<compile_context>
chip_gen: v6e
topology: v6e:2x2x1
jax: 0.10.0
libtpu: 0.0.40
codegen_flags: <defaults>
</compile_context>

<pallas_src>
import functools
import math

import jax
import jax.numpy as jnp
from jax.experimental import pallas as pl
from jax.experimental.pallas import tpu as pltpu


def _capsule_attention_kernel(num_heads, head_dim, num_capsules,
                              x_ref, wqkv_ref, bqkv_ref, wo_ref, bo_ref,
                              o_ref):
    """One grid step: attention for TB batch elements (M = TB*N rows)."""
    M = x_ref.shape[0]
    D = wo_ref.shape[0]
    N = num_capsules
    TB = M // N
    cdt = wqkv_ref.dtype                       # MXU input dtype (f32 or bf16)

    x = x_ref[...].astype(cdt)                 # (M, D)

    # Fused Q/K/V projection: one (M, D) x (D, 3D) MXU matmul, f32 accumulation,
    # f32 bias.  The 1/sqrt(head_dim) score scale is pre-folded into the Q part.
    qkv = jnp.dot(x, wqkv_ref[...],
                  preferred_element_type=jnp.float32) + bqkv_ref[...]   # (M, 3D)
    qkv_c = qkv.astype(cdt)                    # single cast for attention matmuls

    # Stack heads onto the batch axis: (H*TB, N, hd), head h occupies rows
    # [h*TB:(h+1)*TB].  Heads live on the lane axis of qkv, so some relayout is
    # unavoidable; leading-dim reshapes + one concat are the Mosaic-safe way.
    def split_heads(col0):
        return jnp.concatenate(
            [qkv_c[:, col0 + h * head_dim: col0 + (h + 1) * head_dim]
             .reshape(TB, N, head_dim) for h in range(num_heads)], axis=0)

    qh = split_heads(0)
    kh = split_heads(D)
    vh = split_heads(2 * D)

    # One batched score matmul + one softmax + one batched context matmul for
    # all heads and all TB batch elements at once.
    s = jnp.einsum("bnd,bmd->bnm", qh, kh,
                   preferred_element_type=jnp.float32)          # (H*TB, N, N)
    # TODO(synk): optional attention mask not wired in (module passes mask=None).
    s_max = jnp.max(s, axis=-1, keepdims=True)
    e = jnp.exp(s - s_max)
    p = e / jnp.sum(e, axis=-1, keepdims=True)                  # exact softmax

    ctx = jnp.einsum("bnm,bmd->bnd", p.astype(cdt), vh,
                     preferred_element_type=jnp.float32)        # (H*TB, N, hd)

    # concat_h(ctx_h) -> (M, D), then one (M, D) x (D, D) output matmul.
    attended = jnp.concatenate(
        [ctx[h * TB:(h + 1) * TB].reshape(M, head_dim)
         for h in range(num_heads)], axis=-1)
    out = jnp.dot(attended.astype(cdt), wo_ref[...],
                  preferred_element_type=jnp.float32) + bo_ref[...]
    o_ref[...] = out.astype(o_ref.dtype)


def _default_grid_steps():
    """>=2 parallel grid steps on v7x (2 TensorCores), 1 big step otherwise."""
    try:
        kind = jax.devices()[0].device_kind.lower()
    except Exception:
        return 1
    return 2 if "v7" in kind else 1


def _pick_batch_tile(B, N, target_steps, max_rows=1024):
    """Largest divisor TB of B (TB*N rows/step, <= max_rows, sublane-aligned)
    that still yields at least `target_steps` grid steps when possible."""
    cands = [d for d in range(1, B + 1)
             if B % d == 0 and d * N <= max_rows
             and (d == B or (d * N) % 8 == 0)]
    if not cands:
        return B
    for d in sorted(cands, reverse=True):
        if B // d >= target_steps:
            return d
    return max(cands)


def capsule_attention(capsules, wq, bq, wk, bk, wv, bv, wo, bo, *, num_heads,
                      compute_dtype=jnp.float32, batch_tile=None):
    """capsules: [B, N, D] float32 -> attended capsules [B, N, D] float32."""
    B, N, D = capsules.shape
    assert D % num_heads == 0
    head_dim = D // num_heads
    scale = 1.0 / math.sqrt(head_dim)

    # Fold the score scale into the Q projection; fuse Q/K/V weights + biases.
    wqkv = jnp.concatenate([wq * scale, wk, wv], axis=1).astype(compute_dtype)
    bqkv = jnp.concatenate([bq * scale, bk, bv]).reshape(1, 3 * D).astype(jnp.float32)
    wo_c = wo.astype(compute_dtype)
    bo2 = bo.reshape(1, D).astype(jnp.float32)

    TB = batch_tile if batch_tile is not None else _pick_batch_tile(
        B, N, _default_grid_steps())
    assert B % TB == 0
    M = TB * N
    grid = (B // TB,)

    # Flatten (B, N, D) -> (B*N, D): each grid step loads / stores one
    # contiguous (TB*N, D) slab, no in-kernel input reshape needed.
    x2 = capsules.reshape(B * N, D)

    row_spec = pl.BlockSpec((M, D), lambda b: (b, 0))
    in_specs = [
        row_spec,                                    # capsule rows
        pl.BlockSpec((D, 3 * D), lambda b: (0, 0)),  # fused Wqkv
        pl.BlockSpec((1, 3 * D), lambda b: (0, 0)),  # fused bqkv
        pl.BlockSpec((D, D), lambda b: (0, 0)),      # Wo
        pl.BlockSpec((1, D), lambda b: (0, 0)),      # bo
    ]

    kernel = functools.partial(_capsule_attention_kernel, num_heads, head_dim, N)

    wbytes = jnp.dtype(compute_dtype).itemsize
    cost = pl.CostEstimate(
        flops=B * (8 * N * D * D + 4 * N * N * D),
        transcendentals=B * num_heads * N * N,
        bytes_accessed=(2 * B * N * D * capsules.dtype.itemsize
                        + 4 * D * D * wbytes + 4 * D * 4))

    out2 = pl.pallas_call(
        kernel,
        out_shape=jax.ShapeDtypeStruct((B * N, D), capsules.dtype),
        grid_spec=pltpu.PrefetchScalarGridSpec(
            num_scalar_prefetch=0,
            grid=grid,
            in_specs=in_specs,
            out_specs=row_spec),
        compiler_params=pltpu.CompilerParams(
            dimension_semantics=("parallel",)),
        cost_estimate=cost,
    )(x2, wqkv, bqkv, wo_c, bo2)

    return out2.reshape(B, N, D)


def _reference(capsules, wq, bq, wk, bk, wv, bv, wo, bo, *, num_heads):
    """Pure-JAX reference at full f32 matmul precision."""
    B, N, D = capsules.shape
    hd = D // num_heads
    with jax.default_matmul_precision("float32"):
        q = capsules @ wq + bq
        k = capsules @ wk + bk
        v = capsules @ wv + bv
        split = lambda t: t.reshape(B, N, num_heads, hd).transpose(0, 2, 1, 3)
        qh, kh, vh = split(q), split(k), split(v)
        s = jnp.einsum("bhnd,bhmd->bhnm", qh, kh) / math.sqrt(hd)
        p = jax.nn.softmax(s, axis=-1)
        o = jnp.einsum("bhnm,bhmd->bhnd", p, vh)
        o = o.transpose(0, 2, 1, 3).reshape(B, N, D)
        return o @ wo + bo


if __name__ == "__main__":
    # batch=16, num_capsules=8, capsule_dim=32, heads=4 -> 128 capsule rows
    # total: one 128-row grid step (single-TC chips) or two 64-row steps (v7x).
    B, N, D, H = 16, 8, 32, 4

    key = jax.random.PRNGKey(0)
    keys = jax.random.split(key, 9)
    wscale = 1.0 / math.sqrt(D)

    capsules = jax.random.normal(keys[0], (B, N, D), dtype=jnp.float32)
    wq = jax.random.normal(keys[1], (D, D), dtype=jnp.float32) * wscale
    wk = jax.random.normal(keys[2], (D, D), dtype=jnp.float32) * wscale
    wv = jax.random.normal(keys[3], (D, D), dtype=jnp.float32) * wscale
    wo = jax.random.normal(keys[4], (D, D), dtype=jnp.float32) * wscale
    bq = jax.random.normal(keys[5], (D,), dtype=jnp.float32) * 0.01
    bk = jax.random.normal(keys[6], (D,), dtype=jnp.float32) * 0.01
    bv = jax.random.normal(keys[7], (D,), dtype=jnp.float32) * 0.01
    bo = jax.random.normal(keys[8], (D,), dtype=jnp.float32) * 0.01

    ref = _reference(capsules, wq, bq, wk, bk, wv, bv, wo, bo, num_heads=H)

    # Default (f32) path.  On real TPUs the kernel's f32 matmuls run at DEFAULT
    # precision (bf16-rounded MXU inputs, f32 accumulation), while the reference
    # above is full f32 -> allow ~1.5e-2 of bf16-input rounding (outputs are
    # O(1) here); under the CPU interpreter the error is ~1e-6.
    out_f32 = capsule_attention(capsules, wq, bq, wk, bk, wv, bv, wo, bo,
                                num_heads=H)
    out_f32 = jax.block_until_ready(out_f32)
    assert out_f32.shape == (B, N, D)
    err_f32 = float(jnp.max(jnp.abs(out_f32 - ref)))
    assert err_f32 < 3e-2, f"f32 kernel mismatch vs reference (max abs err {err_f32})"

    # Optional bf16 MXU path (f32 accumulation): loose numeric sanity check.
    out_bf16 = capsule_attention(capsules, wq, bq, wk, bk, wv, bv, wo, bo,
                                 num_heads=H, compute_dtype=jnp.bfloat16)
    out_bf16 = jax.block_until_ready(out_bf16)
    assert out_bf16.shape == (B, N, D)
    err_bf16 = float(jnp.max(jnp.abs(out_bf16 - ref)))
    assert err_bf16 < 0.3, f"bf16 kernel drifted too far (max abs err {err_bf16})"

    print("KERNEL_OK")
</pallas_src>

<mosaic_0001>
module attributes {stable_mosaic.version = 11 : i64} {
  func.func @_capsule_attention_kernel(%arg0: i32, %arg1: memref<128x32xf32, #tpu.memory_space<vmem>>, %arg2: memref<32x96xf32, #tpu.memory_space<vmem>>, %arg3: memref<1x96xf32, #tpu.memory_space<vmem>>, %arg4: memref<32x32xf32, #tpu.memory_space<vmem>>, %arg5: memref<1x32xf32, #tpu.memory_space<vmem>>, %arg6: memref<128x32xf32, #tpu.memory_space<vmem>>) attributes {dimension_semantics = [#tpu.dimension_semantics<parallel>], iteration_bounds = array<i64: 1>, scalar_prefetch = 0 : i64, scratch_operands = 0 : i64, tpu.core_type = #tpu.core_type<tc>, window_params = [{transform_indices = @transform_0, window_bounds = array<i64: 128, 32>}, {pipeline_mode = #tpu.pipeline_mode<synchronous>, transform_indices = @transform_1, window_bounds = array<i64: 32, 96>}, {pipeline_mode = #tpu.pipeline_mode<synchronous>, transform_indices = @transform_2, window_bounds = array<i64: 1, 96>}, {pipeline_mode = #tpu.pipeline_mode<synchronous>, transform_indices = @transform_3, window_bounds = array<i64: 32, 32>}, {pipeline_mode = #tpu.pipeline_mode<synchronous>, transform_indices = @transform_4, window_bounds = array<i64: 1, 32>}, {transform_indices = @transform_5, window_bounds = array<i64: 128, 32>}]} {
    %c0 = arith.constant 0 : index
    %c0_0 = arith.constant 0 : index
    %0 = vector.load %arg1[%c0, %c0_0] : memref<128x32xf32, #tpu.memory_space<vmem>>, vector<128x32xf32>
    %c0_1 = arith.constant 0 : index
    %c0_2 = arith.constant 0 : index
    %1 = vector.load %arg2[%c0_1, %c0_2] : memref<32x96xf32, #tpu.memory_space<vmem>>, vector<32x96xf32>
    %cst = arith.constant dense<0.000000e+00> : vector<128x96xf32>
    %2 = tpu.matmul %0, %1, %cst {dimension_numbers = #tpu.dot_dimension_numbers<[1], [0], [0], [1], [0, 0, 1, 1], [], []>} : vector<128x32xf32>, vector<32x96xf32>, vector<128x96xf32> -> vector<128x96xf32>
    %c0_3 = arith.constant 0 : index
    %c0_4 = arith.constant 0 : index
    %3 = vector.load %arg3[%c0_3, %c0_4] : memref<1x96xf32, #tpu.memory_space<vmem>>, vector<1x96xf32>
    %4 = vector.broadcast %3 : vector<1x96xf32> to vector<128x96xf32>
    %5 = arith.addf %2, %4 : vector<128x96xf32>
    %6 = vector.extract_strided_slice %5 {offsets = [0, 0], sizes = [128, 8], strides = [1, 1]} : vector<128x96xf32> to vector<128x8xf32>
    %7 = vector.shape_cast %6 : vector<128x8xf32> to vector<16x8x8xf32>
    %8 = vector.extract_strided_slice %5 {offsets = [0, 8], sizes = [128, 8], strides = [1, 1]} : vector<128x96xf32> to vector<128x8xf32>
    %9 = vector.shape_cast %8 : vector<128x8xf32> to vector<16x8x8xf32>
    %10 = vector.extract_strided_slice %5 {offsets = [0, 16], sizes = [128, 8], strides = [1, 1]} : vector<128x96xf32> to vector<128x8xf32>
    %11 = vector.shape_cast %10 : vector<128x8xf32> to vector<16x8x8xf32>
    %12 = vector.extract_strided_slice %5 {offsets = [0, 24], sizes = [128, 8], strides = [1, 1]} : vector<128x96xf32> to vector<128x8xf32>
    %13 = vector.shape_cast %12 : vector<128x8xf32> to vector<16x8x8xf32>
    %14 = tpu.concatenate %7, %9, %11, %13 in 0 : vector<16x8x8xf32>, vector<16x8x8xf32>, vector<16x8x8xf32>, vector<16x8x8xf32> -> vector<64x8x8xf32>
    %15 = vector.extract_strided_slice %5 {offsets = [0, 32], sizes = [128, 8], strides = [1, 1]} : vector<128x96xf32> to vector<128x8xf32>
    %16 = vector.shape_cast %15 : vector<128x8xf32> to vector<16x8x8xf32>
    %17 = vector.extract_strided_slice %5 {offsets = [0, 40], sizes = [128, 8], strides = [1, 1]} : vector<128x96xf32> to vector<128x8xf32>
    %18 = vector.shape_cast %17 : vector<128x8xf32> to vector<16x8x8xf32>
    %19 = vector.extract_strided_slice %5 {offsets = [0, 48], sizes = [128, 8], strides = [1, 1]} : vector<128x96xf32> to vector<128x8xf32>
    %20 = vector.shape_cast %19 : vector<128x8xf32> to vector<16x8x8xf32>
    %21 = vector.extract_strided_slice %5 {offsets = [0, 56], sizes = [128, 8], strides = [1, 1]} : vector<128x96xf32> to vector<128x8xf32>
    %22 = vector.shape_cast %21 : vector<128x8xf32> to vector<16x8x8xf32>
    %23 = tpu.concatenate %16, %18, %20, %22 in 0 : vector<16x8x8xf32>, vector<16x8x8xf32>, vector<16x8x8xf32>, vector<16x8x8xf32> -> vector<64x8x8xf32>
    %24 = vector.extract_strided_slice %5 {offsets = [0, 64], sizes = [128, 8], strides = [1, 1]} : vector<128x96xf32> to vector<128x8xf32>
    %25 = vector.shape_cast %24 : vector<128x8xf32> to vector<16x8x8xf32>
    %26 = vector.extract_strided_slice %5 {offsets = [0, 72], sizes = [128, 8], strides = [1, 1]} : vector<128x96xf32> to vector<128x8xf32>
    %27 = vector.shape_cast %26 : vector<128x8xf32> to vector<16x8x8xf32>
    %28 = vector.extract_strided_slice %5 {offsets = [0, 80], sizes = [128, 8], strides = [1, 1]} : vector<128x96xf32> to vector<128x8xf32>
    %29 = vector.shape_cast %28 : vector<128x8xf32> to vector<16x8x8xf32>
    %30 = vector.extract_strided_slice %5 {offsets = [0, 88], sizes = [128, 8], strides = [1, 1]} : vector<128x96xf32> to vector<128x8xf32>
    %31 = vector.shape_cast %30 : vector<128x8xf32> to vector<16x8x8xf32>
    %32 = tpu.concatenate %25, %27, %29, %31 in 0 : vector<16x8x8xf32>, vector<16x8x8xf32>, vector<16x8x8xf32>, vector<16x8x8xf32> -> vector<64x8x8xf32>
    "tpu.trace_start"() <{level = 10 : i32, message = "bnd,bmd->bnm"}> : () -> ()
    %cst_5 = arith.constant dense<0.000000e+00> : vector<64x8x8xf32>
    %33 = tpu.matmul %14, %23, %cst_5 {dimension_numbers = #tpu.dot_dimension_numbers<[2], [2], [1], [1], [0, 0, 0, 1, 1, 1], [0], [0]>} : vector<64x8x8xf32>, vector<64x8x8xf32>, vector<64x8x8xf32> -> vector<64x8x8xf32>
    "tpu.trace_stop"() : () -> ()
    %cst_6 = arith.constant dense<0xFF800000> : vector<64x8xf32>
    %34 = vector.multi_reduction <maximumf>, %33, %cst_6 [2] : vector<64x8x8xf32> to vector<64x8xf32>
    %35 = vector.shape_cast %34 : vector<64x8xf32> to vector<64x8x1xf32>
    %36 = vector.broadcast %35 : vector<64x8x1xf32> to vector<64x8x8xf32>
    %37 = arith.subf %33, %36 : vector<64x8x8xf32>
    %38 = math.exp %37 : vector<64x8x8xf32>
    %cst_7 = arith.constant dense<0.000000e+00> : vector<64x8xf32>
    %39 = vector.multi_reduction <add>, %38, %cst_7 [2] : vector<64x8x8xf32> to vector<64x8xf32>
    %40 = vector.shape_cast %39 : vector<64x8xf32> to vector<64x8x1xf32>
    %41 = vector.broadcast %40 : vector<64x8x1xf32> to vector<64x8x8xf32>
    %42 = arith.divf %38, %41 : vector<64x8x8xf32>
    "tpu.trace_start"() <{level = 10 : i32, message = "bnm,bmd->bnd"}> : () -> ()
    %cst_8 = arith.constant dense<0.000000e+00> : vector<64x8x8xf32>
    %43 = tpu.matmul %42, %32, %cst_8 {dimension_numbers = #tpu.dot_dimension_numbers<[2], [1], [1], [2], [0, 0, 0, 1, 1, 2], [0], [0]>} : vector<64x8x8xf32>, vector<64x8x8xf32>, vector<64x8x8xf32> -> vector<64x8x8xf32>
    "tpu.trace_stop"() : () -> ()
    %44 = vector.extract_strided_slice %43 {offsets = [0, 0, 0], sizes = [16, 8, 8], strides = [1, 1, 1]} : vector<64x8x8xf32> to vector<16x8x8xf32>
    %45 = vector.shape_cast %44 : vector<16x8x8xf32> to vector<128x8xf32>
    %46 = vector.extract_strided_slice %43 {offsets = [16, 0, 0], sizes = [16, 8, 8], strides = [1, 1, 1]} : vector<64x8x8xf32> to vector<16x8x8xf32>
    %47 = vector.shape_cast %46 : vector<16x8x8xf32> to vector<128x8xf32>
    %48 = vector.extract_strided_slice %43 {offsets = [32, 0, 0], sizes = [16, 8, 8], strides = [1, 1, 1]} : vector<64x8x8xf32> to vector<16x8x8xf32>
    %49 = vector.shape_cast %48 : vector<16x8x8xf32> to vector<128x8xf32>
    %50 = vector.extract_strided_slice %43 {offsets = [48, 0, 0], sizes = [16, 8, 8], strides = [1, 1, 1]} : vector<64x8x8xf32> to vector<16x8x8xf32>
    %51 = vector.shape_cast %50 : vector<16x8x8xf32> to vector<128x8xf32>
    %52 = tpu.concatenate %45, %47, %49, %51 in 1 : vector<128x8xf32>, vector<128x8xf32>, vector<128x8xf32>, vector<128x8xf32> -> vector<128x32xf32>
    %c0_9 = arith.constant 0 : index
    %c0_10 = arith.constant 0 : index
    %53 = vector.load %arg4[%c0_9, %c0_10] : memref<32x32xf32, #tpu.memory_space<vmem>>, vector<32x32xf32>
    %cst_11 = arith.constant dense<0.000000e+00> : vector<128x32xf32>
    %54 = tpu.matmul %52, %53, %cst_11 {dimension_numbers = #tpu.dot_dimension_numbers<[1], [0], [0], [1], [0, 0, 1, 1], [], []>} : vector<128x32xf32>, vector<32x32xf32>, vector<128x32xf32> -> vector<128x32xf32>
    %c0_12 = arith.constant 0 : index
    %c0_13 = arith.constant 0 : index
    %55 = vector.load %arg5[%c0_12, %c0_13] : memref<1x32xf32, #tpu.memory_space<vmem>>, vector<1x32xf32>
    %56 = vector.broadcast %55 : vector<1x32xf32> to vector<128x32xf32>
    %57 = arith.addf %54, %56 : vector<128x32xf32>
    %c0_14 = arith.constant 0 : index
    %c0_15 = arith.constant 0 : index
    %58 = vector.load %arg6[%c0_14, %c0_15] : memref<128x32xf32, #tpu.memory_space<vmem>>, vector<128x32xf32>
    tpu.vector_store %arg6[%c0_14, %c0_15], %57 {strides = array<i32>} : memref<128x32xf32, #tpu.memory_space<vmem>>, vector<128x32xf32>,
    return
  }
  func.func @transform_0(%arg0: i32) -> (i32, i32) {
    %c0_i32 = arith.constant 0 : i32
    %c0_i32_0 = arith.constant 0 : i32
    return %arg0, %c0_i32 : i32, i32
  }
  func.func @transform_1(%arg0: i32) -> (i32, i32) {
    %c0_i32 = arith.constant 0 : i32
    %c0_i32_0 = arith.constant 0 : i32
    %c0_i32_1 = arith.constant 0 : i32
    return %c0_i32, %c0_i32_0 : i32, i32
  }
  func.func @transform_2(%arg0: i32) -> (i32, i32) {
    %c0_i32 = arith.constant 0 : i32
    %c0_i32_0 = arith.constant 0 : i32
    %c0_i32_1 = arith.constant 0 : i32
    return %c0_i32, %c0_i32_0 : i32, i32
  }
  func.func @transform_3(%arg0: i32) -> (i32, i32) {
    %c0_i32 = arith.constant 0 : i32
    %c0_i32_0 = arith.constant 0 : i32
    %c0_i32_1 = arith.constant 0 : i32
    return %c0_i32, %c0_i32_0 : i32, i32
  }
  func.func @transform_4(%arg0: i32) -> (i32, i32) {
    %c0_i32 = arith.constant 0 : i32
    %c0_i32_0 = arith.constant 0 : i32
    %c0_i32_1 = arith.constant 0 : i32
    return %c0_i32, %c0_i32_0 : i32, i32
  }
  func.func @transform_5(%arg0: i32) -> (i32, i32) {
    %c0_i32 = arith.constant 0 : i32
    %c0_i32_0 = arith.constant 0 : i32
    return %arg0, %c0_i32 : i32, i32
  }
}

</mosaic_0001>

<llo_original>
// kernel: tpu_custom_call.1
$region0: #{tpu_custom_call.1}
  #allocation0 [shape = 'u32[]', space=smem, size = 0x4, offset = 0x4, fixed_abs, tag = 'smem constant byte address 0x4 - core index']
  #allocation1 [shape = 'u32[144,128]{1,0:T(1,128)}', space=vmem, size = 0x12000, scoped, tag = 'internal scratch']
  %s0 = inlined_call_operand.vmem [shape: f32[128,32], index: 0, kind: input, shape index: {}]
  %s1 = inlined_call_operand.vmem [shape: f32[32,96], index: 1, kind: input, shape index: {}]
  %s2 = inlined_call_operand.vmem [shape: f32[1,96], index: 2, kind: input, shape index: {}]
  %s3 = inlined_call_operand.vmem [shape: f32[32,32], index: 3, kind: input, shape index: {}]
  %s4 = inlined_call_operand.vmem [shape: f32[1,32], index: 4, kind: input, shape index: {}]
  %s5 = inlined_call_operand.vmem [shape: f32[128,32], index: 5, kind: output, shape index: {}]
  %s6 = sld [smem:[#allocation0]]
  $region30: #{tpu_custom_call.1} parent=0
    _
  %s8 = ssub.s32 1, %s6
  %s9 = scalar_select 0, %s8, %s6
  // Predicated region
  $region2: #{tpu_custom_call.1} parent=0 // pred_check
    _
  $region3: #{tpu_custom_call.1} parent=0 // pred_check_branch
    %11 = sbr.rel (0) target = $region5
  $region4: #{tpu_custom_call.1} parent=0 // pred_region
    _
  $region5: #{tpu_custom_call.1} parent=0 // pred_fallthru
    _
  // Predicated region
  $region6: #{tpu_custom_call.1} parent=0 // pred_check
    _
  $region7: #{tpu_custom_call.1} parent=0 // pred_check_branch
    %13 = sbr.rel (0) target = $region9
  $region8: #{tpu_custom_call.1} parent=0 // pred_region
    _
  $region9: #{tpu_custom_call.1} parent=0 // pred_fallthru
    _
  // Predicated region
  $region10: #{tpu_custom_call.1} parent=0 // pred_check
    _
  $region11: #{tpu_custom_call.1} parent=0 // pred_check_branch
    %15 = sbr.rel (0) target = $region13
  $region12: #{tpu_custom_call.1} parent=0 // pred_region
    _
  $region13: #{tpu_custom_call.1} parent=0 // pred_fallthru
    _
  // Predicated region
  $region14: #{tpu_custom_call.1} parent=0 // pred_check
    _
  $region15: #{tpu_custom_call.1} parent=0 // pred_check_branch
    %17 = sbr.rel (0) target = $region17
  $region16: #{tpu_custom_call.1} parent=0 // pred_region
    _
  $region17: #{tpu_custom_call.1} parent=0 // pred_fallthru
    _
  // Predicated region
  $region18: #{tpu_custom_call.1} parent=0 // pred_check
    _
  $region19: #{tpu_custom_call.1} parent=0 // pred_check_branch
    %19 = sbr.rel (0) target = $region21
  $region20: #{tpu_custom_call.1} parent=0 // pred_region
    _
  $region21: #{tpu_custom_call.1} parent=0 // pred_fallthru
    _
  %v20 = vld [vmem:[%s0] sm:$0xff]
  %v21 = vld [vmem:[%s0 + $0x8] sm:$0xff]
  %v22 = vld [vmem:[%s0 + $0x10] sm:$0xff]
  %v23 = vld [vmem:[%s0 + $0x18] sm:$0xff]
  %v24 = vld [vmem:[%s0 + $0x20] sm:$0xff]
  %v25 = vld [vmem:[%s0 + $0x28] sm:$0xff]
  %v26 = vld [vmem:[%s0 + $0x30] sm:$0xff]
  %v27 = vld [vmem:[%s0 + $0x38] sm:$0xff]
  %v28 = vld [vmem:[%s0 + $0x40] sm:$0xff]
  %v29 = vld [vmem:[%s0 + $0x48] sm:$0xff]
  %v30 = vld [vmem:[%s0 + $0x50] sm:$0xff]
  %v31 = vld [vmem:[%s0 + $0x58] sm:$0xff]
  %v32 = vld [vmem:[%s0 + $0x60] sm:$0xff]
  %v33 = vld [vmem:[%s0 + $0x68] sm:$0xff]
  %v34 = vld [vmem:[%s0 + $0x70] sm:$0xff]
  %v35 = vld [vmem:[%s0 + $0x78] sm:$0xff]
  %v36 = vld [vmem:[%s1] sm:$0xff]
  %v37 = vld [vmem:[%s1 + $0x8] sm:$0xff]
  %v38 = vld [vmem:[%s1 + $0x10] sm:$0xff]
  %v39 = vld [vmem:[%s1 + $0x18] sm:$0xff]
  %v40 = vld [vmem:[%s2] sm:$0x1]
  %v42 = vlaneseq
  %v43 = vshrl.u32 %v42, 7
  %v44 = vsub.s32 0, %v43
  %v45 = vrot.slane %v40, %v44
  %vm47 = vcmask 261120
  %v49 = vsel %vm47, %v20, 0
  %v52 = vsel %vm47, %v21, 0
  %v55 = vsel %vm47, %v22, 0
  %v58 = vsel %vm47, %v23, 0
  %v61 = vsel %vm47, %v24, 0
  %v64 = vsel %vm47, %v25, 0
  %v67 = vsel %vm47, %v26, 0
  %v70 = vsel %vm47, %v27, 0
  %v73 = vsel %vm47, %v28, 0
  %v76 = vsel %vm47, %v29, 0
  %v79 = vsel %vm47, %v30, 0
  %v82 = vsel %vm47, %v31, 0
  %v85 = vsel %vm47, %v32, 0
  %v88 = vsel %vm47, %v33, 0
  %v91 = vsel %vm47, %v34, 0
  %v94 = vsel %vm47, %v35, 0
  %96 = vmatprep.subr.mxu0 0.0
  %97 = vmatpush1.msra.mxu0 0.0
  %98 = vmatprep.subr.mxu0 0.0
  %99 = vmatpush1.msra.mxu0 0.0
  %100 = vmatprep.subr.mxu0 0.0
  %101 = vmatpush1.msra.mxu0 0.0
  %102 = vmatprep.subr.mxu0 0.0
  %103 = vmatpush1.msra.mxu0 0.0
  %104 = vmatprep.subr.mxu0 0.0
  %105 = vmatpush1.msra.mxu0 0.0
  %106 = vmatprep.subr.mxu0 0.0
  %107 = vmatpush1.msra.mxu0 0.0
  %108 = vmatprep.subr.mxu0 0.0
  %109 = vmatpush1.msra.mxu0 0.0
  %110 = vmatprep.subr.mxu0 0.0
  %111 = vmatpush1.msra.mxu0 0.0
  %112 = vmatprep.subr.mxu0 0.0
  %113 = vmatpush1.msra.mxu0 0.0
  %114 = vmatprep.subr.mxu0 0.0
  %115 = vmatpush1.msra.mxu0 0.0
  %116 = vmatprep.subr.mxu0 0.0
  %117 = vmatpush1.msra.mxu0 0.0
  %118 = vmatprep.subr.mxu0 0.0
  %119 = vmatpush1.msra.mxu0 0.0
  %120 = vmatprep.subr.mxu0 0.0
  %121 = vmatpush1.msra.mxu0 %v39
  %122 = vmatprep.subr.mxu0 0.0
  %123 = vmatpush1.msra.mxu0 %v38
  %124 = vmatprep.subr.mxu0 0.0
  %125 = vmatpush1.msra.mxu0 %v37
  %126 = vmatprep.subr.mxu0 0.0
  %127 = vmatpush1.msra.mxu0 %v36
  %128 = vmatprep.subr.mxu0 0.0
  %129 = vmatpush2.msra.mxu0 0.0
  %130 = vmatprep.subr.mxu0 0.0
  %131 = vmatpush2.msra.mxu0 0.0
  %132 = vmatprep.subr.mxu0 0.0
  %133 = vmatpush2.msra.mxu0 0.0
  %134 = vmatprep.subr.mxu0 0.0
  %135 = vmatpush2.msra.mxu0 0.0
  %136 = vmatprep.subr.mxu0 0.0
  %137 = vmatpush2.msra.mxu0 0.0
  %138 = vmatprep.subr.mxu0 0.0
  %139 = vmatpush2.msra.mxu0 0.0
  %140 = vmatprep.subr.mxu0 0.0
  %141 = vmatpush2.msra.mxu0 0.0
  %142 = vmatprep.subr.mxu0 0.0
  %143 = vmatpush2.msra.mxu0 0.0
  %144 = vmatprep.subr.mxu0 0.0
  %145 = vmatpush2.msra.mxu0 0.0
  %146 = vmatprep.subr.mxu0 0.0
  %147 = vmatpush2.msra.mxu0 0.0
  %148 = vmatprep.subr.mxu0 0.0
  %149 = vmatpush2.msra.mxu0 0.0
  %150 = vmatprep.subr.mxu0 0.0
  %151 = vmatpush2.msra.mxu0 0.0
  %152 = vmatprep.subr.mxu0 0.0
  %153 = vmatpush2.msra.mxu0 0.0
  %154 = vmatprep.subr.mxu0 0.0
  %155 = vmatpush2.msra.mxu0 0.0
  %156 = vmatprep.subr.mxu0 0.0
  %157 = vmatpush2.msra.mxu0 0.0
  %158 = vmatprep.subr.mxu0 0.0
  %159 = vmatpush2.msra.mxu0 0.0
  %160 = vmatprep.mubr.f32.mxu0 0.0
  %161 = vmatmul.mubr.f32.gmra.mxu0 %v49
  %v162 = vpop.f32.mrf.mxu0
  %v163 = vadd.f32 %v45, %v162
  %v164 = vpop.f32.mrf.mxu0
  %165 = vmatprep.mubr.f32.mxu0 0.0
  %166 = vmatmul.mubr.f32.gmra.mxu0 %v52
  %v167 = vpop.f32.mrf.mxu0
  %v168 = vadd.f32 %v45, %v167
  %v169 = vpop.f32.mrf.mxu0
  %170 = vmatprep.mubr.f32.mxu0 0.0
  %171 = vmatmul.mubr.f32.gmra.mxu0 %v55
  %v172 = vpop.f32.mrf.mxu0
  %v173 = vadd.f32 %v45, %v172
  %v174 = vpop.f32.mrf.mxu0
  %175 = vmatprep.mubr.f32.mxu0 0.0
  %176 = vmatmul.mubr.f32.gmra.mxu0 %v58
  %v177 = vpop.f32.mrf.mxu0
  %v178 = vadd.f32 %v45, %v177
  %v179 = vpop.f32.mrf.mxu0
  %180 = vmatprep.mubr.f32.mxu0 0.0
  %181 = vmatmul.mubr.f32.gmra.mxu0 %v61
  %v182 = vpop.f32.mrf.mxu0
  %v183 = vadd.f32 %v45, %v182
  %v184 = vpop.f32.mrf.mxu0
  %185 = vmatprep.mubr.f32.mxu0 0.0
  %186 = vmatmul.mubr.f32.gmra.mxu0 %v64
  %v187 = vpop.f32.mrf.mxu0
  %v188 = vadd.f32 %v45, %v187
  %v189 = vpop.f32.mrf.mxu0
  %190 = vmatprep.mubr.f32.mxu0 0.0
  %191 = vmatmul.mubr.f32.gmra.mxu0 %v67
  %v192 = vpop.f32.mrf.mxu0
  %v193 = vadd.f32 %v45, %v192
  %v194 = vpop.f32.mrf.mxu0
  %195 = vmatprep.mubr.f32.mxu0 0.0
  %196 = vmatmul.mubr.f32.gmra.mxu0 %v70
  %v197 = vpop.f32.mrf.mxu0
  %v198 = vadd.f32 %v45, %v197
  %v199 = vpop.f32.mrf.mxu0
  %200 = vmatprep.mubr.f32.mxu0 0.0
  %201 = vmatmul.mubr.f32.gmra.mxu0 %v73
  %v202 = vpop.f32.mrf.mxu0
  %v203 = vadd.f32 %v45, %v202
  %v204 = vpop.f32.mrf.mxu0
  %205 = vmatprep.mubr.f32.mxu0 0.0
  %206 = vmatmul.mubr.f32.gmra.mxu0 %v76
  %v207 = vpop.f32.mrf.mxu0
  %v208 = vadd.f32 %v45, %v207
  %v209 = vpop.f32.mrf.mxu0
  %210 = vmatprep.mubr.f32.mxu0 0.0
  %211 = vmatmul.mubr.f32.gmra.mxu0 %v79
  %v212 = vpop.f32.mrf.mxu0
  %v213 = vadd.f32 %v45, %v212
  %v214 = vpop.f32.mrf.mxu0
  %215 = vmatprep.mubr.f32.mxu0 0.0
  %216 = vmatmul.mubr.f32.gmra.mxu0 %v82
  %v217 = vpop.f32.mrf.mxu0
  %v218 = vadd.f32 %v45, %v217
  %v219 = vpop.f32.mrf.mxu0
  %220 = vmatprep.mubr.f32.mxu0 0.0
  %221 = vmatmul.mubr.f32.gmra.mxu0 %v85
  %v222 = vpop.f32.mrf.mxu0
  %v223 = vadd.f32 %v45, %v222
  %v224 = vpop.f32.mrf.mxu0
  %225 = vmatprep.mubr.f32.mxu0 0.0
  %226 = vmatmul.mubr.f32.gmra.mxu0 %v88
  %v227 = vpop.f32.mrf.mxu0
  %v228 = vadd.f32 %v45, %v227
  %v229 = vpop.f32.mrf.mxu0
  %230 = vmatprep.mubr.f32.mxu0 0.0
  %231 = vmatmul.mubr.f32.gmra.mxu0 %v91
  %v232 = vpop.f32.mrf.mxu0
  %v233 = vadd.f32 %v45, %v232
  %v234 = vpop.f32.mrf.mxu0
  %235 = vmatprep.mubr.f32.mxu0 0.0
  %236 = vmatmul.mubr.f32.gmra.mxu0 %v94
  %v237 = vpop.f32.mrf.mxu0
  %v238 = vadd.f32 %v45, %v237
  %v239 = vpop.f32.mrf.mxu0
  %240 = vdwg.mxu0
  %257 = vrot.lane.b32.xlu0 %v163, 120
  %v258 = vpop.permute.xlu0 %257
  %259 = vrot.lane.b32.xlu0 %v168, 120
  %v260 = vpop.permute.xlu0 %259
  %261 = vrot.lane.b32.xlu0 %v173, 120
  %v262 = vpop.permute.xlu0 %261
  %263 = vrot.lane.b32.xlu0 %v178, 120
  %v264 = vpop.permute.xlu0 %263
  %265 = vrot.lane.b32.xlu0 %v183, 120
  %v266 = vpop.permute.xlu0 %265
  %267 = vrot.lane.b32.xlu0 %v188, 120
  %v268 = vpop.permute.xlu0 %267
  %269 = vrot.lane.b32.xlu0 %v193, 120
  %v270 = vpop.permute.xlu0 %269
  %271 = vrot.lane.b32.xlu0 %v198, 120
  %v272 = vpop.permute.xlu0 %271
  %273 = vrot.lane.b32.xlu0 %v203, 120
  %v274 = vpop.permute.xlu0 %273
  %275 = vrot.lane.b32.xlu0 %v208, 120
  %v276 = vpop.permute.xlu0 %275
  %277 = vrot.lane.b32.xlu0 %v213, 120
  %v278 = vpop.permute.xlu0 %277
  %279 = vrot.lane.b32.xlu0 %v218, 120
  %v280 = vpop.permute.xlu0 %279
  %281 = vrot.lane.b32.xlu0 %v223, 120
  %v282 = vpop.permute.xlu0 %281
  %283 = vrot.lane.b32.xlu0 %v228, 120
  %v284 = vpop.permute.xlu0 %283
  %285 = vrot.lane.b32.xlu0 %v233, 120
  %v286 = vpop.permute.xlu0 %285
  %287 = vrot.lane.b32.xlu0 %v238, 120
  %v288 = vpop.permute.xlu0 %287
  %289 = vrot.lane.b32.xlu0 %v163, 112
  %v290 = vpop.permute.xlu0 %289
  %291 = vrot.lane.b32.xlu0 %v168, 112
  %v292 = vpop.permute.xlu0 %291
  %293 = vrot.lane.b32.xlu0 %v173, 112
  %v294 = vpop.permute.xlu0 %293
  %295 = vrot.lane.b32.xlu0 %v178, 112
  %v296 = vpop.permute.xlu0 %295
  %297 = vrot.lane.b32.xlu0 %v183, 112
  %v298 = vpop.permute.xlu0 %297
  %299 = vrot.lane.b32.xlu0 %v188, 112
  %v300 = vpop.permute.xlu0 %299
  %301 = vrot.lane.b32.xlu0 %v193, 112
  %v302 = vpop.permute.xlu0 %301
  %303 = vrot.lane.b32.xlu0 %v198, 112
  %v304 = vpop.permute.xlu0 %303
  %305 = vrot.lane.b32.xlu0 %v203, 112
  %v306 = vpop.permute.xlu0 %305
  %307 = vrot.lane.b32.xlu0 %v208, 112
  %v308 = vpop.permute.xlu0 %307
  %309 = vrot.lane.b32.xlu0 %v213, 112
  %v310 = vpop.permute.xlu0 %309
  %311 = vrot.lane.b32.xlu0 %v218, 112
  %v312 = vpop.permute.xlu0 %311
  %313 = vrot.lane.b32.xlu0 %v223, 112
  %v314 = vpop.permute.xlu0 %313
  %315 = vrot.lane.b32.xlu0 %v228, 112
  %v316 = vpop.permute.xlu0 %315
  %317 = vrot.lane.b32.xlu0 %v233, 112
  %v318 = vpop.permute.xlu0 %317
  %319 = vrot.lane.b32.xlu0 %v238, 112
  %v320 = vpop.permute.xlu0 %319
  %321 = vrot.lane.b32.xlu0 %v163, 104
  %v322 = vpop.permute.xlu0 %321
  %323 = vrot.lane.b32.xlu0 %v168, 104
  %v324 = vpop.permute.xlu0 %323
  %325 = vrot.lane.b32.xlu0 %v173, 104
  %v326 = vpop.permute.xlu0 %325
  %327 = vrot.lane.b32.xlu0 %v178, 104
  %v328 = vpop.permute.xlu0 %327
  %329 = vrot.lane.b32.xlu0 %v183, 104
  %v330 = vpop.permute.xlu0 %329
  %331 = vrot.lane.b32.xlu0 %v188, 104
  %v332 = vpop.permute.xlu0 %331
  %333 = vrot.lane.b32.xlu0 %v193, 104
  %v334 = vpop.permute.xlu0 %333
  %335 = vrot.lane.b32.xlu0 %v198, 104
  %v336 = vpop.permute.xlu0 %335
  %337 = vrot.lane.b32.xlu0 %v203, 104
  %v338 = vpop.permute.xlu0 %337
  %339 = vrot.lane.b32.xlu0 %v208, 104
  %v340 = vpop.permute.xlu0 %339
  %341 = vrot.lane.b32.xlu0 %v213, 104
  %v342 = vpop.permute.xlu0 %341
  %343 = vrot.lane.b32.xlu0 %v218, 104
  %v344 = vpop.permute.xlu0 %343
  %345 = vrot.lane.b32.xlu0 %v223, 104
  %v346 = vpop.permute.xlu0 %345
  %347 = vrot.lane.b32.xlu0 %v228, 104
  %v348 = vpop.permute.xlu0 %347
  %349 = vrot.lane.b32.xlu0 %v233, 104
  %v350 = vpop.permute.xlu0 %349
  %351 = vrot.lane.b32.xlu0 %v238, 104
  %v352 = vpop.permute.xlu0 %351
  %353 = vrot.lane.b32.xlu0 %v163, 96
  %v354 = vpop.permute.xlu0 %353
  %vm355 = vcmask 64512
  %v356 = vsel %vm355, %v163, 0
  %v358 = vsel %vm355, %v354, 0
  %360 = vmatprep.subr.mxu0 0.0
  %361 = vmatpush1.xpose.msra.mxu0 0.0
  %362 = vmatprep.subr.mxu0 0.0
  %363 = vmatpush1.xpose.msra.mxu0 0.0
  %364 = vmatprep.subr.mxu0 0.0
  %365 = vmatpush1.xpose.msra.mxu0 0.0
  %366 = vmatprep.subr.mxu0 0.0
  %367 = vmatpush1.xpose.msra.mxu0 0.0
  %368 = vmatprep.subr.mxu0 0.0
  %369 = vmatpush1.xpose.msra.mxu0 0.0
  %370 = vmatprep.subr.mxu0 0.0
  %371 = vmatpush1.xpose.msra.mxu0 0.0
  %372 = vmatprep.subr.mxu0 0.0
  %373 = vmatpush1.xpose.msra.mxu0 0.0
  %374 = vmatprep.subr.mxu0 0.0
  %375 = vmatpush1.xpose.msra.mxu0 0.0
  %376 = vmatprep.subr.mxu0 0.0
  %377 = vmatpush1.xpose.msra.mxu0 0.0
  %378 = vmatprep.subr.mxu0 0.0
  %379 = vmatpush1.xpose.msra.mxu0 0.0
  %380 = vmatprep.subr.mxu0 0.0
  %381 = vmatpush1.xpose.msra.mxu0 0.0
  %382 = vmatprep.subr.mxu0 0.0
  %383 = vmatpush1.xpose.msra.mxu0 0.0
  %384 = vmatprep.subr.mxu0 0.0
  %385 = vmatpush1.xpose.msra.mxu0 0.0
  %386 = vmatprep.subr.mxu0 0.0
  %387 = vmatpush1.xpose.msra.mxu0 0.0
  %388 = vmatprep.subr.mxu0 0.0
  %389 = vmatpush1.xpose.msra.mxu0 0.0
  %390 = vmatprep.subr.mxu0 0.0
  %391 = vmatpush1.xpose.msra.mxu0 %v358
  %392 = vmatprep.subr.mxu0 0.0
  %393 = vmatpush2.xpose.msra.mxu0 0.0
  %394 = vmatprep.subr.mxu0 0.0
  %395 = vmatpush2.xpose.msra.mxu0 0.0
  %396 = vmatprep.subr.mxu0 0.0
  %397 = vmatpush2.xpose.msra.mxu0 0.0
  %398 = vmatprep.subr.mxu0 0.0
  %399 = vmatpush2.xpose.msra.mxu0 0.0
  %400 = vmatprep.subr.mxu0 0.0
  %401 = vmatpush2.xpose.msra.mxu0 0.0
  %402 = vmatprep.subr.mxu0 0.0
  %403 = vmatpush2.xpose.msra.mxu0 0.0
  %404 = vmatprep.subr.mxu0 0.0
  %405 = vmatpush2.xpose.msra.mxu0 0.0
  %406 = vmatprep.subr.mxu0 0.0
  %407 = vmatpush2.xpose.msra.mxu0 0.0
  %408 = vmatprep.subr.mxu0 0.0
  %409 = vmatpush2.xpose.msra.mxu0 0.0
  %410 = vmatprep.subr.mxu0 0.0
  %411 = vmatpush2.xpose.msra.mxu0 0.0
  %412 = vmatprep.subr.mxu0 0.0
  %413 = vmatpush2.xpose.msra.mxu0 0.0
  %414 = vmatprep.subr.mxu0 0.0
  %415 = vmatpush2.xpose.msra.mxu0 0.0
  %416 = vmatprep.subr.mxu0 0.0
  %417 = vmatpush2.xpose.msra.mxu0 0.0
  %418 = vmatprep.subr.mxu0 0.0
  %419 = vmatpush2.xpose.msra.mxu0 0.0
  %420 = vmatprep.subr.mxu0 0.0
  %421 = vmatpush2.xpose.msra.mxu0 0.0
  %422 = vmatprep.subr.mxu0 0.0
  %423 = vmatpush2.xpose.msra.mxu0 0.0
  %424 = vmatprep.mubr.f32.mxu0 0.0
  %425 = vmatmul.mubr.f32.gmra.mxu0 %v356
  %v426 = vpop.f32.mrf.mxu0
  %v427 = vadd.f32 0.0, %v426
  %v428 = vpop.f32.mrf.mxu0
  %429 = vdwg.mxu0
  %430 = vrot.lane.b32.xlu0 %v168, 96
  %v431 = vpop.permute.xlu0 %430
  %v432 = vsel %vm355, %v168, 0
  %v434 = vsel %vm355, %v431, 0
  %436 = vmatprep.subr.mxu0 0.0
  %437 = vmatpush1.xpose.msra.mxu0 0.0
  %438 = vmatprep.subr.mxu0 0.0
  %439 = vmatpush1.xpose.msra.mxu0 0.0
  %440 = vmatprep.subr.mxu0 0.0
  %441 = vmatpush1.xpose.msra.mxu0 0.0
  %442 = vmatprep.subr.mxu0 0.0
  %443 = vmatpush1.xpose.msra.mxu0 0.0
  %444 = vmatprep.subr.mxu0 0.0
  %445 = vmatpush1.xpose.msra.mxu0 0.0
  %446 = vmatprep.subr.mxu0 0.0
  %447 = vmatpush1.xpose.msra.mxu0 0.0
  %448 = vmatprep.subr.mxu0 0.0
  %449 = vmatpush1.xpose.msra.mxu0 0.0
  %450 = vmatprep.subr.mxu0 0.0
  %451 = vmatpush1.xpose.msra.mxu0 0.0
  %452 = vmatprep.subr.mxu0 0.0
  %453 = vmatpush1.xpose.msra.mxu0 0.0
  %454 = vmatprep.subr.mxu0 0.0
  %455 = vmatpush1.xpose.msra.mxu0 0.0
  %456 = vmatprep.subr.mxu0 0.0
  %457 = vmatpush1.xpose.msra.mxu0 0.0
  %458 = vmatprep.subr.mxu0 0.0
  %459 = vmatpush1.xpose.msra.mxu0 0.0
  %460 = vmatprep.subr.mxu0 0.0
  %461 = vmatpush1.xpose.msra.mxu0 0.0
  %462 = vmatprep.subr.mxu0 0.0
  %463 = vmatpush1.xpose.msra.mxu0 0.0
  %464 = vmatprep.subr.mxu0 0.0
  %465 = vmatpush1.xpose.msra.mxu0 0.0
  %466 = vmatprep.subr.mxu0 0.0
  %467 = vmatpush1.xpose.msra.mxu0 %v434
  %468 = vmatprep.subr.mxu0 0.0
  %469 = vmatpush2.xpose.msra.mxu0 0.0
  %470 = vmatprep.subr.mxu0 0.0
  %471 = vmatpush2.xpose.msra.mxu0 0.0
  %472 = vmatprep.subr.mxu0 0.0
  %473 = vmatpush2.xpose.msra.mxu0 0.0
  %474 = vmatprep.subr.mxu0 0.0
  %475 = vmatpush2.xpose.msra.mxu0 0.0
  %476 = vmatprep.subr.mxu0 0.0
  %477 = vmatpush2.xpose.msra.mxu0 0.0
  %478 = vmatprep.subr.mxu0 0.0
  %479 = vmatpush2.xpose.msra.mxu0 0.0
  %480 = vmatprep.subr.mxu0 0.0
  %481 = vmatpush2.xpose.msra.mxu0 0.0
  %482 = vmatprep.subr.mxu0 0.0
  %483 = vmatpush2.xpose.msra.mxu0 0.0
  %484 = vmatprep.subr.mxu0 0.0
  %485 = vmatpush2.xpose.msra.mxu0 0.0
  %486 = vmatprep.subr.mxu0 0.0
  %487 = vmatpush2.xpose.msra.mxu0 0.0
  %488 = vmatprep.subr.mxu0 0.0
  %489 = vmatpush2.xpose.msra.mxu0 0.0
  %490 = vmatprep.subr.mxu0 0.0
  %491 = vmatpush2.xpose.msra.mxu0 0.0
  %492 = vmatprep.subr.mxu0 0.0
  %493 = vmatpush2.xpose.msra.mxu0 0.0
  %494 = vmatprep.subr.mxu0 0.0
  %495 = vmatpush2.xpose.msra.mxu0 0.0
  %496 = vmatprep.subr.mxu0 0.0
  %497 = vmatpush2.xpose.msra.mxu0 0.0
  %498 = vmatprep.subr.mxu0 0.0
  %499 = vmatpush2.xpose.msra.mxu0 0.0
  %500 = vmatprep.mubr.f32.mxu0 0.0
  %501 = vmatmul.mubr.f32.gmra.mxu0 %v432
  %v502 = vpop.f32.mrf.mxu0
  %v503 = vadd.f32 0.0, %v502
  %v504 = vpop.f32.mrf.mxu0
  %505 = vdwg.mxu0
  %506 = vrot.lane.b32.xlu0 %v173, 96
  %v507 = vpop.permute.xlu0 %506
  %v508 = vsel %vm355, %v173, 0
  %v510 = vsel %vm355, %v507, 0
  %512 = vmatprep.subr.mxu0 0.0
  %513 = vmatpush1.xpose.msra.mxu0 0.0
  %514 = vmatprep.subr.mxu0 0.0
  %515 = vmatpush1.xpose.msra.mxu0 0.0
  %516 = vmatprep.subr.mxu0 0.0
  %517 = vmatpush1.xpose.msra.mxu0 0.0
  %518 = vmatprep.subr.mxu0 0.0
  %519 = vmatpush1.xpose.msra.mxu0 0.0
  %520 = vmatprep.subr.mxu0 0.0
  %521 = vmatpush1.xpose.msra.mxu0 0.0
  %522 = vmatprep.subr.mxu0 0.0
  %523 = vmatpush1.xpose.msra.mxu0 0.0
  %524 = vmatprep.subr.mxu0 0.0
  %525 = vmatpush1.xpose.msra.mxu0 0.0
  %526 = vmatprep.subr.mxu0 0.0
  %527 = vmatpush1.xpose.msra.mxu0 0.0
  %528 = vmatprep.subr.mxu0 0.0
  %529 = vmatpush1.xpose.msra.mxu0 0.0
  %530 = vmatprep.subr.mxu0 0.0
  %531 = vmatpush1.xpose.msra.mxu0 0.0
  %532 = vmatprep.subr.mxu0 0.0
  %533 = vmatpush1.xpose.msra.mxu0 0.0
  %534 = vmatprep.subr.mxu0 0.0
  %535 = vmatpush1.xpose.msra.mxu0 0.0
  %536 = vmatprep.subr.mxu0 0.0
  %537 = vmatpush1.xpose.msra.mxu0 0.0
  %538 = vmatprep.subr.mxu0 0.0
  %539 = vmatpush1.xpose.msra.mxu0 0.0
  %540 = vmatprep.subr.mxu0 0.0
  %541 = vmatpush1.xpose.msra.mxu0 0.0
  %542 = vmatprep.subr.mxu0 0.0
  %543 = vmatpush1.xpose.msra.mxu0 %v510
  %544 = vmatprep.subr.mxu0 0.0
  %545 = vmatpush2.xpose.msra.mxu0 0.0
  %546 = vmatprep.subr.mxu0 0.0
  %547 = vmatpush2.xpose.msra.mxu0 0.0
  %548 = vmatprep.subr.mxu0 0.0
  %549 = vmatpush2.xpose.msra.mxu0 0.0
  %550 = vmatprep.subr.mxu0 0.0
  %551 = vmatpush2.xpose.msra.mxu0 0.0
  %552 = vmatprep.subr.mxu0 0.0
  %553 = vmatpush2.xpose.msra.mxu0 0.0
  %554 = vmatprep.subr.mxu0 0.0
  %555 = vmatpush2.xpose.msra.mxu0 0.0
  %556 = vmatprep.subr.mxu0 0.0
  %557 = vmatpush2.xpose.msra.mxu0 0.0
  %558 = vmatprep.subr.mxu0 0.0
  %559 = vmatpush2.xpose.msra.mxu0 0.0
  %560 = vmatprep.subr.mxu0 0.0
  %561 = vmatpush2.xpose.msra.mxu0 0.0
  %562 = vmatprep.subr.mxu0 0.0
  %563 = vmatpush2.xpose.msra.mxu0 0.0
  %564 = vmatprep.subr.mxu0 0.0
  %565 = vmatpush2.xpose.msra.mxu0 0.0
  %566 = vmatprep.subr.mxu0 0.0
  %567 = vmatpush2.xpose.msra.mxu0 0.0
  %568 = vmatprep.subr.mxu0 0.0
  %569 = vmatpush2.xpose.msra.mxu0 0.0
  %570 = vmatprep.subr.mxu0 0.0
  %571 = vmatpush2.xpose.msra.mxu0 0.0
  %572 = vmatprep.subr.mxu0 0.0
  %573 = vmatpush2.xpose.msra.mxu0 0.0
  %574 = vmatprep.subr.mxu0 0.0
  %575 = vmatpush2.xpose.msra.mxu0 0.0
  %576 = vmatprep.mubr.f32.mxu0 0.0
  %577 = vmatmul.mubr.f32.gmra.mxu0 %v508
  %v578 = vpop.f32.mrf.mxu0
  %v579 = vadd.f32 0.0, %v578
  %v580 = vpop.f32.mrf.mxu0
  %581 = vdwg.mxu0
  %582 = vrot.lane.b32.xlu0 %v178, 96
  %v583 = vpop.permute.xlu0 %582
  %v584 = vsel %vm355, %v178, 0
  %v586 = vsel %vm355, %v583, 0
  %588 = vmatprep.subr.mxu0 0.0
  %589 = vmatpush1.xpose.msra.mxu0 0.0
  %590 = vmatprep.subr.mxu0 0.0
  %591 = vmatpush1.xpose.msra.mxu0 0.0
  %592 = vmatprep.subr.mxu0 0.0
  %593 = vmatpush1.xpose.msra.mxu0 0.0
  %594 = vmatprep.subr.mxu0 0.0
  %595 = vmatpush1.xpose.msra.mxu0 0.0
  %596 = vmatprep.subr.mxu0 0.0
  %597 = vmatpush1.xpose.msra.mxu0 0.0
  %598 = vmatprep.subr.mxu0 0.0
  %599 = vmatpush1.xpose.msra.mxu0 0.0
  %600 = vmatprep.subr.mxu0 0.0
  %601 = vmatpush1.xpose.msra.mxu0 0.0
  %602 = vmatprep.subr.mxu0 0.0
  %603 = vmatpush1.xpose.msra.mxu0 0.0
  %604 = vmatprep.subr.mxu0 0.0
  %605 = vmatpush1.xpose.msra.mxu0 0.0
  %606 = vmatprep.subr.mxu0 0.0
  %607 = vmatpush1.xpose.msra.mxu0 0.0
  %608 = vmatprep.subr.mxu0 0.0
  %609 = vmatpush1.xpose.msra.mxu0 0.0
  %610 = vmatprep.subr.mxu0 0.0
  %611 = vmatpush1.xpose.msra.mxu0 0.0
  %612 = vmatprep.subr.mxu0 0.0
  %613 = vmatpush1.xpose.msra.mxu0 0.0
  %614 = vmatprep.subr.mxu0 0.0
  %615 = vmatpush1.xpose.msra.mxu0 0.0
  %616 = vmatprep.subr.mxu0 0.0
  %617 = vmatpush1.xpose.msra.mxu0 0.0
  %618 = vmatprep.subr.mxu0 0.0
  %619 = vmatpush1.xpose.msra.mxu0 %v586
  %620 = vmatprep.subr.mxu0 0.0
  %621 = vmatpush2.xpose.msra.mxu0 0.0
  %622 = vmatprep.subr.mxu0 0.0
  %623 = vmatpush2.xpose.msra.mxu0 0.0
  %624 = vmatprep.subr.mxu0 0.0
  %625 = vmatpush2.xpose.msra.mxu0 0.0
  %626 = vmatprep.subr.mxu0 0.0
  %627 = vmatpush2.xpose.msra.mxu0 0.0
  %628 = vmatprep.subr.mxu0 0.0
  %629 = vmatpush2.xpose.msra.mxu0 0.0
  %630 = vmatprep.subr.mxu0 0.0
  %631 = vmatpush2.xpose.msra.mxu0 0.0
  %632 = vmatprep.subr.mxu0 0.0
  %633 = vmatpush2.xpose.msra.mxu0 0.0
  %634 = vmatprep.subr.mxu0 0.0
  %635 = vmatpush2.xpose.msra.mxu0 0.0
  %636 = vmatprep.subr.mxu0 0.0
  %637 = vmatpush2.xpose.msra.mxu0 0.0
  %638 = vmatprep.subr.mxu0 0.0
  %639 = vmatpush2.xpose.msra.mxu0 0.0
  %640 = vmatprep.subr.mxu0 0.0
  %641 = vmatpush2.xpose.msra.mxu0 0.0
  %642 = vmatprep.subr.mxu0 0.0
  %643 = vmatpush2.xpose.msra.mxu0 0.0
  %644 = vmatprep.subr.mxu0 0.0
  %645 = vmatpush2.xpose.msra.mxu0 0.0
  %646 = vmatprep.subr.mxu0 0.0
  %647 = vmatpush2.xpose.msra.mxu0 0.0
  %648 = vmatprep.subr.mxu0 0.0
  %649 = vmatpush2.xpose.msra.mxu0 0.0
  %650 = vmatprep.subr.mxu0 0.0
  %651 = vmatpush2.xpose.msra.mxu0 0.0
  %652 = vmatprep.mubr.f32.mxu0 0.0
  %653 = vmatmul.mubr.f32.gmra.mxu0 %v584
  %v654 = vpop.f32.mrf.mxu0
  %v655 = vadd.f32 0.0, %v654
  %v656 = vpop.f32.mrf.mxu0
  %657 = vdwg.mxu0
  %658 = vrot.lane.b32.xlu0 %v183, 96
  %v659 = vpop.permute.xlu0 %658
  %v660 = vsel %vm355, %v183, 0
  %v662 = vsel %vm355, %v659, 0
  %664 = vmatprep.subr.mxu0 0.0
  %665 = vmatpush1.xpose.msra.mxu0 0.0
  %666 = vmatprep.subr.mxu0 0.0
  %667 = vmatpush1.xpose.msra.mxu0 0.0
  %668 = vmatprep.subr.mxu0 0.0
  %669 = vmatpush1.xpose.msra.mxu0 0.0
  %670 = vmatprep.subr.mxu0 0.0
  %671 = vmatpush1.xpose.msra.mxu0 0.0
  %672 = vmatprep.subr.mxu0 0.0
  %673 = vmatpush1.xpose.msra.mxu0 0.0
  %674 = vmatprep.subr.mxu0 0.0
  %675 = vmatpush1.xpose.msra.mxu0 0.0
  %676 = vmatprep.subr.mxu0 0.0
  %677 = vmatpush1.xpose.msra.mxu0 0.0
  %678 = vmatprep.subr.mxu0 0.0
  %679 = vmatpush1.xpose.msra.mxu0 0.0
  %680 = vmatprep.subr.mxu0 0.0
  %681 = vmatpush1.xpose.msra.mxu0 0.0
  %682 = vmatprep.subr.mxu0 0.0
  %683 = vmatpush1.xpose.msra.mxu0 0.0
  %684 = vmatprep.subr.mxu0 0.0
  %685 = vmatpush1.xpose.msra.mxu0 0.0
  %686 = vmatprep.subr.mxu0 0.0
  %687 = vmatpush1.xpose.msra.mxu0 0.0
  %688 = vmatprep.subr.mxu0 0.0
  %689 = vmatpush1.xpose.msra.mxu0 0.0
  %690 = vmatprep.subr.mxu0 0.0
  %691 = vmatpush1.xpose.msra.mxu0 0.0
  %692 = vmatprep.subr.mxu0 0.0
  %693 = vmatpush1.xpose.msra.mxu0 0.0
  %694 = vmatprep.subr.mxu0 0.0
  %695 = vmatpush1.xpose.msra.mxu0 %v662
  %696 = vmatprep.subr.mxu0 0.0
  %697 = vmatpush2.xpose.msra.mxu0 0.0
  %698 = vmatprep.subr.mxu0 0.0
  %699 = vmatpush2.xpose.msra.mxu0 0.0
  %700 = vmatprep.subr.mxu0 0.0
  %701 = vmatpush2.xpose.msra.mxu0 0.0
  %702 = vmatprep.subr.mxu0 0.0
  %703 = vmatpush2.xpose.msra.mxu0 0.0
  %704 = vmatprep.subr.mxu0 0.0
  %705 = vmatpush2.xpose.msra.mxu0 0.0
  %706 = vmatprep.subr.mxu0 0.0
  %707 = vmatpush2.xpose.msra.mxu0 0.0
  %708 = vmatprep.subr.mxu0 0.0
  %709 = vmatpush2.xpose.msra.mxu0 0.0
  %710 = vmatprep.subr.mxu0 0.0
  %711 = vmatpush2.xpose.msra.mxu0 0.0
  %712 = vmatprep.subr.mxu0 0.0
  %713 = vmatpush2.xpose.msra.mxu0 0.0
  %714 = vmatprep.subr.mxu0 0.0
  %715 = vmatpush2.xpose.msra.mxu0 0.0
  %716 = vmatprep.subr.mxu0 0.0
  %717 = vmatpush2.xpose.msra.mxu0 0.0
  %718 = vmatprep.subr.mxu0 0.0
  %719 = vmatpush2.xpose.msra.mxu0 0.0
  %720 = vmatprep.subr.mxu0 0.0
  %721 = vmatpush2.xpose.msra.mxu0 0.0
  %722 = vmatprep.subr.mxu0 0.0
  %723 = vmatpush2.xpose.msra.mxu0 0.0
  %724 = vmatprep.subr.mxu0 0.0
  %725 = vmatpush2.xpose.msra.mxu0 0.0
  %726 = vmatprep.subr.mxu0 0.0
  %727 = vmatpush2.xpose.msra.mxu0 0.0
  %728 = vmatprep.mubr.f32.mxu0 0.0
  %729 = vmatmul.mubr.f32.gmra.mxu0 %v660
  %v730 = vpop.f32.mrf.mxu0
  %v731 = vadd.f32 0.0, %v730
  %v732 = vpop.f32.mrf.mxu0
  %733 = vdwg.mxu0
  %734 = vrot.lane.b32.xlu0 %v188, 96
  %v735 = vpop.permute.xlu0 %734
  %v736 = vsel %vm355, %v188, 0
  %v738 = vsel %vm355, %v735, 0
  %740 = vmatprep.subr.mxu0 0.0
  %741 = vmatpush1.xpose.msra.mxu0 0.0
  %742 = vmatprep.subr.mxu0 0.0
  %743 = vmatpush1.xpose.msra.mxu0 0.0
  %744 = vmatprep.subr.mxu0 0.0
  %745 = vmatpush1.xpose.msra.mxu0 0.0
  %746 = vmatprep.subr.mxu0 0.0
  %747 = vmatpush1.xpose.msra.mxu0 0.0
  %748 = vmatprep.subr.mxu0 0.0
  %749 = vmatpush1.xpose.msra.mxu0 0.0
  %750 = vmatprep.subr.mxu0 0.0
  %751 = vmatpush1.xpose.msra.mxu0 0.0
  %752 = vmatprep.subr.mxu0 0.0
  %753 = vmatpush1.xpose.msra.mxu0 0.0
  %754 = vmatprep.subr.mxu0 0.0
  %755 = vmatpush1.xpose.msra.mxu0 0.0
  %756 = vmatprep.subr.mxu0 0.0
  %757 = vmatpush1.xpose.msra.mxu0 0.0
  %758 = vmatprep.subr.mxu0 0.0
  %759 = vmatpush1.xpose.msra.mxu0 0.0
  %760 = vmatprep.subr.mxu0 0.0
  %761 = vmatpush1.xpose.msra.mxu0 0.0
  %762 = vmatprep.subr.mxu0 0.0
  %763 = vmatpush1.xpose.msra.mxu0 0.0
  %764 = vmatprep.subr.mxu0 0.0
  %765 = vmatpush1.xpose.msra.mxu0 0.0
  %766 = vmatprep.subr.mxu0 0.0
  %767 = vmatpush1.xpose.msra.mxu0 0.0
  %768 = vmatprep.subr.mxu0 0.0
  %769 = vmatpush1.xpose.msra.mxu0 0.0
  %770 = vmatprep.subr.mxu0 0.0
  %771 = vmatpush1.xpose.msra.mxu0 %v738
  %772 = vmatprep.subr.mxu0 0.0
  %773 = vmatpush2.xpose.msra.mxu0 0.0
  %774 = vmatprep.subr.mxu0 0.0
  %775 = vmatpush2.xpose.msra.mxu0 0.0
  %776 = vmatprep.subr.mxu0 0.0
  %777 = vmatpush2.xpose.msra.mxu0 0.0
  %778 = vmatprep.subr.mxu0 0.0
  %779 = vmatpush2.xpose.msra.mxu0 0.0
  %780 = vmatprep.subr.mxu0 0.0
  %781 = vmatpush2.xpose.msra.mxu0 0.0
  %782 = vmatprep.subr.mxu0 0.0
  %783 = vmatpush2.xpose.msra.mxu0 0.0
  %784 = vmatprep.subr.mxu0 0.0
  %785 = vmatpush2.xpose.msra.mxu0 0.0
  %786 = vmatprep.subr.mxu0 0.0
  %787 = vmatpush2.xpose.msra.mxu0 0.0
  %788 = vmatprep.subr.mxu0 0.0
  %789 = vmatpush2.xpose.msra.mxu0 0.0
  %790 = vmatprep.subr.mxu0 0.0
  %791 = vmatpush2.xpose.msra.mxu0 0.0
  %792 = vmatprep.subr.mxu0 0.0
  %793 = vmatpush2.xpose.msra.mxu0 0.0
  %794 = vmatprep.subr.mxu0 0.0
  %795 = vmatpush2.xpose.msra.mxu0 0.0
  %796 = vmatprep.subr.mxu0 0.0
  %797 = vmatpush2.xpose.msra.mxu0 0.0
  %798 = vmatprep.subr.mxu0 0.0
  %799 = vmatpush2.xpose.msra.mxu0 0.0
  %800 = vmatprep.subr.mxu0 0.0
  %801 = vmatpush2.xpose.msra.mxu0 0.0
  %802 = vmatprep.subr.mxu0 0.0
  %803 = vmatpush2.xpose.msra.mxu0 0.0
  %804 = vmatprep.mubr.f32.mxu0 0.0
  %805 = vmatmul.mubr.f32.gmra.mxu0 %v736
  %v806 = vpop.f32.mrf.mxu0
  %v807 = vadd.f32 0.0, %v806
  %v808 = vpop.f32.mrf.mxu0
  %809 = vdwg.mxu0
  %810 = vrot.lane.b32.xlu0 %v193, 96
  %v811 = vpop.permute.xlu0 %810
  %v812 = vsel %vm355, %v193, 0
  %v814 = vsel %vm355, %v811, 0
  %816 = vmatprep.subr.mxu0 0.0
  %817 = vmatpush1.xpose.msra.mxu0 0.0
  %818 = vmatprep.subr.mxu0 0.0
  %819 = vmatpush1.xpose.msra.mxu0 0.0
  %820 = vmatprep.subr.mxu0 0.0
  %821 = vmatpush1.xpose.msra.mxu0 0.0
  %822 = vmatprep.subr.mxu0 0.0
  %823 = vmatpush1.xpose.msra.mxu0 0.0
  %824 = vmatprep.subr.mxu0 0.0
  %825 = vmatpush1.xpose.msra.mxu0 0.0
  %826 = vmatprep.subr.mxu0 0.0
  %827 = vmatpush1.xpose.msra.mxu0 0.0
  %828 = vmatprep.subr.mxu0 0.0
  %829 = vmatpush1.xpose.msra.mxu0 0.0
  %830 = vmatprep.subr.mxu0 0.0
  %831 = vmatpush1.xpose.msra.mxu0 0.0
  %832 = vmatprep.subr.mxu0 0.0
  %833 = vmatpush1.xpose.msra.mxu0 0.0
  %834 = vmatprep.subr.mxu0 0.0
  %835 = vmatpush1.xpose.msra.mxu0 0.0
  %836 = vmatprep.subr.mxu0 0.0
  %837 = vmatpush1.xpose.msra.mxu0 0.0
  %838 = vmatprep.subr.mxu0 0.0
  %839 = vmatpush1.xpose.msra.mxu0 0.0
  %840 = vmatprep.subr.mxu0 0.0
  %841 = vmatpush1.xpose.msra.mxu0 0.0
  %842 = vmatprep.subr.mxu0 0.0
  %843 = vmatpush1.xpose.msra.mxu0 0.0
  %844 = vmatprep.subr.mxu0 0.0
  %845 = vmatpush1.xpose.msra.mxu0 0.0
  %846 = vmatprep.subr.mxu0 0.0
  %847 = vmatpush1.xpose.msra.mxu0 %v814
  %848 = vmatprep.subr.mxu0 0.0
  %849 = vmatpush2.xpose.msra.mxu0 0.0
  %850 = vmatprep.subr.mxu0 0.0
  %851 = vmatpush2.xpose.msra.mxu0 0.0
  %852 = vmatprep.subr.mxu0 0.0
  %853 = vmatpush2.xpose.msra.mxu0 0.0
  %854 = vmatprep.subr.mxu0 0.0
  %855 = vmatpush2.xpose.msra.mxu0 0.0
  %856 = vmatprep.subr.mxu0 0.0
  %857 = vmatpush2.xpose.msra.mxu0 0.0
  %858 = vmatprep.subr.mxu0 0.0
  %859 = vmatpush2.xpose.msra.mxu0 0.0
  %860 = vmatprep.subr.mxu0 0.0
  %861 = vmatpush2.xpose.msra.mxu0 0.0
  %862 = vmatprep.subr.mxu0 0.0
  %863 = vmatpush2.xpose.msra.mxu0 0.0
  %864 = vmatprep.subr.mxu0 0.0
  %865 = vmatpush2.xpose.msra.mxu0 0.0
  %866 = vmatprep.subr.mxu0 0.0
  %867 = vmatpush2.xpose.msra.mxu0 0.0
  %868 = vmatprep.subr.mxu0 0.0
  %869 = vmatpush2.xpose.msra.mxu0 0.0
  %870 = vmatprep.subr.mxu0 0.0
  %871 = vmatpush2.xpose.msra.mxu0 0.0
  %872 = vmatprep.subr.mxu0 0.0
  %873 = vmatpush2.xpose.msra.mxu0 0.0
  %874 = vmatprep.subr.mxu0 0.0
  %875 = vmatpush2.xpose.msra.mxu0 0.0
  %876 = vmatprep.subr.mxu0 0.0
  %877 = vmatpush2.xpose.msra.mxu0 0.0
  %878 = vmatprep.subr.mxu0 0.0
  %879 = vmatpush2.xpose.msra.mxu0 0.0
  %880 = vmatprep.mubr.f32.mxu0 0.0
  %881 = vmatmul.mubr.f32.gmra.mxu0 %v812
  %v882 = vpop.f32.mrf.mxu0
  %v883 = vadd.f32 0.0, %v882
  %v884 = vpop.f32.mrf.mxu0
  %885 = vdwg.mxu0
  %886 = vrot.lane.b32.xlu0 %v198, 96
  %v887 = vpop.permute.xlu0 %886
  %v888 = vsel %vm355, %v198, 0
  %v890 = vsel %vm355, %v887, 0
  %892 = vmatprep.subr.mxu0 0.0
  %893 = vmatpush1.xpose.msra.mxu0 0.0
  %894 = vmatprep.subr.mxu0 0.0
  %895 = vmatpush1.xpose.msra.mxu0 0.0
  %896 = vmatprep.subr.mxu0 0.0
  %897 = vmatpush1.xpose.msra.mxu0 0.0
  %898 = vmatprep.subr.mxu0 0.0
  %899 = vmatpush1.xpose.msra.mxu0 0.0
  %900 = vmatprep.subr.mxu0 0.0
  %901 = vmatpush1.xpose.msra.mxu0 0.0
  %902 = vmatprep.subr.mxu0 0.0
  %903 = vmatpush1.xpose.msra.mxu0 0.0
  %904 = vmatprep.subr.mxu0 0.0
  %905 = vmatpush1.xpose.msra.mxu0 0.0
  %906 = vmatprep.subr.mxu0 0.0
  %907 = vmatpush1.xpose.msra.mxu0 0.0
  %908 = vmatprep.subr.mxu0 0.0
  %909 = vmatpush1.xpose.msra.mxu0 0.0
  %910 = vmatprep.subr.mxu0 0.0
  %911 = vmatpush1.xpose.msra.mxu0 0.0
  %912 = vmatprep.subr.mxu0 0.0
  %913 = vmatpush1.xpose.msra.mxu0 0.0
  %914 = vmatprep.subr.mxu0 0.0
  %915 = vmatpush1.xpose.msra.mxu0 0.0
  %916 = vmatprep.subr.mxu0 0.0
  %917 = vmatpush1.xpose.msra.mxu0 0.0
  %918 = vmatprep.subr.mxu0 0.0
  %919 = vmatpush1.xpose.msra.mxu0 0.0
  %920 = vmatprep.subr.mxu0 0.0
  %921 = vmatpush1.xpose.msra.mxu0 0.0
  %922 = vmatprep.subr.mxu0 0.0
  %923 = vmatpush1.xpose.msra.mxu0 %v890
  %924 = vmatprep.subr.mxu0 0.0
  %925 = vmatpush2.xpose.msra.mxu0 0.0
  %926 = vmatprep.subr.mxu0 0.0
  %927 = vmatpush2.xpose.msra.mxu0 0.0
  %928 = vmatprep.subr.mxu0 0.0
  %929 = vmatpush2.xpose.msra.mxu0 0.0
  %930 = vmatprep.subr.mxu0 0.0
  %931 = vmatpush2.xpose.msra.mxu0 0.0
  %932 = vmatprep.subr.mxu0 0.0
  %933 = vmatpush2.xpose.msra.mxu0 0.0
  %934 = vmatprep.subr.mxu0 0.0
  %935 = vmatpush2.xpose.msra.mxu0 0.0
  %936 = vmatprep.subr.mxu0 0.0
  %937 = vmatpush2.xpose.msra.mxu0 0.0
  %938 = vmatprep.subr.mxu0 0.0
  %939 = vmatpush2.xpose.msra.mxu0 0.0
  %940 = vmatprep.subr.mxu0 0.0
  %941 = vmatpush2.xpose.msra.mxu0 0.0
  %942 = vmatprep.subr.mxu0 0.0
  %943 = vmatpush2.xpose.msra.mxu0 0.0
  %944 = vmatprep.subr.mxu0 0.0
  %945 = vmatpush2.xpose.msra.mxu0 0.0
  %946 = vmatprep.subr.mxu0 0.0
  %947 = vmatpush2.xpose.msra.mxu0 0.0
  %948 = vmatprep.subr.mxu0 0.0
  %949 = vmatpush2.xpose.msra.mxu0 0.0
  %950 = vmatprep.subr.mxu0 0.0
  %951 = vmatpush2.xpose.msra.mxu0 0.0
  %952 = vmatprep.subr.mxu0 0.0
  %953 = vmatpush2.xpose.msra.mxu0 0.0
  %954 = vmatprep.subr.mxu0 0.0
  %955 = vmatpush2.xpose.msra.mxu0 0.0
  %956 = vmatprep.mubr.f32.mxu0 0.0
  %957 = vmatmul.mubr.f32.gmra.mxu0 %v888
  %v958 = vpop.f32.mrf.mxu0
  %v959 = vadd.f32 0.0, %v958
  %v960 = vpop.f32.mrf.mxu0
  %961 = vdwg.mxu0
  %962 = vrot.lane.b32.xlu0 %v203, 96
  %v963 = vpop.permute.xlu0 %962
  %v964 = vsel %vm355, %v203, 0
  %v966 = vsel %vm355, %v963, 0
  %968 = vmatprep.subr.mxu0 0.0
  %969 = vmatpush1.xpose.msra.mxu0 0.0
  %970 = vmatprep.subr.mxu0 0.0
  %971 = vmatpush1.xpose.msra.mxu0 0.0
  %972 = vmatprep.subr.mxu0 0.0
  %973 = vmatpush1.xpose.msra.mxu0 0.0
  %974 = vmatprep.subr.mxu0 0.0
  %975 = vmatpush1.xpose.msra.mxu0 0.0
  %976 = vmatprep.subr.mxu0 0.0
  %977 = vmatpush1.xpose.msra.mxu0 0.0
  %978 = vmatprep.subr.mxu0 0.0
  %979 = vmatpush1.xpose.msra.mxu0 0.0
  %980 = vmatprep.subr.mxu0 0.0
  %981 = vmatpush1.xpose.msra.mxu0 0.0
  %982 = vmatprep.subr.mxu0 0.0
  %983 = vmatpush1.xpose.msra.mxu0 0.0
  %984 = vmatprep.subr.mxu0 0.0
  %985 = vmatpush1.xpose.msra.mxu0 0.0
  %986 = vmatprep.subr.mxu0 0.0
  %987 = vmatpush1.xpose.msra.mxu0 0.0
  %988 = vmatprep.subr.mxu0 0.0
  %989 = vmatpush1.xpose.msra.mxu0 0.0
  %990 = vmatprep.subr.mxu0 0.0
  %991 = vmatpush1.xpose.msra.mxu0 0.0
  %992 = vmatprep.subr.mxu0 0.0
  %993 = vmatpush1.xpose.msra.mxu0 0.0
  %994 = vmatprep.subr.mxu0 0.0
  %995 = vmatpush1.xpose.msra.mxu0 0.0
  %996 = vmatprep.subr.mxu0 0.0
  %997 = vmatpush1.xpose.msra.mxu0 0.0
  %998 = vmatprep.subr.mxu0 0.0
  %999 = vmatpush1.xpose.msra.mxu0 %v966
  %1000 = vmatprep.subr.mxu0 0.0
  %1001 = vmatpush2.xpose.msra.mxu0 0.0
  %1002 = vmatprep.subr.mxu0 0.0
  %1003 = vmatpush2.xpose.msra.mxu0 0.0
  %1004 = vmatprep.subr.mxu0 0.0
  %1005 = vmatpush2.xpose.msra.mxu0 0.0
  %1006 = vmatprep.subr.mxu0 0.0
  %1007 = vmatpush2.xpose.msra.mxu0 0.0
  %1008 = vmatprep.subr.mxu0 0.0
  %1009 = vmatpush2.xpose.msra.mxu0 0.0
  %1010 = vmatprep.subr.mxu0 0.0
  %1011 = vmatpush2.xpose.msra.mxu0 0.0
  %1012 = vmatprep.subr.mxu0 0.0
  %1013 = vmatpush2.xpose.msra.mxu0 0.0
  %1014 = vmatprep.subr.mxu0 0.0
  %1015 = vmatpush2.xpose.msra.mxu0 0.0
  %1016 = vmatprep.subr.mxu0 0.0
  %1017 = vmatpush2.xpose.msra.mxu0 0.0
  %1018 = vmatprep.subr.mxu0 0.0
  %1019 = vmatpush2.xpose.msra.mxu0 0.0
  %1020 = vmatprep.subr.mxu0 0.0
  %1021 = vmatpush2.xpose.msra.mxu0 0.0
  %1022 = vmatprep.subr.mxu0 0.0
  %1023 = vmatpush2.xpose.msra.mxu0 0.0
  %1024 = vmatprep.subr.mxu0 0.0
  %1025 = vmatpush2.xpose.msra.mxu0 0.0
  %1026 = vmatprep.subr.mxu0 0.0
  %1027 = vmatpush2.xpose.msra.mxu0 0.0
  %1028 = vmatprep.subr.mxu0 0.0
  %1029 = vmatpush2.xpose.msra.mxu0 0.0
  %1030 = vmatprep.subr.mxu0 0.0
  %1031 = vmatpush2.xpose.msra.mxu0 0.0
  %1032 = vmatprep.mubr.f32.mxu0 0.0
  %1033 = vmatmul.mubr.f32.gmra.mxu0 %v964
  %v1034 = vpop.f32.mrf.mxu0
  %v1035 = vadd.f32 0.0, %v1034
  %v1036 = vpop.f32.mrf.mxu0
  %1037 = vdwg.mxu0
  %1038 = vrot.lane.b32.xlu0 %v208, 96
  %v1039 = vpop.permute.xlu0 %1038
  %v1040 = vsel %vm355, %v208, 0
  %v1042 = vsel %vm355, %v1039, 0
  %1044 = vmatprep.subr.mxu0 0.0
  %1045 = vmatpush1.xpose.msra.mxu0 0.0
  %1046 = vmatprep.subr.mxu0 0.0
  %1047 = vmatpush1.xpose.msra.mxu0 0.0
  %1048 = vmatprep.subr.mxu0 0.0
  %1049 = vmatpush1.xpose.msra.mxu0 0.0
  %1050 = vmatprep.subr.mxu0 0.0
  %1051 = vmatpush1.xpose.msra.mxu0 0.0
  %1052 = vmatprep.subr.mxu0 0.0
  %1053 = vmatpush1.xpose.msra.mxu0 0.0
  %1054 = vmatprep.subr.mxu0 0.0
  %1055 = vmatpush1.xpose.msra.mxu0 0.0
  %1056 = vmatprep.subr.mxu0 0.0
  %1057 = vmatpush1.xpose.msra.mxu0 0.0
  %1058 = vmatprep.subr.mxu0 0.0
  %1059 = vmatpush1.xpose.msra.mxu0 0.0
  %1060 = vmatprep.subr.mxu0 0.0
  %1061 = vmatpush1.xpose.msra.mxu0 0.0
  %1062 = vmatprep.subr.mxu0 0.0
  %1063 = vmatpush1.xpose.msra.mxu0 0.0
  %1064 = vmatprep.subr.mxu0 0.0
  %1065 = vmatpush1.xpose.msra.mxu0 0.0
  %1066 = vmatprep.subr.mxu0 0.0
  %1067 = vmatpush1.xpose.msra.mxu0 0.0
  %1068 = vmatprep.subr.mxu0 0.0
  %1069 = vmatpush1.xpose.msra.mxu0 0.0
  %1070 = vmatprep.subr.mxu0 0.0
  %1071 = vmatpush1.xpose.msra.mxu0 0.0
  %1072 = vmatprep.subr.mxu0 0.0
  %1073 = vmatpush1.xpose.msra.mxu0 0.0
  %1074 = vmatprep.subr.mxu0 0.0
  %1075 = vmatpush1.xpose.msra.mxu0 %v1042
  %1076 = vmatprep.subr.mxu0 0.0
  %1077 = vmatpush2.xpose.msra.mxu0 0.0
  %1078 = vmatprep.subr.mxu0 0.0
  %1079 = vmatpush2.xpose.msra.mxu0 0.0
  %1080 = vmatprep.subr.mxu0 0.0
  %1081 = vmatpush2.xpose.msra.mxu0 0.0
  %1082 = vmatprep.subr.mxu0 0.0
  %1083 = vmatpush2.xpose.msra.mxu0 0.0
  %1084 = vmatprep.subr.mxu0 0.0
  %1085 = vmatpush2.xpose.msra.mxu0 0.0
  %1086 = vmatprep.subr.mxu0 0.0
  %1087 = vmatpush2.xpose.msra.mxu0 0.0
  %1088 = vmatprep.subr.mxu0 0.0
  %1089 = vmatpush2.xpose.msra.mxu0 0.0
  %1090 = vmatprep.subr.mxu0 0.0
  %1091 = vmatpush2.xpose.msra.mxu0 0.0
  %1092 = vmatprep.subr.mxu0 0.0
  %1093 = vmatpush2.xpose.msra.mxu0 0.0
  %1094 = vmatprep.subr.mxu0 0.0
  %1095 = vmatpush2.xpose.msra.mxu0 0.0
  %1096 = vmatprep.subr.mxu0 0.0
  %1097 = vmatpush2.xpose.msra.mxu0 0.0
  %1098 = vmatprep.subr.mxu0 0.0
  %1099 = vmatpush2.xpose.msra.mxu0 0.0
  %1100 = vmatprep.subr.mxu0 0.0
  %1101 = vmatpush2.xpose.msra.mxu0 0.0
  %1102 = vmatprep.subr.mxu0 0.0
  %1103 = vmatpush2.xpose.msra.mxu0 0.0
  %1104 = vmatprep.subr.mxu0 0.0
  %1105 = vmatpush2.xpose.msra.mxu0 0.0
  %1106 = vmatprep.subr.mxu0 0.0
  %1107 = vmatpush2.xpose.msra.mxu0 0.0
  %1108 = vmatprep.mubr.f32.mxu0 0.0
  %1109 = vmatmul.mubr.f32.gmra.mxu0 %v1040
  %v1110 = vpop.f32.mrf.mxu0
  %v1111 = vadd.f32 0.0, %v1110
  %v1112 = vpop.f32.mrf.mxu0
  %1113 = vdwg.mxu0
  %1114 = vrot.lane.b32.xlu0 %v213, 96
  %v1115 = vpop.permute.xlu0 %1114
  %v1116 = vsel %vm355, %v213, 0
  %v1118 = vsel %vm355, %v1115, 0
  %1120 = vmatprep.subr.mxu0 0.0
  %1121 = vmatpush1.xpose.msra.mxu0 0.0
  %1122 = vmatprep.subr.mxu0 0.0
  %1123 = vmatpush1.xpose.msra.mxu0 0.0
  %1124 = vmatprep.subr.mxu0 0.0
  %1125 = vmatpush1.xpose.msra.mxu0 0.0
  %1126 = vmatprep.subr.mxu0 0.0
  %1127 = vmatpush1.xpose.msra.mxu0 0.0
  %1128 = vmatprep.subr.mxu0 0.0
  %1129 = vmatpush1.xpose.msra.mxu0 0.0
  %1130 = vmatprep.subr.mxu0 0.0
  %1131 = vmatpush1.xpose.msra.mxu0 0.0
  %1132 = vmatprep.subr.mxu0 0.0
  %1133 = vmatpush1.xpose.msra.mxu0 0.0
  %1134 = vmatprep.subr.mxu0 0.0
  %1135 = vmatpush1.xpose.msra.mxu0 0.0
  %1136 = vmatprep.subr.mxu0 0.0
  %1137 = vmatpush1.xpose.msra.mxu0 0.0
  %1138 = vmatprep.subr.mxu0 0.0
  %1139 = vmatpush1.xpose.msra.mxu0 0.0
  %1140 = vmatprep.subr.mxu0 0.0
  %1141 = vmatpush1.xpose.msra.mxu0 0.0
  %1142 = vmatprep.subr.mxu0 0.0
  %1143 = vmatpush1.xpose.msra.mxu0 0.0
  %1144 = vmatprep.subr.mxu0 0.0
  %1145 = vmatpush1.xpose.msra.mxu0 0.0
  %1146 = vmatprep.subr.mxu0 0.0
  %1147 = vmatpush1.xpose.msra.mxu0 0.0
  %1148 = vmatprep.subr.mxu0 0.0
  %1149 = vmatpush1.xpose.msra.mxu0 0.0
  %1150 = vmatprep.subr.mxu0 0.0
  %1151 = vmatpush1.xpose.msra.mxu0 %v1118
  %1152 = vmatprep.subr.mxu0 0.0
  %1153 = vmatpush2.xpose.msra.mxu0 0.0
  %1154 = vmatprep.subr.mxu0 0.0
  %1155 = vmatpush2.xpose.msra.mxu0 0.0
  %1156 = vmatprep.subr.mxu0 0.0
  %1157 = vmatpush2.xpose.msra.mxu0 0.0
  %1158 = vmatprep.subr.mxu0 0.0
  %1159 = vmatpush2.xpose.msra.mxu0 0.0
  %1160 = vmatprep.subr.mxu0 0.0
  %1161 = vmatpush2.xpose.msra.mxu0 0.0
  %1162 = vmatprep.subr.mxu0 0.0
  %1163 = vmatpush2.xpose.msra.mxu0 0.0
  %1164 = vmatprep.subr.mxu0 0.0
  %1165 = vmatpush2.xpose.msra.mxu0 0.0
  %1166 = vmatprep.subr.mxu0 0.0
  %1167 = vmatpush2.xpose.msra.mxu0 0.0
  %1168 = vmatprep.subr.mxu0 0.0
  %1169 = vmatpush2.xpose.msra.mxu0 0.0
  %1170 = vmatprep.subr.mxu0 0.0
  %1171 = vmatpush2.xpose.msra.mxu0 0.0
  %1172 = vmatprep.subr.mxu0 0.0
  %1173 = vmatpush2.xpose.msra.mxu0 0.0
  %1174 = vmatprep.subr.mxu0 0.0
  %1175 = vmatpush2.xpose.msra.mxu0 0.0
  %1176 = vmatprep.subr.mxu0 0.0
  %1177 = vmatpush2.xpose.msra.mxu0 0.0
  %1178 = vmatprep.subr.mxu0 0.0
  %1179 = vmatpush2.xpose.msra.mxu0 0.0
  %1180 = vmatprep.subr.mxu0 0.0
  %1181 = vmatpush2.xpose.msra.mxu0 0.0
  %1182 = vmatprep.subr.mxu0 0.0
  %1183 = vmatpush2.xpose.msra.mxu0 0.0
  %1184 = vmatprep.mubr.f32.mxu0 0.0
  %1185 = vmatmul.mubr.f32.gmra.mxu0 %v1116
  %v1186 = vpop.f32.mrf.mxu0
  %v1187 = vadd.f32 0.0, %v1186
  %v1188 = vpop.f32.mrf.mxu0
  %1189 = vdwg.mxu0
  %1190 = vrot.lane.b32.xlu0 %v218, 96
  %v1191 = vpop.permute.xlu0 %1190
  %v1192 = vsel %vm355, %v218, 0
  %v1194 = vsel %vm355, %v1191, 0
  %1196 = vmatprep.subr.mxu0 0.0
  %1197 = vmatpush1.xpose.msra.mxu0 0.0
  %1198 = vmatprep.subr.mxu0 0.0
  %1199 = vmatpush1.xpose.msra.mxu0 0.0
  %1200 = vmatprep.subr.mxu0 0.0
  %1201 = vmatpush1.xpose.msra.mxu0 0.0
  %1202 = vmatprep.subr.mxu0 0.0
  %1203 = vmatpush1.xpose.msra.mxu0 0.0
  %1204 = vmatprep.subr.mxu0 0.0
  %1205 = vmatpush1.xpose.msra.mxu0 0.0
  %1206 = vmatprep.subr.mxu0 0.0
  %1207 = vmatpush1.xpose.msra.mxu0 0.0
  %1208 = vmatprep.subr.mxu0 0.0
  %1209 = vmatpush1.xpose.msra.mxu0 0.0
  %1210 = vmatprep.subr.mxu0 0.0
  %1211 = vmatpush1.xpose.msra.mxu0 0.0
  %1212 = vmatprep.subr.mxu0 0.0
  %1213 = vmatpush1.xpose.msra.mxu0 0.0
  %1214 = vmatprep.subr.mxu0 0.0
  %1215 = vmatpush1.xpose.msra.mxu0 0.0
  %1216 = vmatprep.subr.mxu0 0.0
  %1217 = vmatpush1.xpose.msra.mxu0 0.0
  %1218 = vmatprep.subr.mxu0 0.0
  %1219 = vmatpush1.xpose.msra.mxu0 0.0
  %1220 = vmatprep.subr.mxu0 0.0
  %1221 = vmatpush1.xpose.msra.mxu0 0.0
  %1222 = vmatprep.subr.mxu0 0.0
  %1223 = vmatpush1.xpose.msra.mxu0 0.0
  %1224 = vmatprep.subr.mxu0 0.0
  %1225 = vmatpush1.xpose.msra.mxu0 0.0
  %1226 = vmatprep.subr.mxu0 0.0
  %1227 = vmatpush1.xpose.msra.mxu0 %v1194
  %1228 = vmatprep.subr.mxu0 0.0
  %1229 = vmatpush2.xpose.msra.mxu0 0.0
  %1230 = vmatprep.subr.mxu0 0.0
  %1231 = vmatpush2.xpose.msra.mxu0 0.0
  %1232 = vmatprep.subr.mxu0 0.0
  %1233 = vmatpush2.xpose.msra.mxu0 0.0
  %1234 = vmatprep.subr.mxu0 0.0
  %1235 = vmatpush2.xpose.msra.mxu0 0.0
  %1236 = vmatprep.subr.mxu0 0.0
  %1237 = vmatpush2.xpose.msra.mxu0 0.0
  %1238 = vmatprep.subr.mxu0 0.0
  %1239 = vmatpush2.xpose.msra.mxu0 0.0
  %1240 = vmatprep.subr.mxu0 0.0
  %1241 = vmatpush2.xpose.msra.mxu0 0.0
  %1242 = vmatprep.subr.mxu0 0.0
  %1243 = vmatpush2.xpose.msra.mxu0 0.0
  %1244 = vmatprep.subr.mxu0 0.0
  %1245 = vmatpush2.xpose.msra.mxu0 0.0
  %1246 = vmatprep.subr.mxu0 0.0
  %1247 = vmatpush2.xpose.msra.mxu0 0.0
  %1248 = vmatprep.subr.mxu0 0.0
  %1249 = vmatpush2.xpose.msra.mxu0 0.0
  %1250 = vmatprep.subr.mxu0 0.0
  %1251 = vmatpush2.xpose.msra.mxu0 0.0
  %1252 = vmatprep.subr.mxu0 0.0
  %1253 = vmatpush2.xpose.msra.mxu0 0.0
  %1254 = vmatprep.subr.mxu0 0.0
  %1255 = vmatpush2.xpose.msra.mxu0 0.0
  %1256 = vmatprep.subr.mxu0 0.0
  %1257 = vmatpush2.xpose.msra.mxu0 0.0
  %1258 = vmatprep.subr.mxu0 0.0
  %1259 = vmatpush2.xpose.msra.mxu0 0.0
  %1260 = vmatprep.mubr.f32.mxu0 0.0
  %1261 = vmatmul.mubr.f32.gmra.mxu0 %v1192
  %v1262 = vpop.f32.mrf.mxu0
  %v1263 = vadd.f32 0.0, %v1262
  %v1264 = vpop.f32.mrf.mxu0
  %1265 = vdwg.mxu0
  %1266 = vrot.lane.b32.xlu0 %v223, 96
  %v1267 = vpop.permute.xlu0 %1266
  %v1268 = vsel %vm355, %v223, 0
  %v1270 = vsel %vm355, %v1267, 0
  %1272 = vmatprep.subr.mxu0 0.0
  %1273 = vmatpush1.xpose.msra.mxu0 0.0
  %1274 = vmatprep.subr.mxu0 0.0
  %1275 = vmatpush1.xpose.msra.mxu0 0.0
  %1276 = vmatprep.subr.mxu0 0.0
  %1277 = vmatpush1.xpose.msra.mxu0 0.0
  %1278 = vmatprep.subr.mxu0 0.0
  %1279 = vmatpush1.xpose.msra.mxu0 0.0
  %1280 = vmatprep.subr.mxu0 0.0
  %1281 = vmatpush1.xpose.msra.mxu0 0.0
  %1282 = vmatprep.subr.mxu0 0.0
  %1283 = vmatpush1.xpose.msra.mxu0 0.0
  %1284 = vmatprep.subr.mxu0 0.0
  %1285 = vmatpush1.xpose.msra.mxu0 0.0
  %1286 = vmatprep.subr.mxu0 0.0
  %1287 = vmatpush1.xpose.msra.mxu0 0.0
  %1288 = vmatprep.subr.mxu0 0.0
  %1289 = vmatpush1.xpose.msra.mxu0 0.0
  %1290 = vmatprep.subr.mxu0 0.0
  %1291 = vmatpush1.xpose.msra.mxu0 0.0
  %1292 = vmatprep.subr.mxu0 0.0
  %1293 = vmatpush1.xpose.msra.mxu0 0.0
  %1294 = vmatprep.subr.mxu0 0.0
  %1295 = vmatpush1.xpose.msra.mxu0 0.0
  %1296 = vmatprep.subr.mxu0 0.0
  %1297 = vmatpush1.xpose.msra.mxu0 0.0
  %1298 = vmatprep.subr.mxu0 0.0
  %1299 = vmatpush1.xpose.msra.mxu0 0.0
  %1300 = vmatprep.subr.mxu0 0.0
  %1301 = vmatpush1.xpose.msra.mxu0 0.0
  %1302 = vmatprep.subr.mxu0 0.0
  %1303 = vmatpush1.xpose.msra.mxu0 %v1270
  %1304 = vmatprep.subr.mxu0 0.0
  %1305 = vmatpush2.xpose.msra.mxu0 0.0
  %1306 = vmatprep.subr.mxu0 0.0
  %1307 = vmatpush2.xpose.msra.mxu0 0.0
  %1308 = vmatprep.subr.mxu0 0.0
  %1309 = vmatpush2.xpose.msra.mxu0 0.0
  %1310 = vmatprep.subr.mxu0 0.0
  %1311 = vmatpush2.xpose.msra.mxu0 0.0
  %1312 = vmatprep.subr.mxu0 0.0
  %1313 = vmatpush2.xpose.msra.mxu0 0.0
  %1314 = vmatprep.subr.mxu0 0.0
  %1315 = vmatpush2.xpose.msra.mxu0 0.0
  %1316 = vmatprep.subr.mxu0 0.0
  %1317 = vmatpush2.xpose.msra.mxu0 0.0
  %1318 = vmatprep.subr.mxu0 0.0
  %1319 = vmatpush2.xpose.msra.mxu0 0.0
  %1320 = vmatprep.subr.mxu0 0.0
  %1321 = vmatpush2.xpose.msra.mxu0 0.0
  %1322 = vmatprep.subr.mxu0 0.0
  %1323 = vmatpush2.xpose.msra.mxu0 0.0
  %1324 = vmatprep.subr.mxu0 0.0
  %1325 = vmatpush2.xpose.msra.mxu0 0.0
  %1326 = vmatprep.subr.mxu0 0.0
  %1327 = vmatpush2.xpose.msra.mxu0 0.0
  %1328 = vmatprep.subr.mxu0 0.0
  %1329 = vmatpush2.xpose.msra.mxu0 0.0
  %1330 = vmatprep.subr.mxu0 0.0
  %1331 = vmatpush2.xpose.msra.mxu0 0.0
  %1332 = vmatprep.subr.mxu0 0.0
  %1333 = vmatpush2.xpose.msra.mxu0 0.0
  %1334 = vmatprep.subr.mxu0 0.0
  %1335 = vmatpush2.xpose.msra.mxu0 0.0
  %1336 = vmatprep.mubr.f32.mxu0 0.0
  %1337 = vmatmul.mubr.f32.gmra.mxu0 %v1268
  %v1338 = vpop.f32.mrf.mxu0
  %v1339 = vadd.f32 0.0, %v1338
  %v1340 = vpop.f32.mrf.mxu0
  %1341 = vdwg.mxu0
  %1342 = vrot.lane.b32.xlu0 %v228, 96
  %v1343 = vpop.permute.xlu0 %1342
  %v1344 = vsel %vm355, %v228, 0
  %v1346 = vsel %vm355, %v1343, 0
  %1348 = vmatprep.subr.mxu0 0.0
  %1349 = vmatpush1.xpose.msra.mxu0 0.0
  %1350 = vmatprep.subr.mxu0 0.0
  %1351 = vmatpush1.xpose.msra.mxu0 0.0
  %1352 = vmatprep.subr.mxu0 0.0
  %1353 = vmatpush1.xpose.msra.mxu0 0.0
  %1354 = vmatprep.subr.mxu0 0.0
  %1355 = vmatpush1.xpose.msra.mxu0 0.0
  %1356 = vmatprep.subr.mxu0 0.0
  %1357 = vmatpush1.xpose.msra.mxu0 0.0
  %1358 = vmatprep.subr.mxu0 0.0
  %1359 = vmatpush1.xpose.msra.mxu0 0.0
  %1360 = vmatprep.subr.mxu0 0.0
  %1361 = vmatpush1.xpose.msra.mxu0 0.0
  %1362 = vmatprep.subr.mxu0 0.0
  %1363 = vmatpush1.xpose.msra.mxu0 0.0
  %1364 = vmatprep.subr.mxu0 0.0
  %1365 = vmatpush1.xpose.msra.mxu0 0.0
  %1366 = vmatprep.subr.mxu0 0.0
  %1367 = vmatpush1.xpose.msra.mxu0 0.0
  %1368 = vmatprep.subr.mxu0 0.0
  %1369 = vmatpush1.xpose.msra.mxu0 0.0
  %1370 = vmatprep.subr.mxu0 0.0
  %1371 = vmatpush1.xpose.msra.mxu0 0.0
  %1372 = vmatprep.subr.mxu0 0.0
  %1373 = vmatpush1.xpose.msra.mxu0 0.0
  %1374 = vmatprep.subr.mxu0 0.0
  %1375 = vmatpush1.xpose.msra.mxu0 0.0
  %1376 = vmatprep.subr.mxu0 0.0
  %1377 = vmatpush1.xpose.msra.mxu0 0.0
  %1378 = vmatprep.subr.mxu0 0.0
  %1379 = vmatpush1.xpose.msra.mxu0 %v1346
  %1380 = vmatprep.subr.mxu0 0.0
  %1381 = vmatpush2.xpose.msra.mxu0 0.0
  %1382 = vmatprep.subr.mxu0 0.0
  %1383 = vmatpush2.xpose.msra.mxu0 0.0
  %1384 = vmatprep.subr.mxu0 0.0
  %1385 = vmatpush2.xpose.msra.mxu0 0.0
  %1386 = vmatprep.subr.mxu0 0.0
  %1387 = vmatpush2.xpose.msra.mxu0 0.0
  %1388 = vmatprep.subr.mxu0 0.0
  %1389 = vmatpush2.xpose.msra.mxu0 0.0
  %1390 = vmatprep.subr.mxu0 0.0
  %1391 = vmatpush2.xpose.msra.mxu0 0.0
  %1392 = vmatprep.subr.mxu0 0.0
  %1393 = vmatpush2.xpose.msra.mxu0 0.0
  %1394 = vmatprep.subr.mxu0 0.0
  %1395 = vmatpush2.xpose.msra.mxu0 0.0
  %1396 = vmatprep.subr.mxu0 0.0
  %1397 = vmatpush2.xpose.msra.mxu0 0.0
  %1398 = vmatprep.subr.mxu0 0.0
  %1399 = vmatpush2.xpose.msra.mxu0 0.0
  %1400 = vmatprep.subr.mxu0 0.0
  %1401 = vmatpush2.xpose.msra.mxu0 0.0
  %1402 = vmatprep.subr.mxu0 0.0
  %1403 = vmatpush2.xpose.msra.mxu0 0.0
  %1404 = vmatprep.subr.mxu0 0.0
  %1405 = vmatpush2.xpose.msra.mxu0 0.0
  %1406 = vmatprep.subr.mxu0 0.0
  %1407 = vmatpush2.xpose.msra.mxu0 0.0
  %1408 = vmatprep.subr.mxu0 0.0
  %1409 = vmatpush2.xpose.msra.mxu0 0.0
  %1410 = vmatprep.subr.mxu0 0.0
  %1411 = vmatpush2.xpose.msra.mxu0 0.0
  %1412 = vmatprep.mubr.f32.mxu0 0.0
  %1413 = vmatmul.mubr.f32.gmra.mxu0 %v1344
  %v1414 = vpop.f32.mrf.mxu0
  %v1415 = vadd.f32 0.0, %v1414
  %v1416 = vpop.f32.mrf.mxu0
  %1417 = vdwg.mxu0
  %1418 = vrot.lane.b32.xlu0 %v233, 96
  %v1419 = vpop.permute.xlu0 %1418
  %v1420 = vsel %vm355, %v233, 0
  %v1422 = vsel %vm355, %v1419, 0
  %1424 = vmatprep.subr.mxu0 0.0
  %1425 = vmatpush1.xpose.msra.mxu0 0.0
  %1426 = vmatprep.subr.mxu0 0.0
  %1427 = vmatpush1.xpose.msra.mxu0 0.0
  %1428 = vmatprep.subr.mxu0 0.0
  %1429 = vmatpush1.xpose.msra.mxu0 0.0
  %1430 = vmatprep.subr.mxu0 0.0
  %1431 = vmatpush1.xpose.msra.mxu0 0.0
  %1432 = vmatprep.subr.mxu0 0.0
  %1433 = vmatpush1.xpose.msra.mxu0 0.0
  %1434 = vmatprep.subr.mxu0 0.0
  %1435 = vmatpush1.xpose.msra.mxu0 0.0
  %1436 = vmatprep.subr.mxu0 0.0
  %1437 = vmatpush1.xpose.msra.mxu0 0.0
  %1438 = vmatprep.subr.mxu0 0.0
  %1439 = vmatpush1.xpose.msra.mxu0 0.0
  %1440 = vmatprep.subr.mxu0 0.0
  %1441 = vmatpush1.xpose.msra.mxu0 0.0
  %1442 = vmatprep.subr.mxu0 0.0
  %1443 = vmatpush1.xpose.msra.mxu0 0.0
  %1444 = vmatprep.subr.mxu0 0.0
  %1445 = vmatpush1.xpose.msra.mxu0 0.0
  %1446 = vmatprep.subr.mxu0 0.0
  %1447 = vmatpush1.xpose.msra.mxu0 0.0
  %1448 = vmatprep.subr.mxu0 0.0
  %1449 = vmatpush1.xpose.msra.mxu0 0.0
  %1450 = vmatprep.subr.mxu0 0.0
  %1451 = vmatpush1.xpose.msra.mxu0 0.0
  %1452 = vmatprep.subr.mxu0 0.0
  %1453 = vmatpush1.xpose.msra.mxu0 0.0
  %1454 = vmatprep.subr.mxu0 0.0
  %1455 = vmatpush1.xpose.msra.mxu0 %v1422
  %1456 = vmatprep.subr.mxu0 0.0
  %1457 = vmatpush2.xpose.msra.mxu0 0.0
  %1458 = vmatprep.subr.mxu0 0.0
  %1459 = vmatpush2.xpose.msra.mxu0 0.0
  %1460 = vmatprep.subr.mxu0 0.0
  %1461 = vmatpush2.xpose.msra.mxu0 0.0
  %1462 = vmatprep.subr.mxu0 0.0
  %1463 = vmatpush2.xpose.msra.mxu0 0.0
  %1464 = vmatprep.subr.mxu0 0.0
  %1465 = vmatpush2.xpose.msra.mxu0 0.0
  %1466 = vmatprep.subr.mxu0 0.0
  %1467 = vmatpush2.xpose.msra.mxu0 0.0
  %1468 = vmatprep.subr.mxu0 0.0
  %1469 = vmatpush2.xpose.msra.mxu0 0.0
  %1470 = vmatprep.subr.mxu0 0.0
  %1471 = vmatpush2.xpose.msra.mxu0 0.0
  %1472 = vmatprep.subr.mxu0 0.0
  %1473 = vmatpush2.xpose.msra.mxu0 0.0
  %1474 = vmatprep.subr.mxu0 0.0
  %1475 = vmatpush2.xpose.msra.mxu0 0.0
  %1476 = vmatprep.subr.mxu0 0.0
  %1477 = vmatpush2.xpose.msra.mxu0 0.0
  %1478 = vmatprep.subr.mxu0 0.0
  %1479 = vmatpush2.xpose.msra.mxu0 0.0
  %1480 = vmatprep.subr.mxu0 0.0
  %1481 = vmatpush2.xpose.msra.mxu0 0.0
  %1482 = vmatprep.subr.mxu0 0.0
  %1483 = vmatpush2.xpose.msra.mxu0 0.0
  %1484 = vmatprep.subr.mxu0 0.0
  %1485 = vmatpush2.xpose.msra.mxu0 0.0
  %1486 = vmatprep.subr.mxu0 0.0
  %1487 = vmatpush2.xpose.msra.mxu0 0.0
  %1488 = vmatprep.mubr.f32.mxu0 0.0
  %1489 = vmatmul.mubr.f32.gmra.mxu0 %v1420
  %v1490 = vpop.f32.mrf.mxu0
  %v1491 = vadd.f32 0.0, %v1490
  %v1492 = vpop.f32.mrf.mxu0
  %1493 = vdwg.mxu0
  %1494 = vrot.lane.b32.xlu0 %v238, 96
  %v1495 = vpop.permute.xlu0 %1494
  %v1496 = vsel %vm355, %v238, 0
  %v1498 = vsel %vm355, %v1495, 0
  %1500 = vmatprep.subr.mxu0 0.0
  %1501 = vmatpush1.xpose.msra.mxu0 0.0
  %1502 = vmatprep.subr.mxu0 0.0
  %1503 = vmatpush1.xpose.msra.mxu0 0.0
  %1504 = vmatprep.subr.mxu0 0.0
  %1505 = vmatpush1.xpose.msra.mxu0 0.0
  %1506 = vmatprep.subr.mxu0 0.0
  %1507 = vmatpush1.xpose.msra.mxu0 0.0
  %1508 = vmatprep.subr.mxu0 0.0
  %1509 = vmatpush1.xpose.msra.mxu0 0.0
  %1510 = vmatprep.subr.mxu0 0.0
  %1511 = vmatpush1.xpose.msra.mxu0 0.0
  %1512 = vmatprep.subr.mxu0 0.0
  %1513 = vmatpush1.xpose.msra.mxu0 0.0
  %1514 = vmatprep.subr.mxu0 0.0
  %1515 = vmatpush1.xpose.msra.mxu0 0.0
  %1516 = vmatprep.subr.mxu0 0.0
  %1517 = vmatpush1.xpose.msra.mxu0 0.0
  %1518 = vmatprep.subr.mxu0 0.0
  %1519 = vmatpush1.xpose.msra.mxu0 0.0
  %1520 = vmatprep.subr.mxu0 0.0
  %1521 = vmatpush1.xpose.msra.mxu0 0.0
  %1522 = vmatprep.subr.mxu0 0.0
  %1523 = vmatpush1.xpose.msra.mxu0 0.0
  %1524 = vmatprep.subr.mxu0 0.0
  %1525 = vmatpush1.xpose.msra.mxu0 0.0
  %1526 = vmatprep.subr.mxu0 0.0
  %1527 = vmatpush1.xpose.msra.mxu0 0.0
  %1528 = vmatprep.subr.mxu0 0.0
  %1529 = vmatpush1.xpose.msra.mxu0 0.0
  %1530 = vmatprep.subr.mxu0 0.0
  %1531 = vmatpush1.xpose.msra.mxu0 %v1498
  %1532 = vmatprep.subr.mxu0 0.0
  %1533 = vmatpush2.xpose.msra.mxu0 0.0
  %1534 = vmatprep.subr.mxu0 0.0
  %1535 = vmatpush2.xpose.msra.mxu0 0.0
  %1536 = vmatprep.subr.mxu0 0.0
  %1537 = vmatpush2.xpose.msra.mxu0 0.0
  %1538 = vmatprep.subr.mxu0 0.0
  %1539 = vmatpush2.xpose.msra.mxu0 0.0
  %1540 = vmatprep.subr.mxu0 0.0
  %1541 = vmatpush2.xpose.msra.mxu0 0.0
  %1542 = vmatprep.subr.mxu0 0.0
  %1543 = vmatpush2.xpose.msra.mxu0 0.0
  %1544 = vmatprep.subr.mxu0 0.0
  %1545 = vmatpush2.xpose.msra.mxu0 0.0
  %1546 = vmatprep.subr.mxu0 0.0
  %1547 = vmatpush2.xpose.msra.mxu0 0.0
  %1548 = vmatprep.subr.mxu0 0.0
  %1549 = vmatpush2.xpose.msra.mxu0 0.0
  %1550 = vmatprep.subr.mxu0 0.0
  %1551 = vmatpush2.xpose.msra.mxu0 0.0
  %1552 = vmatprep.subr.mxu0 0.0
  %1553 = vmatpush2.xpose.msra.mxu0 0.0
  %1554 = vmatprep.subr.mxu0 0.0
  %1555 = vmatpush2.xpose.msra.mxu0 0.0
  %1556 = vmatprep.subr.mxu0 0.0
  %1557 = vmatpush2.xpose.msra.mxu0 0.0
  %1558 = vmatprep.subr.mxu0 0.0
  %1559 = vmatpush2.xpose.msra.mxu0 0.0
  %1560 = vmatprep.subr.mxu0 0.0
  %1561 = vmatpush2.xpose.msra.mxu0 0.0
  %1562 = vmatprep.subr.mxu0 0.0
  %1563 = vmatpush2.xpose.msra.mxu0 0.0
  %1564 = vmatprep.mubr.f32.mxu0 0.0
  %1565 = vmatmul.mubr.f32.gmra.mxu0 %v1496
  %v1566 = vpop.f32.mrf.mxu0
  %v1567 = vadd.f32 0.0, %v1566
  %v1568 = vpop.f32.mrf.mxu0
  %1569 = vdwg.mxu0
  %1570 = vrot.lane.b32.xlu0 %v258, 96
  %v1571 = vpop.permute.xlu0 %1570
  %v1572 = vsel %vm355, %v258, 0
  %v1574 = vsel %vm355, %v1571, 0
  %1576 = vmatprep.subr.mxu0 0.0
  %1577 = vmatpush1.xpose.msra.mxu0 0.0
  %1578 = vmatprep.subr.mxu0 0.0
  %1579 = vmatpush1.xpose.msra.mxu0 0.0
  %1580 = vmatprep.subr.mxu0 0.0
  %1581 = vmatpush1.xpose.msra.mxu0 0.0
  %1582 = vmatprep.subr.mxu0 0.0
  %1583 = vmatpush1.xpose.msra.mxu0 0.0
  %1584 = vmatprep.subr.mxu0 0.0
  %1585 = vmatpush1.xpose.msra.mxu0 0.0
  %1586 = vmatprep.subr.mxu0 0.0
  %1587 = vmatpush1.xpose.msra.mxu0 0.0
  %1588 = vmatprep.subr.mxu0 0.0
  %1589 = vmatpush1.xpose.msra.mxu0 0.0
  %1590 = vmatprep.subr.mxu0 0.0
  %1591 = vmatpush1.xpose.msra.mxu0 0.0
  %1592 = vmatprep.subr.mxu0 0.0
  %1593 = vmatpush1.xpose.msra.mxu0 0.0
  %1594 = vmatprep.subr.mxu0 0.0
  %1595 = vmatpush1.xpose.msra.mxu0 0.0
  %1596 = vmatprep.subr.mxu0 0.0
  %1597 = vmatpush1.xpose.msra.mxu0 0.0
  %1598 = vmatprep.subr.mxu0 0.0
  %1599 = vmatpush1.xpose.msra.mxu0 0.0
  %1600 = vmatprep.subr.mxu0 0.0
  %1601 = vmatpush1.xpose.msra.mxu0 0.0
  %1602 = vmatprep.subr.mxu0 0.0
  %1603 = vmatpush1.xpose.msra.mxu0 0.0
  %1604 = vmatprep.subr.mxu0 0.0
  %1605 = vmatpush1.xpose.msra.mxu0 0.0
  %1606 = vmatprep.subr.mxu0 0.0
  %1607 = vmatpush1.xpose.msra.mxu0 %v1574
  %1608 = vmatprep.subr.mxu0 0.0
  %1609 = vmatpush2.xpose.msra.mxu0 0.0
  %1610 = vmatprep.subr.mxu0 0.0
  %1611 = vmatpush2.xpose.msra.mxu0 0.0
  %1612 = vmatprep.subr.mxu0 0.0
  %1613 = vmatpush2.xpose.msra.mxu0 0.0
  %1614 = vmatprep.subr.mxu0 0.0
  %1615 = vmatpush2.xpose.msra.mxu0 0.0
  %1616 = vmatprep.subr.mxu0 0.0
  %1617 = vmatpush2.xpose.msra.mxu0 0.0
  %1618 = vmatprep.subr.mxu0 0.0
  %1619 = vmatpush2.xpose.msra.mxu0 0.0
  %1620 = vmatprep.subr.mxu0 0.0
  %1621 = vmatpush2.xpose.msra.mxu0 0.0
  %1622 = vmatprep.subr.mxu0 0.0
  %1623 = vmatpush2.xpose.msra.mxu0 0.0
  %1624 = vmatprep.subr.mxu0 0.0
  %1625 = vmatpush2.xpose.msra.mxu0 0.0
  %1626 = vmatprep.subr.mxu0 0.0
  %1627 = vmatpush2.xpose.msra.mxu0 0.0
  %1628 = vmatprep.subr.mxu0 0.0
  %1629 = vmatpush2.xpose.msra.mxu0 0.0
  %1630 = vmatprep.subr.mxu0 0.0
  %1631 = vmatpush2.xpose.msra.mxu0 0.0
  %1632 = vmatprep.subr.mxu0 0.0
  %1633 = vmatpush2.xpose.msra.mxu0 0.0
  %1634 = vmatprep.subr.mxu0 0.0
  %1635 = vmatpush2.xpose.msra.mxu0 0.0
  %1636 = vmatprep.subr.mxu0 0.0
  %1637 = vmatpush2.xpose.msra.mxu0 0.0
  %1638 = vmatprep.subr.mxu0 0.0
  %1639 = vmatpush2.xpose.msra.mxu0 0.0
  %1640 = vmatprep.mubr.f32.mxu0 0.0
  %1641 = vmatmul.mubr.f32.gmra.mxu0 %v1572
  %v1642 = vpop.f32.mrf.mxu0
  %v1643 = vadd.f32 0.0, %v1642
  %v1644 = vpop.f32.mrf.mxu0
  %1645 = vdwg.mxu0
  %1646 = vrot.lane.b32.xlu0 %v260, 96
  %v1647 = vpop.permute.xlu0 %1646
  %v1648 = vsel %vm355, %v260, 0
  %v1650 = vsel %vm355, %v1647, 0
  %1652 = vmatprep.subr.mxu0 0.0
  %1653 = vmatpush1.xpose.msra.mxu0 0.0
  %1654 = vmatprep.subr.mxu0 0.0
  %1655 = vmatpush1.xpose.msra.mxu0 0.0
  %1656 = vmatprep.subr.mxu0 0.0
  %1657 = vmatpush1.xpose.msra.mxu0 0.0
  %1658 = vmatprep.subr.mxu0 0.0
  %1659 = vmatpush1.xpose.msra.mxu0 0.0
  %1660 = vmatprep.subr.mxu0 0.0
  %1661 = vmatpush1.xpose.msra.mxu0 0.0
  %1662 = vmatprep.subr.mxu0 0.0
  %1663 = vmatpush1.xpose.msra.mxu0 0.0
  %1664 = vmatprep.subr.mxu0 0.0
  %1665 = vmatpush1.xpose.msra.mxu0 0.0
  %1666 = vmatprep.subr.mxu0 0.0
  %1667 = vmatpush1.xpose.msra.mxu0 0.0
  %1668 = vmatprep.subr.mxu0 0.0
  %1669 = vmatpush1.xpose.msra.mxu0 0.0
  %1670 = vmatprep.subr.mxu0 0.0
  %1671 = vmatpush1.xpose.msra.mxu0 0.0
  %1672 = vmatprep.subr.mxu0 0.0
  %1673 = vmatpush1.xpose.msra.mxu0 0.0
  %1674 = vmatprep.subr.mxu0 0.0
  %1675 = vmatpush1.xpose.msra.mxu0 0.0
  %1676 = vmatprep.subr.mxu0 0.0
  %1677 = vmatpush1.xpose.msra.mxu0 0.0
  %1678 = vmatprep.subr.mxu0 0.0
  %1679 = vmatpush1.xpose.msra.mxu0 0.0
  %1680 = vmatprep.subr.mxu0 0.0
  %1681 = vmatpush1.xpose.msra.mxu0 0.0
  %1682 = vmatprep.subr.mxu0 0.0
  %1683 = vmatpush1.xpose.msra.mxu0 %v1650
  %1684 = vmatprep.subr.mxu0 0.0
  %1685 = vmatpush2.xpose.msra.mxu0 0.0
  %1686 = vmatprep.subr.mxu0 0.0
  %1687 = vmatpush2.xpose.msra.mxu0 0.0
  %1688 = vmatprep.subr.mxu0 0.0
  %1689 = vmatpush2.xpose.msra.mxu0 0.0
  %1690 = vmatprep.subr.mxu0 0.0
  %1691 = vmatpush2.xpose.msra.mxu0 0.0
  %1692 = vmatprep.subr.mxu0 0.0
  %1693 = vmatpush2.xpose.msra.mxu0 0.0
  %1694 = vmatprep.subr.mxu0 0.0
  %1695 = vmatpush2.xpose.msra.mxu0 0.0
  %1696 = vmatprep.subr.mxu0 0.0
  %1697 = vmatpush2.xpose.msra.mxu0 0.0
  %1698 = vmatprep.subr.mxu0 0.0
  %1699 = vmatpush2.xpose.msra.mxu0 0.0
  %1700 = vmatprep.subr.mxu0 0.0
  %1701 = vmatpush2.xpose.msra.mxu0 0.0
  %1702 = vmatprep.subr.mxu0 0.0
  %1703 = vmatpush2.xpose.msra.mxu0 0.0
  %1704 = vmatprep.subr.mxu0 0.0
  %1705 = vmatpush2.xpose.msra.mxu0 0.0
  %1706 = vmatprep.subr.mxu0 0.0
  %1707 = vmatpush2.xpose.msra.mxu0 0.0
  %1708 = vmatprep.subr.mxu0 0.0
  %1709 = vmatpush2.xpose.msra.mxu0 0.0
  %1710 = vmatprep.subr.mxu0 0.0
  %1711 = vmatpush2.xpose.msra.mxu0 0.0
  %1712 = vmatprep.subr.mxu0 0.0
  %1713 = vmatpush2.xpose.msra.mxu0 0.0
  %1714 = vmatprep.subr.mxu0 0.0
  %1715 = vmatpush2.xpose.msra.mxu0 0.0
  %1716 = vmatprep.mubr.f32.mxu0 0.0
  %1717 = vmatmul.mubr.f32.gmra.mxu0 %v1648
  %v1718 = vpop.f32.mrf.mxu0
  %v1719 = vadd.f32 0.0, %v1718
  %v1720 = vpop.f32.mrf.mxu0
  %1721 = vdwg.mxu0
  %1722 = vrot.lane.b32.xlu0 %v262, 96
  %v1723 = vpop.permute.xlu0 %1722
  %v1724 = vsel %vm355, %v262, 0
  %v1726 = vsel %vm355, %v1723, 0
  %1728 = vmatprep.subr.mxu0 0.0
  %1729 = vmatpush1.xpose.msra.mxu0 0.0
  %1730 = vmatprep.subr.mxu0 0.0
  %1731 = vmatpush1.xpose.msra.mxu0 0.0
  %1732 = vmatprep.subr.mxu0 0.0
  %1733 = vmatpush1.xpose.msra.mxu0 0.0
  %1734 = vmatprep.subr.mxu0 0.0
  %1735 = vmatpush1.xpose.msra.mxu0 0.0
  %1736 = vmatprep.subr.mxu0 0.0
  %1737 = vmatpush1.xpose.msra.mxu0 0.0
  %1738 = vmatprep.subr.mxu0 0.0
  %1739 = vmatpush1.xpose.msra.mxu0 0.0
  %1740 = vmatprep.subr.mxu0 0.0
  %1741 = vmatpush1.xpose.msra.mxu0 0.0
  %1742 = vmatprep.subr.mxu0 0.0
  %1743 = vmatpush1.xpose.msra.mxu0 0.0
  %1744 = vmatprep.subr.mxu0 0.0
  %1745 = vmatpush1.xpose.msra.mxu0 0.0
  %1746 = vmatprep.subr.mxu0 0.0
  %1747 = vmatpush1.xpose.msra.mxu0 0.0
  %1748 = vmatprep.subr.mxu0 0.0
  %1749 = vmatpush1.xpose.msra.mxu0 0.0
  %1750 = vmatprep.subr.mxu0 0.0
  %1751 = vmatpush1.xpose.msra.mxu0 0.0
  %1752 = vmatprep.subr.mxu0 0.0
  %1753 = vmatpush1.xpose.msra.mxu0 0.0
  %1754 = vmatprep.subr.mxu0 0.0
  %1755 = vmatpush1.xpose.msra.mxu0 0.0
  %1756 = vmatprep.subr.mxu0 0.0
  %1757 = vmatpush1.xpose.msra.mxu0 0.0
  %1758 = vmatprep.subr.mxu0 0.0
  %1759 = vmatpush1.xpose.msra.mxu0 %v1726
  %1760 = vmatprep.subr.mxu0 0.0
  %1761 = vmatpush2.xpose.msra.mxu0 0.0
  %1762 = vmatprep.subr.mxu0 0.0
  %1763 = vmatpush2.xpose.msra.mxu0 0.0
  %1764 = vmatprep.subr.mxu0 0.0
  %1765 = vmatpush2.xpose.msra.mxu0 0.0
  %1766 = vmatprep.subr.mxu0 0.0
  %1767 = vmatpush2.xpose.msra.mxu0 0.0
  %1768 = vmatprep.subr.mxu0 0.0
  %1769 = vmatpush2.xpose.msra.mxu0 0.0
  %1770 = vmatprep.subr.mxu0 0.0
  %1771 = vmatpush2.xpose.msra.mxu0 0.0
  %1772 = vmatprep.subr.mxu0 0.0
  %1773 = vmatpush2.xpose.msra.mxu0 0.0
  %1774 = vmatprep.subr.mxu0 0.0
  %1775 = vmatpush2.xpose.msra.mxu0 0.0
  %1776 = vmatprep.subr.mxu0 0.0
  %1777 = vmatpush2.xpose.msra.mxu0 0.0
  %1778 = vmatprep.subr.mxu0 0.0
  %1779 = vmatpush2.xpose.msra.mxu0 0.0
  %1780 = vmatprep.subr.mxu0 0.0
  %1781 = vmatpush2.xpose.msra.mxu0 0.0
  %1782 = vmatprep.subr.mxu0 0.0
  %1783 = vmatpush2.xpose.msra.mxu0 0.0
  %1784 = vmatprep.subr.mxu0 0.0
  %1785 = vmatpush2.xpose.msra.mxu0 0.0
  %1786 = vmatprep.subr.mxu0 0.0
  %1787 = vmatpush2.xpose.msra.mxu0 0.0
  %1788 = vmatprep.subr.mxu0 0.0
  %1789 = vmatpush2.xpose.msra.mxu0 0.0
  %1790 = vmatprep.subr.mxu0 0.0
  %1791 = vmatpush2.xpose.msra.mxu0 0.0
  %1792 = vmatprep.mubr.f32.mxu0 0.0
  %1793 = vmatmul.mubr.f32.gmra.mxu0 %v1724
  %v1794 = vpop.f32.mrf.mxu0
  %v1795 = vadd.f32 0.0, %v1794
  %v1796 = vpop.f32.mrf.mxu0
  %1797 = vdwg.mxu0
  %1798 = vrot.lane.b32.xlu0 %v264, 96
  %v1799 = vpop.permute.xlu0 %1798
  %v1800 = vsel %vm355, %v264, 0
  %v1802 = vsel %vm355, %v1799, 0
  %1804 = vmatprep.subr.mxu0 0.0
  %1805 = vmatpush1.xpose.msra.mxu0 0.0
  %1806 = vmatprep.subr.mxu0 0.0
  %1807 = vmatpush1.xpose.msra.mxu0 0.0
  %1808 = vmatprep.subr.mxu0 0.0
  %1809 = vmatpush1.xpose.msra.mxu0 0.0
  %1810 = vmatprep.subr.mxu0 0.0
  %1811 = vmatpush1.xpose.msra.mxu0 0.0
  %1812 = vmatprep.subr.mxu0 0.0
  %1813 = vmatpush1.xpose.msra.mxu0 0.0
  %1814 = vmatprep.subr.mxu0 0.0
  %1815 = vmatpush1.xpose.msra.mxu0 0.0
  %1816 = vmatprep.subr.mxu0 0.0
  %1817 = vmatpush1.xpose.msra.mxu0 0.0
  %1818 = vmatprep.subr.mxu0 0.0
  %1819 = vmatpush1.xpose.msra.mxu0 0.0
  %1820 = vmatprep.subr.mxu0 0.0
  %1821 = vmatpush1.xpose.msra.mxu0 0.0
  %1822 = vmatprep.subr.mxu0 0.0
  %1823 = vmatpush1.xpose.msra.mxu0 0.0
  %1824 = vmatprep.subr.mxu0 0.0
  %1825 = vmatpush1.xpose.msra.mxu0 0.0
  %1826 = vmatprep.subr.mxu0 0.0
  %1827 = vmatpush1.xpose.msra.mxu0 0.0
  %1828 = vmatprep.subr.mxu0 0.0
  %1829 = vmatpush1.xpose.msra.mxu0 0.0
  %1830 = vmatprep.subr.mxu0 0.0
  %1831 = vmatpush1.xpose.msra.mxu0 0.0
  %1832 = vmatprep.subr.mxu0 0.0
  %1833 = vmatpush1.xpose.msra.mxu0 0.0
  %1834 = vmatprep.subr.mxu0 0.0
  %1835 = vmatpush1.xpose.msra.mxu0 %v1802
  %1836 = vmatprep.subr.mxu0 0.0
  %1837 = vmatpush2.xpose.msra.mxu0 0.0
  %1838 = vmatprep.subr.mxu0 0.0
  %1839 = vmatpush2.xpose.msra.mxu0 0.0
  %1840 = vmatprep.subr.mxu0 0.0
  %1841 = vmatpush2.xpose.msra.mxu0 0.0
  %1842 = vmatprep.subr.mxu0 0.0
  %1843 = vmatpush2.xpose.msra.mxu0 0.0
  %1844 = vmatprep.subr.mxu0 0.0
  %1845 = vmatpush2.xpose.msra.mxu0 0.0
  %1846 = vmatprep.subr.mxu0 0.0
  %1847 = vmatpush2.xpose.msra.mxu0 0.0
  %1848 = vmatprep.subr.mxu0 0.0
  %1849 = vmatpush2.xpose.msra.mxu0 0.0
  %1850 = vmatprep.subr.mxu0 0.0
  %1851 = vmatpush2.xpose.msra.mxu0 0.0
  %1852 = vmatprep.subr.mxu0 0.0
  %1853 = vmatpush2.xpose.msra.mxu0 0.0
  %1854 = vmatprep.subr.mxu0 0.0
  %1855 = vmatpush2.xpose.msra.mxu0 0.0
  %1856 = vmatprep.subr.mxu0 0.0
  %1857 = vmatpush2.xpose.msra.mxu0 0.0
  %1858 = vmatprep.subr.mxu0 0.0
  %1859 = vmatpush2.xpose.msra.mxu0 0.0
  %1860 = vmatprep.subr.mxu0 0.0
  %1861 = vmatpush2.xpose.msra.mxu0 0.0
  %1862 = vmatprep.subr.mxu0 0.0
  %1863 = vmatpush2.xpose.msra.mxu0 0.0
  %1864 = vmatprep.subr.mxu0 0.0
  %1865 = vmatpush2.xpose.msra.mxu0 0.0
  %1866 = vmatprep.subr.mxu0 0.0
  %1867 = vmatpush2.xpose.msra.mxu0 0.0
  %1868 = vmatprep.mubr.f32.mxu0 0.0
  %1869 = vmatmul.mubr.f32.gmra.mxu0 %v1800
  %v1870 = vpop.f32.mrf.mxu0
  %v1871 = vadd.f32 0.0, %v1870
  %v1872 = vpop.f32.mrf.mxu0
  %1873 = vdwg.mxu0
  %1874 = vrot.lane.b32.xlu0 %v266, 96
  %v1875 = vpop.permute.xlu0 %1874
  %v1876 = vsel %vm355, %v266, 0
  %v1878 = vsel %vm355, %v1875, 0
  %1880 = vmatprep.subr.mxu0 0.0
  %1881 = vmatpush1.xpose.msra.mxu0 0.0
  %1882 = vmatprep.subr.mxu0 0.0
  %1883 = vmatpush1.xpose.msra.mxu0 0.0
  %1884 = vmatprep.subr.mxu0 0.0
  %1885 = vmatpush1.xpose.msra.mxu0 0.0
  %1886 = vmatprep.subr.mxu0 0.0
  %1887 = vmatpush1.xpose.msra.mxu0 0.0
  %1888 = vmatprep.subr.mxu0 0.0
  %1889 = vmatpush1.xpose.msra.mxu0 0.0
  %1890 = vmatprep.subr.mxu0 0.0
  %1891 = vmatpush1.xpose.msra.mxu0 0.0
  %1892 = vmatprep.subr.mxu0 0.0
  %1893 = vmatpush1.xpose.msra.mxu0 0.0
  %1894 = vmatprep.subr.mxu0 0.0
  %1895 = vmatpush1.xpose.msra.mxu0 0.0
  %1896 = vmatprep.subr.mxu0 0.0
  %1897 = vmatpush1.xpose.msra.mxu0 0.0
  %1898 = vmatprep.subr.mxu0 0.0
  %1899 = vmatpush1.xpose.msra.mxu0 0.0
  %1900 = vmatprep.subr.mxu0 0.0
  %1901 = vmatpush1.xpose.msra.mxu0 0.0
  %1902 = vmatprep.subr.mxu0 0.0
  %1903 = vmatpush1.xpose.msra.mxu0 0.0
  %1904 = vmatprep.subr.mxu0 0.0
  %1905 = vmatpush1.xpose.msra.mxu0 0.0
  %1906 = vmatprep.subr.mxu0 0.0
  %1907 = vmatpush1.xpose.msra.mxu0 0.0
  %1908 = vmatprep.subr.mxu0 0.0
  %1909 = vmatpush1.xpose.msra.mxu0 0.0
  %1910 = vmatprep.subr.mxu0 0.0
  %1911 = vmatpush1.xpose.msra.mxu0 %v1878
  %1912 = vmatprep.subr.mxu0 0.0
  %1913 = vmatpush2.xpose.msra.mxu0 0.0
  %1914 = vmatprep.subr.mxu0 0.0
  %1915 = vmatpush2.xpose.msra.mxu0 0.0
  %1916 = vmatprep.subr.mxu0 0.0
  %1917 = vmatpush2.xpose.msra.mxu0 0.0
  %1918 = vmatprep.subr.mxu0 0.0
  %1919 = vmatpush2.xpose.msra.mxu0 0.0
  %1920 = vmatprep.subr.mxu0 0.0
  %1921 = vmatpush2.xpose.msra.mxu0 0.0
  %1922 = vmatprep.subr.mxu0 0.0
  %1923 = vmatpush2.xpose.msra.mxu0 0.0
  %1924 = vmatprep.subr.mxu0 0.0
  %1925 = vmatpush2.xpose.msra.mxu0 0.0
  %1926 = vmatprep.subr.mxu0 0.0
  %1927 = vmatpush2.xpose.msra.mxu0 0.0
  %1928 = vmatprep.subr.mxu0 0.0
  %1929 = vmatpush2.xpose.msra.mxu0 0.0
  %1930 = vmatprep.subr.mxu0 0.0
  %1931 = vmatpush2.xpose.msra.mxu0 0.0
  %1932 = vmatprep.subr.mxu0 0.0
  %1933 = vmatpush2.xpose.msra.mxu0 0.0
  %1934 = vmatprep.subr.mxu0 0.0
  %1935 = vmatpush2.xpose.msra.mxu0 0.0
  %1936 = vmatprep.subr.mxu0 0.0
  %1937 = vmatpush2.xpose.msra.mxu0 0.0
  %1938 = vmatprep.subr.mxu0 0.0
  %1939 = vmatpush2.xpose.msra.mxu0 0.0
  %1940 = vmatprep.subr.mxu0 0.0
  %1941 = vmatpush2.xpose.msra.mxu0 0.0
  %1942 = vmatprep.subr.mxu0 0.0
  %1943 = vmatpush2.xpose.msra.mxu0 0.0
  %1944 = vmatprep.mubr.f32.mxu0 0.0
  %1945 = vmatmul.mubr.f32.gmra.mxu0 %v1876
  %v1946 = vpop.f32.mrf.mxu0
  %v1947 = vadd.f32 0.0, %v1946
  %v1948 = vpop.f32.mrf.mxu0
  %1949 = vdwg.mxu0
  %1950 = vrot.lane.b32.xlu0 %v268, 96
  %v1951 = vpop.permute.xlu0 %1950
  %v1952 = vsel %vm355, %v268, 0
  %v1954 = vsel %vm355, %v1951, 0
  %1956 = vmatprep.subr.mxu0 0.0
  %1957 = vmatpush1.xpose.msra.mxu0 0.0
  %1958 = vmatprep.subr.mxu0 0.0
  %1959 = vmatpush1.xpose.msra.mxu0 0.0
  %1960 = vmatprep.subr.mxu0 0.0
  %1961 = vmatpush1.xpose.msra.mxu0 0.0
  %1962 = vmatprep.subr.mxu0 0.0
  %1963 = vmatpush1.xpose.msra.mxu0 0.0
  %1964 = vmatprep.subr.mxu0 0.0
  %1965 = vmatpush1.xpose.msra.mxu0 0.0
  %1966 = vmatprep.subr.mxu0 0.0
  %1967 = vmatpush1.xpose.msra.mxu0 0.0
  %1968 = vmatprep.subr.mxu0 0.0
  %1969 = vmatpush1.xpose.msra.mxu0 0.0
  %1970 = vmatprep.subr.mxu0 0.0
  %1971 = vmatpush1.xpose.msra.mxu0 0.0
  %1972 = vmatprep.subr.mxu0 0.0
  %1973 = vmatpush1.xpose.msra.mxu0 0.0
  %1974 = vmatprep.subr.mxu0 0.0
  %1975 = vmatpush1.xpose.msra.mxu0 0.0
  %1976 = vmatprep.subr.mxu0 0.0
  %1977 = vmatpush1.xpose.msra.mxu0 0.0
  %1978 = vmatprep.subr.mxu0 0.0
  %1979 = vmatpush1.xpose.msra.mxu0 0.0
  %1980 = vmatprep.subr.mxu0 0.0
  %1981 = vmatpush1.xpose.msra.mxu0 0.0
  %1982 = vmatprep.subr.mxu0 0.0
  %1983 = vmatpush1.xpose.msra.mxu0 0.0
  %1984 = vmatprep.subr.mxu0 0.0
  %1985 = vmatpush1.xpose.msra.mxu0 0.0
  %1986 = vmatprep.subr.mxu0 0.0
  %1987 = vmatpush1.xpose.msra.mxu0 %v1954
  %1988 = vmatprep.subr.mxu0 0.0
  %1989 = vmatpush2.xpose.msra.mxu0 0.0
  %1990 = vmatprep.subr.mxu0 0.0
  %1991 = vmatpush2.xpose.msra.mxu0 0.0
  %1992 = vmatprep.subr.mxu0 0.0
  %1993 = vmatpush2.xpose.msra.mxu0 0.0
  %1994 = vmatprep.subr.mxu0 0.0
  %1995 = vmatpush2.xpose.msra.mxu0 0.0
  %1996 = vmatprep.subr.mxu0 0.0
  %1997 = vmatpush2.xpose.msra.mxu0 0.0
  %1998 = vmatprep.subr.mxu0 0.0
  %1999 = vmatpush2.xpose.msra.mxu0 0.0
  %2000 = vmatprep.subr.mxu0 0.0
  %2001 = vmatpush2.xpose.msra.mxu0 0.0
  %2002 = vmatprep.subr.mxu0 0.0
  %2003 = vmatpush2.xpose.msra.mxu0 0.0
  %2004 = vmatprep.subr.mxu0 0.0
  %2005 = vmatpush2.xpose.msra.mxu0 0.0
  %2006 = vmatprep.subr.mxu0 0.0
  %2007 = vmatpush2.xpose.msra.mxu0 0.0
  %2008 = vmatprep.subr.mxu0 0.0
  %2009 = vmatpush2.xpose.msra.mxu0 0.0
  %2010 = vmatprep.subr.mxu0 0.0
  %2011 = vmatpush2.xpose.msra.mxu0 0.0
  %2012 = vmatprep.subr.mxu0 0.0
  %2013 = vmatpush2.xpose.msra.mxu0 0.0
  %2014 = vmatprep.subr.mxu0 0.0
  %2015 = vmatpush2.xpose.msra.mxu0 0.0
  %2016 = vmatprep.subr.mxu0 0.0
  %2017 = vmatpush2.xpose.msra.mxu0 0.0
  %2018 = vmatprep.subr.mxu0 0.0
  %2019 = vmatpush2.xpose.msra.mxu0 0.0
  %2020 = vmatprep.mubr.f32.mxu0 0.0
  %2021 = vmatmul.mubr.f32.gmra.mxu0 %v1952
  %v2022 = vpop.f32.mrf.mxu0
  %v2023 = vadd.f32 0.0, %v2022
  %v2024 = vpop.f32.mrf.mxu0
  %2025 = vdwg.mxu0
  %2026 = vrot.lane.b32.xlu0 %v270, 96
  %v2027 = vpop.permute.xlu0 %2026
  %v2028 = vsel %vm355, %v270, 0
  %v2030 = vsel %vm355, %v2027, 0
  %2032 = vmatprep.subr.mxu0 0.0
  %2033 = vmatpush1.xpose.msra.mxu0 0.0
  %2034 = vmatprep.subr.mxu0 0.0
  %2035 = vmatpush1.xpose.msra.mxu0 0.0
  %2036 = vmatprep.subr.mxu0 0.0
  %2037 = vmatpush1.xpose.msra.mxu0 0.0
  %2038 = vmatprep.subr.mxu0 0.0
  %2039 = vmatpush1.xpose.msra.mxu0 0.0
  %2040 = vmatprep.subr.mxu0 0.0
  %2041 = vmatpush1.xpose.msra.mxu0 0.0
  %2042 = vmatprep.subr.mxu0 0.0
  %2043 = vmatpush1.xpose.msra.mxu0 0.0
  %2044 = vmatprep.subr.mxu0 0.0
  %2045 = vmatpush1.xpose.msra.mxu0 0.0
  %2046 = vmatprep.subr.mxu0 0.0
  %2047 = vmatpush1.xpose.msra.mxu0 0.0
  %2048 = vmatprep.subr.mxu0 0.0
  %2049 = vmatpush1.xpose.msra.mxu0 0.0
  %2050 = vmatprep.subr.mxu0 0.0
  %2051 = vmatpush1.xpose.msra.mxu0 0.0
  %2052 = vmatprep.subr.mxu0 0.0
  %2053 = vmatpush1.xpose.msra.mxu0 0.0
  %2054 = vmatprep.subr.mxu0 0.0
  %2055 = vmatpush1.xpose.msra.mxu0 0.0
  %2056 = vmatprep.subr.mxu0 0.0
  %2057 = vmatpush1.xpose.msra.mxu0 0.0
  %2058 = vmatprep.subr.mxu0 0.0
  %2059 = vmatpush1.xpose.msra.mxu0 0.0
  %2060 = vmatprep.subr.mxu0 0.0
  %2061 = vmatpush1.xpose.msra.mxu0 0.0
  %2062 = vmatprep.subr.mxu0 0.0
  %2063 = vmatpush1.xpose.msra.mxu0 %v2030
  %2064 = vmatprep.subr.mxu0 0.0
  %2065 = vmatpush2.xpose.msra.mxu0 0.0
  %2066 = vmatprep.subr.mxu0 0.0
  %2067 = vmatpush2.xpose.msra.mxu0 0.0
  %2068 = vmatprep.subr.mxu0 0.0
  %2069 = vmatpush2.xpose.msra.mxu0 0.0
  %2070 = vmatprep.subr.mxu0 0.0
  %2071 = vmatpush2.xpose.msra.mxu0 0.0
  %2072 = vmatprep.subr.mxu0 0.0
  %2073 = vmatpush2.xpose.msra.mxu0 0.0
  %2074 = vmatprep.subr.mxu0 0.0
  %2075 = vmatpush2.xpose.msra.mxu0 0.0
  %2076 = vmatprep.subr.mxu0 0.0
  %2077 = vmatpush2.xpose.msra.mxu0 0.0
  %2078 = vmatprep.subr.mxu0 0.0
  %2079 = vmatpush2.xpose.msra.mxu0 0.0
  %2080 = vmatprep.subr.mxu0 0.0
  %2081 = vmatpush2.xpose.msra.mxu0 0.0
  %2082 = vmatprep.subr.mxu0 0.0
  %2083 = vmatpush2.xpose.msra.mxu0 0.0
  %2084 = vmatprep.subr.mxu0 0.0
  %2085 = vmatpush2.xpose.msra.mxu0 0.0
  %2086 = vmatprep.subr.mxu0 0.0
  %2087 = vmatpush2.xpose.msra.mxu0 0.0
  %2088 = vmatprep.subr.mxu0 0.0
  %2089 = vmatpush2.xpose.msra.mxu0 0.0
  %2090 = vmatprep.subr.mxu0 0.0
  %2091 = vmatpush2.xpose.msra.mxu0 0.0
  %2092 = vmatprep.subr.mxu0 0.0
  %2093 = vmatpush2.xpose.msra.mxu0 0.0
  %2094 = vmatprep.subr.mxu0 0.0
  %2095 = vmatpush2.xpose.msra.mxu0 0.0
  %2096 = vmatprep.mubr.f32.mxu0 0.0
  %2097 = vmatmul.mubr.f32.gmra.mxu0 %v2028
  %v2098 = vpop.f32.mrf.mxu0
  %v2099 = vadd.f32 0.0, %v2098
  %v2100 = vpop.f32.mrf.mxu0
  %2101 = vdwg.mxu0
  %2102 = vrot.lane.b32.xlu0 %v272, 96
  %v2103 = vpop.permute.xlu0 %2102
  %v2104 = vsel %vm355, %v272, 0
  %v2106 = vsel %vm355, %v2103, 0
  %2108 = vmatprep.subr.mxu0 0.0
  %2109 = vmatpush1.xpose.msra.mxu0 0.0
  %2110 = vmatprep.subr.mxu0 0.0
  %2111 = vmatpush1.xpose.msra.mxu0 0.0
  %2112 = vmatprep.subr.mxu0 0.0
  %2113 = vmatpush1.xpose.msra.mxu0 0.0
  %2114 = vmatprep.subr.mxu0 0.0
  %2115 = vmatpush1.xpose.msra.mxu0 0.0
  %2116 = vmatprep.subr.mxu0 0.0
  %2117 = vmatpush1.xpose.msra.mxu0 0.0
  %2118 = vmatprep.subr.mxu0 0.0
  %2119 = vmatpush1.xpose.msra.mxu0 0.0
  %2120 = vmatprep.subr.mxu0 0.0
  %2121 = vmatpush1.xpose.msra.mxu0 0.0
  %2122 = vmatprep.subr.mxu0 0.0
  %2123 = vmatpush1.xpose.msra.mxu0 0.0
  %2124 = vmatprep.subr.mxu0 0.0
  %2125 = vmatpush1.xpose.msra.mxu0 0.0
  %2126 = vmatprep.subr.mxu0 0.0
  %2127 = vmatpush1.xpose.msra.mxu0 0.0
  %2128 = vmatprep.subr.mxu0 0.0
  %2129 = vmatpush1.xpose.msra.mxu0 0.0
  %2130 = vmatprep.subr.mxu0 0.0
  %2131 = vmatpush1.xpose.msra.mxu0 0.0
  %2132 = vmatprep.subr.mxu0 0.0
  %2133 = vmatpush1.xpose.msra.mxu0 0.0
  %2134 = vmatprep.subr.mxu0 0.0
  %2135 = vmatpush1.xpose.msra.mxu0 0.0
  %2136 = vmatprep.subr.mxu0 0.0
  %2137 = vmatpush1.xpose.msra.mxu0 0.0
  %2138 = vmatprep.subr.mxu0 0.0
  %2139 = vmatpush1.xpose.msra.mxu0 %v2106
  %2140 = vmatprep.subr.mxu0 0.0
  %2141 = vmatpush2.xpose.msra.mxu0 0.0
  %2142 = vmatprep.subr.mxu0 0.0
  %2143 = vmatpush2.xpose.msra.mxu0 0.0
  %2144 = vmatprep.subr.mxu0 0.0
  %2145 = vmatpush2.xpose.msra.mxu0 0.0
  %2146 = vmatprep.subr.mxu0 0.0
  %2147 = vmatpush2.xpose.msra.mxu0 0.0
  %2148 = vmatprep.subr.mxu0 0.0
  %2149 = vmatpush2.xpose.msra.mxu0 0.0
  %2150 = vmatprep.subr.mxu0 0.0
  %2151 = vmatpush2.xpose.msra.mxu0 0.0
  %2152 = vmatprep.subr.mxu0 0.0
  %2153 = vmatpush2.xpose.msra.mxu0 0.0
  %2154 = vmatprep.subr.mxu0 0.0
  %2155 = vmatpush2.xpose.msra.mxu0 0.0
  %2156 = vmatprep.subr.mxu0 0.0
  %2157 = vmatpush2.xpose.msra.mxu0 0.0
  %2158 = vmatprep.subr.mxu0 0.0
  %2159 = vmatpush2.xpose.msra.mxu0 0.0
  %2160 = vmatprep.subr.mxu0 0.0
  %2161 = vmatpush2.xpose.msra.mxu0 0.0
  %2162 = vmatprep.subr.mxu0 0.0
  %2163 = vmatpush2.xpose.msra.mxu0 0.0
  %2164 = vmatprep.subr.mxu0 0.0
  %2165 = vmatpush2.xpose.msra.mxu0 0.0
  %2166 = vmatprep.subr.mxu0 0.0
  %2167 = vmatpush2.xpose.msra.mxu0 0.0
  %2168 = vmatprep.subr.mxu0 0.0
  %2169 = vmatpush2.xpose.msra.mxu0 0.0
  %2170 = vmatprep.subr.mxu0 0.0
  %2171 = vmatpush2.xpose.msra.mxu0 0.0
  %2172 = vmatprep.mubr.f32.mxu0 0.0
  %2173 = vmatmul.mubr.f32.gmra.mxu0 %v2104
  %v2174 = vpop.f32.mrf.mxu0
  %v2175 = vadd.f32 0.0, %v2174
  %v2176 = vpop.f32.mrf.mxu0
  %2177 = vdwg.mxu0
  %2178 = vrot.lane.b32.xlu0 %v274, 96
  %v2179 = vpop.permute.xlu0 %2178
  %v2180 = vsel %vm355, %v274, 0
  %v2182 = vsel %vm355, %v2179, 0
  %2184 = vmatprep.subr.mxu0 0.0
  %2185 = vmatpush1.xpose.msra.mxu0 0.0
  %2186 = vmatprep.subr.mxu0 0.0
  %2187 = vmatpush1.xpose.msra.mxu0 0.0
  %2188 = vmatprep.subr.mxu0 0.0
  %2189 = vmatpush1.xpose.msra.mxu0 0.0
  %2190 = vmatprep.subr.mxu0 0.0
  %2191 = vmatpush1.xpose.msra.mxu0 0.0
  %2192 = vmatprep.subr.mxu0 0.0
  %2193 = vmatpush1.xpose.msra.mxu0 0.0
  %2194 = vmatprep.subr.mxu0 0.0
  %2195 = vmatpush1.xpose.msra.mxu0 0.0
  %2196 = vmatprep.subr.mxu0 0.0
  %2197 = vmatpush1.xpose.msra.mxu0 0.0
  %2198 = vmatprep.subr.mxu0 0.0
  %2199 = vmatpush1.xpose.msra.mxu0 0.0
  %2200 = vmatprep.subr.mxu0 0.0
  %2201 = vmatpush1.xpose.msra.mxu0 0.0
  %2202 = vmatprep.subr.mxu0 0.0
  %2203 = vmatpush1.xpose.msra.mxu0 0.0
  %2204 = vmatprep.subr.mxu0 0.0
  %2205 = vmatpush1.xpose.msra.mxu0 0.0
  %2206 = vmatprep.subr.mxu0 0.0
  %2207 = vmatpush1.xpose.msra.mxu0 0.0
  %2208 = vmatprep.subr.mxu0 0.0
  %2209 = vmatpush1.xpose.msra.mxu0 0.0
  %2210 = vmatprep.subr.mxu0 0.0
  %2211 = vmatpush1.xpose.msra.mxu0 0.0
  %2212 = vmatprep.subr.mxu0 0.0
  %2213 = vmatpush1.xpose.msra.mxu0 0.0
  %2214 = vmatprep.subr.mxu0 0.0
  %2215 = vmatpush1.xpose.msra.mxu0 %v2182
  %2216 = vmatprep.subr.mxu0 0.0
  %2217 = vmatpush2.xpose.msra.mxu0 0.0
  %2218 = vmatprep.subr.mxu0 0.0
  %2219 = vmatpush2.xpose.msra.mxu0 0.0
  %2220 = vmatprep.subr.mxu0 0.0
  %2221 = vmatpush2.xpose.msra.mxu0 0.0
  %2222 = vmatprep.subr.mxu0 0.0
  %2223 = vmatpush2.xpose.msra.mxu0 0.0
  %2224 = vmatprep.subr.mxu0 0.0
  %2225 = vmatpush2.xpose.msra.mxu0 0.0
  %2226 = vmatprep.subr.mxu0 0.0
  %2227 = vmatpush2.xpose.msra.mxu0 0.0
  %2228 = vmatprep.subr.mxu0 0.0
  %2229 = vmatpush2.xpose.msra.mxu0 0.0
  %2230 = vmatprep.subr.mxu0 0.0
  %2231 = vmatpush2.xpose.msra.mxu0 0.0
  %2232 = vmatprep.subr.mxu0 0.0
  %2233 = vmatpush2.xpose.msra.mxu0 0.0
  %2234 = vmatprep.subr.mxu0 0.0
  %2235 = vmatpush2.xpose.msra.mxu0 0.0
  %2236 = vmatprep.subr.mxu0 0.0
  %2237 = vmatpush2.xpose.msra.mxu0 0.0
  %2238 = vmatprep.subr.mxu0 0.0
  %2239 = vmatpush2.xpose.msra.mxu0 0.0
  %2240 = vmatprep.subr.mxu0 0.0
  %2241 = vmatpush2.xpose.msra.mxu0 0.0
  %2242 = vmatprep.subr.mxu0 0.0
  %2243 = vmatpush2.xpose.msra.mxu0 0.0
  %2244 = vmatprep.subr.mxu0 0.0
  %2245 = vmatpush2.xpose.msra.mxu0 0.0
  %2246 = vmatprep.subr.mxu0 0.0
  %2247 = vmatpush2.xpose.msra.mxu0 0.0
  %2248 = vmatprep.mubr.f32.mxu0 0.0
  %2249 = vmatmul.mubr.f32.gmra.mxu0 %v2180
  %v2250 = vpop.f32.mrf.mxu0
  %v2251 = vadd.f32 0.0, %v2250
  %v2252 = vpop.f32.mrf.mxu0
  %2253 = vdwg.mxu0
  %2254 = vrot.lane.b32.xlu0 %v276, 96
  %v2255 = vpop.permute.xlu0 %2254
  %v2256 = vsel %vm355, %v276, 0
  %v2258 = vsel %vm355, %v2255, 0
  %2260 = vmatprep.subr.mxu0 0.0
  %2261 = vmatpush1.xpose.msra.mxu0 0.0
  %2262 = vmatprep.subr.mxu0 0.0
  %2263 = vmatpush1.xpose.msra.mxu0 0.0
  %2264 = vmatprep.subr.mxu0 0.0
  %2265 = vmatpush1.xpose.msra.mxu0 0.0
  %2266 = vmatprep.subr.mxu0 0.0
  %2267 = vmatpush1.xpose.msra.mxu0 0.0
  %2268 = vmatprep.subr.mxu0 0.0
  %2269 = vmatpush1.xpose.msra.mxu0 0.0
  %2270 = vmatprep.subr.mxu0 0.0
  %2271 = vmatpush1.xpose.msra.mxu0 0.0
  %2272 = vmatprep.subr.mxu0 0.0
  %2273 = vmatpush1.xpose.msra.mxu0 0.0
  %2274 = vmatprep.subr.mxu0 0.0
  %2275 = vmatpush1.xpose.msra.mxu0 0.0
  %2276 = vmatprep.subr.mxu0 0.0
  %2277 = vmatpush1.xpose.msra.mxu0 0.0
  %2278 = vmatprep.subr.mxu0 0.0
  %2279 = vmatpush1.xpose.msra.mxu0 0.0
  %2280 = vmatprep.subr.mxu0 0.0
  %2281 = vmatpush1.xpose.msra.mxu0 0.0
  %2282 = vmatprep.subr.mxu0 0.0
  %2283 = vmatpush1.xpose.msra.mxu0 0.0
  %2284 = vmatprep.subr.mxu0 0.0
  %2285 = vmatpush1.xpose.msra.mxu0 0.0
  %2286 = vmatprep.subr.mxu0 0.0
  %2287 = vmatpush1.xpose.msra.mxu0 0.0
  %2288 = vmatprep.subr.mxu0 0.0
  %2289 = vmatpush1.xpose.msra.mxu0 0.0
  %2290 = vmatprep.subr.mxu0 0.0
  %2291 = vmatpush1.xpose.msra.mxu0 %v2258
  %2292 = vmatprep.subr.mxu0 0.0
  %2293 = vmatpush2.xpose.msra.mxu0 0.0
  %2294 = vmatprep.subr.mxu0 0.0
  %2295 = vmatpush2.xpose.msra.mxu0 0.0
  %2296 = vmatprep.subr.mxu0 0.0
  %2297 = vmatpush2.xpose.msra.mxu0 0.0
  %2298 = vmatprep.subr.mxu0 0.0
  %2299 = vmatpush2.xpose.msra.mxu0 0.0
  %2300 = vmatprep.subr.mxu0 0.0
  %2301 = vmatpush2.xpose.msra.mxu0 0.0
  %2302 = vmatprep.subr.mxu0 0.0
  %2303 = vmatpush2.xpose.msra.mxu0 0.0
  %2304 = vmatprep.subr.mxu0 0.0
  %2305 = vmatpush2.xpose.msra.mxu0 0.0
  %2306 = vmatprep.subr.mxu0 0.0
  %2307 = vmatpush2.xpose.msra.mxu0 0.0
  %2308 = vmatprep.subr.mxu0 0.0
  %2309 = vmatpush2.xpose.msra.mxu0 0.0
  %2310 = vmatprep.subr.mxu0 0.0
  %2311 = vmatpush2.xpose.msra.mxu0 0.0
  %2312 = vmatprep.subr.mxu0 0.0
  %2313 = vmatpush2.xpose.msra.mxu0 0.0
  %2314 = vmatprep.subr.mxu0 0.0
  %2315 = vmatpush2.xpose.msra.mxu0 0.0
  %2316 = vmatprep.subr.mxu0 0.0
  %2317 = vmatpush2.xpose.msra.mxu0 0.0
  %2318 = vmatprep.subr.mxu0 0.0
  %2319 = vmatpush2.xpose.msra.mxu0 0.0
  %2320 = vmatprep.subr.mxu0 0.0
  %2321 = vmatpush2.xpose.msra.mxu0 0.0
  %2322 = vmatprep.subr.mxu0 0.0
  %2323 = vmatpush2.xpose.msra.mxu0 0.0
  %2324 = vmatprep.mubr.f32.mxu0 0.0
  %2325 = vmatmul.mubr.f32.gmra.mxu0 %v2256
  %v2326 = vpop.f32.mrf.mxu0
  %v2327 = vadd.f32 0.0, %v2326
  %v2328 = vpop.f32.mrf.mxu0
  %2329 = vdwg.mxu0
  %2330 = vrot.lane.b32.xlu0 %v278, 96
  %v2331 = vpop.permute.xlu0 %2330
  %v2332 = vsel %vm355, %v278, 0
  %v2334 = vsel %vm355, %v2331, 0
  %2336 = vmatprep.subr.mxu0 0.0
  %2337 = vmatpush1.xpose.msra.mxu0 0.0
  %2338 = vmatprep.subr.mxu0 0.0
  %2339 = vmatpush1.xpose.msra.mxu0 0.0
  %2340 = vmatprep.subr.mxu0 0.0
  %2341 = vmatpush1.xpose.msra.mxu0 0.0
  %2342 = vmatprep.subr.mxu0 0.0
  %2343 = vmatpush1.xpose.msra.mxu0 0.0
  %2344 = vmatprep.subr.mxu0 0.0
  %2345 = vmatpush1.xpose.msra.mxu0 0.0
  %2346 = vmatprep.subr.mxu0 0.0
  %2347 = vmatpush1.xpose.msra.mxu0 0.0
  %2348 = vmatprep.subr.mxu0 0.0
  %2349 = vmatpush1.xpose.msra.mxu0 0.0
  %2350 = vmatprep.subr.mxu0 0.0
  %2351 = vmatpush1.xpose.msra.mxu0 0.0
  %2352 = vmatprep.subr.mxu0 0.0
  %2353 = vmatpush1.xpose.msra.mxu0 0.0
  %2354 = vmatprep.subr.mxu0 0.0
  %2355 = vmatpush1.xpose.msra.mxu0 0.0
  %2356 = vmatprep.subr.mxu0 0.0
  %2357 = vmatpush1.xpose.msra.mxu0 0.0
  %2358 = vmatprep.subr.mxu0 0.0
  %2359 = vmatpush1.xpose.msra.mxu0 0.0
  %2360 = vmatprep.subr.mxu0 0.0
  %2361 = vmatpush1.xpose.msra.mxu0 0.0
  %2362 = vmatprep.subr.mxu0 0.0
  %2363 = vmatpush1.xpose.msra.mxu0 0.0
  %2364 = vmatprep.subr.mxu0 0.0
  %2365 = vmatpush1.xpose.msra.mxu0 0.0
  %2366 = vmatprep.subr.mxu0 0.0
  %2367 = vmatpush1.xpose.msra.mxu0 %v2334
  %2368 = vmatprep.subr.mxu0 0.0
  %2369 = vmatpush2.xpose.msra.mxu0 0.0
  %2370 = vmatprep.subr.mxu0 0.0
  %2371 = vmatpush2.xpose.msra.mxu0 0.0
  %2372 = vmatprep.subr.mxu0 0.0
  %2373 = vmatpush2.xpose.msra.mxu0 0.0
  %2374 = vmatprep.subr.mxu0 0.0
  %2375 = vmatpush2.xpose.msra.mxu0 0.0
  %2376 = vmatprep.subr.mxu0 0.0
  %2377 = vmatpush2.xpose.msra.mxu0 0.0
  %2378 = vmatprep.subr.mxu0 0.0
  %2379 = vmatpush2.xpose.msra.mxu0 0.0
  %2380 = vmatprep.subr.mxu0 0.0
  %2381 = vmatpush2.xpose.msra.mxu0 0.0
  %2382 = vmatprep.subr.mxu0 0.0
  %2383 = vmatpush2.xpose.msra.mxu0 0.0
  %2384 = vmatprep.subr.mxu0 0.0
  %2385 = vmatpush2.xpose.msra.mxu0 0.0
  %2386 = vmatprep.subr.mxu0 0.0
  %2387 = vmatpush2.xpose.msra.mxu0 0.0
  %2388 = vmatprep.subr.mxu0 0.0
  %2389 = vmatpush2.xpose.msra.mxu0 0.0
  %2390 = vmatprep.subr.mxu0 0.0
  %2391 = vmatpush2.xpose.msra.mxu0 0.0
  %2392 = vmatprep.subr.mxu0 0.0
  %2393 = vmatpush2.xpose.msra.mxu0 0.0
  %2394 = vmatprep.subr.mxu0 0.0
  %2395 = vmatpush2.xpose.msra.mxu0 0.0
  %2396 = vmatprep.subr.mxu0 0.0
  %2397 = vmatpush2.xpose.msra.mxu0 0.0
  %2398 = vmatprep.subr.mxu0 0.0
  %2399 = vmatpush2.xpose.msra.mxu0 0.0
  %2400 = vmatprep.mubr.f32.mxu0 0.0
  %2401 = vmatmul.mubr.f32.gmra.mxu0 %v2332
  %v2402 = vpop.f32.mrf.mxu0
  %v2403 = vadd.f32 0.0, %v2402
  %v2404 = vpop.f32.mrf.mxu0
  %2405 = vdwg.mxu0
  %2406 = vrot.lane.b32.xlu0 %v280, 96
  %v2407 = vpop.permute.xlu0 %2406
  %v2408 = vsel %vm355, %v280, 0
  %v2410 = vsel %vm355, %v2407, 0
  %2412 = vmatprep.subr.mxu0 0.0
  %2413 = vmatpush1.xpose.msra.mxu0 0.0
  %2414 = vmatprep.subr.mxu0 0.0
  %2415 = vmatpush1.xpose.msra.mxu0 0.0
  %2416 = vmatprep.subr.mxu0 0.0
  %2417 = vmatpush1.xpose.msra.mxu0 0.0
  %2418 = vmatprep.subr.mxu0 0.0
  %2419 = vmatpush1.xpose.msra.mxu0 0.0
  %2420 = vmatprep.subr.mxu0 0.0
  %2421 = vmatpush1.xpose.msra.mxu0 0.0
  %2422 = vmatprep.subr.mxu0 0.0
  %2423 = vmatpush1.xpose.msra.mxu0 0.0
  %2424 = vmatprep.subr.mxu0 0.0
  %2425 = vmatpush1.xpose.msra.mxu0 0.0
  %2426 = vmatprep.subr.mxu0 0.0
  %2427 = vmatpush1.xpose.msra.mxu0 0.0
  %2428 = vmatprep.subr.mxu0 0.0
  %2429 = vmatpush1.xpose.msra.mxu0 0.0
  %2430 = vmatprep.subr.mxu0 0.0
  %2431 = vmatpush1.xpose.msra.mxu0 0.0
  %2432 = vmatprep.subr.mxu0 0.0
  %2433 = vmatpush1.xpose.msra.mxu0 0.0
  %2434 = vmatprep.subr.mxu0 0.0
  %2435 = vmatpush1.xpose.msra.mxu0 0.0
  %2436 = vmatprep.subr.mxu0 0.0
  %2437 = vmatpush1.xpose.msra.mxu0 0.0
  %2438 = vmatprep.subr.mxu0 0.0
  %2439 = vmatpush1.xpose.msra.mxu0 0.0
  %2440 = vmatprep.subr.mxu0 0.0
  %2441 = vmatpush1.xpose.msra.mxu0 0.0
  %2442 = vmatprep.subr.mxu0 0.0
  %2443 = vmatpush1.xpose.msra.mxu0 %v2410
  %2444 = vmatprep.subr.mxu0 0.0
  %2445 = vmatpush2.xpose.msra.mxu0 0.0
  %2446 = vmatprep.subr.mxu0 0.0
  %2447 = vmatpush2.xpose.msra.mxu0 0.0
  %2448 = vmatprep.subr.mxu0 0.0
  %2449 = vmatpush2.xpose.msra.mxu0 0.0
  %2450 = vmatprep.subr.mxu0 0.0
  %2451 = vmatpush2.xpose.msra.mxu0 0.0
  %2452 = vmatprep.subr.mxu0 0.0
  %2453 = vmatpush2.xpose.msra.mxu0 0.0
  %2454 = vmatprep.subr.mxu0 0.0
  %2455 = vmatpush2.xpose.msra.mxu0 0.0
  %2456 = vmatprep.subr.mxu0 0.0
  %2457 = vmatpush2.xpose.msra.mxu0 0.0
  %2458 = vmatprep.subr.mxu0 0.0
  %2459 = vmatpush2.xpose.msra.mxu0 0.0
  %2460 = vmatprep.subr.mxu0 0.0
  %2461 = vmatpush2.xpose.msra.mxu0 0.0
  %2462 = vmatprep.subr.mxu0 0.0
  %2463 = vmatpush2.xpose.msra.mxu0 0.0
  %2464 = vmatprep.subr.mxu0 0.0
  %2465 = vmatpush2.xpose.msra.mxu0 0.0
  %2466 = vmatprep.subr.mxu0 0.0
  %2467 = vmatpush2.xpose.msra.mxu0 0.0
  %2468 = vmatprep.subr.mxu0 0.0
  %2469 = vmatpush2.xpose.msra.mxu0 0.0
  %2470 = vmatprep.subr.mxu0 0.0
  %2471 = vmatpush2.xpose.msra.mxu0 0.0
  %2472 = vmatprep.subr.mxu0 0.0
  %2473 = vmatpush2.xpose.msra.mxu0 0.0
  %2474 = vmatprep.subr.mxu0 0.0
  %2475 = vmatpush2.xpose.msra.mxu0 0.0
  %2476 = vmatprep.mubr.f32.mxu0 0.0
  %2477 = vmatmul.mubr.f32.gmra.mxu0 %v2408
  %v2478 = vpop.f32.mrf.mxu0
  %v2479 = vadd.f32 0.0, %v2478
  %v2480 = vpop.f32.mrf.mxu0
  %2481 = vdwg.mxu0
  %2482 = vrot.lane.b32.xlu0 %v282, 96
  %v2483 = vpop.permute.xlu0 %2482
  %v2484 = vsel %vm355, %v282, 0
  %v2486 = vsel %vm355, %v2483, 0
  %2488 = vmatprep.subr.mxu0 0.0
  %2489 = vmatpush1.xpose.msra.mxu0 0.0
  %2490 = vmatprep.subr.mxu0 0.0
  %2491 = vmatpush1.xpose.msra.mxu0 0.0
  %2492 = vmatprep.subr.mxu0 0.0
  %2493 = vmatpush1.xpose.msra.mxu0 0.0
  %2494 = vmatprep.subr.mxu0 0.0
  %2495 = vmatpush1.xpose.msra.mxu0 0.0
  %2496 = vmatprep.subr.mxu0 0.0
  %2497 = vmatpush1.xpose.msra.mxu0 0.0
  %2498 = vmatprep.subr.mxu0 0.0
  %2499 = vmatpush1.xpose.msra.mxu0 0.0
  %2500 = vmatprep.subr.mxu0 0.0
  %2501 = vmatpush1.xpose.msra.mxu0 0.0
  %2502 = vmatprep.subr.mxu0 0.0
  %2503 = vmatpush1.xpose.msra.mxu0 0.0
  %2504 = vmatprep.subr.mxu0 0.0
  %2505 = vmatpush1.xpose.msra.mxu0 0.0
  %2506 = vmatprep.subr.mxu0 0.0
  %2507 = vmatpush1.xpose.msra.mxu0 0.0
  %2508 = vmatprep.subr.mxu0 0.0
  %2509 = vmatpush1.xpose.msra.mxu0 0.0
  %2510 = vmatprep.subr.mxu0 0.0
  %2511 = vmatpush1.xpose.msra.mxu0 0.0
  %2512 = vmatprep.subr.mxu0 0.0
  %2513 = vmatpush1.xpose.msra.mxu0 0.0
  %2514 = vmatprep.subr.mxu0 0.0
  %2515 = vmatpush1.xpose.msra.mxu0 0.0
  %2516 = vmatprep.subr.mxu0 0.0
  %2517 = vmatpush1.xpose.msra.mxu0 0.0
  %2518 = vmatprep.subr.mxu0 0.0
  %2519 = vmatpush1.xpose.msra.mxu0 %v2486
  %2520 = vmatprep.subr.mxu0 0.0
  %2521 = vmatpush2.xpose.msra.mxu0 0.0
  %2522 = vmatprep.subr.mxu0 0.0
  %2523 = vmatpush2.xpose.msra.mxu0 0.0
  %2524 = vmatprep.subr.mxu0 0.0
  %2525 = vmatpush2.xpose.msra.mxu0 0.0
  %2526 = vmatprep.subr.mxu0 0.0
  %2527 = vmatpush2.xpose.msra.mxu0 0.0
  %2528 = vmatprep.subr.mxu0 0.0
  %2529 = vmatpush2.xpose.msra.mxu0 0.0
  %2530 = vmatprep.subr.mxu0 0.0
  %2531 = vmatpush2.xpose.msra.mxu0 0.0
  %2532 = vmatprep.subr.mxu0 0.0
  %2533 = vmatpush2.xpose.msra.mxu0 0.0
  %2534 = vmatprep.subr.mxu0 0.0
  %2535 = vmatpush2.xpose.msra.mxu0 0.0
  %2536 = vmatprep.subr.mxu0 0.0
  %2537 = vmatpush2.xpose.msra.mxu0 0.0
  %2538 = vmatprep.subr.mxu0 0.0
  %2539 = vmatpush2.xpose.msra.mxu0 0.0
  %2540 = vmatprep.subr.mxu0 0.0
  %2541 = vmatpush2.xpose.msra.mxu0 0.0
  %2542 = vmatprep.subr.mxu0 0.0
  %2543 = vmatpush2.xpose.msra.mxu0 0.0
  %2544 = vmatprep.subr.mxu0 0.0
  %2545 = vmatpush2.xpose.msra.mxu0 0.0
  %2546 = vmatprep.subr.mxu0 0.0
  %2547 = vmatpush2.xpose.msra.mxu0 0.0
  %2548 = vmatprep.subr.mxu0 0.0
  %2549 = vmatpush2.xpose.msra.mxu0 0.0
  %2550 = vmatprep.subr.mxu0 0.0
  %2551 = vmatpush2.xpose.msra.mxu0 0.0
  %2552 = vmatprep.mubr.f32.mxu0 0.0
  %2553 = vmatmul.mubr.f32.gmra.mxu0 %v2484
  %v2554 = vpop.f32.mrf.mxu0
  %v2555 = vadd.f32 0.0, %v2554
  %v2556 = vpop.f32.mrf.mxu0
  %2557 = vdwg.mxu0
  %2558 = vrot.lane.b32.xlu0 %v284, 96
  %v2559 = vpop.permute.xlu0 %2558
  %v2560 = vsel %vm355, %v284, 0
  %v2562 = vsel %vm355, %v2559, 0
  %2564 = vmatprep.subr.mxu0 0.0
  %2565 = vmatpush1.xpose.msra.mxu0 0.0
  %2566 = vmatprep.subr.mxu0 0.0
  %2567 = vmatpush1.xpose.msra.mxu0 0.0
  %2568 = vmatprep.subr.mxu0 0.0
  %2569 = vmatpush1.xpose.msra.mxu0 0.0
  %2570 = vmatprep.subr.mxu0 0.0
  %2571 = vmatpush1.xpose.msra.mxu0 0.0
  %2572 = vmatprep.subr.mxu0 0.0
  %2573 = vmatpush1.xpose.msra.mxu0 0.0
  %2574 = vmatprep.subr.mxu0 0.0
  %2575 = vmatpush1.xpose.msra.mxu0 0.0
  %2576 = vmatprep.subr.mxu0 0.0
  %2577 = vmatpush1.xpose.msra.mxu0 0.0
  %2578 = vmatprep.subr.mxu0 0.0
  %2579 = vmatpush1.xpose.msra.mxu0 0.0
  %2580 = vmatprep.subr.mxu0 0.0
  %2581 = vmatpush1.xpose.msra.mxu0 0.0
  %2582 = vmatprep.subr.mxu0 0.0
  %2583 = vmatpush1.xpose.msra.mxu0 0.0
  %2584 = vmatprep.subr.mxu0 0.0
  %2585 = vmatpush1.xpose.msra.mxu0 0.0
  %2586 = vmatprep.subr.mxu0 0.0
  %2587 = vmatpush1.xpose.msra.mxu0 0.0
  %2588 = vmatprep.subr.mxu0 0.0
  %2589 = vmatpush1.xpose.msra.mxu0 0.0
  %2590 = vmatprep.subr.mxu0 0.0
  %2591 = vmatpush1.xpose.msra.mxu0 0.0
  %2592 = vmatprep.subr.mxu0 0.0
  %2593 = vmatpush1.xpose.msra.mxu0 0.0
  %2594 = vmatprep.subr.mxu0 0.0
  %2595 = vmatpush1.xpose.msra.mxu0 %v2562
  %2596 = vmatprep.subr.mxu0 0.0
  %2597 = vmatpush2.xpose.msra.mxu0 0.0
  %2598 = vmatprep.subr.mxu0 0.0
  %2599 = vmatpush2.xpose.msra.mxu0 0.0
  %2600 = vmatprep.subr.mxu0 0.0
  %2601 = vmatpush2.xpose.msra.mxu0 0.0
  %2602 = vmatprep.subr.mxu0 0.0
  %2603 = vmatpush2.xpose.msra.mxu0 0.0
  %2604 = vmatprep.subr.mxu0 0.0
  %2605 = vmatpush2.xpose.msra.mxu0 0.0
  %2606 = vmatprep.subr.mxu0 0.0
  %2607 = vmatpush2.xpose.msra.mxu0 0.0
  %2608 = vmatprep.subr.mxu0 0.0
  %2609 = vmatpush2.xpose.msra.mxu0 0.0
  %2610 = vmatprep.subr.mxu0 0.0
  %2611 = vmatpush2.xpose.msra.mxu0 0.0
  %2612 = vmatprep.subr.mxu0 0.0
  %2613 = vmatpush2.xpose.msra.mxu0 0.0
  %2614 = vmatprep.subr.mxu0 0.0
  %2615 = vmatpush2.xpose.msra.mxu0 0.0
  %2616 = vmatprep.subr.mxu0 0.0
  %2617 = vmatpush2.xpose.msra.mxu0 0.0
  %2618 = vmatprep.subr.mxu0 0.0
  %2619 = vmatpush2.xpose.msra.mxu0 0.0
  %2620 = vmatprep.subr.mxu0 0.0
  %2621 = vmatpush2.xpose.msra.mxu0 0.0
  %2622 = vmatprep.subr.mxu0 0.0
  %2623 = vmatpush2.xpose.msra.mxu0 0.0
  %2624 = vmatprep.subr.mxu0 0.0
  %2625 = vmatpush2.xpose.msra.mxu0 0.0
  %2626 = vmatprep.subr.mxu0 0.0
  %2627 = vmatpush2.xpose.msra.mxu0 0.0
  %2628 = vmatprep.mubr.f32.mxu0 0.0
  %2629 = vmatmul.mubr.f32.gmra.mxu0 %v2560
  %v2630 = vpop.f32.mrf.mxu0
  %v2631 = vadd.f32 0.0, %v2630
  %v2632 = vpop.f32.mrf.mxu0
  %2633 = vdwg.mxu0
  %2634 = vrot.lane.b32.xlu0 %v286, 96
  %v2635 = vpop.permute.xlu0 %2634
  %v2636 = vsel %vm355, %v286, 0
  %v2638 = vsel %vm355, %v2635, 0
  %2640 = vmatprep.subr.mxu0 0.0
  %2641 = vmatpush1.xpose.msra.mxu0 0.0
  %2642 = vmatprep.subr.mxu0 0.0
  %2643 = vmatpush1.xpose.msra.mxu0 0.0
  %2644 = vmatprep.subr.mxu0 0.0
  %2645 = vmatpush1.xpose.msra.mxu0 0.0
  %2646 = vmatprep.subr.mxu0 0.0
  %2647 = vmatpush1.xpose.msra.mxu0 0.0
  %2648 = vmatprep.subr.mxu0 0.0
  %2649 = vmatpush1.xpose.msra.mxu0 0.0
  %2650 = vmatprep.subr.mxu0 0.0
  %2651 = vmatpush1.xpose.msra.mxu0 0.0
  %2652 = vmatprep.subr.mxu0 0.0
  %2653 = vmatpush1.xpose.msra.mxu0 0.0
  %2654 = vmatprep.subr.mxu0 0.0
  %2655 = vmatpush1.xpose.msra.mxu0 0.0
  %2656 = vmatprep.subr.mxu0 0.0
  %2657 = vmatpush1.xpose.msra.mxu0 0.0
  %2658 = vmatprep.subr.mxu0 0.0
  %2659 = vmatpush1.xpose.msra.mxu0 0.0
  %2660 = vmatprep.subr.mxu0 0.0
  %2661 = vmatpush1.xpose.msra.mxu0 0.0
  %2662 = vmatprep.subr.mxu0 0.0
  %2663 = vmatpush1.xpose.msra.mxu0 0.0
  %2664 = vmatprep.subr.mxu0 0.0
  %2665 = vmatpush1.xpose.msra.mxu0 0.0
  %2666 = vmatprep.subr.mxu0 0.0
  %2667 = vmatpush1.xpose.msra.mxu0 0.0
  %2668 = vmatprep.subr.mxu0 0.0
  %2669 = vmatpush1.xpose.msra.mxu0 0.0
  %2670 = vmatprep.subr.mxu0 0.0
  %2671 = vmatpush1.xpose.msra.mxu0 %v2638
  %2672 = vmatprep.subr.mxu0 0.0
  %2673 = vmatpush2.xpose.msra.mxu0 0.0
  %2674 = vmatprep.subr.mxu0 0.0
  %2675 = vmatpush2.xpose.msra.mxu0 0.0
  %2676 = vmatprep.subr.mxu0 0.0
  %2677 = vmatpush2.xpose.msra.mxu0 0.0
  %2678 = vmatprep.subr.mxu0 0.0
  %2679 = vmatpush2.xpose.msra.mxu0 0.0
  %2680 = vmatprep.subr.mxu0 0.0
  %2681 = vmatpush2.xpose.msra.mxu0 0.0
  %2682 = vmatprep.subr.mxu0 0.0
  %2683 = vmatpush2.xpose.msra.mxu0 0.0
  %2684 = vmatprep.subr.mxu0 0.0
  %2685 = vmatpush2.xpose.msra.mxu0 0.0
  %2686 = vmatprep.subr.mxu0 0.0
  %2687 = vmatpush2.xpose.msra.mxu0 0.0
  %2688 = vmatprep.subr.mxu0 0.0
  %2689 = vmatpush2.xpose.msra.mxu0 0.0
  %2690 = vmatprep.subr.mxu0 0.0
  %2691 = vmatpush2.xpose.msra.mxu0 0.0
  %2692 = vmatprep.subr.mxu0 0.0
  %2693 = vmatpush2.xpose.msra.mxu0 0.0
  %2694 = vmatprep.subr.mxu0 0.0
  %2695 = vmatpush2.xpose.msra.mxu0 0.0
  %2696 = vmatprep.subr.mxu0 0.0
  %2697 = vmatpush2.xpose.msra.mxu0 0.0
  %2698 = vmatprep.subr.mxu0 0.0
  %2699 = vmatpush2.xpose.msra.mxu0 0.0
  %2700 = vmatprep.subr.mxu0 0.0
  %2701 = vmatpush2.xpose.msra.mxu0 0.0
  %2702 = vmatprep.subr.mxu0 0.0
  %2703 = vmatpush2.xpose.msra.mxu0 0.0
  %2704 = vmatprep.mubr.f32.mxu0 0.0
  %2705 = vmatmul.mubr.f32.gmra.mxu0 %v2636
  %v2706 = vpop.f32.mrf.mxu0
  %v2707 = vadd.f32 0.0, %v2706
  %v2708 = vpop.f32.mrf.mxu0
  %2709 = vdwg.mxu0
  %2710 = vrot.lane.b32.xlu0 %v288, 96
  %v2711 = vpop.permute.xlu0 %2710
  %v2712 = vsel %vm355, %v288, 0
  %v2714 = vsel %vm355, %v2711, 0
  %2716 = vmatprep.subr.mxu0 0.0
  %2717 = vmatpush1.xpose.msra.mxu0 0.0
  %2718 = vmatprep.subr.mxu0 0.0
  %2719 = vmatpush1.xpose.msra.mxu0 0.0
  %2720 = vmatprep.subr.mxu0 0.0
  %2721 = vmatpush1.xpose.msra.mxu0 0.0
  %2722 = vmatprep.subr.mxu0 0.0
  %2723 = vmatpush1.xpose.msra.mxu0 0.0
  %2724 = vmatprep.subr.mxu0 0.0
  %2725 = vmatpush1.xpose.msra.mxu0 0.0
  %2726 = vmatprep.subr.mxu0 0.0
  %2727 = vmatpush1.xpose.msra.mxu0 0.0
  %2728 = vmatprep.subr.mxu0 0.0
  %2729 = vmatpush1.xpose.msra.mxu0 0.0
  %2730 = vmatprep.subr.mxu0 0.0
  %2731 = vmatpush1.xpose.msra.mxu0 0.0
  %2732 = vmatprep.subr.mxu0 0.0
  %2733 = vmatpush1.xpose.msra.mxu0 0.0
  %2734 = vmatprep.subr.mxu0 0.0
  %2735 = vmatpush1.xpose.msra.mxu0 0.0
  %2736 = vmatprep.subr.mxu0 0.0
  %2737 = vmatpush1.xpose.msra.mxu0 0.0
  %2738 = vmatprep.subr.mxu0 0.0
  %2739 = vmatpush1.xpose.msra.mxu0 0.0
  %2740 = vmatprep.subr.mxu0 0.0
  %2741 = vmatpush1.xpose.msra.mxu0 0.0
  %2742 = vmatprep.subr.mxu0 0.0
  %2743 = vmatpush1.xpose.msra.mxu0 0.0
  %2744 = vmatprep.subr.mxu0 0.0
  %2745 = vmatpush1.xpose.msra.mxu0 0.0
  %2746 = vmatprep.subr.mxu0 0.0
  %2747 = vmatpush1.xpose.msra.mxu0 %v2714
  %2748 = vmatprep.subr.mxu0 0.0
  %2749 = vmatpush2.xpose.msra.mxu0 0.0
  %2750 = vmatprep.subr.mxu0 0.0
  %2751 = vmatpush2.xpose.msra.mxu0 0.0
  %2752 = vmatprep.subr.mxu0 0.0
  %2753 = vmatpush2.xpose.msra.mxu0 0.0
  %2754 = vmatprep.subr.mxu0 0.0
  %2755 = vmatpush2.xpose.msra.mxu0 0.0
  %2756 = vmatprep.subr.mxu0 0.0
  %2757 = vmatpush2.xpose.msra.mxu0 0.0
  %2758 = vmatprep.subr.mxu0 0.0
  %2759 = vmatpush2.xpose.msra.mxu0 0.0
  %2760 = vmatprep.subr.mxu0 0.0
  %2761 = vmatpush2.xpose.msra.mxu0 0.0
  %2762 = vmatprep.subr.mxu0 0.0
  %2763 = vmatpush2.xpose.msra.mxu0 0.0
  %2764 = vmatprep.subr.mxu0 0.0
  %2765 = vmatpush2.xpose.msra.mxu0 0.0
  %2766 = vmatprep.subr.mxu0 0.0
  %2767 = vmatpush2.xpose.msra.mxu0 0.0
  %2768 = vmatprep.subr.mxu0 0.0
  %2769 = vmatpush2.xpose.msra.mxu0 0.0
  %2770 = vmatprep.subr.mxu0 0.0
  %2771 = vmatpush2.xpose.msra.mxu0 0.0
  %2772 = vmatprep.subr.mxu0 0.0
  %2773 = vmatpush2.xpose.msra.mxu0 0.0
  %2774 = vmatprep.subr.mxu0 0.0
  %2775 = vmatpush2.xpose.msra.mxu0 0.0
  %2776 = vmatprep.subr.mxu0 0.0
  %2777 = vmatpush2.xpose.msra.mxu0 0.0
  %2778 = vmatprep.subr.mxu0 0.0
  %2779 = vmatpush2.xpose.msra.mxu0 0.0
  %2780 = vmatprep.mubr.f32.mxu0 0.0
  %2781 = vmatmul.mubr.f32.gmra.mxu0 %v2712
  %v2782 = vpop.f32.mrf.mxu0
  %v2783 = vadd.f32 0.0, %v2782
  %v2784 = vpop.f32.mrf.mxu0
  %2785 = vdwg.mxu0
  %2786 = vrot.lane.b32.xlu0 %v290, 96
  %v2787 = vpop.permute.xlu0 %2786
  %v2788 = vsel %vm355, %v290, 0
  %v2790 = vsel %vm355, %v2787, 0
  %2792 = vmatprep.subr.mxu0 0.0
  %2793 = vmatpush1.xpose.msra.mxu0 0.0
  %2794 = vmatprep.subr.mxu0 0.0
  %2795 = vmatpush1.xpose.msra.mxu0 0.0
  %2796 = vmatprep.subr.mxu0 0.0
  %2797 = vmatpush1.xpose.msra.mxu0 0.0
  %2798 = vmatprep.subr.mxu0 0.0
  %2799 = vmatpush1.xpose.msra.mxu0 0.0
  %2800 = vmatprep.subr.mxu0 0.0
  %2801 = vmatpush1.xpose.msra.mxu0 0.0
  %2802 = vmatprep.subr.mxu0 0.0
  %2803 = vmatpush1.xpose.msra.mxu0 0.0
  %2804 = vmatprep.subr.mxu0 0.0
  %2805 = vmatpush1.xpose.msra.mxu0 0.0
  %2806 = vmatprep.subr.mxu0 0.0
  %2807 = vmatpush1.xpose.msra.mxu0 0.0
  %2808 = vmatprep.subr.mxu0 0.0
  %2809 = vmatpush1.xpose.msra.mxu0 0.0
  %2810 = vmatprep.subr.mxu0 0.0
  %2811 = vmatpush1.xpose.msra.mxu0 0.0
  %2812 = vmatprep.subr.mxu0 0.0
  %2813 = vmatpush1.xpose.msra.mxu0 0.0
  %2814 = vmatprep.subr.mxu0 0.0
  %2815 = vmatpush1.xpose.msra.mxu0 0.0
  %2816 = vmatprep.subr.mxu0 0.0
  %2817 = vmatpush1.xpose.msra.mxu0 0.0
  %2818 = vmatprep.subr.mxu0 0.0
  %2819 = vmatpush1.xpose.msra.mxu0 0.0
  %2820 = vmatprep.subr.mxu0 0.0
  %2821 = vmatpush1.xpose.msra.mxu0 0.0
  %2822 = vmatprep.subr.mxu0 0.0
  %2823 = vmatpush1.xpose.msra.mxu0 %v2790
  %2824 = vmatprep.subr.mxu0 0.0
  %2825 = vmatpush2.xpose.msra.mxu0 0.0
  %2826 = vmatprep.subr.mxu0 0.0
  %2827 = vmatpush2.xpose.msra.mxu0 0.0
  %2828 = vmatprep.subr.mxu0 0.0
  %2829 = vmatpush2.xpose.msra.mxu0 0.0
  %2830 = vmatprep.subr.mxu0 0.0
  %2831 = vmatpush2.xpose.msra.mxu0 0.0
  %2832 = vmatprep.subr.mxu0 0.0
  %2833 = vmatpush2.xpose.msra.mxu0 0.0
  %2834 = vmatprep.subr.mxu0 0.0
  %2835 = vmatpush2.xpose.msra.mxu0 0.0
  %2836 = vmatprep.subr.mxu0 0.0
  %2837 = vmatpush2.xpose.msra.mxu0 0.0
  %2838 = vmatprep.subr.mxu0 0.0
  %2839 = vmatpush2.xpose.msra.mxu0 0.0
  %2840 = vmatprep.subr.mxu0 0.0
  %2841 = vmatpush2.xpose.msra.mxu0 0.0
  %2842 = vmatprep.subr.mxu0 0.0
  %2843 = vmatpush2.xpose.msra.mxu0 0.0
  %2844 = vmatprep.subr.mxu0 0.0
  %2845 = vmatpush2.xpose.msra.mxu0 0.0
  %2846 = vmatprep.subr.mxu0 0.0
  %2847 = vmatpush2.xpose.msra.mxu0 0.0
  %2848 = vmatprep.subr.mxu0 0.0
  %2849 = vmatpush2.xpose.msra.mxu0 0.0
  %2850 = vmatprep.subr.mxu0 0.0
  %2851 = vmatpush2.xpose.msra.mxu0 0.0
  %2852 = vmatprep.subr.mxu0 0.0
  %2853 = vmatpush2.xpose.msra.mxu0 0.0
  %2854 = vmatprep.subr.mxu0 0.0
  %2855 = vmatpush2.xpose.msra.mxu0 0.0
  %2856 = vmatprep.mubr.f32.mxu0 0.0
  %2857 = vmatmul.mubr.f32.gmra.mxu0 %v2788
  %v2858 = vpop.f32.mrf.mxu0
  %v2859 = vadd.f32 0.0, %v2858
  %v2860 = vpop.f32.mrf.mxu0
  %2861 = vdwg.mxu0
  %2862 = vrot.lane.b32.xlu0 %v292, 96
  %v2863 = vpop.permute.xlu0 %2862
  %v2864 = vsel %vm355, %v292, 0
  %v2866 = vsel %vm355, %v2863, 0
  %2868 = vmatprep.subr.mxu0 0.0
  %2869 = vmatpush1.xpose.msra.mxu0 0.0
  %2870 = vmatprep.subr.mxu0 0.0
  %2871 = vmatpush1.xpose.msra.mxu0 0.0
  %2872 = vmatprep.subr.mxu0 0.0
  %2873 = vmatpush1.xpose.msra.mxu0 0.0
  %2874 = vmatprep.subr.mxu0 0.0
  %2875 = vmatpush1.xpose.msra.mxu0 0.0
  %2876 = vmatprep.subr.mxu0 0.0
  %2877 = vmatpush1.xpose.msra.mxu0 0.0
  %2878 = vmatprep.subr.mxu0 0.0
  %2879 = vmatpush1.xpose.msra.mxu0 0.0
  %2880 = vmatprep.subr.mxu0 0.0
  %2881 = vmatpush1.xpose.msra.mxu0 0.0
  %2882 = vmatprep.subr.mxu0 0.0
  %2883 = vmatpush1.xpose.msra.mxu0 0.0
  %2884 = vmatprep.subr.mxu0 0.0
  %2885 = vmatpush1.xpose.msra.mxu0 0.0
  %2886 = vmatprep.subr.mxu0 0.0
  %2887 = vmatpush1.xpose.msra.mxu0 0.0
  %2888 = vmatprep.subr.mxu0 0.0
  %2889 = vmatpush1.xpose.msra.mxu0 0.0
  %2890 = vmatprep.subr.mxu0 0.0
  %2891 = vmatpush1.xpose.msra.mxu0 0.0
  %2892 = vmatprep.subr.mxu0 0.0
  %2893 = vmatpush1.xpose.msra.mxu0 0.0
  %2894 = vmatprep.subr.mxu0 0.0
  %2895 = vmatpush1.xpose.msra.mxu0 0.0
  %2896 = vmatprep.subr.mxu0 0.0
  %2897 = vmatpush1.xpose.msra.mxu0 0.0
  %2898 = vmatprep.subr.mxu0 0.0
  %2899 = vmatpush1.xpose.msra.mxu0 %v2866
  %2900 = vmatprep.subr.mxu0 0.0
  %2901 = vmatpush2.xpose.msra.mxu0 0.0
  %2902 = vmatprep.subr.mxu0 0.0
  %2903 = vmatpush2.xpose.msra.mxu0 0.0
  %2904 = vmatprep.subr.mxu0 0.0
  %2905 = vmatpush2.xpose.msra.mxu0 0.0
  %2906 = vmatprep.subr.mxu0 0.0
  %2907 = vmatpush2.xpose.msra.mxu0 0.0
  %2908 = vmatprep.subr.mxu0 0.0
  %2909 = vmatpush2.xpose.msra.mxu0 0.0
  %2910 = vmatprep.subr.mxu0 0.0
  %2911 = vmatpush2.xpose.msra.mxu0 0.0
  %2912 = vmatprep.subr.mxu0 0.0
  %2913 = vmatpush2.xpose.msra.mxu0 0.0
  %2914 = vmatprep.subr.mxu0 0.0
  %2915 = vmatpush2.xpose.msra.mxu0 0.0
  %2916 = vmatprep.subr.mxu0 0.0
  %2917 = vmatpush2.xpose.msra.mxu0 0.0
  %2918 = vmatprep.subr.mxu0 0.0
  %2919 = vmatpush2.xpose.msra.mxu0 0.0
  %2920 = vmatprep.subr.mxu0 0.0
  %2921 = vmatpush2.xpose.msra.mxu0 0.0
  %2922 = vmatprep.subr.mxu0 0.0
  %2923 = vmatpush2.xpose.msra.mxu0 0.0
  %2924 = vmatprep.subr.mxu0 0.0
  %2925 = vmatpush2.xpose.msra.mxu0 0.0
  %2926 = vmatprep.subr.mxu0 0.0
  %2927 = vmatpush2.xpose.msra.mxu0 0.0
  %2928 = vmatprep.subr.mxu0 0.0
  %2929 = vmatpush2.xpose.msra.mxu0 0.0
  %2930 = vmatprep.subr.mxu0 0.0
  %2931 = vmatpush2.xpose.msra.mxu0 0.0
  %2932 = vmatprep.mubr.f32.mxu0 0.0
  %2933 = vmatmul.mubr.f32.gmra.mxu0 %v2864
  %v2934 = vpop.f32.mrf.mxu0
  %v2935 = vadd.f32 0.0, %v2934
  %v2936 = vpop.f32.mrf.mxu0
  %2937 = vdwg.mxu0
  %2938 = vrot.lane.b32.xlu0 %v294, 96
  %v2939 = vpop.permute.xlu0 %2938
  %v2940 = vsel %vm355, %v294, 0
  %v2942 = vsel %vm355, %v2939, 0
  %2944 = vmatprep.subr.mxu0 0.0
  %2945 = vmatpush1.xpose.msra.mxu0 0.0
  %2946 = vmatprep.subr.mxu0 0.0
  %2947 = vmatpush1.xpose.msra.mxu0 0.0
  %2948 = vmatprep.subr.mxu0 0.0
  %2949 = vmatpush1.xpose.msra.mxu0 0.0
  %2950 = vmatprep.subr.mxu0 0.0
  %2951 = vmatpush1.xpose.msra.mxu0 0.0
  %2952 = vmatprep.subr.mxu0 0.0
  %2953 = vmatpush1.xpose.msra.mxu0 0.0
  %2954 = vmatprep.subr.mxu0 0.0
  %2955 = vmatpush1.xpose.msra.mxu0 0.0
  %2956 = vmatprep.subr.mxu0 0.0
  %2957 = vmatpush1.xpose.msra.mxu0 0.0
  %2958 = vmatprep.subr.mxu0 0.0
  %2959 = vmatpush1.xpose.msra.mxu0 0.0
  %2960 = vmatprep.subr.mxu0 0.0
  %2961 = vmatpush1.xpose.msra.mxu0 0.0
  %2962 = vmatprep.subr.mxu0 0.0
  %2963 = vmatpush1.xpose.msra.mxu0 0.0
  %2964 = vmatprep.subr.mxu0 0.0
  %2965 = vmatpush1.xpose.msra.mxu0 0.0
  %2966 = vmatprep.subr.mxu0 0.0
  %2967 = vmatpush1.xpose.msra.mxu0 0.0
  %2968 = vmatprep.subr.mxu0 0.0
  %2969 = vmatpush1.xpose.msra.mxu0 0.0
  %2970 = vmatprep.subr.mxu0 0.0
  %2971 = vmatpush1.xpose.msra.mxu0 0.0
  %2972 = vmatprep.subr.mxu0 0.0
  %2973 = vmatpush1.xpose.msra.mxu0 0.0
  %2974 = vmatprep.subr.mxu0 0.0
  %2975 = vmatpush1.xpose.msra.mxu0 %v2942
  %2976 = vmatprep.subr.mxu0 0.0
  %2977 = vmatpush2.xpose.msra.mxu0 0.0
  %2978 = vmatprep.subr.mxu0 0.0
  %2979 = vmatpush2.xpose.msra.mxu0 0.0
  %2980 = vmatprep.subr.mxu0 0.0
  %2981 = vmatpush2.xpose.msra.mxu0 0.0
  %2982 = vmatprep.subr.mxu0 0.0
  %2983 = vmatpush2.xpose.msra.mxu0 0.0
  %2984 = vmatprep.subr.mxu0 0.0
  %2985 = vmatpush2.xpose.msra.mxu0 0.0
  %2986 = vmatprep.subr.mxu0 0.0
  %2987 = vmatpush2.xpose.msra.mxu0 0.0
  %2988 = vmatprep.subr.mxu0 0.0
  %2989 = vmatpush2.xpose.msra.mxu0 0.0
  %2990 = vmatprep.subr.mxu0 0.0
  %2991 = vmatpush2.xpose.msra.mxu0 0.0
  %2992 = vmatprep.subr.mxu0 0.0
  %2993 = vmatpush2.xpose.msra.mxu0 0.0
  %2994 = vmatprep.subr.mxu0 0.0
  %2995 = vmatpush2.xpose.msra.mxu0 0.0
  %2996 = vmatprep.subr.mxu0 0.0
  %2997 = vmatpush2.xpose.msra.mxu0 0.0
  %2998 = vmatprep.subr.mxu0 0.0
  %2999 = vmatpush2.xpose.msra.mxu0 0.0
  %3000 = vmatprep.subr.mxu0 0.0
  %3001 = vmatpush2.xpose.msra.mxu0 0.0
  %3002 = vmatprep.subr.mxu0 0.0
  %3003 = vmatpush2.xpose.msra.mxu0 0.0
  %3004 = vmatprep.subr.mxu0 0.0
  %3005 = vmatpush2.xpose.msra.mxu0 0.0
  %3006 = vmatprep.subr.mxu0 0.0
  %3007 = vmatpush2.xpose.msra.mxu0 0.0
  %3008 = vmatprep.mubr.f32.mxu0 0.0
  %3009 = vmatmul.mubr.f32.gmra.mxu0 %v2940
  %v3010 = vpop.f32.mrf.mxu0
  %v3011 = vadd.f32 0.0, %v3010
  %v3012 = vpop.f32.mrf.mxu0
  %3013 = vdwg.mxu0
  %3014 = vrot.lane.b32.xlu0 %v296, 96
  %v3015 = vpop.permute.xlu0 %3014
  %v3016 = vsel %vm355, %v296, 0
  %v3018 = vsel %vm355, %v3015, 0
  %3020 = vmatprep.subr.mxu0 0.0
  %3021 = vmatpush1.xpose.msra.mxu0 0.0
  %3022 = vmatprep.subr.mxu0 0.0
  %3023 = vmatpush1.xpose.msra.mxu0 0.0
  %3024 = vmatprep.subr.mxu0 0.0
  %3025 = vmatpush1.xpose.msra.mxu0 0.0
  %3026 = vmatprep.subr.mxu0 0.0
  %3027 = vmatpush1.xpose.msra.mxu0 0.0
  %3028 = vmatprep.subr.mxu0 0.0
  %3029 = vmatpush1.xpose.msra.mxu0 0.0
  %3030 = vmatprep.subr.mxu0 0.0
  %3031 = vmatpush1.xpose.msra.mxu0 0.0
  %3032 = vmatprep.subr.mxu0 0.0
  %3033 = vmatpush1.xpose.msra.mxu0 0.0
  %3034 = vmatprep.subr.mxu0 0.0
  %3035 = vmatpush1.xpose.msra.mxu0 0.0
  %3036 = vmatprep.subr.mxu0 0.0
  %3037 = vmatpush1.xpose.msra.mxu0 0.0
  %3038 = vmatprep.subr.mxu0 0.0
  %3039 = vmatpush1.xpose.msra.mxu0 0.0
  %3040 = vmatprep.subr.mxu0 0.0
  %3041 = vmatpush1.xpose.msra.mxu0 0.0
  %3042 = vmatprep.subr.mxu0 0.0
  %3043 = vmatpush1.xpose.msra.mxu0 0.0
  %3044 = vmatprep.subr.mxu0 0.0
  %3045 = vmatpush1.xpose.msra.mxu0 0.0
  %3046 = vmatprep.subr.mxu0 0.0
  %3047 = vmatpush1.xpose.msra.mxu0 0.0
  %3048 = vmatprep.subr.mxu0 0.0
  %3049 = vmatpush1.xpose.msra.mxu0 0.0
  %3050 = vmatprep.subr.mxu0 0.0
  %3051 = vmatpush1.xpose.msra.mxu0 %v3018
  %3052 = vmatprep.subr.mxu0 0.0
  %3053 = vmatpush2.xpose.msra.mxu0 0.0
  %3054 = vmatprep.subr.mxu0 0.0
  %3055 = vmatpush2.xpose.msra.mxu0 0.0
  %3056 = vmatprep.subr.mxu0 0.0
  %3057 = vmatpush2.xpose.msra.mxu0 0.0
  %3058 = vmatprep.subr.mxu0 0.0
  %3059 = vmatpush2.xpose.msra.mxu0 0.0
  %3060 = vmatprep.subr.mxu0 0.0
  %3061 = vmatpush2.xpose.msra.mxu0 0.0
  %3062 = vmatprep.subr.mxu0 0.0
  %3063 = vmatpush2.xpose.msra.mxu0 0.0
  %3064 = vmatprep.subr.mxu0 0.0
  %3065 = vmatpush2.xpose.msra.mxu0 0.0
  %3066 = vmatprep.subr.mxu0 0.0
  %3067 = vmatpush2.xpose.msra.mxu0 0.0
  %3068 = vmatprep.subr.mxu0 0.0
  %3069 = vmatpush2.xpose.msra.mxu0 0.0
  %3070 = vmatprep.subr.mxu0 0.0
  %3071 = vmatpush2.xpose.msra.mxu0 0.0
  %3072 = vmatprep.subr.mxu0 0.0
  %3073 = vmatpush2.xpose.msra.mxu0 0.0
  %3074 = vmatprep.subr.mxu0 0.0
  %3075 = vmatpush2.xpose.msra.mxu0 0.0
  %3076 = vmatprep.subr.mxu0 0.0
  %3077 = vmatpush2.xpose.msra.mxu0 0.0
  %3078 = vmatprep.subr.mxu0 0.0
  %3079 = vmatpush2.xpose.msra.mxu0 0.0
  %3080 = vmatprep.subr.mxu0 0.0
  %3081 = vmatpush2.xpose.msra.mxu0 0.0
  %3082 = vmatprep.subr.mxu0 0.0
  %3083 = vmatpush2.xpose.msra.mxu0 0.0
  %3084 = vmatprep.mubr.f32.mxu0 0.0
  %3085 = vmatmul.mubr.f32.gmra.mxu0 %v3016
  %v3086 = vpop.f32.mrf.mxu0
  %v3087 = vadd.f32 0.0, %v3086
  %v3088 = vpop.f32.mrf.mxu0
  %3089 = vdwg.mxu0
  %3090 = vrot.lane.b32.xlu0 %v298, 96
  %v3091 = vpop.permute.xlu0 %3090
  %v3092 = vsel %vm355, %v298, 0
  %v3094 = vsel %vm355, %v3091, 0
  %3096 = vmatprep.subr.mxu0 0.0
  %3097 = vmatpush1.xpose.msra.mxu0 0.0
  %3098 = vmatprep.subr.mxu0 0.0
  %3099 = vmatpush1.xpose.msra.mxu0 0.0
  %3100 = vmatprep.subr.mxu0 0.0
  %3101 = vmatpush1.xpose.msra.mxu0 0.0
  %3102 = vmatprep.subr.mxu0 0.0
  %3103 = vmatpush1.xpose.msra.mxu0 0.0
  %3104 = vmatprep.subr.mxu0 0.0
  %3105 = vmatpush1.xpose.msra.mxu0 0.0
  %3106 = vmatprep.subr.mxu0 0.0
  %3107 = vmatpush1.xpose.msra.mxu0 0.0
  %3108 = vmatprep.subr.mxu0 0.0
  %3109 = vmatpush1.xpose.msra.mxu0 0.0
  %3110 = vmatprep.subr.mxu0 0.0
  %3111 = vmatpush1.xpose.msra.mxu0 0.0
  %3112 = vmatprep.subr.mxu0 0.0
  %3113 = vmatpush1.xpose.msra.mxu0 0.0
  %3114 = vmatprep.subr.mxu0 0.0
  %3115 = vmatpush1.xpose.msra.mxu0 0.0
  %3116 = vmatprep.subr.mxu0 0.0
  %3117 = vmatpush1.xpose.msra.mxu0 0.0
  %3118 = vmatprep.subr.mxu0 0.0
  %3119 = vmatpush1.xpose.msra.mxu0 0.0
  %3120 = vmatprep.subr.mxu0 0.0
  %3121 = vmatpush1.xpose.msra.mxu0 0.0
  %3122 = vmatprep.subr.mxu0 0.0
  %3123 = vmatpush1.xpose.msra.mxu0 0.0
  %3124 = vmatprep.subr.mxu0 0.0
  %3125 = vmatpush1.xpose.msra.mxu0 0.0
  %3126 = vmatprep.subr.mxu0 0.0
  %3127 = vmatpush1.xpose.msra.mxu0 %v3094
  %3128 = vmatprep.subr.mxu0 0.0
  %3129 = vmatpush2.xpose.msra.mxu0 0.0
  %3130 = vmatprep.subr.mxu0 0.0
  %3131 = vmatpush2.xpose.msra.mxu0 0.0
  %3132 = vmatprep.subr.mxu0 0.0
  %3133 = vmatpush2.xpose.msra.mxu0 0.0
  %3134 = vmatprep.subr.mxu0 0.0
  %3135 = vmatpush2.xpose.msra.mxu0 0.0
  %3136 = vmatprep.subr.mxu0 0.0
  %3137 = vmatpush2.xpose.msra.mxu0 0.0
  %3138 = vmatprep.subr.mxu0 0.0
  %3139 = vmatpush2.xpose.msra.mxu0 0.0
  %3140 = vmatprep.subr.mxu0 0.0
  %3141 = vmatpush2.xpose.msra.mxu0 0.0
  %3142 = vmatprep.subr.mxu0 0.0
  %3143 = vmatpush2.xpose.msra.mxu0 0.0
  %3144 = vmatprep.subr.mxu0 0.0
  %3145 = vmatpush2.xpose.msra.mxu0 0.0
  %3146 = vmatprep.subr.mxu0 0.0
  %3147 = vmatpush2.xpose.msra.mxu0 0.0
  %3148 = vmatprep.subr.mxu0 0.0
  %3149 = vmatpush2.xpose.msra.mxu0 0.0
  %3150 = vmatprep.subr.mxu0 0.0
  %3151 = vmatpush2.xpose.msra.mxu0 0.0
  %3152 = vmatprep.subr.mxu0 0.0
  %3153 = vmatpush2.xpose.msra.mxu0 0.0
  %3154 = vmatprep.subr.mxu0 0.0
  %3155 = vmatpush2.xpose.msra.mxu0 0.0
  %3156 = vmatprep.subr.mxu0 0.0
  %3157 = vmatpush2.xpose.msra.mxu0 0.0
  %3158 = vmatprep.subr.mxu0 0.0
  %3159 = vmatpush2.xpose.msra.mxu0 0.0
  %3160 = vmatprep.mubr.f32.mxu0 0.0
  %3161 = vmatmul.mubr.f32.gmra.mxu0 %v3092
  %v3162 = vpop.f32.mrf.mxu0
  %v3163 = vadd.f32 0.0, %v3162
  %v3164 = vpop.f32.mrf.mxu0
  %3165 = vdwg.mxu0
  %3166 = vrot.lane.b32.xlu0 %v300, 96
  %v3167 = vpop.permute.xlu0 %3166
  %v3168 = vsel %vm355, %v300, 0
  %v3170 = vsel %vm355, %v3167, 0
  %3172 = vmatprep.subr.mxu0 0.0
  %3173 = vmatpush1.xpose.msra.mxu0 0.0
  %3174 = vmatprep.subr.mxu0 0.0
  %3175 = vmatpush1.xpose.msra.mxu0 0.0
  %3176 = vmatprep.subr.mxu0 0.0
  %3177 = vmatpush1.xpose.msra.mxu0 0.0
  %3178 = vmatprep.subr.mxu0 0.0
  %3179 = vmatpush1.xpose.msra.mxu0 0.0
  %3180 = vmatprep.subr.mxu0 0.0
  %3181 = vmatpush1.xpose.msra.mxu0 0.0
  %3182 = vmatprep.subr.mxu0 0.0
  %3183 = vmatpush1.xpose.msra.mxu0 0.0
  %3184 = vmatprep.subr.mxu0 0.0
  %3185 = vmatpush1.xpose.msra.mxu0 0.0
  %3186 = vmatprep.subr.mxu0 0.0
  %3187 = vmatpush1.xpose.msra.mxu0 0.0
  %3188 = vmatprep.subr.mxu0 0.0
  %3189 = vmatpush1.xpose.msra.mxu0 0.0
  %3190 = vmatprep.subr.mxu0 0.0
  %3191 = vmatpush1.xpose.msra.mxu0 0.0
  %3192 = vmatprep.subr.mxu0 0.0
  %3193 = vmatpush1.xpose.msra.mxu0 0.0
  %3194 = vmatprep.subr.mxu0 0.0
  %3195 = vmatpush1.xpose.msra.mxu0 0.0
  %3196 = vmatprep.subr.mxu0 0.0
  %3197 = vmatpush1.xpose.msra.mxu0 0.0
  %3198 = vmatprep.subr.mxu0 0.0
  %3199 = vmatpush1.xpose.msra.mxu0 0.0
  %3200 = vmatprep.subr.mxu0 0.0
  %3201 = vmatpush1.xpose.msra.mxu0 0.0
  %3202 = vmatprep.subr.mxu0 0.0
  %3203 = vmatpush1.xpose.msra.mxu0 %v3170
  %3204 = vmatprep.subr.mxu0 0.0
  %3205 = vmatpush2.xpose.msra.mxu0 0.0
  %3206 = vmatprep.subr.mxu0 0.0
  %3207 = vmatpush2.xpose.msra.mxu0 0.0
  %3208 = vmatprep.subr.mxu0 0.0
  %3209 = vmatpush2.xpose.msra.mxu0 0.0
  %3210 = vmatprep.subr.mxu0 0.0
  %3211 = vmatpush2.xpose.msra.mxu0 0.0
  %3212 = vmatprep.subr.mxu0 0.0
  %3213 = vmatpush2.xpose.msra.mxu0 0.0
  %3214 = vmatprep.subr.mxu0 0.0
  %3215 = vmatpush2.xpose.msra.mxu0 0.0
  %3216 = vmatprep.subr.mxu0 0.0
  %3217 = vmatpush2.xpose.msra.mxu0 0.0
  %3218 = vmatprep.subr.mxu0 0.0
  %3219 = vmatpush2.xpose.msra.mxu0 0.0
  %3220 = vmatprep.subr.mxu0 0.0
  %3221 = vmatpush2.xpose.msra.mxu0 0.0
  %3222 = vmatprep.subr.mxu0 0.0
  %3223 = vmatpush2.xpose.msra.mxu0 0.0
  %3224 = vmatprep.subr.mxu0 0.0
  %3225 = vmatpush2.xpose.msra.mxu0 0.0
  %3226 = vmatprep.subr.mxu0 0.0
  %3227 = vmatpush2.xpose.msra.mxu0 0.0
  %3228 = vmatprep.subr.mxu0 0.0
  %3229 = vmatpush2.xpose.msra.mxu0 0.0
  %3230 = vmatprep.subr.mxu0 0.0
  %3231 = vmatpush2.xpose.msra.mxu0 0.0
  %3232 = vmatprep.subr.mxu0 0.0
  %3233 = vmatpush2.xpose.msra.mxu0 0.0
  %3234 = vmatprep.subr.mxu0 0.0
  %3235 = vmatpush2.xpose.msra.mxu0 0.0
  %3236 = vmatprep.mubr.f32.mxu0 0.0
  %3237 = vmatmul.mubr.f32.gmra.mxu0 %v3168
  %v3238 = vpop.f32.mrf.mxu0
  %v3239 = vadd.f32 0.0, %v3238
  %v3240 = vpop.f32.mrf.mxu0
  %3241 = vdwg.mxu0
  %3242 = vrot.lane.b32.xlu0 %v302, 96
  %v3243 = vpop.permute.xlu0 %3242
  %v3244 = vsel %vm355, %v302, 0
  %v3246 = vsel %vm355, %v3243, 0
  %3248 = vmatprep.subr.mxu0 0.0
  %3249 = vmatpush1.xpose.msra.mxu0 0.0
  %3250 = vmatprep.subr.mxu0 0.0
  %3251 = vmatpush1.xpose.msra.mxu0 0.0
  %3252 = vmatprep.subr.mxu0 0.0
  %3253 = vmatpush1.xpose.msra.mxu0 0.0
  %3254 = vmatprep.subr.mxu0 0.0
  %3255 = vmatpush1.xpose.msra.mxu0 0.0
  %3256 = vmatprep.subr.mxu0 0.0
  %3257 = vmatpush1.xpose.msra.mxu0 0.0
  %3258 = vmatprep.subr.mxu0 0.0
  %3259 = vmatpush1.xpose.msra.mxu0 0.0
  %3260 = vmatprep.subr.mxu0 0.0
  %3261 = vmatpush1.xpose.msra.mxu0 0.0
  %3262 = vmatprep.subr.mxu0 0.0
  %3263 = vmatpush1.xpose.msra.mxu0 0.0
  %3264 = vmatprep.subr.mxu0 0.0
  %3265 = vmatpush1.xpose.msra.mxu0 0.0
  %3266 = vmatprep.subr.mxu0 0.0
  %3267 = vmatpush1.xpose.msra.mxu0 0.0
  %3268 = vmatprep.subr.mxu0 0.0
  %3269 = vmatpush1.xpose.msra.mxu0 0.0
  %3270 = vmatprep.subr.mxu0 0.0
  %3271 = vmatpush1.xpose.msra.mxu0 0.0
  %3272 = vmatprep.subr.mxu0 0.0
  %3273 = vmatpush1.xpose.msra.mxu0 0.0
  %3274 = vmatprep.subr.mxu0 0.0
  %3275 = vmatpush1.xpose.msra.mxu0 0.0
  %3276 = vmatprep.subr.mxu0 0.0
  %3277 = vmatpush1.xpose.msra.mxu0 0.0
  %3278 = vmatprep.subr.mxu0 0.0
  %3279 = vmatpush1.xpose.msra.mxu0 %v3246
  %3280 = vmatprep.subr.mxu0 0.0
  %3281 = vmatpush2.xpose.msra.mxu0 0.0
  %3282 = vmatprep.subr.mxu0 0.0
  %3283 = vmatpush2.xpose.msra.mxu0 0.0
  %3284 = vmatprep.subr.mxu0 0.0
  %3285 = vmatpush2.xpose.msra.mxu0 0.0
  %3286 = vmatprep.subr.mxu0 0.0
  %3287 = vmatpush2.xpose.msra.mxu0 0.0
  %3288 = vmatprep.subr.mxu0 0.0
  %3289 = vmatpush2.xpose.msra.mxu0 0.0
  %3290 = vmatprep.subr.mxu0 0.0
  %3291 = vmatpush2.xpose.msra.mxu0 0.0
  %3292 = vmatprep.subr.mxu0 0.0
  %3293 = vmatpush2.xpose.msra.mxu0 0.0
  %3294 = vmatprep.subr.mxu0 0.0
  %3295 = vmatpush2.xpose.msra.mxu0 0.0
  %3296 = vmatprep.subr.mxu0 0.0
  %3297 = vmatpush2.xpose.msra.mxu0 0.0
  %3298 = vmatprep.subr.mxu0 0.0
  %3299 = vmatpush2.xpose.msra.mxu0 0.0
  %3300 = vmatprep.subr.mxu0 0.0
  %3301 = vmatpush2.xpose.msra.mxu0 0.0
  %3302 = vmatprep.subr.mxu0 0.0
  %3303 = vmatpush2.xpose.msra.mxu0 0.0
  %3304 = vmatprep.subr.mxu0 0.0
  %3305 = vmatpush2.xpose.msra.mxu0 0.0
  %3306 = vmatprep.subr.mxu0 0.0
  %3307 = vmatpush2.xpose.msra.mxu0 0.0
  %3308 = vmatprep.subr.mxu0 0.0
  %3309 = vmatpush2.xpose.msra.mxu0 0.0
  %3310 = vmatprep.subr.mxu0 0.0
  %3311 = vmatpush2.xpose.msra.mxu0 0.0
  %3312 = vmatprep.mubr.f32.mxu0 0.0
  %3313 = vmatmul.mubr.f32.gmra.mxu0 %v3244
  %v3314 = vpop.f32.mrf.mxu0
  %v3315 = vadd.f32 0.0, %v3314
  %v3316 = vpop.f32.mrf.mxu0
  %3317 = vdwg.mxu0
  %3318 = vrot.lane.b32.xlu0 %v304, 96
  %v3319 = vpop.permute.xlu0 %3318
  %v3320 = vsel %vm355, %v304, 0
  %v3322 = vsel %vm355, %v3319, 0
  %3324 = vmatprep.subr.mxu0 0.0
  %3325 = vmatpush1.xpose.msra.mxu0 0.0
  %3326 = vmatprep.subr.mxu0 0.0
  %3327 = vmatpush1.xpose.msra.mxu0 0.0
  %3328 = vmatprep.subr.mxu0 0.0
  %3329 = vmatpush1.xpose.msra.mxu0 0.0
  %3330 = vmatprep.subr.mxu0 0.0
  %3331 = vmatpush1.xpose.msra.mxu0 0.0
  %3332 = vmatprep.subr.mxu0 0.0
  %3333 = vmatpush1.xpose.msra.mxu0 0.0
  %3334 = vmatprep.subr.mxu0 0.0
  %3335 = vmatpush1.xpose.msra.mxu0 0.0
  %3336 = vmatprep.subr.mxu0 0.0
  %3337 = vmatpush1.xpose.msra.mxu0 0.0
  %3338 = vmatprep.subr.mxu0 0.0
  %3339 = vmatpush1.xpose.msra.mxu0 0.0
  %3340 = vmatprep.subr.mxu0 0.0
  %3341 = vmatpush1.xpose.msra.mxu0 0.0
  %3342 = vmatprep.subr.mxu0 0.0
  %3343 = vmatpush1.xpose.msra.mxu0 0.0
  %3344 = vmatprep.subr.mxu0 0.0
  %3345 = vmatpush1.xpose.msra.mxu0 0.0
  %3346 = vmatprep.subr.mxu0 0.0
  %3347 = vmatpush1.xpose.msra.mxu0 0.0
  %3348 = vmatprep.subr.mxu0 0.0
  %3349 = vmatpush1.xpose.msra.mxu0 0.0
  %3350 = vmatprep.subr.mxu0 0.0
  %3351 = vmatpush1.xpose.msra.mxu0 0.0
  %3352 = vmatprep.subr.mxu0 0.0
  %3353 = vmatpush1.xpose.msra.mxu0 0.0
  %3354 = vmatprep.subr.mxu0 0.0
  %3355 = vmatpush1.xpose.msra.mxu0 %v3322
  %3356 = vmatprep.subr.mxu0 0.0
  %3357 = vmatpush2.xpose.msra.mxu0 0.0
  %3358 = vmatprep.subr.mxu0 0.0
  %3359 = vmatpush2.xpose.msra.mxu0 0.0
  %3360 = vmatprep.subr.mxu0 0.0
  %3361 = vmatpush2.xpose.msra.mxu0 0.0
  %3362 = vmatprep.subr.mxu0 0.0
  %3363 = vmatpush2.xpose.msra.mxu0 0.0
  %3364 = vmatprep.subr.mxu0 0.0
  %3365 = vmatpush2.xpose.msra.mxu0 0.0
  %3366 = vmatprep.subr.mxu0 0.0
  %3367 = vmatpush2.xpose.msra.mxu0 0.0
  %3368 = vmatprep.subr.mxu0 0.0
  %3369 = vmatpush2.xpose.msra.mxu0 0.0
  %3370 = vmatprep.subr.mxu0 0.0
  %3371 = vmatpush2.xpose.msra.mxu0 0.0
  %3372 = vmatprep.subr.mxu0 0.0
  %3373 = vmatpush2.xpose.msra.mxu0 0.0
  %3374 = vmatprep.subr.mxu0 0.0
  %3375 = vmatpush2.xpose.msra.mxu0 0.0
  %3376 = vmatprep.subr.mxu0 0.0
  %3377 = vmatpush2.xpose.msra.mxu0 0.0
  %3378 = vmatprep.subr.mxu0 0.0
  %3379 = vmatpush2.xpose.msra.mxu0 0.0
  %3380 = vmatprep.subr.mxu0 0.0
  %3381 = vmatpush2.xpose.msra.mxu0 0.0
  %3382 = vmatprep.subr.mxu0 0.0
  %3383 = vmatpush2.xpose.msra.mxu0 0.0
  %3384 = vmatprep.subr.mxu0 0.0
  %3385 = vmatpush2.xpose.msra.mxu0 0.0
  %3386 = vmatprep.subr.mxu0 0.0
  %3387 = vmatpush2.xpose.msra.mxu0 0.0
  %3388 = vmatprep.mubr.f32.mxu0 0.0
  %3389 = vmatmul.mubr.f32.gmra.mxu0 %v3320
  %v3390 = vpop.f32.mrf.mxu0
  %v3391 = vadd.f32 0.0, %v3390
  %v3392 = vpop.f32.mrf.mxu0
  %3393 = vdwg.mxu0
  %3394 = vrot.lane.b32.xlu0 %v306, 96
  %v3395 = vpop.permute.xlu0 %3394
  %v3396 = vsel %vm355, %v306, 0
  %v3398 = vsel %vm355, %v3395, 0
  %3400 = vmatprep.subr.mxu0 0.0
  %3401 = vmatpush1.xpose.msra.mxu0 0.0
  %3402 = vmatprep.subr.mxu0 0.0
  %3403 = vmatpush1.xpose.msra.mxu0 0.0
  %3404 = vmatprep.subr.mxu0 0.0
  %3405 = vmatpush1.xpose.msra.mxu0 0.0
  %3406 = vmatprep.subr.mxu0 0.0
  %3407 = vmatpush1.xpose.msra.mxu0 0.0
  %3408 = vmatprep.subr.mxu0 0.0
  %3409 = vmatpush1.xpose.msra.mxu0 0.0
  %3410 = vmatprep.subr.mxu0 0.0
  %3411 = vmatpush1.xpose.msra.mxu0 0.0
  %3412 = vmatprep.subr.mxu0 0.0
  %3413 = vmatpush1.xpose.msra.mxu0 0.0
  %3414 = vmatprep.subr.mxu0 0.0
  %3415 = vmatpush1.xpose.msra.mxu0 0.0
  %3416 = vmatprep.subr.mxu0 0.0
  %3417 = vmatpush1.xpose.msra.mxu0 0.0
  %3418 = vmatprep.subr.mxu0 0.0
  %3419 = vmatpush1.xpose.msra.mxu0 0.0
  %3420 = vmatprep.subr.mxu0 0.0
  %3421 = vmatpush1.xpose.msra.mxu0 0.0
  %3422 = vmatprep.subr.mxu0 0.0
  %3423 = vmatpush1.xpose.msra.mxu0 0.0
  %3424 = vmatprep.subr.mxu0 0.0
  %3425 = vmatpush1.xpose.msra.mxu0 0.0
  %3426 = vmatprep.subr.mxu0 0.0
  %3427 = vmatpush1.xpose.msra.mxu0 0.0
  %3428 = vmatprep.subr.mxu0 0.0
  %3429 = vmatpush1.xpose.msra.mxu0 0.0
  %3430 = vmatprep.subr.mxu0 0.0
  %3431 = vmatpush1.xpose.msra.mxu0 %v3398
  %3432 = vmatprep.subr.mxu0 0.0
  %3433 = vmatpush2.xpose.msra.mxu0 0.0
  %3434 = vmatprep.subr.mxu0 0.0
  %3435 = vmatpush2.xpose.msra.mxu0 0.0
  %3436 = vmatprep.subr.mxu0 0.0
  %3437 = vmatpush2.xpose.msra.mxu0 0.0
  %3438 = vmatprep.subr.mxu0 0.0
  %3439 = vmatpush2.xpose.msra.mxu0 0.0
  %3440 = vmatprep.subr.mxu0 0.0
  %3441 = vmatpush2.xpose.msra.mxu0 0.0
  %3442 = vmatprep.subr.mxu0 0.0
  %3443 = vmatpush2.xpose.msra.mxu0 0.0
  %3444 = vmatprep.subr.mxu0 0.0
  %3445 = vmatpush2.xpose.msra.mxu0 0.0
  %3446 = vmatprep.subr.mxu0 0.0
  %3447 = vmatpush2.xpose.msra.mxu0 0.0
  %3448 = vmatprep.subr.mxu0 0.0
  %3449 = vmatpush2.xpose.msra.mxu0 0.0
  %3450 = vmatprep.subr.mxu0 0.0
  %3451 = vmatpush2.xpose.msra.mxu0 0.0
  %3452 = vmatprep.subr.mxu0 0.0
  %3453 = vmatpush2.xpose.msra.mxu0 0.0
  %3454 = vmatprep.subr.mxu0 0.0
  %3455 = vmatpush2.xpose.msra.mxu0 0.0
  %3456 = vmatprep.subr.mxu0 0.0
  %3457 = vmatpush2.xpose.msra.mxu0 0.0
  %3458 = vmatprep.subr.mxu0 0.0
  %3459 = vmatpush2.xpose.msra.mxu0 0.0
  %3460 = vmatprep.subr.mxu0 0.0
  %3461 = vmatpush2.xpose.msra.mxu0 0.0
  %3462 = vmatprep.subr.mxu0 0.0
  %3463 = vmatpush2.xpose.msra.mxu0 0.0
  %3464 = vmatprep.mubr.f32.mxu0 0.0
  %3465 = vmatmul.mubr.f32.gmra.mxu0 %v3396
  %v3466 = vpop.f32.mrf.mxu0
  %v3467 = vadd.f32 0.0, %v3466
  %v3468 = vpop.f32.mrf.mxu0
  %3469 = vdwg.mxu0
  %3470 = vrot.lane.b32.xlu0 %v308, 96
  %v3471 = vpop.permute.xlu0 %3470
  %v3472 = vsel %vm355, %v308, 0
  %v3474 = vsel %vm355, %v3471, 0
  %3476 = vmatprep.subr.mxu0 0.0
  %3477 = vmatpush1.xpose.msra.mxu0 0.0
  %3478 = vmatprep.subr.mxu0 0.0
  %3479 = vmatpush1.xpose.msra.mxu0 0.0
  %3480 = vmatprep.subr.mxu0 0.0
  %3481 = vmatpush1.xpose.msra.mxu0 0.0
  %3482 = vmatprep.subr.mxu0 0.0
  %3483 = vmatpush1.xpose.msra.mxu0 0.0
  %3484 = vmatprep.subr.mxu0 0.0
  %3485 = vmatpush1.xpose.msra.mxu0 0.0
  %3486 = vmatprep.subr.mxu0 0.0
  %3487 = vmatpush1.xpose.msra.mxu0 0.0
  %3488 = vmatprep.subr.mxu0 0.0
  %3489 = vmatpush1.xpose.msra.mxu0 0.0
  %3490 = vmatprep.subr.mxu0 0.0
  %3491 = vmatpush1.xpose.msra.mxu0 0.0
  %3492 = vmatprep.subr.mxu0 0.0
  %3493 = vmatpush1.xpose.msra.mxu0 0.0
  %3494 = vmatprep.subr.mxu0 0.0
  %3495 = vmatpush1.xpose.msra.mxu0 0.0
  %3496 = vmatprep.subr.mxu0 0.0
  %3497 = vmatpush1.xpose.msra.mxu0 0.0
  %3498 = vmatprep.subr.mxu0 0.0
  %3499 = vmatpush1.xpose.msra.mxu0 0.0
  %3500 = vmatprep.subr.mxu0 0.0
  %3501 = vmatpush1.xpose.msra.mxu0 0.0
  %3502 = vmatprep.subr.mxu0 0.0
  %3503 = vmatpush1.xpose.msra.mxu0 0.0
  %3504 = vmatprep.subr.mxu0 0.0
  %3505 = vmatpush1.xpose.msra.mxu0 0.0
  %3506 = vmatprep.subr.mxu0 0.0
  %3507 = vmatpush1.xpose.msra.mxu0 %v3474
  %3508 = vmatprep.subr.mxu0 0.0
  %3509 = vmatpush2.xpose.msra.mxu0 0.0
  %3510 = vmatprep.subr.mxu0 0.0
  %3511 = vmatpush2.xpose.msra.mxu0 0.0
  %3512 = vmatprep.subr.mxu0 0.0
  %3513 = vmatpush2.xpose.msra.mxu0 0.0
  %3514 = vmatprep.subr.mxu0 0.0
  %3515 = vmatpush2.xpose.msra.mxu0 0.0
  %3516 = vmatprep.subr.mxu0 0.0
  %3517 = vmatpush2.xpose.msra.mxu0 0.0
  %3518 = vmatprep.subr.mxu0 0.0
  %3519 = vmatpush2.xpose.msra.mxu0 0.0
  %3520 = vmatprep.subr.mxu0 0.0
  %3521 = vmatpush2.xpose.msra.mxu0 0.0
  %3522 = vmatprep.subr.mxu0 0.0
  %3523 = vmatpush2.xpose.msra.mxu0 0.0
  %3524 = vmatprep.subr.mxu0 0.0
  %3525 = vmatpush2.xpose.msra.mxu0 0.0
  %3526 = vmatprep.subr.mxu0 0.0
  %3527 = vmatpush2.xpose.msra.mxu0 0.0
  %3528 = vmatprep.subr.mxu0 0.0
  %3529 = vmatpush2.xpose.msra.mxu0 0.0
  %3530 = vmatprep.subr.mxu0 0.0
  %3531 = vmatpush2.xpose.msra.mxu0 0.0
  %3532 = vmatprep.subr.mxu0 0.0
  %3533 = vmatpush2.xpose.msra.mxu0 0.0
  %3534 = vmatprep.subr.mxu0 0.0
  %3535 = vmatpush2.xpose.msra.mxu0 0.0
  %3536 = vmatprep.subr.mxu0 0.0
  %3537 = vmatpush2.xpose.msra.mxu0 0.0
  %3538 = vmatprep.subr.mxu0 0.0
  %3539 = vmatpush2.xpose.msra.mxu0 0.0
  %3540 = vmatprep.mubr.f32.mxu0 0.0
  %3541 = vmatmul.mubr.f32.gmra.mxu0 %v3472
  %v3542 = vpop.f32.mrf.mxu0
  %v3543 = vadd.f32 0.0, %v3542
  %v3544 = vpop.f32.mrf.mxu0
  %3545 = vdwg.mxu0
  %3546 = vrot.lane.b32.xlu0 %v310, 96
  %v3547 = vpop.permute.xlu0 %3546
  %v3548 = vsel %vm355, %v310, 0
  %v3550 = vsel %vm355, %v3547, 0
  %3552 = vmatprep.subr.mxu0 0.0
  %3553 = vmatpush1.xpose.msra.mxu0 0.0
  %3554 = vmatprep.subr.mxu0 0.0
  %3555 = vmatpush1.xpose.msra.mxu0 0.0
  %3556 = vmatprep.subr.mxu0 0.0
  %3557 = vmatpush1.xpose.msra.mxu0 0.0
  %3558 = vmatprep.subr.mxu0 0.0
  %3559 = vmatpush1.xpose.msra.mxu0 0.0
  %3560 = vmatprep.subr.mxu0 0.0
  %3561 = vmatpush1.xpose.msra.mxu0 0.0
  %3562 = vmatprep.subr.mxu0 0.0
  %3563 = vmatpush1.xpose.msra.mxu0 0.0
  %3564 = vmatprep.subr.mxu0 0.0
  %3565 = vmatpush1.xpose.msra.mxu0 0.0
  %3566 = vmatprep.subr.mxu0 0.0
  %3567 = vmatpush1.xpose.msra.mxu0 0.0
  %3568 = vmatprep.subr.mxu0 0.0
  %3569 = vmatpush1.xpose.msra.mxu0 0.0
  %3570 = vmatprep.subr.mxu0 0.0
  %3571 = vmatpush1.xpose.msra.mxu0 0.0
  %3572 = vmatprep.subr.mxu0 0.0
  %3573 = vmatpush1.xpose.msra.mxu0 0.0
  %3574 = vmatprep.subr.mxu0 0.0
  %3575 = vmatpush1.xpose.msra.mxu0 0.0
  %3576 = vmatprep.subr.mxu0 0.0
  %3577 = vmatpush1.xpose.msra.mxu0 0.0
  %3578 = vmatprep.subr.mxu0 0.0
  %3579 = vmatpush1.xpose.msra.mxu0 0.0
  %3580 = vmatprep.subr.mxu0 0.0
  %3581 = vmatpush1.xpose.msra.mxu0 0.0
  %3582 = vmatprep.subr.mxu0 0.0
  %3583 = vmatpush1.xpose.msra.mxu0 %v3550
  %3584 = vmatprep.subr.mxu0 0.0
  %3585 = vmatpush2.xpose.msra.mxu0 0.0
  %3586 = vmatprep.subr.mxu0 0.0
  %3587 = vmatpush2.xpose.msra.mxu0 0.0
  %3588 = vmatprep.subr.mxu0 0.0
  %3589 = vmatpush2.xpose.msra.mxu0 0.0
  %3590 = vmatprep.subr.mxu0 0.0
  %3591 = vmatpush2.xpose.msra.mxu0 0.0
  %3592 = vmatprep.subr.mxu0 0.0
  %3593 = vmatpush2.xpose.msra.mxu0 0.0
  %3594 = vmatprep.subr.mxu0 0.0
  %3595 = vmatpush2.xpose.msra.mxu0 0.0
  %3596 = vmatprep.subr.mxu0 0.0
  %3597 = vmatpush2.xpose.msra.mxu0 0.0
  %3598 = vmatprep.subr.mxu0 0.0
  %3599 = vmatpush2.xpose.msra.mxu0 0.0
  %3600 = vmatprep.subr.mxu0 0.0
  %3601 = vmatpush2.xpose.msra.mxu0 0.0
  %3602 = vmatprep.subr.mxu0 0.0
  %3603 = vmatpush2.xpose.msra.mxu0 0.0
  %3604 = vmatprep.subr.mxu0 0.0
  %3605 = vmatpush2.xpose.msra.mxu0 0.0
  %3606 = vmatprep.subr.mxu0 0.0
  %3607 = vmatpush2.xpose.msra.mxu0 0.0
  %3608 = vmatprep.subr.mxu0 0.0
  %3609 = vmatpush2.xpose.msra.mxu0 0.0
  %3610 = vmatprep.subr.mxu0 0.0
  %3611 = vmatpush2.xpose.msra.mxu0 0.0
  %3612 = vmatprep.subr.mxu0 0.0
  %3613 = vmatpush2.xpose.msra.mxu0 0.0
  %3614 = vmatprep.subr.mxu0 0.0
  %3615 = vmatpush2.xpose.msra.mxu0 0.0
  %3616 = vmatprep.mubr.f32.mxu0 0.0
  %3617 = vmatmul.mubr.f32.gmra.mxu0 %v3548
  %v3618 = vpop.f32.mrf.mxu0
  %v3619 = vadd.f32 0.0, %v3618
  %v3620 = vpop.f32.mrf.mxu0
  %3621 = vdwg.mxu0
  %3622 = vrot.lane.b32.xlu0 %v312, 96
  %v3623 = vpop.permute.xlu0 %3622
  %v3624 = vsel %vm355, %v312, 0
  %v3626 = vsel %vm355, %v3623, 0
  %3628 = vmatprep.subr.mxu0 0.0
  %3629 = vmatpush1.xpose.msra.mxu0 0.0
  %3630 = vmatprep.subr.mxu0 0.0
  %3631 = vmatpush1.xpose.msra.mxu0 0.0
  %3632 = vmatprep.subr.mxu0 0.0
  %3633 = vmatpush1.xpose.msra.mxu0 0.0
  %3634 = vmatprep.subr.mxu0 0.0
  %3635 = vmatpush1.xpose.msra.mxu0 0.0
  %3636 = vmatprep.subr.mxu0 0.0
  %3637 = vmatpush1.xpose.msra.mxu0 0.0
  %3638 = vmatprep.subr.mxu0 0.0
  %3639 = vmatpush1.xpose.msra.mxu0 0.0
  %3640 = vmatprep.subr.mxu0 0.0
  %3641 = vmatpush1.xpose.msra.mxu0 0.0
  %3642 = vmatprep.subr.mxu0 0.0
  %3643 = vmatpush1.xpose.msra.mxu0 0.0
  %3644 = vmatprep.subr.mxu0 0.0
  %3645 = vmatpush1.xpose.msra.mxu0 0.0
  %3646 = vmatprep.subr.mxu0 0.0
  %3647 = vmatpush1.xpose.msra.mxu0 0.0
  %3648 = vmatprep.subr.mxu0 0.0
  %3649 = vmatpush1.xpose.msra.mxu0 0.0
  %3650 = vmatprep.subr.mxu0 0.0
  %3651 = vmatpush1.xpose.msra.mxu0 0.0
  %3652 = vmatprep.subr.mxu0 0.0
  %3653 = vmatpush1.xpose.msra.mxu0 0.0
  %3654 = vmatprep.subr.mxu0 0.0
  %3655 = vmatpush1.xpose.msra.mxu0 0.0
  %3656 = vmatprep.subr.mxu0 0.0
  %3657 = vmatpush1.xpose.msra.mxu0 0.0
  %3658 = vmatprep.subr.mxu0 0.0
  %3659 = vmatpush1.xpose.msra.mxu0 %v3626
  %3660 = vmatprep.subr.mxu0 0.0
  %3661 = vmatpush2.xpose.msra.mxu0 0.0
  %3662 = vmatprep.subr.mxu0 0.0
  %3663 = vmatpush2.xpose.msra.mxu0 0.0
  %3664 = vmatprep.subr.mxu0 0.0
  %3665 = vmatpush2.xpose.msra.mxu0 0.0
  %3666 = vmatprep.subr.mxu0 0.0
  %3667 = vmatpush2.xpose.msra.mxu0 0.0
  %3668 = vmatprep.subr.mxu0 0.0
  %3669 = vmatpush2.xpose.msra.mxu0 0.0
  %3670 = vmatprep.subr.mxu0 0.0
  %3671 = vmatpush2.xpose.msra.mxu0 0.0
  %3672 = vmatprep.subr.mxu0 0.0
  %3673 = vmatpush2.xpose.msra.mxu0 0.0
  %3674 = vmatprep.subr.mxu0 0.0
  %3675 = vmatpush2.xpose.msra.mxu0 0.0
  %3676 = vmatprep.subr.mxu0 0.0
  %3677 = vmatpush2.xpose.msra.mxu0 0.0
  %3678 = vmatprep.subr.mxu0 0.0
  %3679 = vmatpush2.xpose.msra.mxu0 0.0
  %3680 = vmatprep.subr.mxu0 0.0
  %3681 = vmatpush2.xpose.msra.mxu0 0.0
  %3682 = vmatprep.subr.mxu0 0.0
  %3683 = vmatpush2.xpose.msra.mxu0 0.0
  %3684 = vmatprep.subr.mxu0 0.0
  %3685 = vmatpush2.xpose.msra.mxu0 0.0
  %3686 = vmatprep.subr.mxu0 0.0
  %3687 = vmatpush2.xpose.msra.mxu0 0.0
  %3688 = vmatprep.subr.mxu0 0.0
  %3689 = vmatpush2.xpose.msra.mxu0 0.0
  %3690 = vmatprep.subr.mxu0 0.0
  %3691 = vmatpush2.xpose.msra.mxu0 0.0
  %3692 = vmatprep.mubr.f32.mxu0 0.0
  %3693 = vmatmul.mubr.f32.gmra.mxu0 %v3624
  %v3694 = vpop.f32.mrf.mxu0
  %v3695 = vadd.f32 0.0, %v3694
  %v3696 = vpop.f32.mrf.mxu0
  %3697 = vdwg.mxu0
  %3698 = vrot.lane.b32.xlu0 %v314, 96
  %v3699 = vpop.permute.xlu0 %3698
  %v3700 = vsel %vm355, %v314, 0
  %v3702 = vsel %vm355, %v3699, 0
  %3704 = vmatprep.subr.mxu0 0.0
  %3705 = vmatpush1.xpose.msra.mxu0 0.0
  %3706 = vmatprep.subr.mxu0 0.0
  %3707 = vmatpush1.xpose.msra.mxu0 0.0
  %3708 = vmatprep.subr.mxu0 0.0
  %3709 = vmatpush1.xpose.msra.mxu0 0.0
  %3710 = vmatprep.subr.mxu0 0.0
  %3711 = vmatpush1.xpose.msra.mxu0 0.0
  %3712 = vmatprep.subr.mxu0 0.0
  %3713 = vmatpush1.xpose.msra.mxu0 0.0
  %3714 = vmatprep.subr.mxu0 0.0
  %3715 = vmatpush1.xpose.msra.mxu0 0.0
  %3716 = vmatprep.subr.mxu0 0.0
  %3717 = vmatpush1.xpose.msra.mxu0 0.0
  %3718 = vmatprep.subr.mxu0 0.0
  %3719 = vmatpush1.xpose.msra.mxu0 0.0
  %3720 = vmatprep.subr.mxu0 0.0
  %3721 = vmatpush1.xpose.msra.mxu0 0.0
  %3722 = vmatprep.subr.mxu0 0.0
  %3723 = vmatpush1.xpose.msra.mxu0 0.0
  %3724 = vmatprep.subr.mxu0 0.0
  %3725 = vmatpush1.xpose.msra.mxu0 0.0
  %3726 = vmatprep.subr.mxu0 0.0
  %3727 = vmatpush1.xpose.msra.mxu0 0.0
  %3728 = vmatprep.subr.mxu0 0.0
  %3729 = vmatpush1.xpose.msra.mxu0 0.0
  %3730 = vmatprep.subr.mxu0 0.0
  %3731 = vmatpush1.xpose.msra.mxu0 0.0
  %3732 = vmatprep.subr.mxu0 0.0
  %3733 = vmatpush1.xpose.msra.mxu0 0.0
  %3734 = vmatprep.subr.mxu0 0.0
  %3735 = vmatpush1.xpose.msra.mxu0 %v3702
  %3736 = vmatprep.subr.mxu0 0.0
  %3737 = vmatpush2.xpose.msra.mxu0 0.0
  %3738 = vmatprep.subr.mxu0 0.0
  %3739 = vmatpush2.xpose.msra.mxu0 0.0
  %3740 = vmatprep.subr.mxu0 0.0
  %3741 = vmatpush2.xpose.msra.mxu0 0.0
  %3742 = vmatprep.subr.mxu0 0.0
  %3743 = vmatpush2.xpose.msra.mxu0 0.0
  %3744 = vmatprep.subr.mxu0 0.0
  %3745 = vmatpush2.xpose.msra.mxu0 0.0
  %3746 = vmatprep.subr.mxu0 0.0
  %3747 = vmatpush2.xpose.msra.mxu0 0.0
  %3748 = vmatprep.subr.mxu0 0.0
  %3749 = vmatpush2.xpose.msra.mxu0 0.0
  %3750 = vmatprep.subr.mxu0 0.0
  %3751 = vmatpush2.xpose.msra.mxu0 0.0
  %3752 = vmatprep.subr.mxu0 0.0
  %3753 = vmatpush2.xpose.msra.mxu0 0.0
  %3754 = vmatprep.subr.mxu0 0.0
  %3755 = vmatpush2.xpose.msra.mxu0 0.0
  %3756 = vmatprep.subr.mxu0 0.0
  %3757 = vmatpush2.xpose.msra.mxu0 0.0
  %3758 = vmatprep.subr.mxu0 0.0
  %3759 = vmatpush2.xpose.msra.mxu0 0.0
  %3760 = vmatprep.subr.mxu0 0.0
  %3761 = vmatpush2.xpose.msra.mxu0 0.0
  %3762 = vmatprep.subr.mxu0 0.0
  %3763 = vmatpush2.xpose.msra.mxu0 0.0
  %3764 = vmatprep.subr.mxu0 0.0
  %3765 = vmatpush2.xpose.msra.mxu0 0.0
  %3766 = vmatprep.subr.mxu0 0.0
  %3767 = vmatpush2.xpose.msra.mxu0 0.0
  %3768 = vmatprep.mubr.f32.mxu0 0.0
  %3769 = vmatmul.mubr.f32.gmra.mxu0 %v3700
  %v3770 = vpop.f32.mrf.mxu0
  %v3771 = vadd.f32 0.0, %v3770
  %v3772 = vpop.f32.mrf.mxu0
  %3773 = vdwg.mxu0
  %3774 = vrot.lane.b32.xlu0 %v316, 96
  %v3775 = vpop.permute.xlu0 %3774
  %v3776 = vsel %vm355, %v316, 0
  %v3778 = vsel %vm355, %v3775, 0
  %3780 = vmatprep.subr.mxu0 0.0
  %3781 = vmatpush1.xpose.msra.mxu0 0.0
  %3782 = vmatprep.subr.mxu0 0.0
  %3783 = vmatpush1.xpose.msra.mxu0 0.0
  %3784 = vmatprep.subr.mxu0 0.0
  %3785 = vmatpush1.xpose.msra.mxu0 0.0
  %3786 = vmatprep.subr.mxu0 0.0
  %3787 = vmatpush1.xpose.msra.mxu0 0.0
  %3788 = vmatprep.subr.mxu0 0.0
  %3789 = vmatpush1.xpose.msra.mxu0 0.0
  %3790 = vmatprep.subr.mxu0 0.0
  %3791 = vmatpush1.xpose.msra.mxu0 0.0
  %3792 = vmatprep.subr.mxu0 0.0
  %3793 = vmatpush1.xpose.msra.mxu0 0.0
  %3794 = vmatprep.subr.mxu0 0.0
  %3795 = vmatpush1.xpose.msra.mxu0 0.0
  %3796 = vmatprep.subr.mxu0 0.0
  %3797 = vmatpush1.xpose.msra.mxu0 0.0
  %3798 = vmatprep.subr.mxu0 0.0
  %3799 = vmatpush1.xpose.msra.mxu0 0.0
  %3800 = vmatprep.subr.mxu0 0.0
  %3801 = vmatpush1.xpose.msra.mxu0 0.0
  %3802 = vmatprep.subr.mxu0 0.0
  %3803 = vmatpush1.xpose.msra.mxu0 0.0
  %3804 = vmatprep.subr.mxu0 0.0
  %3805 = vmatpush1.xpose.msra.mxu0 0.0
  %3806 = vmatprep.subr.mxu0 0.0
  %3807 = vmatpush1.xpose.msra.mxu0 0.0
  %3808 = vmatprep.subr.mxu0 0.0
  %3809 = vmatpush1.xpose.msra.mxu0 0.0
  %3810 = vmatprep.subr.mxu0 0.0
  %3811 = vmatpush1.xpose.msra.mxu0 %v3778
  %3812 = vmatprep.subr.mxu0 0.0
  %3813 = vmatpush2.xpose.msra.mxu0 0.0
  %3814 = vmatprep.subr.mxu0 0.0
  %3815 = vmatpush2.xpose.msra.mxu0 0.0
  %3816 = vmatprep.subr.mxu0 0.0
  %3817 = vmatpush2.xpose.msra.mxu0 0.0
  %3818 = vmatprep.subr.mxu0 0.0
  %3819 = vmatpush2.xpose.msra.mxu0 0.0
  %3820 = vmatprep.subr.mxu0 0.0
  %3821 = vmatpush2.xpose.msra.mxu0 0.0
  %3822 = vmatprep.subr.mxu0 0.0
  %3823 = vmatpush2.xpose.msra.mxu0 0.0
  %3824 = vmatprep.subr.mxu0 0.0
  %3825 = vmatpush2.xpose.msra.mxu0 0.0
  %3826 = vmatprep.subr.mxu0 0.0
  %3827 = vmatpush2.xpose.msra.mxu0 0.0
  %3828 = vmatprep.subr.mxu0 0.0
  %3829 = vmatpush2.xpose.msra.mxu0 0.0
  %3830 = vmatprep.subr.mxu0 0.0
  %3831 = vmatpush2.xpose.msra.mxu0 0.0
  %3832 = vmatprep.subr.mxu0 0.0
  %3833 = vmatpush2.xpose.msra.mxu0 0.0
  %3834 = vmatprep.subr.mxu0 0.0
  %3835 = vmatpush2.xpose.msra.mxu0 0.0
  %3836 = vmatprep.subr.mxu0 0.0
  %3837 = vmatpush2.xpose.msra.mxu0 0.0
  %3838 = vmatprep.subr.mxu0 0.0
  %3839 = vmatpush2.xpose.msra.mxu0 0.0
  %3840 = vmatprep.subr.mxu0 0.0
  %3841 = vmatpush2.xpose.msra.mxu0 0.0
  %3842 = vmatprep.subr.mxu0 0.0
  %3843 = vmatpush2.xpose.msra.mxu0 0.0
  %3844 = vmatprep.mubr.f32.mxu0 0.0
  %3845 = vmatmul.mubr.f32.gmra.mxu0 %v3776
  %v3846 = vpop.f32.mrf.mxu0
  %v3847 = vadd.f32 0.0, %v3846
  %v3848 = vpop.f32.mrf.mxu0
  %3849 = vdwg.mxu0
  %3850 = vrot.lane.b32.xlu0 %v318, 96
  %v3851 = vpop.permute.xlu0 %3850
  %v3852 = vsel %vm355, %v318, 0
  %v3854 = vsel %vm355, %v3851, 0
  %3856 = vmatprep.subr.mxu0 0.0
  %3857 = vmatpush1.xpose.msra.mxu0 0.0
  %3858 = vmatprep.subr.mxu0 0.0
  %3859 = vmatpush1.xpose.msra.mxu0 0.0
  %3860 = vmatprep.subr.mxu0 0.0
  %3861 = vmatpush1.xpose.msra.mxu0 0.0
  %3862 = vmatprep.subr.mxu0 0.0
  %3863 = vmatpush1.xpose.msra.mxu0 0.0
  %3864 = vmatprep.subr.mxu0 0.0
  %3865 = vmatpush1.xpose.msra.mxu0 0.0
  %3866 = vmatprep.subr.mxu0 0.0
  %3867 = vmatpush1.xpose.msra.mxu0 0.0
  %3868 = vmatprep.subr.mxu0 0.0
  %3869 = vmatpush1.xpose.msra.mxu0 0.0
  %3870 = vmatprep.subr.mxu0 0.0
  %3871 = vmatpush1.xpose.msra.mxu0 0.0
  %3872 = vmatprep.subr.mxu0 0.0
  %3873 = vmatpush1.xpose.msra.mxu0 0.0
  %3874 = vmatprep.subr.mxu0 0.0
  %3875 = vmatpush1.xpose.msra.mxu0 0.0
  %3876 = vmatprep.subr.mxu0 0.0
  %3877 = vmatpush1.xpose.msra.mxu0 0.0
  %3878 = vmatprep.subr.mxu0 0.0
  %3879 = vmatpush1.xpose.msra.mxu0 0.0
  %3880 = vmatprep.subr.mxu0 0.0
  %3881 = vmatpush1.xpose.msra.mxu0 0.0
  %3882 = vmatprep.subr.mxu0 0.0
  %3883 = vmatpush1.xpose.msra.mxu0 0.0
  %3884 = vmatprep.subr.mxu0 0.0
  %3885 = vmatpush1.xpose.msra.mxu0 0.0
  %3886 = vmatprep.subr.mxu0 0.0
  %3887 = vmatpush1.xpose.msra.mxu0 %v3854
  %3888 = vmatprep.subr.mxu0 0.0
  %3889 = vmatpush2.xpose.msra.mxu0 0.0
  %3890 = vmatprep.subr.mxu0 0.0
  %3891 = vmatpush2.xpose.msra.mxu0 0.0
  %3892 = vmatprep.subr.mxu0 0.0
  %3893 = vmatpush2.xpose.msra.mxu0 0.0
  %3894 = vmatprep.subr.mxu0 0.0
  %3895 = vmatpush2.xpose.msra.mxu0 0.0
  %3896 = vmatprep.subr.mxu0 0.0
  %3897 = vmatpush2.xpose.msra.mxu0 0.0
  %3898 = vmatprep.subr.mxu0 0.0
  %3899 = vmatpush2.xpose.msra.mxu0 0.0
  %3900 = vmatprep.subr.mxu0 0.0
  %3901 = vmatpush2.xpose.msra.mxu0 0.0
  %3902 = vmatprep.subr.mxu0 0.0
  %3903 = vmatpush2.xpose.msra.mxu0 0.0
  %3904 = vmatprep.subr.mxu0 0.0
  %3905 = vmatpush2.xpose.msra.mxu0 0.0
  %3906 = vmatprep.subr.mxu0 0.0
  %3907 = vmatpush2.xpose.msra.mxu0 0.0
  %3908 = vmatprep.subr.mxu0 0.0
  %3909 = vmatpush2.xpose.msra.mxu0 0.0
  %3910 = vmatprep.subr.mxu0 0.0
  %3911 = vmatpush2.xpose.msra.mxu0 0.0
  %3912 = vmatprep.subr.mxu0 0.0
  %3913 = vmatpush2.xpose.msra.mxu0 0.0
  %3914 = vmatprep.subr.mxu0 0.0
  %3915 = vmatpush2.xpose.msra.mxu0 0.0
  %3916 = vmatprep.subr.mxu0 0.0
  %3917 = vmatpush2.xpose.msra.mxu0 0.0
  %3918 = vmatprep.subr.mxu0 0.0
  %3919 = vmatpush2.xpose.msra.mxu0 0.0
  %3920 = vmatprep.mubr.f32.mxu0 0.0
  %3921 = vmatmul.mubr.f32.gmra.mxu0 %v3852
  %v3922 = vpop.f32.mrf.mxu0
  %v3923 = vadd.f32 0.0, %v3922
  %v3924 = vpop.f32.mrf.mxu0
  %3925 = vdwg.mxu0
  %3926 = vrot.lane.b32.xlu0 %v320, 96
  %v3927 = vpop.permute.xlu0 %3926
  %v3928 = vsel %vm355, %v320, 0
  %v3930 = vsel %vm355, %v3927, 0
  %3932 = vmatprep.subr.mxu0 0.0
  %3933 = vmatpush1.xpose.msra.mxu0 0.0
  %3934 = vmatprep.subr.mxu0 0.0
  %3935 = vmatpush1.xpose.msra.mxu0 0.0
  %3936 = vmatprep.subr.mxu0 0.0
  %3937 = vmatpush1.xpose.msra.mxu0 0.0
  %3938 = vmatprep.subr.mxu0 0.0
  %3939 = vmatpush1.xpose.msra.mxu0 0.0
  %3940 = vmatprep.subr.mxu0 0.0
  %3941 = vmatpush1.xpose.msra.mxu0 0.0
  %3942 = vmatprep.subr.mxu0 0.0
  %3943 = vmatpush1.xpose.msra.mxu0 0.0
  %3944 = vmatprep.subr.mxu0 0.0
  %3945 = vmatpush1.xpose.msra.mxu0 0.0
  %3946 = vmatprep.subr.mxu0 0.0
  %3947 = vmatpush1.xpose.msra.mxu0 0.0
  %3948 = vmatprep.subr.mxu0 0.0
  %3949 = vmatpush1.xpose.msra.mxu0 0.0
  %3950 = vmatprep.subr.mxu0 0.0
  %3951 = vmatpush1.xpose.msra.mxu0 0.0
  %3952 = vmatprep.subr.mxu0 0.0
  %3953 = vmatpush1.xpose.msra.mxu0 0.0
  %3954 = vmatprep.subr.mxu0 0.0
  %3955 = vmatpush1.xpose.msra.mxu0 0.0
  %3956 = vmatprep.subr.mxu0 0.0
  %3957 = vmatpush1.xpose.msra.mxu0 0.0
  %3958 = vmatprep.subr.mxu0 0.0
  %3959 = vmatpush1.xpose.msra.mxu0 0.0
  %3960 = vmatprep.subr.mxu0 0.0
  %3961 = vmatpush1.xpose.msra.mxu0 0.0
  %3962 = vmatprep.subr.mxu0 0.0
  %3963 = vmatpush1.xpose.msra.mxu0 %v3930
  %3964 = vmatprep.subr.mxu0 0.0
  %3965 = vmatpush2.xpose.msra.mxu0 0.0
  %3966 = vmatprep.subr.mxu0 0.0
  %3967 = vmatpush2.xpose.msra.mxu0 0.0
  %3968 = vmatprep.subr.mxu0 0.0
  %3969 = vmatpush2.xpose.msra.mxu0 0.0
  %3970 = vmatprep.subr.mxu0 0.0
  %3971 = vmatpush2.xpose.msra.mxu0 0.0
  %3972 = vmatprep.subr.mxu0 0.0
  %3973 = vmatpush2.xpose.msra.mxu0 0.0
  %3974 = vmatprep.subr.mxu0 0.0
  %3975 = vmatpush2.xpose.msra.mxu0 0.0
  %3976 = vmatprep.subr.mxu0 0.0
  %3977 = vmatpush2.xpose.msra.mxu0 0.0
  %3978 = vmatprep.subr.mxu0 0.0
  %3979 = vmatpush2.xpose.msra.mxu0 0.0
  %3980 = vmatprep.subr.mxu0 0.0
  %3981 = vmatpush2.xpose.msra.mxu0 0.0
  %3982 = vmatprep.subr.mxu0 0.0
  %3983 = vmatpush2.xpose.msra.mxu0 0.0
  %3984 = vmatprep.subr.mxu0 0.0
  %3985 = vmatpush2.xpose.msra.mxu0 0.0
  %3986 = vmatprep.subr.mxu0 0.0
  %3987 = vmatpush2.xpose.msra.mxu0 0.0
  %3988 = vmatprep.subr.mxu0 0.0
  %3989 = vmatpush2.xpose.msra.mxu0 0.0
  %3990 = vmatprep.subr.mxu0 0.0
  %3991 = vmatpush2.xpose.msra.mxu0 0.0
  %3992 = vmatprep.subr.mxu0 0.0
  %3993 = vmatpush2.xpose.msra.mxu0 0.0
  %3994 = vmatprep.subr.mxu0 0.0
  %3995 = vmatpush2.xpose.msra.mxu0 0.0
  %3996 = vmatprep.mubr.f32.mxu0 0.0
  %3997 = vmatmul.mubr.f32.gmra.mxu0 %v3928
  %v3998 = vpop.f32.mrf.mxu0
  %v3999 = vadd.f32 0.0, %v3998
  %v4000 = vpop.f32.mrf.mxu0
  %4001 = vdwg.mxu0
  %4002 = vrot.lane.b32.xlu0 %v322, 96
  %v4003 = vpop.permute.xlu0 %4002
  %v4004 = vsel %vm355, %v322, 0
  %v4006 = vsel %vm355, %v4003, 0
  %4008 = vmatprep.subr.mxu0 0.0
  %4009 = vmatpush1.xpose.msra.mxu0 0.0
  %4010 = vmatprep.subr.mxu0 0.0
  %4011 = vmatpush1.xpose.msra.mxu0 0.0
  %4012 = vmatprep.subr.mxu0 0.0
  %4013 = vmatpush1.xpose.msra.mxu0 0.0
  %4014 = vmatprep.subr.mxu0 0.0
  %4015 = vmatpush1.xpose.msra.mxu0 0.0
  %4016 = vmatprep.subr.mxu0 0.0
  %4017 = vmatpush1.xpose.msra.mxu0 0.0
  %4018 = vmatprep.subr.mxu0 0.0
  %4019 = vmatpush1.xpose.msra.mxu0 0.0
  %4020 = vmatprep.subr.mxu0 0.0
  %4021 = vmatpush1.xpose.msra.mxu0 0.0
  %4022 = vmatprep.subr.mxu0 0.0
  %4023 = vmatpush1.xpose.msra.mxu0 0.0
  %4024 = vmatprep.subr.mxu0 0.0
  %4025 = vmatpush1.xpose.msra.mxu0 0.0
  %4026 = vmatprep.subr.mxu0 0.0
  %4027 = vmatpush1.xpose.msra.mxu0 0.0
  %4028 = vmatprep.subr.mxu0 0.0
  %4029 = vmatpush1.xpose.msra.mxu0 0.0
  %4030 = vmatprep.subr.mxu0 0.0
  %4031 = vmatpush1.xpose.msra.mxu0 0.0
  %4032 = vmatprep.subr.mxu0 0.0
  %4033 = vmatpush1.xpose.msra.mxu0 0.0
  %4034 = vmatprep.subr.mxu0 0.0
  %4035 = vmatpush1.xpose.msra.mxu0 0.0
  %4036 = vmatprep.subr.mxu0 0.0
  %4037 = vmatpush1.xpose.msra.mxu0 0.0
  %4038 = vmatprep.subr.mxu0 0.0
  %4039 = vmatpush1.xpose.msra.mxu0 %v4006
  %4040 = vmatprep.subr.mxu0 0.0
  %4041 = vmatpush2.xpose.msra.mxu0 0.0
  %4042 = vmatprep.subr.mxu0 0.0
  %4043 = vmatpush2.xpose.msra.mxu0 0.0
  %4044 = vmatprep.subr.mxu0 0.0
  %4045 = vmatpush2.xpose.msra.mxu0 0.0
  %4046 = vmatprep.subr.mxu0 0.0
  %4047 = vmatpush2.xpose.msra.mxu0 0.0
  %4048 = vmatprep.subr.mxu0 0.0
  %4049 = vmatpush2.xpose.msra.mxu0 0.0
  %4050 = vmatprep.subr.mxu0 0.0
  %4051 = vmatpush2.xpose.msra.mxu0 0.0
  %4052 = vmatprep.subr.mxu0 0.0
  %4053 = vmatpush2.xpose.msra.mxu0 0.0
  %4054 = vmatprep.subr.mxu0 0.0
  %4055 = vmatpush2.xpose.msra.mxu0 0.0
  %4056 = vmatprep.subr.mxu0 0.0
  %4057 = vmatpush2.xpose.msra.mxu0 0.0
  %4058 = vmatprep.subr.mxu0 0.0
  %4059 = vmatpush2.xpose.msra.mxu0 0.0
  %4060 = vmatprep.subr.mxu0 0.0
  %4061 = vmatpush2.xpose.msra.mxu0 0.0
  %4062 = vmatprep.subr.mxu0 0.0
  %4063 = vmatpush2.xpose.msra.mxu0 0.0
  %4064 = vmatprep.subr.mxu0 0.0
  %4065 = vmatpush2.xpose.msra.mxu0 0.0
  %4066 = vmatprep.subr.mxu0 0.0
  %4067 = vmatpush2.xpose.msra.mxu0 0.0
  %4068 = vmatprep.subr.mxu0 0.0
  %4069 = vmatpush2.xpose.msra.mxu0 0.0
  %4070 = vmatprep.subr.mxu0 0.0
  %4071 = vmatpush2.xpose.msra.mxu0 0.0
  %4072 = vmatprep.mubr.f32.mxu0 0.0
  %4073 = vmatmul.mubr.f32.gmra.mxu0 %v4004
  %v4074 = vpop.f32.mrf.mxu0
  %v4075 = vadd.f32 0.0, %v4074
  %v4076 = vpop.f32.mrf.mxu0
  %4077 = vdwg.mxu0
  %4078 = vrot.lane.b32.xlu0 %v324, 96
  %v4079 = vpop.permute.xlu0 %4078
  %v4080 = vsel %vm355, %v324, 0
  %v4082 = vsel %vm355, %v4079, 0
  %4084 = vmatprep.subr.mxu0 0.0
  %4085 = vmatpush1.xpose.msra.mxu0 0.0
  %4086 = vmatprep.subr.mxu0 0.0
  %4087 = vmatpush1.xpose.msra.mxu0 0.0
  %4088 = vmatprep.subr.mxu0 0.0
  %4089 = vmatpush1.xpose.msra.mxu0 0.0
  %4090 = vmatprep.subr.mxu0 0.0
  %4091 = vmatpush1.xpose.msra.mxu0 0.0
  %4092 = vmatprep.subr.mxu0 0.0
  %4093 = vmatpush1.xpose.msra.mxu0 0.0
  %4094 = vmatprep.subr.mxu0 0.0
  %4095 = vmatpush1.xpose.msra.mxu0 0.0
  %4096 = vmatprep.subr.mxu0 0.0
  %4097 = vmatpush1.xpose.msra.mxu0 0.0
  %4098 = vmatprep.subr.mxu0 0.0
  %4099 = vmatpush1.xpose.msra.mxu0 0.0
  %4100 = vmatprep.subr.mxu0 0.0
  %4101 = vmatpush1.xpose.msra.mxu0 0.0
  %4102 = vmatprep.subr.mxu0 0.0
  %4103 = vmatpush1.xpose.msra.mxu0 0.0
  %4104 = vmatprep.subr.mxu0 0.0
  %4105 = vmatpush1.xpose.msra.mxu0 0.0
  %4106 = vmatprep.subr.mxu0 0.0
  %4107 = vmatpush1.xpose.msra.mxu0 0.0
  %4108 = vmatprep.subr.mxu0 0.0
  %4109 = vmatpush1.xpose.msra.mxu0 0.0
  %4110 = vmatprep.subr.mxu0 0.0
  %4111 = vmatpush1.xpose.msra.mxu0 0.0
  %4112 = vmatprep.subr.mxu0 0.0
  %4113 = vmatpush1.xpose.msra.mxu0 0.0
  %4114 = vmatprep.subr.mxu0 0.0
  %4115 = vmatpush1.xpose.msra.mxu0 %v4082
  %4116 = vmatprep.subr.mxu0 0.0
  %4117 = vmatpush2.xpose.msra.mxu0 0.0
  %4118 = vmatprep.subr.mxu0 0.0
  %4119 = vmatpush2.xpose.msra.mxu0 0.0
  %4120 = vmatprep.subr.mxu0 0.0
  %4121 = vmatpush2.xpose.msra.mxu0 0.0
  %4122 = vmatprep.subr.mxu0 0.0
  %4123 = vmatpush2.xpose.msra.mxu0 0.0
  %4124 = vmatprep.subr.mxu0 0.0
  %4125 = vmatpush2.xpose.msra.mxu0 0.0
  %4126 = vmatprep.subr.mxu0 0.0
  %4127 = vmatpush2.xpose.msra.mxu0 0.0
  %4128 = vmatprep.subr.mxu0 0.0
  %4129 = vmatpush2.xpose.msra.mxu0 0.0
  %4130 = vmatprep.subr.mxu0 0.0
  %4131 = vmatpush2.xpose.msra.mxu0 0.0
  %4132 = vmatprep.subr.mxu0 0.0
  %4133 = vmatpush2.xpose.msra.mxu0 0.0
  %4134 = vmatprep.subr.mxu0 0.0
  %4135 = vmatpush2.xpose.msra.mxu0 0.0
  %4136 = vmatprep.subr.mxu0 0.0
  %4137 = vmatpush2.xpose.msra.mxu0 0.0
  %4138 = vmatprep.subr.mxu0 0.0
  %4139 = vmatpush2.xpose.msra.mxu0 0.0
  %4140 = vmatprep.subr.mxu0 0.0
  %4141 = vmatpush2.xpose.msra.mxu0 0.0
  %4142 = vmatprep.subr.mxu0 0.0
  %4143 = vmatpush2.xpose.msra.mxu0 0.0
  %4144 = vmatprep.subr.mxu0 0.0
  %4145 = vmatpush2.xpose.msra.mxu0 0.0
  %4146 = vmatprep.subr.mxu0 0.0
  %4147 = vmatpush2.xpose.msra.mxu0 0.0
  %4148 = vmatprep.mubr.f32.mxu0 0.0
  %4149 = vmatmul.mubr.f32.gmra.mxu0 %v4080
  %v4150 = vpop.f32.mrf.mxu0
  %v4151 = vadd.f32 0.0, %v4150
  %v4152 = vpop.f32.mrf.mxu0
  %4153 = vdwg.mxu0
  %4154 = vrot.lane.b32.xlu0 %v326, 96
  %v4155 = vpop.permute.xlu0 %4154
  %v4156 = vsel %vm355, %v326, 0
  %v4158 = vsel %vm355, %v4155, 0
  %4160 = vmatprep.subr.mxu0 0.0
  %4161 = vmatpush1.xpose.msra.mxu0 0.0
  %4162 = vmatprep.subr.mxu0 0.0
  %4163 = vmatpush1.xpose.msra.mxu0 0.0
  %4164 = vmatprep.subr.mxu0 0.0
  %4165 = vmatpush1.xpose.msra.mxu0 0.0
  %4166 = vmatprep.subr.mxu0 0.0
  %4167 = vmatpush1.xpose.msra.mxu0 0.0
  %4168 = vmatprep.subr.mxu0 0.0
  %4169 = vmatpush1.xpose.msra.mxu0 0.0
  %4170 = vmatprep.subr.mxu0 0.0
  %4171 = vmatpush1.xpose.msra.mxu0 0.0
  %4172 = vmatprep.subr.mxu0 0.0
  %4173 = vmatpush1.xpose.msra.mxu0 0.0
  %4174 = vmatprep.subr.mxu0 0.0
  %4175 = vmatpush1.xpose.msra.mxu0 0.0
  %4176 = vmatprep.subr.mxu0 0.0
  %4177 = vmatpush1.xpose.msra.mxu0 0.0
  %4178 = vmatprep.subr.mxu0 0.0
  %4179 = vmatpush1.xpose.msra.mxu0 0.0
  %4180 = vmatprep.subr.mxu0 0.0
  %4181 = vmatpush1.xpose.msra.mxu0 0.0
  %4182 = vmatprep.subr.mxu0 0.0
  %4183 = vmatpush1.xpose.msra.mxu0 0.0
  %4184 = vmatprep.subr.mxu0 0.0
  %4185 = vmatpush1.xpose.msra.mxu0 0.0
  %4186 = vmatprep.subr.mxu0 0.0
  %4187 = vmatpush1.xpose.msra.mxu0 0.0
  %4188 = vmatprep.subr.mxu0 0.0
  %4189 = vmatpush1.xpose.msra.mxu0 0.0
  %4190 = vmatprep.subr.mxu0 0.0
  %4191 = vmatpush1.xpose.msra.mxu0 %v4158
  %4192 = vmatprep.subr.mxu0 0.0
  %4193 = vmatpush2.xpose.msra.mxu0 0.0
  %4194 = vmatprep.subr.mxu0 0.0
  %4195 = vmatpush2.xpose.msra.mxu0 0.0
  %4196 = vmatprep.subr.mxu0 0.0
  %4197 = vmatpush2.xpose.msra.mxu0 0.0
  %4198 = vmatprep.subr.mxu0 0.0
  %4199 = vmatpush2.xpose.msra.mxu0 0.0
  %4200 = vmatprep.subr.mxu0 0.0
  %4201 = vmatpush2.xpose.msra.mxu0 0.0
  %4202 = vmatprep.subr.mxu0 0.0
  %4203 = vmatpush2.xpose.msra.mxu0 0.0
  %4204 = vmatprep.subr.mxu0 0.0
  %4205 = vmatpush2.xpose.msra.mxu0 0.0
  %4206 = vmatprep.subr.mxu0 0.0
  %4207 = vmatpush2.xpose.msra.mxu0 0.0
  %4208 = vmatprep.subr.mxu0 0.0
  %4209 = vmatpush2.xpose.msra.mxu0 0.0
  %4210 = vmatprep.subr.mxu0 0.0
  %4211 = vmatpush2.xpose.msra.mxu0 0.0
  %4212 = vmatprep.subr.mxu0 0.0
  %4213 = vmatpush2.xpose.msra.mxu0 0.0
  %4214 = vmatprep.subr.mxu0 0.0
  %4215 = vmatpush2.xpose.msra.mxu0 0.0
  %4216 = vmatprep.subr.mxu0 0.0
  %4217 = vmatpush2.xpose.msra.mxu0 0.0
  %4218 = vmatprep.subr.mxu0 0.0
  %4219 = vmatpush2.xpose.msra.mxu0 0.0
  %4220 = vmatprep.subr.mxu0 0.0
  %4221 = vmatpush2.xpose.msra.mxu0 0.0
  %4222 = vmatprep.subr.mxu0 0.0
  %4223 = vmatpush2.xpose.msra.mxu0 0.0
  %4224 = vmatprep.mubr.f32.mxu0 0.0
  %4225 = vmatmul.mubr.f32.gmra.mxu0 %v4156
  %v4226 = vpop.f32.mrf.mxu0
  %v4227 = vadd.f32 0.0, %v4226
  %v4228 = vpop.f32.mrf.mxu0
  %4229 = vdwg.mxu0
  %4230 = vrot.lane.b32.xlu0 %v328, 96
  %v4231 = vpop.permute.xlu0 %4230
  %v4232 = vsel %vm355, %v328, 0
  %v4234 = vsel %vm355, %v4231, 0
  %4236 = vmatprep.subr.mxu0 0.0
  %4237 = vmatpush1.xpose.msra.mxu0 0.0
  %4238 = vmatprep.subr.mxu0 0.0
  %4239 = vmatpush1.xpose.msra.mxu0 0.0
  %4240 = vmatprep.subr.mxu0 0.0
  %4241 = vmatpush1.xpose.msra.mxu0 0.0
  %4242 = vmatprep.subr.mxu0 0.0
  %4243 = vmatpush1.xpose.msra.mxu0 0.0
  %4244 = vmatprep.subr.mxu0 0.0
  %4245 = vmatpush1.xpose.msra.mxu0 0.0
  %4246 = vmatprep.subr.mxu0 0.0
  %4247 = vmatpush1.xpose.msra.mxu0 0.0
  %4248 = vmatprep.subr.mxu0 0.0
  %4249 = vmatpush1.xpose.msra.mxu0 0.0
  %4250 = vmatprep.subr.mxu0 0.0
  %4251 = vmatpush1.xpose.msra.mxu0 0.0
  %4252 = vmatprep.subr.mxu0 0.0
  %4253 = vmatpush1.xpose.msra.mxu0 0.0
  %4254 = vmatprep.subr.mxu0 0.0
  %4255 = vmatpush1.xpose.msra.mxu0 0.0
  %4256 = vmatprep.subr.mxu0 0.0
  %4257 = vmatpush1.xpose.msra.mxu0 0.0
  %4258 = vmatprep.subr.mxu0 0.0
  %4259 = vmatpush1.xpose.msra.mxu0 0.0
  %4260 = vmatprep.subr.mxu0 0.0
  %4261 = vmatpush1.xpose.msra.mxu0 0.0
  %4262 = vmatprep.subr.mxu0 0.0
  %4263 = vmatpush1.xpose.msra.mxu0 0.0
  %4264 = vmatprep.subr.mxu0 0.0
  %4265 = vmatpush1.xpose.msra.mxu0 0.0
  %4266 = vmatprep.subr.mxu0 0.0
  %4267 = vmatpush1.xpose.msra.mxu0 %v4234
  %4268 = vmatprep.subr.mxu0 0.0
  %4269 = vmatpush2.xpose.msra.mxu0 0.0
  %4270 = vmatprep.subr.mxu0 0.0
  %4271 = vmatpush2.xpose.msra.mxu0 0.0
  %4272 = vmatprep.subr.mxu0 0.0
  %4273 = vmatpush2.xpose.msra.mxu0 0.0
  %4274 = vmatprep.subr.mxu0 0.0
  %4275 = vmatpush2.xpose.msra.mxu0 0.0
  %4276 = vmatprep.subr.mxu0 0.0
  %4277 = vmatpush2.xpose.msra.mxu0 0.0
  %4278 = vmatprep.subr.mxu0 0.0
  %4279 = vmatpush2.xpose.msra.mxu0 0.0
  %4280 = vmatprep.subr.mxu0 0.0
  %4281 = vmatpush2.xpose.msra.mxu0 0.0
  %4282 = vmatprep.subr.mxu0 0.0
  %4283 = vmatpush2.xpose.msra.mxu0 0.0
  %4284 = vmatprep.subr.mxu0 0.0
  %4285 = vmatpush2.xpose.msra.mxu0 0.0
  %4286 = vmatprep.subr.mxu0 0.0
  %4287 = vmatpush2.xpose.msra.mxu0 0.0
  %4288 = vmatprep.subr.mxu0 0.0
  %4289 = vmatpush2.xpose.msra.mxu0 0.0
  %4290 = vmatprep.subr.mxu0 0.0
  %4291 = vmatpush2.xpose.msra.mxu0 0.0
  %4292 = vmatprep.subr.mxu0 0.0
  %4293 = vmatpush2.xpose.msra.mxu0 0.0
  %4294 = vmatprep.subr.mxu0 0.0
  %4295 = vmatpush2.xpose.msra.mxu0 0.0
  %4296 = vmatprep.subr.mxu0 0.0
  %4297 = vmatpush2.xpose.msra.mxu0 0.0
  %4298 = vmatprep.subr.mxu0 0.0
  %4299 = vmatpush2.xpose.msra.mxu0 0.0
  %4300 = vmatprep.mubr.f32.mxu0 0.0
  %4301 = vmatmul.mubr.f32.gmra.mxu0 %v4232
  %v4302 = vpop.f32.mrf.mxu0
  %v4303 = vadd.f32 0.0, %v4302
  %v4304 = vpop.f32.mrf.mxu0
  %4305 = vdwg.mxu0
  %4306 = vrot.lane.b32.xlu0 %v330, 96
  %v4307 = vpop.permute.xlu0 %4306
  %v4308 = vsel %vm355, %v330, 0
  %v4310 = vsel %vm355, %v4307, 0
  %4312 = vmatprep.subr.mxu0 0.0
  %4313 = vmatpush1.xpose.msra.mxu0 0.0
  %4314 = vmatprep.subr.mxu0 0.0
  %4315 = vmatpush1.xpose.msra.mxu0 0.0
  %4316 = vmatprep.subr.mxu0 0.0
  %4317 = vmatpush1.xpose.msra.mxu0 0.0
  %4318 = vmatprep.subr.mxu0 0.0
  %4319 = vmatpush1.xpose.msra.mxu0 0.0
  %4320 = vmatprep.subr.mxu0 0.0
  %4321 = vmatpush1.xpose.msra.mxu0 0.0
  %4322 = vmatprep.subr.mxu0 0.0
  %4323 = vmatpush1.xpose.msra.mxu0 0.0
  %4324 = vmatprep.subr.mxu0 0.0
  %4325 = vmatpush1.xpose.msra.mxu0 0.0
  %4326 = vmatprep.subr.mxu0 0.0
  %4327 = vmatpush1.xpose.msra.mxu0 0.0
  %4328 = vmatprep.subr.mxu0 0.0
  %4329 = vmatpush1.xpose.msra.mxu0 0.0
  %4330 = vmatprep.subr.mxu0 0.0
  %4331 = vmatpush1.xpose.msra.mxu0 0.0
  %4332 = vmatprep.subr.mxu0 0.0
  %4333 = vmatpush1.xpose.msra.mxu0 0.0
  %4334 = vmatprep.subr.mxu0 0.0
  %4335 = vmatpush1.xpose.msra.mxu0 0.0
  %4336 = vmatprep.subr.mxu0 0.0
  %4337 = vmatpush1.xpose.msra.mxu0 0.0
  %4338 = vmatprep.subr.mxu0 0.0
  %4339 = vmatpush1.xpose.msra.mxu0 0.0
  %4340 = vmatprep.subr.mxu0 0.0
  %4341 = vmatpush1.xpose.msra.mxu0 0.0
  %4342 = vmatprep.subr.mxu0 0.0
  %4343 = vmatpush1.xpose.msra.mxu0 %v4310
  %4344 = vmatprep.subr.mxu0 0.0
  %4345 = vmatpush2.xpose.msra.mxu0 0.0
  %4346 = vmatprep.subr.mxu0 0.0
  %4347 = vmatpush2.xpose.msra.mxu0 0.0
  %4348 = vmatprep.subr.mxu0 0.0
  %4349 = vmatpush2.xpose.msra.mxu0 0.0
  %4350 = vmatprep.subr.mxu0 0.0
  %4351 = vmatpush2.xpose.msra.mxu0 0.0
  %4352 = vmatprep.subr.mxu0 0.0
  %4353 = vmatpush2.xpose.msra.mxu0 0.0
  %4354 = vmatprep.subr.mxu0 0.0
  %4355 = vmatpush2.xpose.msra.mxu0 0.0
  %4356 = vmatprep.subr.mxu0 0.0
  %4357 = vmatpush2.xpose.msra.mxu0 0.0
  %4358 = vmatprep.subr.mxu0 0.0
  %4359 = vmatpush2.xpose.msra.mxu0 0.0
  %4360 = vmatprep.subr.mxu0 0.0
  %4361 = vmatpush2.xpose.msra.mxu0 0.0
  %4362 = vmatprep.subr.mxu0 0.0
  %4363 = vmatpush2.xpose.msra.mxu0 0.0
  %4364 = vmatprep.subr.mxu0 0.0
  %4365 = vmatpush2.xpose.msra.mxu0 0.0
  %4366 = vmatprep.subr.mxu0 0.0
  %4367 = vmatpush2.xpose.msra.mxu0 0.0
  %4368 = vmatprep.subr.mxu0 0.0
  %4369 = vmatpush2.xpose.msra.mxu0 0.0
  %4370 = vmatprep.subr.mxu0 0.0
  %4371 = vmatpush2.xpose.msra.mxu0 0.0
  %4372 = vmatprep.subr.mxu0 0.0
  %4373 = vmatpush2.xpose.msra.mxu0 0.0
  %4374 = vmatprep.subr.mxu0 0.0
  %4375 = vmatpush2.xpose.msra.mxu0 0.0
  %4376 = vmatprep.mubr.f32.mxu0 0.0
  %4377 = vmatmul.mubr.f32.gmra.mxu0 %v4308
  %v4378 = vpop.f32.mrf.mxu0
  %v4379 = vadd.f32 0.0, %v4378
  %v4380 = vpop.f32.mrf.mxu0
  %4381 = vdwg.mxu0
  %4382 = vrot.lane.b32.xlu0 %v332, 96
  %v4383 = vpop.permute.xlu0 %4382
  %v4384 = vsel %vm355, %v332, 0
  %v4386 = vsel %vm355, %v4383, 0
  %4388 = vmatprep.subr.mxu0 0.0
  %4389 = vmatpush1.xpose.msra.mxu0 0.0
  %4390 = vmatprep.subr.mxu0 0.0
  %4391 = vmatpush1.xpose.msra.mxu0 0.0
  %4392 = vmatprep.subr.mxu0 0.0
  %4393 = vmatpush1.xpose.msra.mxu0 0.0
  %4394 = vmatprep.subr.mxu0 0.0
  %4395 = vmatpush1.xpose.msra.mxu0 0.0
  %4396 = vmatprep.subr.mxu0 0.0
  %4397 = vmatpush1.xpose.msra.mxu0 0.0
  %4398 = vmatprep.subr.mxu0 0.0
  %4399 = vmatpush1.xpose.msra.mxu0 0.0
  %4400 = vmatprep.subr.mxu0 0.0
  %4401 = vmatpush1.xpose.msra.mxu0 0.0
  %4402 = vmatprep.subr.mxu0 0.0
  %4403 = vmatpush1.xpose.msra.mxu0 0.0
  %4404 = vmatprep.subr.mxu0 0.0
  %4405 = vmatpush1.xpose.msra.mxu0 0.0
  %4406 = vmatprep.subr.mxu0 0.0
  %4407 = vmatpush1.xpose.msra.mxu0 0.0
  %4408 = vmatprep.subr.mxu0 0.0
  %4409 = vmatpush1.xpose.msra.mxu0 0.0
  %4410 = vmatprep.subr.mxu0 0.0
  %4411 = vmatpush1.xpose.msra.mxu0 0.0
  %4412 = vmatprep.subr.mxu0 0.0
  %4413 = vmatpush1.xpose.msra.mxu0 0.0
  %4414 = vmatprep.subr.mxu0 0.0
  %4415 = vmatpush1.xpose.msra.mxu0 0.0
  %4416 = vmatprep.subr.mxu0 0.0
  %4417 = vmatpush1.xpose.msra.mxu0 0.0
  %4418 = vmatprep.subr.mxu0 0.0
  %4419 = vmatpush1.xpose.msra.mxu0 %v4386
  %4420 = vmatprep.subr.mxu0 0.0
  %4421 = vmatpush2.xpose.msra.mxu0 0.0
  %4422 = vmatprep.subr.mxu0 0.0
  %4423 = vmatpush2.xpose.msra.mxu0 0.0
  %4424 = vmatprep.subr.mxu0 0.0
  %4425 = vmatpush2.xpose.msra.mxu0 0.0
  %4426 = vmatprep.subr.mxu0 0.0
  %4427 = vmatpush2.xpose.msra.mxu0 0.0
  %4428 = vmatprep.subr.mxu0 0.0
  %4429 = vmatpush2.xpose.msra.mxu0 0.0
  %4430 = vmatprep.subr.mxu0 0.0
  %4431 = vmatpush2.xpose.msra.mxu0 0.0
  %4432 = vmatprep.subr.mxu0 0.0
  %4433 = vmatpush2.xpose.msra.mxu0 0.0
  %4434 = vmatprep.subr.mxu0 0.0
  %4435 = vmatpush2.xpose.msra.mxu0 0.0
  %4436 = vmatprep.subr.mxu0 0.0
  %4437 = vmatpush2.xpose.msra.mxu0 0.0
  %4438 = vmatprep.subr.mxu0 0.0
  %4439 = vmatpush2.xpose.msra.mxu0 0.0
  %4440 = vmatprep.subr.mxu0 0.0
  %4441 = vmatpush2.xpose.msra.mxu0 0.0
  %4442 = vmatprep.subr.mxu0 0.0
  %4443 = vmatpush2.xpose.msra.mxu0 0.0
  %4444 = vmatprep.subr.mxu0 0.0
  %4445 = vmatpush2.xpose.msra.mxu0 0.0
  %4446 = vmatprep.subr.mxu0 0.0
  %4447 = vmatpush2.xpose.msra.mxu0 0.0
  %4448 = vmatprep.subr.mxu0 0.0
  %4449 = vmatpush2.xpose.msra.mxu0 0.0
  %4450 = vmatprep.subr.mxu0 0.0
  %4451 = vmatpush2.xpose.msra.mxu0 0.0
  %4452 = vmatprep.mubr.f32.mxu0 0.0
  %4453 = vmatmul.mubr.f32.gmra.mxu0 %v4384
  %v4454 = vpop.f32.mrf.mxu0
  %v4455 = vadd.f32 0.0, %v4454
  %v4456 = vpop.f32.mrf.mxu0
  %4457 = vdwg.mxu0
  %4458 = vrot.lane.b32.xlu0 %v334, 96
  %v4459 = vpop.permute.xlu0 %4458
  %v4460 = vsel %vm355, %v334, 0
  %v4462 = vsel %vm355, %v4459, 0
  %4464 = vmatprep.subr.mxu0 0.0
  %4465 = vmatpush1.xpose.msra.mxu0 0.0
  %4466 = vmatprep.subr.mxu0 0.0
  %4467 = vmatpush1.xpose.msra.mxu0 0.0
  %4468 = vmatprep.subr.mxu0 0.0
  %4469 = vmatpush1.xpose.msra.mxu0 0.0
  %4470 = vmatprep.subr.mxu0 0.0
  %4471 = vmatpush1.xpose.msra.mxu0 0.0
  %4472 = vmatprep.subr.mxu0 0.0
  %4473 = vmatpush1.xpose.msra.mxu0 0.0
  %4474 = vmatprep.subr.mxu0 0.0
  %4475 = vmatpush1.xpose.msra.mxu0 0.0
  %4476 = vmatprep.subr.mxu0 0.0
  %4477 = vmatpush1.xpose.msra.mxu0 0.0
  %4478 = vmatprep.subr.mxu0 0.0
  %4479 = vmatpush1.xpose.msra.mxu0 0.0
  %4480 = vmatprep.subr.mxu0 0.0
  %4481 = vmatpush1.xpose.msra.mxu0 0.0
  %4482 = vmatprep.subr.mxu0 0.0
  %4483 = vmatpush1.xpose.msra.mxu0 0.0
  %4484 = vmatprep.subr.mxu0 0.0
  %4485 = vmatpush1.xpose.msra.mxu0 0.0
  %4486 = vmatprep.subr.mxu0 0.0
  %4487 = vmatpush1.xpose.msra.mxu0 0.0
  %4488 = vmatprep.subr.mxu0 0.0
  %4489 = vmatpush1.xpose.msra.mxu0 0.0
  %4490 = vmatprep.subr.mxu0 0.0
  %4491 = vmatpush1.xpose.msra.mxu0 0.0
  %4492 = vmatprep.subr.mxu0 0.0
  %4493 = vmatpush1.xpose.msra.mxu0 0.0
  %4494 = vmatprep.subr.mxu0 0.0
  %4495 = vmatpush1.xpose.msra.mxu0 %v4462
  %4496 = vmatprep.subr.mxu0 0.0
  %4497 = vmatpush2.xpose.msra.mxu0 0.0
  %4498 = vmatprep.subr.mxu0 0.0
  %4499 = vmatpush2.xpose.msra.mxu0 0.0
  %4500 = vmatprep.subr.mxu0 0.0
  %4501 = vmatpush2.xpose.msra.mxu0 0.0
  %4502 = vmatprep.subr.mxu0 0.0
  %4503 = vmatpush2.xpose.msra.mxu0 0.0
  %4504 = vmatprep.subr.mxu0 0.0
  %4505 = vmatpush2.xpose.msra.mxu0 0.0
  %4506 = vmatprep.subr.mxu0 0.0
  %4507 = vmatpush2.xpose.msra.mxu0 0.0
  %4508 = vmatprep.subr.mxu0 0.0
  %4509 = vmatpush2.xpose.msra.mxu0 0.0
  %4510 = vmatprep.subr.mxu0 0.0
  %4511 = vmatpush2.xpose.msra.mxu0 0.0
  %4512 = vmatprep.subr.mxu0 0.0
  %4513 = vmatpush2.xpose.msra.mxu0 0.0
  %4514 = vmatprep.subr.mxu0 0.0
  %4515 = vmatpush2.xpose.msra.mxu0 0.0
  %4516 = vmatprep.subr.mxu0 0.0
  %4517 = vmatpush2.xpose.msra.mxu0 0.0
  %4518 = vmatprep.subr.mxu0 0.0
  %4519 = vmatpush2.xpose.msra.mxu0 0.0
  %4520 = vmatprep.subr.mxu0 0.0
  %4521 = vmatpush2.xpose.msra.mxu0 0.0
  %4522 = vmatprep.subr.mxu0 0.0
  %4523 = vmatpush2.xpose.msra.mxu0 0.0
  %4524 = vmatprep.subr.mxu0 0.0
  %4525 = vmatpush2.xpose.msra.mxu0 0.0
  %4526 = vmatprep.subr.mxu0 0.0
  %4527 = vmatpush2.xpose.msra.mxu0 0.0
  %4528 = vmatprep.mubr.f32.mxu0 0.0
  %4529 = vmatmul.mubr.f32.gmra.mxu0 %v4460
  %v4530 = vpop.f32.mrf.mxu0
  %v4531 = vadd.f32 0.0, %v4530
  %v4532 = vpop.f32.mrf.mxu0
  %4533 = vdwg.mxu0
  %4534 = vrot.lane.b32.xlu0 %v336, 96
  %v4535 = vpop.permute.xlu0 %4534
  %v4536 = vsel %vm355, %v336, 0
  %v4538 = vsel %vm355, %v4535, 0
  %4540 = vmatprep.subr.mxu0 0.0
  %4541 = vmatpush1.xpose.msra.mxu0 0.0
  %4542 = vmatprep.subr.mxu0 0.0
  %4543 = vmatpush1.xpose.msra.mxu0 0.0
  %4544 = vmatprep.subr.mxu0 0.0
  %4545 = vmatpush1.xpose.msra.mxu0 0.0
  %4546 = vmatprep.subr.mxu0 0.0
  %4547 = vmatpush1.xpose.msra.mxu0 0.0
  %4548 = vmatprep.subr.mxu0 0.0
  %4549 = vmatpush1.xpose.msra.mxu0 0.0
  %4550 = vmatprep.subr.mxu0 0.0
  %4551 = vmatpush1.xpose.msra.mxu0 0.0
  %4552 = vmatprep.subr.mxu0 0.0
  %4553 = vmatpush1.xpose.msra.mxu0 0.0
  %4554 = vmatprep.subr.mxu0 0.0
  %4555 = vmatpush1.xpose.msra.mxu0 0.0
  %4556 = vmatprep.subr.mxu0 0.0
  %4557 = vmatpush1.xpose.msra.mxu0 0.0
  %4558 = vmatprep.subr.mxu0 0.0
  %4559 = vmatpush1.xpose.msra.mxu0 0.0
  %4560 = vmatprep.subr.mxu0 0.0
  %4561 = vmatpush1.xpose.msra.mxu0 0.0
  %4562 = vmatprep.subr.mxu0 0.0
  %4563 = vmatpush1.xpose.msra.mxu0 0.0
  %4564 = vmatprep.subr.mxu0 0.0
  %4565 = vmatpush1.xpose.msra.mxu0 0.0
  %4566 = vmatprep.subr.mxu0 0.0
  %4567 = vmatpush1.xpose.msra.mxu0 0.0
  %4568 = vmatprep.subr.mxu0 0.0
  %4569 = vmatpush1.xpose.msra.mxu0 0.0
  %4570 = vmatprep.subr.mxu0 0.0
  %4571 = vmatpush1.xpose.msra.mxu0 %v4538
  %4572 = vmatprep.subr.mxu0 0.0
  %4573 = vmatpush2.xpose.msra.mxu0 0.0
  %4574 = vmatprep.subr.mxu0 0.0
  %4575 = vmatpush2.xpose.msra.mxu0 0.0
  %4576 = vmatprep.subr.mxu0 0.0
  %4577 = vmatpush2.xpose.msra.mxu0 0.0
  %4578 = vmatprep.subr.mxu0 0.0
  %4579 = vmatpush2.xpose.msra.mxu0 0.0
  %4580 = vmatprep.subr.mxu0 0.0
  %4581 = vmatpush2.xpose.msra.mxu0 0.0
  %4582 = vmatprep.subr.mxu0 0.0
  %4583 = vmatpush2.xpose.msra.mxu0 0.0
  %4584 = vmatprep.subr.mxu0 0.0
  %4585 = vmatpush2.xpose.msra.mxu0 0.0
  %4586 = vmatprep.subr.mxu0 0.0
  %4587 = vmatpush2.xpose.msra.mxu0 0.0
  %4588 = vmatprep.subr.mxu0 0.0
  %4589 = vmatpush2.xpose.msra.mxu0 0.0
  %4590 = vmatprep.subr.mxu0 0.0
  %4591 = vmatpush2.xpose.msra.mxu0 0.0
  %4592 = vmatprep.subr.mxu0 0.0
  %4593 = vmatpush2.xpose.msra.mxu0 0.0
  %4594 = vmatprep.subr.mxu0 0.0
  %4595 = vmatpush2.xpose.msra.mxu0 0.0
  %4596 = vmatprep.subr.mxu0 0.0
  %4597 = vmatpush2.xpose.msra.mxu0 0.0
  %4598 = vmatprep.subr.mxu0 0.0
  %4599 = vmatpush2.xpose.msra.mxu0 0.0
  %4600 = vmatprep.subr.mxu0 0.0
  %4601 = vmatpush2.xpose.msra.mxu0 0.0
  %4602 = vmatprep.subr.mxu0 0.0
  %4603 = vmatpush2.xpose.msra.mxu0 0.0
  %4604 = vmatprep.mubr.f32.mxu0 0.0
  %4605 = vmatmul.mubr.f32.gmra.mxu0 %v4536
  %v4606 = vpop.f32.mrf.mxu0
  %v4607 = vadd.f32 0.0, %v4606
  %v4608 = vpop.f32.mrf.mxu0
  %4609 = vdwg.mxu0
  %4610 = vrot.lane.b32.xlu0 %v338, 96
  %v4611 = vpop.permute.xlu0 %4610
  %v4612 = vsel %vm355, %v338, 0
  %v4614 = vsel %vm355, %v4611, 0
  %4616 = vmatprep.subr.mxu0 0.0
  %4617 = vmatpush1.xpose.msra.mxu0 0.0
  %4618 = vmatprep.subr.mxu0 0.0
  %4619 = vmatpush1.xpose.msra.mxu0 0.0
  %4620 = vmatprep.subr.mxu0 0.0
  %4621 = vmatpush1.xpose.msra.mxu0 0.0
  %4622 = vmatprep.subr.mxu0 0.0
  %4623 = vmatpush1.xpose.msra.mxu0 0.0
  %4624 = vmatprep.subr.mxu0 0.0
  %4625 = vmatpush1.xpose.msra.mxu0 0.0
  %4626 = vmatprep.subr.mxu0 0.0
  %4627 = vmatpush1.xpose.msra.mxu0 0.0
  %4628 = vmatprep.subr.mxu0 0.0
  %4629 = vmatpush1.xpose.msra.mxu0 0.0
  %4630 = vmatprep.subr.mxu0 0.0
  %4631 = vmatpush1.xpose.msra.mxu0 0.0
  %4632 = vmatprep.subr.mxu0 0.0
  %4633 = vmatpush1.xpose.msra.mxu0 0.0
  %4634 = vmatprep.subr.mxu0 0.0
  %4635 = vmatpush1.xpose.msra.mxu0 0.0
  %4636 = vmatprep.subr.mxu0 0.0
  %4637 = vmatpush1.xpose.msra.mxu0 0.0
  %4638 = vmatprep.subr.mxu0 0.0
  %4639 = vmatpush1.xpose.msra.mxu0 0.0
  %4640 = vmatprep.subr.mxu0 0.0
  %4641 = vmatpush1.xpose.msra.mxu0 0.0
  %4642 = vmatprep.subr.mxu0 0.0
  %4643 = vmatpush1.xpose.msra.mxu0 0.0
  %4644 = vmatprep.subr.mxu0 0.0
  %4645 = vmatpush1.xpose.msra.mxu0 0.0
  %4646 = vmatprep.subr.mxu0 0.0
  %4647 = vmatpush1.xpose.msra.mxu0 %v4614
  %4648 = vmatprep.subr.mxu0 0.0
  %4649 = vmatpush2.xpose.msra.mxu0 0.0
  %4650 = vmatprep.subr.mxu0 0.0
  %4651 = vmatpush2.xpose.msra.mxu0 0.0
  %4652 = vmatprep.subr.mxu0 0.0
  %4653 = vmatpush2.xpose.msra.mxu0 0.0
  %4654 = vmatprep.subr.mxu0 0.0
  %4655 = vmatpush2.xpose.msra.mxu0 0.0
  %4656 = vmatprep.subr.mxu0 0.0
  %4657 = vmatpush2.xpose.msra.mxu0 0.0
  %4658 = vmatprep.subr.mxu0 0.0
  %4659 = vmatpush2.xpose.msra.mxu0 0.0
  %4660 = vmatprep.subr.mxu0 0.0
  %4661 = vmatpush2.xpose.msra.mxu0 0.0
  %4662 = vmatprep.subr.mxu0 0.0
  %4663 = vmatpush2.xpose.msra.mxu0 0.0
  %4664 = vmatprep.subr.mxu0 0.0
  %4665 = vmatpush2.xpose.msra.mxu0 0.0
  %4666 = vmatprep.subr.mxu0 0.0
  %4667 = vmatpush2.xpose.msra.mxu0 0.0
  %4668 = vmatprep.subr.mxu0 0.0
  %4669 = vmatpush2.xpose.msra.mxu0 0.0
  %4670 = vmatprep.subr.mxu0 0.0
  %4671 = vmatpush2.xpose.msra.mxu0 0.0
  %4672 = vmatprep.subr.mxu0 0.0
  %4673 = vmatpush2.xpose.msra.mxu0 0.0
  %4674 = vmatprep.subr.mxu0 0.0
  %4675 = vmatpush2.xpose.msra.mxu0 0.0
  %4676 = vmatprep.subr.mxu0 0.0
  %4677 = vmatpush2.xpose.msra.mxu0 0.0
  %4678 = vmatprep.subr.mxu0 0.0
  %4679 = vmatpush2.xpose.msra.mxu0 0.0
  %4680 = vmatprep.mubr.f32.mxu0 0.0
  %4681 = vmatmul.mubr.f32.gmra.mxu0 %v4612
  %v4682 = vpop.f32.mrf.mxu0
  %v4683 = vadd.f32 0.0, %v4682
  %v4684 = vpop.f32.mrf.mxu0
  %4685 = vdwg.mxu0
  %4686 = vrot.lane.b32.xlu0 %v340, 96
  %v4687 = vpop.permute.xlu0 %4686
  %v4688 = vsel %vm355, %v340, 0
  %v4690 = vsel %vm355, %v4687, 0
  %4692 = vmatprep.subr.mxu0 0.0
  %4693 = vmatpush1.xpose.msra.mxu0 0.0
  %4694 = vmatprep.subr.mxu0 0.0
  %4695 = vmatpush1.xpose.msra.mxu0 0.0
  %4696 = vmatprep.subr.mxu0 0.0
  %4697 = vmatpush1.xpose.msra.mxu0 0.0
  %4698 = vmatprep.subr.mxu0 0.0
  %4699 = vmatpush1.xpose.msra.mxu0 0.0
  %4700 = vmatprep.subr.mxu0 0.0
  %4701 = vmatpush1.xpose.msra.mxu0 0.0
  %4702 = vmatprep.subr.mxu0 0.0
  %4703 = vmatpush1.xpose.msra.mxu0 0.0
  %4704 = vmatprep.subr.mxu0 0.0
  %4705 = vmatpush1.xpose.msra.mxu0 0.0
  %4706 = vmatprep.subr.mxu0 0.0
  %4707 = vmatpush1.xpose.msra.mxu0 0.0
  %4708 = vmatprep.subr.mxu0 0.0
  %4709 = vmatpush1.xpose.msra.mxu0 0.0
  %4710 = vmatprep.subr.mxu0 0.0
  %4711 = vmatpush1.xpose.msra.mxu0 0.0
  %4712 = vmatprep.subr.mxu0 0.0
  %4713 = vmatpush1.xpose.msra.mxu0 0.0
  %4714 = vmatprep.subr.mxu0 0.0
  %4715 = vmatpush1.xpose.msra.mxu0 0.0
  %4716 = vmatprep.subr.mxu0 0.0
  %4717 = vmatpush1.xpose.msra.mxu0 0.0
  %4718 = vmatprep.subr.mxu0 0.0
  %4719 = vmatpush1.xpose.msra.mxu0 0.0
  %4720 = vmatprep.subr.mxu0 0.0
  %4721 = vmatpush1.xpose.msra.mxu0 0.0
  %4722 = vmatprep.subr.mxu0 0.0
  %4723 = vmatpush1.xpose.msra.mxu0 %v4690
  %4724 = vmatprep.subr.mxu0 0.0
  %4725 = vmatpush2.xpose.msra.mxu0 0.0
  %4726 = vmatprep.subr.mxu0 0.0
  %4727 = vmatpush2.xpose.msra.mxu0 0.0
  %4728 = vmatprep.subr.mxu0 0.0
  %4729 = vmatpush2.xpose.msra.mxu0 0.0
  %4730 = vmatprep.subr.mxu0 0.0
  %4731 = vmatpush2.xpose.msra.mxu0 0.0
  %4732 = vmatprep.subr.mxu0 0.0
  %4733 = vmatpush2.xpose.msra.mxu0 0.0
  %4734 = vmatprep.subr.mxu0 0.0
  %4735 = vmatpush2.xpose.msra.mxu0 0.0
  %4736 = vmatprep.subr.mxu0 0.0
  %4737 = vmatpush2.xpose.msra.mxu0 0.0
  %4738 = vmatprep.subr.mxu0 0.0
  %4739 = vmatpush2.xpose.msra.mxu0 0.0
  %4740 = vmatprep.subr.mxu0 0.0
  %4741 = vmatpush2.xpose.msra.mxu0 0.0
  %4742 = vmatprep.subr.mxu0 0.0
  %4743 = vmatpush2.xpose.msra.mxu0 0.0
  %4744 = vmatprep.subr.mxu0 0.0
  %4745 = vmatpush2.xpose.msra.mxu0 0.0
  %4746 = vmatprep.subr.mxu0 0.0
  %4747 = vmatpush2.xpose.msra.mxu0 0.0
  %4748 = vmatprep.subr.mxu0 0.0
  %4749 = vmatpush2.xpose.msra.mxu0 0.0
  %4750 = vmatprep.subr.mxu0 0.0
  %4751 = vmatpush2.xpose.msra.mxu0 0.0
  %4752 = vmatprep.subr.mxu0 0.0
  %4753 = vmatpush2.xpose.msra.mxu0 0.0
  %4754 = vmatprep.subr.mxu0 0.0
  %4755 = vmatpush2.xpose.msra.mxu0 0.0
  %4756 = vmatprep.mubr.f32.mxu0 0.0
  %4757 = vmatmul.mubr.f32.gmra.mxu0 %v4688
  %v4758 = vpop.f32.mrf.mxu0
  %v4759 = vadd.f32 0.0, %v4758
  %v4760 = vpop.f32.mrf.mxu0
  %4761 = vdwg.mxu0
  %4762 = vrot.lane.b32.xlu0 %v342, 96
  %v4763 = vpop.permute.xlu0 %4762
  %v4764 = vsel %vm355, %v342, 0
  %v4766 = vsel %vm355, %v4763, 0
  %4768 = vmatprep.subr.mxu0 0.0
  %4769 = vmatpush1.xpose.msra.mxu0 0.0
  %4770 = vmatprep.subr.mxu0 0.0
  %4771 = vmatpush1.xpose.msra.mxu0 0.0
  %4772 = vmatprep.subr.mxu0 0.0
  %4773 = vmatpush1.xpose.msra.mxu0 0.0
  %4774 = vmatprep.subr.mxu0 0.0
  %4775 = vmatpush1.xpose.msra.mxu0 0.0
  %4776 = vmatprep.subr.mxu0 0.0
  %4777 = vmatpush1.xpose.msra.mxu0 0.0
  %4778 = vmatprep.subr.mxu0 0.0
  %4779 = vmatpush1.xpose.msra.mxu0 0.0
  %4780 = vmatprep.subr.mxu0 0.0
  %4781 = vmatpush1.xpose.msra.mxu0 0.0
  %4782 = vmatprep.subr.mxu0 0.0
  %4783 = vmatpush1.xpose.msra.mxu0 0.0
  %4784 = vmatprep.subr.mxu0 0.0
  %4785 = vmatpush1.xpose.msra.mxu0 0.0
  %4786 = vmatprep.subr.mxu0 0.0
  %4787 = vmatpush1.xpose.msra.mxu0 0.0
  %4788 = vmatprep.subr.mxu0 0.0
  %4789 = vmatpush1.xpose.msra.mxu0 0.0
  %4790 = vmatprep.subr.mxu0 0.0
  %4791 = vmatpush1.xpose.msra.mxu0 0.0
  %4792 = vmatprep.subr.mxu0 0.0
  %4793 = vmatpush1.xpose.msra.mxu0 0.0
  %4794 = vmatprep.subr.mxu0 0.0
  %4795 = vmatpush1.xpose.msra.mxu0 0.0
  %4796 = vmatprep.subr.mxu0 0.0
  %4797 = vmatpush1.xpose.msra.mxu0 0.0
  %4798 = vmatprep.subr.mxu0 0.0
  %4799 = vmatpush1.xpose.msra.mxu0 %v4766
  %4800 = vmatprep.subr.mxu0 0.0
  %4801 = vmatpush2.xpose.msra.mxu0 0.0
  %4802 = vmatprep.subr.mxu0 0.0
  %4803 = vmatpush2.xpose.msra.mxu0 0.0
  %4804 = vmatprep.subr.mxu0 0.0
  %4805 = vmatpush2.xpose.msra.mxu0 0.0
  %4806 = vmatprep.subr.mxu0 0.0
  %4807 = vmatpush2.xpose.msra.mxu0 0.0
  %4808 = vmatprep.subr.mxu0 0.0
  %4809 = vmatpush2.xpose.msra.mxu0 0.0
  %4810 = vmatprep.subr.mxu0 0.0
  %4811 = vmatpush2.xpose.msra.mxu0 0.0
  %4812 = vmatprep.subr.mxu0 0.0
  %4813 = vmatpush2.xpose.msra.mxu0 0.0
  %4814 = vmatprep.subr.mxu0 0.0
  %4815 = vmatpush2.xpose.msra.mxu0 0.0
  %4816 = vmatprep.subr.mxu0 0.0
  %4817 = vmatpush2.xpose.msra.mxu0 0.0
  %4818 = vmatprep.subr.mxu0 0.0
  %4819 = vmatpush2.xpose.msra.mxu0 0.0
  %4820 = vmatprep.subr.mxu0 0.0
  %4821 = vmatpush2.xpose.msra.mxu0 0.0
  %4822 = vmatprep.subr.mxu0 0.0
  %4823 = vmatpush2.xpose.msra.mxu0 0.0
  %4824 = vmatprep.subr.mxu0 0.0
  %4825 = vmatpush2.xpose.msra.mxu0 0.0
  %4826 = vmatprep.subr.mxu0 0.0
  %4827 = vmatpush2.xpose.msra.mxu0 0.0
  %4828 = vmatprep.subr.mxu0 0.0
  %4829 = vmatpush2.xpose.msra.mxu0 0.0
  %4830 = vmatprep.subr.mxu0 0.0
  %4831 = vmatpush2.xpose.msra.mxu0 0.0
  %4832 = vmatprep.mubr.f32.mxu0 0.0
  %4833 = vmatmul.mubr.f32.gmra.mxu0 %v4764
  %v4834 = vpop.f32.mrf.mxu0
  %v4835 = vadd.f32 0.0, %v4834
  %v4836 = vpop.f32.mrf.mxu0
  %4837 = vdwg.mxu0
  %4838 = vrot.lane.b32.xlu0 %v344, 96
  %v4839 = vpop.permute.xlu0 %4838
  %v4840 = vsel %vm355, %v344, 0
  %v4842 = vsel %vm355, %v4839, 0
  %4844 = vmatprep.subr.mxu0 0.0
  %4845 = vmatpush1.xpose.msra.mxu0 0.0
  %4846 = vmatprep.subr.mxu0 0.0
  %4847 = vmatpush1.xpose.msra.mxu0 0.0
  %4848 = vmatprep.subr.mxu0 0.0
  %4849 = vmatpush1.xpose.msra.mxu0 0.0
  %4850 = vmatprep.subr.mxu0 0.0
  %4851 = vmatpush1.xpose.msra.mxu0 0.0
  %4852 = vmatprep.subr.mxu0 0.0
  %4853 = vmatpush1.xpose.msra.mxu0 0.0
  %4854 = vmatprep.subr.mxu0 0.0
  %4855 = vmatpush1.xpose.msra.mxu0 0.0
  %4856 = vmatprep.subr.mxu0 0.0
  %4857 = vmatpush1.xpose.msra.mxu0 0.0
  %4858 = vmatprep.subr.mxu0 0.0
  %4859 = vmatpush1.xpose.msra.mxu0 0.0
  %4860 = vmatprep.subr.mxu0 0.0
  %4861 = vmatpush1.xpose.msra.mxu0 0.0
  %4862 = vmatprep.subr.mxu0 0.0
  %4863 = vmatpush1.xpose.msra.mxu0 0.0
  %4864 = vmatprep.subr.mxu0 0.0
  %4865 = vmatpush1.xpose.msra.mxu0 0.0
  %4866 = vmatprep.subr.mxu0 0.0
  %4867 = vmatpush1.xpose.msra.mxu0 0.0
  %4868 = vmatprep.subr.mxu0 0.0
  %4869 = vmatpush1.xpose.msra.mxu0 0.0
  %4870 = vmatprep.subr.mxu0 0.0
  %4871 = vmatpush1.xpose.msra.mxu0 0.0
  %4872 = vmatprep.subr.mxu0 0.0
  %4873 = vmatpush1.xpose.msra.mxu0 0.0
  %4874 = vmatprep.subr.mxu0 0.0
  %4875 = vmatpush1.xpose.msra.mxu0 %v4842
  %4876 = vmatprep.subr.mxu0 0.0
  %4877 = vmatpush2.xpose.msra.mxu0 0.0
  %4878 = vmatprep.subr.mxu0 0.0
  %4879 = vmatpush2.xpose.msra.mxu0 0.0
  %4880 = vmatprep.subr.mxu0 0.0
  %4881 = vmatpush2.xpose.msra.mxu0 0.0
  %4882 = vmatprep.subr.mxu0 0.0
  %4883 = vmatpush2.xpose.msra.mxu0 0.0
  %4884 = vmatprep.subr.mxu0 0.0
  %4885 = vmatpush2.xpose.msra.mxu0 0.0
  %4886 = vmatprep.subr.mxu0 0.0
  %4887 = vmatpush2.xpose.msra.mxu0 0.0
  %4888 = vmatprep.subr.mxu0 0.0
  %4889 = vmatpush2.xpose.msra.mxu0 0.0
  %4890 = vmatprep.subr.mxu0 0.0
  %4891 = vmatpush2.xpose.msra.mxu0 0.0
  %4892 = vmatprep.subr.mxu0 0.0
  %4893 = vmatpush2.xpose.msra.mxu0 0.0
  %4894 = vmatprep.subr.mxu0 0.0
  %4895 = vmatpush2.xpose.msra.mxu0 0.0
  %4896 = vmatprep.subr.mxu0 0.0
  %4897 = vmatpush2.xpose.msra.mxu0 0.0
  %4898 = vmatprep.subr.mxu0 0.0
  %4899 = vmatpush2.xpose.msra.mxu0 0.0
  %4900 = vmatprep.subr.mxu0 0.0
  %4901 = vmatpush2.xpose.msra.mxu0 0.0
  %4902 = vmatprep.subr.mxu0 0.0
  %4903 = vmatpush2.xpose.msra.mxu0 0.0
  %4904 = vmatprep.subr.mxu0 0.0
  %4905 = vmatpush2.xpose.msra.mxu0 0.0
  %4906 = vmatprep.subr.mxu0 0.0
  %4907 = vmatpush2.xpose.msra.mxu0 0.0
  %4908 = vmatprep.mubr.f32.mxu0 0.0
  %4909 = vmatmul.mubr.f32.gmra.mxu0 %v4840
  %v4910 = vpop.f32.mrf.mxu0
  %v4911 = vadd.f32 0.0, %v4910
  %v4912 = vpop.f32.mrf.mxu0
  %4913 = vdwg.mxu0
  %4914 = vrot.lane.b32.xlu0 %v346, 96
  %v4915 = vpop.permute.xlu0 %4914
  %v4916 = vsel %vm355, %v346, 0
  %v4918 = vsel %vm355, %v4915, 0
  %4920 = vmatprep.subr.mxu0 0.0
  %4921 = vmatpush1.xpose.msra.mxu0 0.0
  %4922 = vmatprep.subr.mxu0 0.0
  %4923 = vmatpush1.xpose.msra.mxu0 0.0
  %4924 = vmatprep.subr.mxu0 0.0
  %4925 = vmatpush1.xpose.msra.mxu0 0.0
  %4926 = vmatprep.subr.mxu0 0.0
  %4927 = vmatpush1.xpose.msra.mxu0 0.0
  %4928 = vmatprep.subr.mxu0 0.0
  %4929 = vmatpush1.xpose.msra.mxu0 0.0
  %4930 = vmatprep.subr.mxu0 0.0
  %4931 = vmatpush1.xpose.msra.mxu0 0.0
  %4932 = vmatprep.subr.mxu0 0.0
  %4933 = vmatpush1.xpose.msra.mxu0 0.0
  %4934 = vmatprep.subr.mxu0 0.0
  %4935 = vmatpush1.xpose.msra.mxu0 0.0
  %4936 = vmatprep.subr.mxu0 0.0
  %4937 = vmatpush1.xpose.msra.mxu0 0.0
  %4938 = vmatprep.subr.mxu0 0.0
  %4939 = vmatpush1.xpose.msra.mxu0 0.0
  %4940 = vmatprep.subr.mxu0 0.0
  %4941 = vmatpush1.xpose.msra.mxu0 0.0
  %4942 = vmatprep.subr.mxu0 0.0
  %4943 = vmatpush1.xpose.msra.mxu0 0.0
  %4944 = vmatprep.subr.mxu0 0.0
  %4945 = vmatpush1.xpose.msra.mxu0 0.0
  %4946 = vmatprep.subr.mxu0 0.0
  %4947 = vmatpush1.xpose.msra.mxu0 0.0
  %4948 = vmatprep.subr.mxu0 0.0
  %4949 = vmatpush1.xpose.msra.mxu0 0.0
  %4950 = vmatprep.subr.mxu0 0.0
  %4951 = vmatpush1.xpose.msra.mxu0 %v4918
  %4952 = vmatprep.subr.mxu0 0.0
  %4953 = vmatpush2.xpose.msra.mxu0 0.0
  %4954 = vmatprep.subr.mxu0 0.0
  %4955 = vmatpush2.xpose.msra.mxu0 0.0
  %4956 = vmatprep.subr.mxu0 0.0
  %4957 = vmatpush2.xpose.msra.mxu0 0.0
  %4958 = vmatprep.subr.mxu0 0.0
  %4959 = vmatpush2.xpose.msra.mxu0 0.0
  %4960 = vmatprep.subr.mxu0 0.0
  %4961 = vmatpush2.xpose.msra.mxu0 0.0
  %4962 = vmatprep.subr.mxu0 0.0
  %4963 = vmatpush2.xpose.msra.mxu0 0.0
  %4964 = vmatprep.subr.mxu0 0.0
  %4965 = vmatpush2.xpose.msra.mxu0 0.0
  %4966 = vmatprep.subr.mxu0 0.0
  %4967 = vmatpush2.xpose.msra.mxu0 0.0
  %4968 = vmatprep.subr.mxu0 0.0
  %4969 = vmatpush2.xpose.msra.mxu0 0.0
  %4970 = vmatprep.subr.mxu0 0.0
  %4971 = vmatpush2.xpose.msra.mxu0 0.0
  %4972 = vmatprep.subr.mxu0 0.0
  %4973 = vmatpush2.xpose.msra.mxu0 0.0
  %4974 = vmatprep.subr.mxu0 0.0
  %4975 = vmatpush2.xpose.msra.mxu0 0.0
  %4976 = vmatprep.subr.mxu0 0.0
  %4977 = vmatpush2.xpose.msra.mxu0 0.0
  %4978 = vmatprep.subr.mxu0 0.0
  %4979 = vmatpush2.xpose.msra.mxu0 0.0
  %4980 = vmatprep.subr.mxu0 0.0
  %4981 = vmatpush2.xpose.msra.mxu0 0.0
  %4982 = vmatprep.subr.mxu0 0.0
  %4983 = vmatpush2.xpose.msra.mxu0 0.0
  %4984 = vmatprep.mubr.f32.mxu0 0.0
  %4985 = vmatmul.mubr.f32.gmra.mxu0 %v4916
  %v4986 = vpop.f32.mrf.mxu0
  %v4987 = vadd.f32 0.0, %v4986
  %v4988 = vpop.f32.mrf.mxu0
  %4989 = vdwg.mxu0
  %4990 = vrot.lane.b32.xlu0 %v348, 96
  %v4991 = vpop.permute.xlu0 %4990
  %v4992 = vsel %vm355, %v348, 0
  %v4994 = vsel %vm355, %v4991, 0
  %4996 = vmatprep.subr.mxu0 0.0
  %4997 = vmatpush1.xpose.msra.mxu0 0.0
  %4998 = vmatprep.subr.mxu0 0.0
  %4999 = vmatpush1.xpose.msra.mxu0 0.0
  %5000 = vmatprep.subr.mxu0 0.0
  %5001 = vmatpush1.xpose.msra.mxu0 0.0
  %5002 = vmatprep.subr.mxu0 0.0
  %5003 = vmatpush1.xpose.msra.mxu0 0.0
  %5004 = vmatprep.subr.mxu0 0.0
  %5005 = vmatpush1.xpose.msra.mxu0 0.0
  %5006 = vmatprep.subr.mxu0 0.0
  %5007 = vmatpush1.xpose.msra.mxu0 0.0
  %5008 = vmatprep.subr.mxu0 0.0
  %5009 = vmatpush1.xpose.msra.mxu0 0.0
  %5010 = vmatprep.subr.mxu0 0.0
  %5011 = vmatpush1.xpose.msra.mxu0 0.0
  %5012 = vmatprep.subr.mxu0 0.0
  %5013 = vmatpush1.xpose.msra.mxu0 0.0
  %5014 = vmatprep.subr.mxu0 0.0
  %5015 = vmatpush1.xpose.msra.mxu0 0.0
  %5016 = vmatprep.subr.mxu0 0.0
  %5017 = vmatpush1.xpose.msra.mxu0 0.0
  %5018 = vmatprep.subr.mxu0 0.0
  %5019 = vmatpush1.xpose.msra.mxu0 0.0
  %5020 = vmatprep.subr.mxu0 0.0
  %5021 = vmatpush1.xpose.msra.mxu0 0.0
  %5022 = vmatprep.subr.mxu0 0.0
  %5023 = vmatpush1.xpose.msra.mxu0 0.0
  %5024 = vmatprep.subr.mxu0 0.0
  %5025 = vmatpush1.xpose.msra.mxu0 0.0
  %5026 = vmatprep.subr.mxu0 0.0
  %5027 = vmatpush1.xpose.msra.mxu0 %v4994
  %5028 = vmatprep.subr.mxu0 0.0
  %5029 = vmatpush2.xpose.msra.mxu0 0.0
  %5030 = vmatprep.subr.mxu0 0.0
  %5031 = vmatpush2.xpose.msra.mxu0 0.0
  %5032 = vmatprep.subr.mxu0 0.0
  %5033 = vmatpush2.xpose.msra.mxu0 0.0
  %5034 = vmatprep.subr.mxu0 0.0
  %5035 = vmatpush2.xpose.msra.mxu0 0.0
  %5036 = vmatprep.subr.mxu0 0.0
  %5037 = vmatpush2.xpose.msra.mxu0 0.0
  %5038 = vmatprep.subr.mxu0 0.0
  %5039 = vmatpush2.xpose.msra.mxu0 0.0
  %5040 = vmatprep.subr.mxu0 0.0
  %5041 = vmatpush2.xpose.msra.mxu0 0.0
  %5042 = vmatprep.subr.mxu0 0.0
  %5043 = vmatpush2.xpose.msra.mxu0 0.0
  %5044 = vmatprep.subr.mxu0 0.0
  %5045 = vmatpush2.xpose.msra.mxu0 0.0
  %5046 = vmatprep.subr.mxu0 0.0
  %5047 = vmatpush2.xpose.msra.mxu0 0.0
  %5048 = vmatprep.subr.mxu0 0.0
  %5049 = vmatpush2.xpose.msra.mxu0 0.0
  %5050 = vmatprep.subr.mxu0 0.0
  %5051 = vmatpush2.xpose.msra.mxu0 0.0
  %5052 = vmatprep.subr.mxu0 0.0
  %5053 = vmatpush2.xpose.msra.mxu0 0.0
  %5054 = vmatprep.subr.mxu0 0.0
  %5055 = vmatpush2.xpose.msra.mxu0 0.0
  %5056 = vmatprep.subr.mxu0 0.0
  %5057 = vmatpush2.xpose.msra.mxu0 0.0
  %5058 = vmatprep.subr.mxu0 0.0
  %5059 = vmatpush2.xpose.msra.mxu0 0.0
  %5060 = vmatprep.mubr.f32.mxu0 0.0
  %5061 = vmatmul.mubr.f32.gmra.mxu0 %v4992
  %v5062 = vpop.f32.mrf.mxu0
  %v5063 = vadd.f32 0.0, %v5062
  %v5064 = vpop.f32.mrf.mxu0
  %5065 = vdwg.mxu0
  %5066 = vrot.lane.b32.xlu0 %v350, 96
  %v5067 = vpop.permute.xlu0 %5066
  %v5068 = vsel %vm355, %v350, 0
  %v5070 = vsel %vm355, %v5067, 0
  %5072 = vmatprep.subr.mxu0 0.0
  %5073 = vmatpush1.xpose.msra.mxu0 0.0
  %5074 = vmatprep.subr.mxu0 0.0
  %5075 = vmatpush1.xpose.msra.mxu0 0.0
  %5076 = vmatprep.subr.mxu0 0.0
  %5077 = vmatpush1.xpose.msra.mxu0 0.0
  %5078 = vmatprep.subr.mxu0 0.0
  %5079 = vmatpush1.xpose.msra.mxu0 0.0
  %5080 = vmatprep.subr.mxu0 0.0
  %5081 = vmatpush1.xpose.msra.mxu0 0.0
  %5082 = vmatprep.subr.mxu0 0.0
  %5083 = vmatpush1.xpose.msra.mxu0 0.0
  %5084 = vmatprep.subr.mxu0 0.0
  %5085 = vmatpush1.xpose.msra.mxu0 0.0
  %5086 = vmatprep.subr.mxu0 0.0
  %5087 = vmatpush1.xpose.msra.mxu0 0.0
  %5088 = vmatprep.subr.mxu0 0.0
  %5089 = vmatpush1.xpose.msra.mxu0 0.0
  %5090 = vmatprep.subr.mxu0 0.0
  %5091 = vmatpush1.xpose.msra.mxu0 0.0
  %5092 = vmatprep.subr.mxu0 0.0
  %5093 = vmatpush1.xpose.msra.mxu0 0.0
  %5094 = vmatprep.subr.mxu0 0.0
  %5095 = vmatpush1.xpose.msra.mxu0 0.0
  %5096 = vmatprep.subr.mxu0 0.0
  %5097 = vmatpush1.xpose.msra.mxu0 0.0
  %5098 = vmatprep.subr.mxu0 0.0
  %5099 = vmatpush1.xpose.msra.mxu0 0.0
  %5100 = vmatprep.subr.mxu0 0.0
  %5101 = vmatpush1.xpose.msra.mxu0 0.0
  %5102 = vmatprep.subr.mxu0 0.0
  %5103 = vmatpush1.xpose.msra.mxu0 %v5070
  %5104 = vmatprep.subr.mxu0 0.0
  %5105 = vmatpush2.xpose.msra.mxu0 0.0
  %5106 = vmatprep.subr.mxu0 0.0
  %5107 = vmatpush2.xpose.msra.mxu0 0.0
  %5108 = vmatprep.subr.mxu0 0.0
  %5109 = vmatpush2.xpose.msra.mxu0 0.0
  %5110 = vmatprep.subr.mxu0 0.0
  %5111 = vmatpush2.xpose.msra.mxu0 0.0
  %5112 = vmatprep.subr.mxu0 0.0
  %5113 = vmatpush2.xpose.msra.mxu0 0.0
  %5114 = vmatprep.subr.mxu0 0.0
  %5115 = vmatpush2.xpose.msra.mxu0 0.0
  %5116 = vmatprep.subr.mxu0 0.0
  %5117 = vmatpush2.xpose.msra.mxu0 0.0
  %5118 = vmatprep.subr.mxu0 0.0
  %5119 = vmatpush2.xpose.msra.mxu0 0.0
  %5120 = vmatprep.subr.mxu0 0.0
  %5121 = vmatpush2.xpose.msra.mxu0 0.0
  %5122 = vmatprep.subr.mxu0 0.0
  %5123 = vmatpush2.xpose.msra.mxu0 0.0
  %5124 = vmatprep.subr.mxu0 0.0
  %5125 = vmatpush2.xpose.msra.mxu0 0.0
  %5126 = vmatprep.subr.mxu0 0.0
  %5127 = vmatpush2.xpose.msra.mxu0 0.0
  %5128 = vmatprep.subr.mxu0 0.0
  %5129 = vmatpush2.xpose.msra.mxu0 0.0
  %5130 = vmatprep.subr.mxu0 0.0
  %5131 = vmatpush2.xpose.msra.mxu0 0.0
  %5132 = vmatprep.subr.mxu0 0.0
  %5133 = vmatpush2.xpose.msra.mxu0 0.0
  %5134 = vmatprep.subr.mxu0 0.0
  %5135 = vmatpush2.xpose.msra.mxu0 0.0
  %5136 = vmatprep.mubr.f32.mxu0 0.0
  %5137 = vmatmul.mubr.f32.gmra.mxu0 %v5068
  %v5138 = vpop.f32.mrf.mxu0
  %v5139 = vadd.f32 0.0, %v5138
  %v5140 = vpop.f32.mrf.mxu0
  %5141 = vdwg.mxu0
  %5142 = vrot.lane.b32.xlu0 %v352, 96
  %v5143 = vpop.permute.xlu0 %5142
  %v5144 = vsel %vm355, %v352, 0
  %v5146 = vsel %vm355, %v5143, 0
  %5148 = vmatprep.subr.mxu0 0.0
  %5149 = vmatpush1.xpose.msra.mxu0 0.0
  %5150 = vmatprep.subr.mxu0 0.0
  %5151 = vmatpush1.xpose.msra.mxu0 0.0
  %5152 = vmatprep.subr.mxu0 0.0
  %5153 = vmatpush1.xpose.msra.mxu0 0.0
  %5154 = vmatprep.subr.mxu0 0.0
  %5155 = vmatpush1.xpose.msra.mxu0 0.0
  %5156 = vmatprep.subr.mxu0 0.0
  %5157 = vmatpush1.xpose.msra.mxu0 0.0
  %5158 = vmatprep.subr.mxu0 0.0
  %5159 = vmatpush1.xpose.msra.mxu0 0.0
  %5160 = vmatprep.subr.mxu0 0.0
  %5161 = vmatpush1.xpose.msra.mxu0 0.0
  %5162 = vmatprep.subr.mxu0 0.0
  %5163 = vmatpush1.xpose.msra.mxu0 0.0
  %5164 = vmatprep.subr.mxu0 0.0
  %5165 = vmatpush1.xpose.msra.mxu0 0.0
  %5166 = vmatprep.subr.mxu0 0.0
  %5167 = vmatpush1.xpose.msra.mxu0 0.0
  %5168 = vmatprep.subr.mxu0 0.0
  %5169 = vmatpush1.xpose.msra.mxu0 0.0
  %5170 = vmatprep.subr.mxu0 0.0
  %5171 = vmatpush1.xpose.msra.mxu0 0.0
  %5172 = vmatprep.subr.mxu0 0.0
  %5173 = vmatpush1.xpose.msra.mxu0 0.0
  %5174 = vmatprep.subr.mxu0 0.0
  %5175 = vmatpush1.xpose.msra.mxu0 0.0
  %5176 = vmatprep.subr.mxu0 0.0
  %5177 = vmatpush1.xpose.msra.mxu0 0.0
  %5178 = vmatprep.subr.mxu0 0.0
  %5179 = vmatpush1.xpose.msra.mxu0 %v5146
  %5180 = vmatprep.subr.mxu0 0.0
  %5181 = vmatpush2.xpose.msra.mxu0 0.0
  %5182 = vmatprep.subr.mxu0 0.0
  %5183 = vmatpush2.xpose.msra.mxu0 0.0
  %5184 = vmatprep.subr.mxu0 0.0
  %5185 = vmatpush2.xpose.msra.mxu0 0.0
  %5186 = vmatprep.subr.mxu0 0.0
  %5187 = vmatpush2.xpose.msra.mxu0 0.0
  %5188 = vmatprep.subr.mxu0 0.0
  %5189 = vmatpush2.xpose.msra.mxu0 0.0
  %5190 = vmatprep.subr.mxu0 0.0
  %5191 = vmatpush2.xpose.msra.mxu0 0.0
  %5192 = vmatprep.subr.mxu0 0.0
  %5193 = vmatpush2.xpose.msra.mxu0 0.0
  %5194 = vmatprep.subr.mxu0 0.0
  %5195 = vmatpush2.xpose.msra.mxu0 0.0
  %5196 = vmatprep.subr.mxu0 0.0
  %5197 = vmatpush2.xpose.msra.mxu0 0.0
  %5198 = vmatprep.subr.mxu0 0.0
  %5199 = vmatpush2.xpose.msra.mxu0 0.0
  %5200 = vmatprep.subr.mxu0 0.0
  %5201 = vmatpush2.xpose.msra.mxu0 0.0
  %5202 = vmatprep.subr.mxu0 0.0
  %5203 = vmatpush2.xpose.msra.mxu0 0.0
  %5204 = vmatprep.subr.mxu0 0.0
  %5205 = vmatpush2.xpose.msra.mxu0 0.0
  %5206 = vmatprep.subr.mxu0 0.0
  %5207 = vmatpush2.xpose.msra.mxu0 0.0
  %5208 = vmatprep.subr.mxu0 0.0
  %5209 = vmatpush2.xpose.msra.mxu0 0.0
  %5210 = vmatprep.subr.mxu0 0.0
  %5211 = vmatpush2.xpose.msra.mxu0 0.0
  %5212 = vmatprep.mubr.f32.mxu0 0.0
  %5213 = vmatmul.mubr.f32.gmra.mxu0 %v5144
  %v5214 = vpop.f32.mrf.mxu0
  %v5215 = vadd.f32 0.0, %v5214
  %v5216 = vpop.f32.mrf.mxu0
  %5217 = vdwg.mxu0
  %v5218 = vsel %vm355, %v427, -inf
  %5219 = vmax.xlane.f32.xlu0 %v5218
  %v5220 = vpop.xlane.xlu0 %5219
  %v5221 = vsel %vm355, %v503, -inf
  %5222 = vmax.xlane.f32.xlu0 %v5221
  %v5223 = vpop.xlane.xlu0 %5222
  %v5224 = vsel %vm355, %v579, -inf
  %5225 = vmax.xlane.f32.xlu0 %v5224
  %v5226 = vpop.xlane.xlu0 %5225
  %v5227 = vsel %vm355, %v655, -inf
  %5228 = vmax.xlane.f32.xlu0 %v5227
  %v5229 = vpop.xlane.xlu0 %5228
  %v5230 = vsel %vm355, %v731, -inf
  %5231 = vmax.xlane.f32.xlu0 %v5230
  %v5232 = vpop.xlane.xlu0 %5231
  %v5233 = vsel %vm355, %v807, -inf
  %5234 = vmax.xlane.f32.xlu0 %v5233
  %v5235 = vpop.xlane.xlu0 %5234
  %v5236 = vsel %vm355, %v883, -inf
  %5237 = vmax.xlane.f32.xlu0 %v5236
  %v5238 = vpop.xlane.xlu0 %5237
  %v5239 = vsel %vm355, %v959, -inf
  %5240 = vmax.xlane.f32.xlu0 %v5239
  %v5241 = vpop.xlane.xlu0 %5240
  %v5242 = vsel %vm355, %v1035, -inf
  %5243 = vmax.xlane.f32.xlu0 %v5242
  %v5244 = vpop.xlane.xlu0 %5243
  %v5245 = vsel %vm355, %v1111, -inf
  %5246 = vmax.xlane.f32.xlu0 %v5245
  %v5247 = vpop.xlane.xlu0 %5246
  %v5248 = vsel %vm355, %v1187, -inf
  %5249 = vmax.xlane.f32.xlu0 %v5248
  %v5250 = vpop.xlane.xlu0 %5249
  %v5251 = vsel %vm355, %v1263, -inf
  %5252 = vmax.xlane.f32.xlu0 %v5251
  %v5253 = vpop.xlane.xlu0 %5252
  %v5254 = vsel %vm355, %v1339, -inf
  %5255 = vmax.xlane.f32.xlu0 %v5254
  %v5256 = vpop.xlane.xlu0 %5255
  %v5257 = vsel %vm355, %v1415, -inf
  %5258 = vmax.xlane.f32.xlu0 %v5257
  %v5259 = vpop.xlane.xlu0 %5258
  %v5260 = vsel %vm355, %v1491, -inf
  %5261 = vmax.xlane.f32.xlu0 %v5260
  %v5262 = vpop.xlane.xlu0 %5261
  %v5263 = vsel %vm355, %v1567, -inf
  %5264 = vmax.xlane.f32.xlu0 %v5263
  %v5265 = vpop.xlane.xlu0 %5264
  %v5266 = vsel %vm355, %v1643, -inf
  %5267 = vmax.xlane.f32.xlu0 %v5266
  %v5268 = vpop.xlane.xlu0 %5267
  %v5269 = vsel %vm355, %v1719, -inf
  %5270 = vmax.xlane.f32.xlu0 %v5269
  %v5271 = vpop.xlane.xlu0 %5270
  %v5272 = vsel %vm355, %v1795, -inf
  %5273 = vmax.xlane.f32.xlu0 %v5272
  %v5274 = vpop.xlane.xlu0 %5273
  %v5275 = vsel %vm355, %v1871, -inf
  %5276 = vmax.xlane.f32.xlu0 %v5275
  %v5277 = vpop.xlane.xlu0 %5276
  %v5278 = vsel %vm355, %v1947, -inf
  %5279 = vmax.xlane.f32.xlu0 %v5278
  %v5280 = vpop.xlane.xlu0 %5279
  %v5281 = vsel %vm355, %v2023, -inf
  %5282 = vmax.xlane.f32.xlu0 %v5281
  %v5283 = vpop.xlane.xlu0 %5282
  %v5284 = vsel %vm355, %v2099, -inf
  %5285 = vmax.xlane.f32.xlu0 %v5284
  %v5286 = vpop.xlane.xlu0 %5285
  %v5287 = vsel %vm355, %v2175, -inf
  %5288 = vmax.xlane.f32.xlu0 %v5287
  %v5289 = vpop.xlane.xlu0 %5288
  %v5290 = vsel %vm355, %v2251, -inf
  %5291 = vmax.xlane.f32.xlu0 %v5290
  %v5292 = vpop.xlane.xlu0 %5291
  %v5293 = vsel %vm355, %v2327, -inf
  %5294 = vmax.xlane.f32.xlu0 %v5293
  %v5295 = vpop.xlane.xlu0 %5294
  %v5296 = vsel %vm355, %v2403, -inf
  %5297 = vmax.xlane.f32.xlu0 %v5296
  %v5298 = vpop.xlane.xlu0 %5297
  %v5299 = vsel %vm355, %v2479, -inf
  %5300 = vmax.xlane.f32.xlu0 %v5299
  %v5301 = vpop.xlane.xlu0 %5300
  %v5302 = vsel %vm355, %v2555, -inf
  %5303 = vmax.xlane.f32.xlu0 %v5302
  %v5304 = vpop.xlane.xlu0 %5303
  %v5305 = vsel %vm355, %v2631, -inf
  %5306 = vmax.xlane.f32.xlu0 %v5305
  %v5307 = vpop.xlane.xlu0 %5306
  %v5308 = vsel %vm355, %v2707, -inf
  %5309 = vmax.xlane.f32.xlu0 %v5308
  %v5310 = vpop.xlane.xlu0 %5309
  %v5311 = vsel %vm355, %v2783, -inf
  %5312 = vmax.xlane.f32.xlu0 %v5311
  %v5313 = vpop.xlane.xlu0 %5312
  %v5314 = vsel %vm355, %v2859, -inf
  %5315 = vmax.xlane.f32.xlu0 %v5314
  %v5316 = vpop.xlane.xlu0 %5315
  %v5317 = vsel %vm355, %v2935, -inf
  %5318 = vmax.xlane.f32.xlu0 %v5317
  %v5319 = vpop.xlane.xlu0 %5318
  %v5320 = vsel %vm355, %v3011, -inf
  %5321 = vmax.xlane.f32.xlu0 %v5320
  %v5322 = vpop.xlane.xlu0 %5321
  %v5323 = vsel %vm355, %v3087, -inf
  %5324 = vmax.xlane.f32.xlu0 %v5323
  %v5325 = vpop.xlane.xlu0 %5324
  %v5326 = vsel %vm355, %v3163, -inf
  %5327 = vmax.xlane.f32.xlu0 %v5326
  %v5328 = vpop.xlane.xlu0 %5327
  %v5329 = vsel %vm355, %v3239, -inf
  %5330 = vmax.xlane.f32.xlu0 %v5329
  %v5331 = vpop.xlane.xlu0 %5330
  %v5332 = vsel %vm355, %v3315, -inf
  %5333 = vmax.xlane.f32.xlu0 %v5332
  %v5334 = vpop.xlane.xlu0 %5333
  %v5335 = vsel %vm355, %v3391, -inf
  %5336 = vmax.xlane.f32.xlu0 %v5335
  %v5337 = vpop.xlane.xlu0 %5336
  %v5338 = vsel %vm355, %v3467, -inf
  %5339 = vmax.xlane.f32.xlu0 %v5338
  %v5340 = vpop.xlane.xlu0 %5339
  %v5341 = vsel %vm355, %v3543, -inf
  %5342 = vmax.xlane.f32.xlu0 %v5341
  %v5343 = vpop.xlane.xlu0 %5342
  %v5344 = vsel %vm355, %v3619, -inf
  %5345 = vmax.xlane.f32.xlu0 %v5344
  %v5346 = vpop.xlane.xlu0 %5345
  %v5347 = vsel %vm355, %v3695, -inf
  %5348 = vmax.xlane.f32.xlu0 %v5347
  %v5349 = vpop.xlane.xlu0 %5348
  %v5350 = vsel %vm355, %v3771, -inf
  %5351 = vmax.xlane.f32.xlu0 %v5350
  %v5352 = vpop.xlane.xlu0 %5351
  %v5353 = vsel %vm355, %v3847, -inf
  %5354 = vmax.xlane.f32.xlu0 %v5353
  %v5355 = vpop.xlane.xlu0 %5354
  %v5356 = vsel %vm355, %v3923, -inf
  %5357 = vmax.xlane.f32.xlu0 %v5356
  %v5358 = vpop.xlane.xlu0 %5357
  %v5359 = vsel %vm355, %v3999, -inf
  %5360 = vmax.xlane.f32.xlu0 %v5359
  %v5361 = vpop.xlane.xlu0 %5360
  %v5362 = vsel %vm355, %v4075, -inf
  %5363 = vmax.xlane.f32.xlu0 %v5362
  %v5364 = vpop.xlane.xlu0 %5363
  %v5365 = vsel %vm355, %v4151, -inf
  %5366 = vmax.xlane.f32.xlu0 %v5365
  %v5367 = vpop.xlane.xlu0 %5366
  %v5368 = vsel %vm355, %v4227, -inf
  %5369 = vmax.xlane.f32.xlu0 %v5368
  %v5370 = vpop.xlane.xlu0 %5369
  %v5371 = vsel %vm355, %v4303, -inf
  %5372 = vmax.xlane.f32.xlu0 %v5371
  %v5373 = vpop.xlane.xlu0 %5372
  %v5374 = vsel %vm355, %v4379, -inf
  %5375 = vmax.xlane.f32.xlu0 %v5374
  %v5376 = vpop.xlane.xlu0 %5375
  %v5377 = vsel %vm355, %v4455, -inf
  %5378 = vmax.xlane.f32.xlu0 %v5377
  %v5379 = vpop.xlane.xlu0 %5378
  %v5380 = vsel %vm355, %v4531, -inf
  %5381 = vmax.xlane.f32.xlu0 %v5380
  %v5382 = vpop.xlane.xlu0 %5381
  %v5383 = vsel %vm355, %v4607, -inf
  %5384 = vmax.xlane.f32.xlu0 %v5383
  %v5385 = vpop.xlane.xlu0 %5384
  %v5386 = vsel %vm355, %v4683, -inf
  %5387 = vmax.xlane.f32.xlu0 %v5386
  %v5388 = vpop.xlane.xlu0 %5387
  %v5389 = vsel %vm355, %v4759, -inf
  %5390 = vmax.xlane.f32.xlu0 %v5389
  %v5391 = vpop.xlane.xlu0 %5390
  %v5392 = vsel %vm355, %v4835, -inf
  %5393 = vmax.xlane.f32.xlu0 %v5392
  %v5394 = vpop.xlane.xlu0 %5393
  %v5395 = vsel %vm355, %v4911, -inf
  %5396 = vmax.xlane.f32.xlu0 %v5395
  %v5397 = vpop.xlane.xlu0 %5396
  %v5398 = vsel %vm355, %v4987, -inf
  %5399 = vmax.xlane.f32.xlu0 %v5398
  %v5400 = vpop.xlane.xlu0 %5399
  %v5401 = vsel %vm355, %v5063, -inf
  %5402 = vmax.xlane.f32.xlu0 %v5401
  %v5403 = vpop.xlane.xlu0 %5402
  %v5404 = vsel %vm355, %v5139, -inf
  %5405 = vmax.xlane.f32.xlu0 %v5404
  %v5406 = vpop.xlane.xlu0 %5405
  %v5407 = vsel %vm355, %v5215, -inf
  %5408 = vmax.xlane.f32.xlu0 %v5407
  %v5409 = vpop.xlane.xlu0 %5408
  %v5410 = vsub.f32 %v427, %v5220
  %v5411 = vsub.f32 %v503, %v5223
  %v5412 = vsub.f32 %v579, %v5226
  %v5413 = vsub.f32 %v655, %v5229
  %v5414 = vsub.f32 %v731, %v5232
  %v5415 = vsub.f32 %v807, %v5235
  %v5416 = vsub.f32 %v883, %v5238
  %v5417 = vsub.f32 %v959, %v5241
  %v5418 = vsub.f32 %v1035, %v5244
  %v5419 = vsub.f32 %v1111, %v5247
  %v5420 = vsub.f32 %v1187, %v5250
  %v5421 = vsub.f32 %v1263, %v5253
  %v5422 = vsub.f32 %v1339, %v5256
  %v5423 = vsub.f32 %v1415, %v5259
  %v5424 = vsub.f32 %v1491, %v5262
  %v5425 = vsub.f32 %v1567, %v5265
  %v5426 = vsub.f32 %v1643, %v5268
  %v5427 = vsub.f32 %v1719, %v5271
  %v5428 = vsub.f32 %v1795, %v5274
  %v5429 = vsub.f32 %v1871, %v5277
  %v5430 = vsub.f32 %v1947, %v5280
  %v5431 = vsub.f32 %v2023, %v5283
  %v5432 = vsub.f32 %v2099, %v5286
  %v5433 = vsub.f32 %v2175, %v5289
  %v5434 = vsub.f32 %v2251, %v5292
  %v5435 = vsub.f32 %v2327, %v5295
  %v5436 = vsub.f32 %v2403, %v5298
  %v5437 = vsub.f32 %v2479, %v5301
  %v5438 = vsub.f32 %v2555, %v5304
  %v5439 = vsub.f32 %v2631, %v5307
  %v5440 = vsub.f32 %v2707, %v5310
  %v5441 = vsub.f32 %v2783, %v5313
  %v5442 = vsub.f32 %v2859, %v5316
  %v5443 = vsub.f32 %v2935, %v5319
  %v5444 = vsub.f32 %v3011, %v5322
  %v5445 = vsub.f32 %v3087, %v5325
  %v5446 = vsub.f32 %v3163, %v5328
  %v5447 = vsub.f32 %v3239, %v5331
  %v5448 = vsub.f32 %v3315, %v5334
  %v5449 = vsub.f32 %v3391, %v5337
  %v5450 = vsub.f32 %v3467, %v5340
  %v5451 = vsub.f32 %v3543, %v5343
  %v5452 = vsub.f32 %v3619, %v5346
  %v5453 = vsub.f32 %v3695, %v5349
  %v5454 = vsub.f32 %v3771, %v5352
  %v5455 = vsub.f32 %v3847, %v5355
  %v5456 = vsub.f32 %v3923, %v5358
  %v5457 = vsub.f32 %v3999, %v5361
  %v5458 = vsub.f32 %v4075, %v5364
  %v5459 = vsub.f32 %v4151, %v5367
  %v5460 = vsub.f32 %v4227, %v5370
  %v5461 = vsub.f32 %v4303, %v5373
  %v5462 = vsub.f32 %v4379, %v5376
  %v5463 = vsub.f32 %v4455, %v5379
  %v5464 = vsub.f32 %v4531, %v5382
  %v5465 = vsub.f32 %v4607, %v5385
  %v5466 = vsub.f32 %v4683, %v5388
  %v5467 = vsub.f32 %v4759, %v5391
  %v5468 = vsub.f32 %v4835, %v5394
  %v5469 = vsub.f32 %v4911, %v5397
  %v5470 = vsub.f32 %v4987, %v5400
  %v5471 = vsub.f32 %v5063, %v5403
  %v5472 = vsub.f32 %v5139, %v5406
  %v5473 = vsub.f32 %v5215, %v5409
  %v5474 = vmul.f32 %v5410, 1.442695
  %v5475 = vpow.pop %v5474
  %v5476 = vmul.f32 %v5411, 1.442695
  %v5477 = vpow.pop %v5476
  %v5478 = vmul.f32 %v5412, 1.442695
  %v5479 = vpow.pop %v5478
  %v5480 = vmul.f32 %v5413, 1.442695
  %v5481 = vpow.pop %v5480
  %v5482 = vmul.f32 %v5414, 1.442695
  %v5483 = vpow.pop %v5482
  %v5484 = vmul.f32 %v5415, 1.442695
  %v5485 = vpow.pop %v5484
  %v5486 = vmul.f32 %v5416, 1.442695
  %v5487 = vpow.pop %v5486
  %v5488 = vmul.f32 %v5417, 1.442695
  %v5489 = vpow.pop %v5488
  %v5490 = vmul.f32 %v5418, 1.442695
  %v5491 = vpow.pop %v5490
  %v5492 = vmul.f32 %v5419, 1.442695
  %v5493 = vpow.pop %v5492
  %v5494 = vmul.f32 %v5420, 1.442695
  %v5495 = vpow.pop %v5494
  %v5496 = vmul.f32 %v5421, 1.442695
  %v5497 = vpow.pop %v5496
  %v5498 = vmul.f32 %v5422, 1.442695
  %v5499 = vpow.pop %v5498
  %v5500 = vmul.f32 %v5423, 1.442695
  %v5501 = vpow.pop %v5500
  %v5502 = vmul.f32 %v5424, 1.442695
  %v5503 = vpow.pop %v5502
  %v5504 = vmul.f32 %v5425, 1.442695
  %v5505 = vpow.pop %v5504
  %v5506 = vmul.f32 %v5426, 1.442695
  %v5507 = vpow.pop %v5506
  %v5508 = vmul.f32 %v5427, 1.442695
  %v5509 = vpow.pop %v5508
  %v5510 = vmul.f32 %v5428, 1.442695
  %v5511 = vpow.pop %v5510
  %v5512 = vmul.f32 %v5429, 1.442695
  %v5513 = vpow.pop %v5512
  %v5514 = vmul.f32 %v5430, 1.442695
  %v5515 = vpow.pop %v5514
  %v5516 = vmul.f32 %v5431, 1.442695
  %v5517 = vpow.pop %v5516
  %v5518 = vmul.f32 %v5432, 1.442695
  %v5519 = vpow.pop %v5518
  %v5520 = vmul.f32 %v5433, 1.442695
  %v5521 = vpow.pop %v5520
  %v5522 = vmul.f32 %v5434, 1.442695
  %v5523 = vpow.pop %v5522
  %v5524 = vmul.f32 %v5435, 1.442695
  %v5525 = vpow.pop %v5524
  %v5526 = vmul.f32 %v5436, 1.442695
  %v5527 = vpow.pop %v5526
  %v5528 = vmul.f32 %v5437, 1.442695
  %v5529 = vpow.pop %v5528
  %v5530 = vmul.f32 %v5438, 1.442695
  %v5531 = vpow.pop %v5530
  %v5532 = vmul.f32 %v5439, 1.442695
  %v5533 = vpow.pop %v5532
  %v5534 = vmul.f32 %v5440, 1.442695
  %v5535 = vpow.pop %v5534
  %v5536 = vmul.f32 %v5441, 1.442695
  %v5537 = vpow.pop %v5536
  %v5538 = vmul.f32 %v5442, 1.442695
  %v5539 = vpow.pop %v5538
  %v5540 = vmul.f32 %v5443, 1.442695
  %v5541 = vpow.pop %v5540
  %v5542 = vmul.f32 %v5444, 1.442695
  %v5543 = vpow.pop %v5542
  %v5544 = vmul.f32 %v5445, 1.442695
  %v5545 = vpow.pop %v5544
  %v5546 = vmul.f32 %v5446, 1.442695
  %v5547 = vpow.pop %v5546
  %v5548 = vmul.f32 %v5447, 1.442695
  %v5549 = vpow.pop %v5548
  %v5550 = vmul.f32 %v5448, 1.442695
  %v5551 = vpow.pop %v5550
  %v5552 = vmul.f32 %v5449, 1.442695
  %v5553 = vpow.pop %v5552
  %v5554 = vmul.f32 %v5450, 1.442695
  %v5555 = vpow.pop %v5554
  %v5556 = vmul.f32 %v5451, 1.442695
  %v5557 = vpow.pop %v5556
  %v5558 = vmul.f32 %v5452, 1.442695
  %v5559 = vpow.pop %v5558
  %v5560 = vmul.f32 %v5453, 1.442695
  %v5561 = vpow.pop %v5560
  %v5562 = vmul.f32 %v5454, 1.442695
  %v5563 = vpow.pop %v5562
  %v5564 = vmul.f32 %v5455, 1.442695
  %v5565 = vpow.pop %v5564
  %v5566 = vmul.f32 %v5456, 1.442695
  %v5567 = vpow.pop %v5566
  %v5568 = vmul.f32 %v5457, 1.442695
  %v5569 = vpow.pop %v5568
  %v5570 = vmul.f32 %v5458, 1.442695
  %v5571 = vpow.pop %v5570
  %v5572 = vmul.f32 %v5459, 1.442695
  %v5573 = vpow.pop %v5572
  %v5574 = vmul.f32 %v5460, 1.442695
  %v5575 = vpow.pop %v5574
  %v5576 = vmul.f32 %v5461, 1.442695
  %v5577 = vpow.pop %v5576
  %v5578 = vmul.f32 %v5462, 1.442695
  %v5579 = vpow.pop %v5578
  %v5580 = vmul.f32 %v5463, 1.442695
  %v5581 = vpow.pop %v5580
  %v5582 = vmul.f32 %v5464, 1.442695
  %v5583 = vpow.pop %v5582
  %v5584 = vmul.f32 %v5465, 1.442695
  %v5585 = vpow.pop %v5584
  %v5586 = vmul.f32 %v5466, 1.442695
  %v5587 = vpow.pop %v5586
  %v5588 = vmul.f32 %v5467, 1.442695
  %v5589 = vpow.pop %v5588
  %v5590 = vmul.f32 %v5468, 1.442695
  %v5591 = vpow.pop %v5590
  %v5592 = vmul.f32 %v5469, 1.442695
  %v5593 = vpow.pop %v5592
  %v5594 = vmul.f32 %v5470, 1.442695
  %v5595 = vpow.pop %v5594
  %v5596 = vmul.f32 %v5471, 1.442695
  %v5597 = vpow.pop %v5596
  %v5598 = vmul.f32 %v5472, 1.442695
  %v5599 = vpow.pop %v5598
  %v5600 = vmul.f32 %v5473, 1.442695
  %v5601 = vpow.pop %v5600
  %v5602 = vsel %vm355, %v5475, 0.0
  %5603 = vadd.xlane.f32.xlu0 %v5602
  %v5604 = vpop.xlane.xlu0 %5603
  %v5605 = vsel %vm355, %v5477, 0.0
  %5606 = vadd.xlane.f32.xlu0 %v5605
  %v5607 = vpop.xlane.xlu0 %5606
  %v5608 = vsel %vm355, %v5479, 0.0
  %5609 = vadd.xlane.f32.xlu0 %v5608
  %v5610 = vpop.xlane.xlu0 %5609
  %v5611 = vsel %vm355, %v5481, 0.0
  %5612 = vadd.xlane.f32.xlu0 %v5611
  %v5613 = vpop.xlane.xlu0 %5612
  %v5614 = vsel %vm355, %v5483, 0.0
  %5615 = vadd.xlane.f32.xlu0 %v5614
  %v5616 = vpop.xlane.xlu0 %5615
  %v5617 = vsel %vm355, %v5485, 0.0
  %5618 = vadd.xlane.f32.xlu0 %v5617
  %v5619 = vpop.xlane.xlu0 %5618
  %v5620 = vsel %vm355, %v5487, 0.0
  %5621 = vadd.xlane.f32.xlu0 %v5620
  %v5622 = vpop.xlane.xlu0 %5621
  %v5623 = vsel %vm355, %v5489, 0.0
  %5624 = vadd.xlane.f32.xlu0 %v5623
  %v5625 = vpop.xlane.xlu0 %5624
  %v5626 = vsel %vm355, %v5491, 0.0
  %5627 = vadd.xlane.f32.xlu0 %v5626
  %v5628 = vpop.xlane.xlu0 %5627
  %v5629 = vsel %vm355, %v5493, 0.0
  %5630 = vadd.xlane.f32.xlu0 %v5629
  %v5631 = vpop.xlane.xlu0 %5630
  %v5632 = vsel %vm355, %v5495, 0.0
  %5633 = vadd.xlane.f32.xlu0 %v5632
  %v5634 = vpop.xlane.xlu0 %5633
  %v5635 = vsel %vm355, %v5497, 0.0
  %5636 = vadd.xlane.f32.xlu0 %v5635
  %v5637 = vpop.xlane.xlu0 %5636
  %v5638 = vsel %vm355, %v5499, 0.0
  %5639 = vadd.xlane.f32.xlu0 %v5638
  %v5640 = vpop.xlane.xlu0 %5639
  %v5641 = vsel %vm355, %v5501, 0.0
  %5642 = vadd.xlane.f32.xlu0 %v5641
  %v5643 = vpop.xlane.xlu0 %5642
  %v5644 = vsel %vm355, %v5503, 0.0
  %5645 = vadd.xlane.f32.xlu0 %v5644
  %v5646 = vpop.xlane.xlu0 %5645
  %v5647 = vsel %vm355, %v5505, 0.0
  %5648 = vadd.xlane.f32.xlu0 %v5647
  %v5649 = vpop.xlane.xlu0 %5648
  %v5650 = vsel %vm355, %v5507, 0.0
  %5651 = vadd.xlane.f32.xlu0 %v5650
  %v5652 = vpop.xlane.xlu0 %5651
  %v5653 = vsel %vm355, %v5509, 0.0
  %5654 = vadd.xlane.f32.xlu0 %v5653
  %v5655 = vpop.xlane.xlu0 %5654
  %v5656 = vsel %vm355, %v5511, 0.0
  %5657 = vadd.xlane.f32.xlu0 %v5656
  %v5658 = vpop.xlane.xlu0 %5657
  %v5659 = vsel %vm355, %v5513, 0.0
  %5660 = vadd.xlane.f32.xlu0 %v5659
  %v5661 = vpop.xlane.xlu0 %5660
  %v5662 = vsel %vm355, %v5515, 0.0
  %5663 = vadd.xlane.f32.xlu0 %v5662
  %v5664 = vpop.xlane.xlu0 %5663
  %v5665 = vsel %vm355, %v5517, 0.0
  %5666 = vadd.xlane.f32.xlu0 %v5665
  %v5667 = vpop.xlane.xlu0 %5666
  %v5668 = vsel %vm355, %v5519, 0.0
  %5669 = vadd.xlane.f32.xlu0 %v5668
  %v5670 = vpop.xlane.xlu0 %5669
  %v5671 = vsel %vm355, %v5521, 0.0
  %5672 = vadd.xlane.f32.xlu0 %v5671
  %v5673 = vpop.xlane.xlu0 %5672
  %v5674 = vsel %vm355, %v5523, 0.0
  %5675 = vadd.xlane.f32.xlu0 %v5674
  %v5676 = vpop.xlane.xlu0 %5675
  %v5677 = vsel %vm355, %v5525, 0.0
  %5678 = vadd.xlane.f32.xlu0 %v5677
  %v5679 = vpop.xlane.xlu0 %5678
  %v5680 = vsel %vm355, %v5527, 0.0
  %5681 = vadd.xlane.f32.xlu0 %v5680
  %v5682 = vpop.xlane.xlu0 %5681
  %v5683 = vsel %vm355, %v5529, 0.0
  %5684 = vadd.xlane.f32.xlu0 %v5683
  %v5685 = vpop.xlane.xlu0 %5684
  %v5686 = vsel %vm355, %v5531, 0.0
  %5687 = vadd.xlane.f32.xlu0 %v5686
  %v5688 = vpop.xlane.xlu0 %5687
  %v5689 = vsel %vm355, %v5533, 0.0
  %5690 = vadd.xlane.f32.xlu0 %v5689
  %v5691 = vpop.xlane.xlu0 %5690
  %v5692 = vsel %vm355, %v5535, 0.0
  %5693 = vadd.xlane.f32.xlu0 %v5692
  %v5694 = vpop.xlane.xlu0 %5693
  %v5695 = vsel %vm355, %v5537, 0.0
  %5696 = vadd.xlane.f32.xlu0 %v5695
  %v5697 = vpop.xlane.xlu0 %5696
  %v5698 = vsel %vm355, %v5539, 0.0
  %5699 = vadd.xlane.f32.xlu0 %v5698
  %v5700 = vpop.xlane.xlu0 %5699
  %v5701 = vsel %vm355, %v5541, 0.0
  %5702 = vadd.xlane.f32.xlu0 %v5701
  %v5703 = vpop.xlane.xlu0 %5702
  %v5704 = vsel %vm355, %v5543, 0.0
  %5705 = vadd.xlane.f32.xlu0 %v5704
  %v5706 = vpop.xlane.xlu0 %5705
  %v5707 = vsel %vm355, %v5545, 0.0
  %5708 = vadd.xlane.f32.xlu0 %v5707
  %v5709 = vpop.xlane.xlu0 %5708
  %v5710 = vsel %vm355, %v5547, 0.0
  %5711 = vadd.xlane.f32.xlu0 %v5710
  %v5712 = vpop.xlane.xlu0 %5711
  %v5713 = vsel %vm355, %v5549, 0.0
  %5714 = vadd.xlane.f32.xlu0 %v5713
  %v5715 = vpop.xlane.xlu0 %5714
  %v5716 = vsel %vm355, %v5551, 0.0
  %5717 = vadd.xlane.f32.xlu0 %v5716
  %v5718 = vpop.xlane.xlu0 %5717
  %v5719 = vsel %vm355, %v5553, 0.0
  %5720 = vadd.xlane.f32.xlu0 %v5719
  %v5721 = vpop.xlane.xlu0 %5720
  %v5722 = vsel %vm355, %v5555, 0.0
  %5723 = vadd.xlane.f32.xlu0 %v5722
  %v5724 = vpop.xlane.xlu0 %5723
  %v5725 = vsel %vm355, %v5557, 0.0
  %5726 = vadd.xlane.f32.xlu0 %v5725
  %v5727 = vpop.xlane.xlu0 %5726
  %v5728 = vsel %vm355, %v5559, 0.0
  %5729 = vadd.xlane.f32.xlu0 %v5728
  %v5730 = vpop.xlane.xlu0 %5729
  %v5731 = vsel %vm355, %v5561, 0.0
  %5732 = vadd.xlane.f32.xlu0 %v5731
  %v5733 = vpop.xlane.xlu0 %5732
  %v5734 = vsel %vm355, %v5563, 0.0
  %5735 = vadd.xlane.f32.xlu0 %v5734
  %v5736 = vpop.xlane.xlu0 %5735
  %v5737 = vsel %vm355, %v5565, 0.0
  %5738 = vadd.xlane.f32.xlu0 %v5737
  %v5739 = vpop.xlane.xlu0 %5738
  %v5740 = vsel %vm355, %v5567, 0.0
  %5741 = vadd.xlane.f32.xlu0 %v5740
  %v5742 = vpop.xlane.xlu0 %5741
  %v5743 = vsel %vm355, %v5569, 0.0
  %5744 = vadd.xlane.f32.xlu0 %v5743
  %v5745 = vpop.xlane.xlu0 %5744
  %v5746 = vsel %vm355, %v5571, 0.0
  %5747 = vadd.xlane.f32.xlu0 %v5746
  %v5748 = vpop.xlane.xlu0 %5747
  %v5749 = vsel %vm355, %v5573, 0.0
  %5750 = vadd.xlane.f32.xlu0 %v5749
  %v5751 = vpop.xlane.xlu0 %5750
  %v5752 = vsel %vm355, %v5575, 0.0
  %5753 = vadd.xlane.f32.xlu0 %v5752
  %v5754 = vpop.xlane.xlu0 %5753
  %v5755 = vsel %vm355, %v5577, 0.0
  %5756 = vadd.xlane.f32.xlu0 %v5755
  %v5757 = vpop.xlane.xlu0 %5756
  %v5758 = vsel %vm355, %v5579, 0.0
  %5759 = vadd.xlane.f32.xlu0 %v5758
  %v5760 = vpop.xlane.xlu0 %5759
  %v5761 = vsel %vm355, %v5581, 0.0
  %5762 = vadd.xlane.f32.xlu0 %v5761
  %v5763 = vpop.xlane.xlu0 %5762
  %v5764 = vsel %vm355, %v5583, 0.0
  %5765 = vadd.xlane.f32.xlu0 %v5764
  %v5766 = vpop.xlane.xlu0 %5765
  %v5767 = vsel %vm355, %v5585, 0.0
  %5768 = vadd.xlane.f32.xlu0 %v5767
  %v5769 = vpop.xlane.xlu0 %5768
  %v5770 = vsel %vm355, %v5587, 0.0
  %5771 = vadd.xlane.f32.xlu0 %v5770
  %v5772 = vpop.xlane.xlu0 %5771
  %v5773 = vsel %vm355, %v5589, 0.0
  %5774 = vadd.xlane.f32.xlu0 %v5773
  %v5775 = vpop.xlane.xlu0 %5774
  %v5776 = vsel %vm355, %v5591, 0.0
  %5777 = vadd.xlane.f32.xlu0 %v5776
  %v5778 = vpop.xlane.xlu0 %5777
  %v5779 = vsel %vm355, %v5593, 0.0
  %5780 = vadd.xlane.f32.xlu0 %v5779
  %v5781 = vpop.xlane.xlu0 %5780
  %v5782 = vsel %vm355, %v5595, 0.0
  %5783 = vadd.xlane.f32.xlu0 %v5782
  %v5784 = vpop.xlane.xlu0 %5783
  %v5785 = vsel %vm355, %v5597, 0.0
  %5786 = vadd.xlane.f32.xlu0 %v5785
  %v5787 = vpop.xlane.xlu0 %5786
  %v5788 = vsel %vm355, %v5599, 0.0
  %5789 = vadd.xlane.f32.xlu0 %v5788
  %v5790 = vpop.xlane.xlu0 %5789
  %v5791 = vsel %vm355, %v5601, 0.0
  %5792 = vadd.xlane.f32.xlu0 %v5791
  %v5793 = vpop.xlane.xlu0 %5792
  %v5794 = vrcp.pop %v5604
  %v5795 = vmul.f32 %v5475, %v5794
  %v5796 = vrcp.pop %v5607
  %v5797 = vmul.f32 %v5477, %v5796
  %v5798 = vrcp.pop %v5610
  %v5799 = vmul.f32 %v5479, %v5798
  %v5800 = vrcp.pop %v5613
  %v5801 = vmul.f32 %v5481, %v5800
  %v5802 = vrcp.pop %v5616
  %v5803 = vmul.f32 %v5483, %v5802
  %v5804 = vrcp.pop %v5619
  %v5805 = vmul.f32 %v5485, %v5804
  %v5806 = vrcp.pop %v5622
  %v5807 = vmul.f32 %v5487, %v5806
  %v5808 = vrcp.pop %v5625
  %v5809 = vmul.f32 %v5489, %v5808
  %v5810 = vrcp.pop %v5628
  %v5811 = vmul.f32 %v5491, %v5810
  %v5812 = vrcp.pop %v5631
  %v5813 = vmul.f32 %v5493, %v5812
  %v5814 = vrcp.pop %v5634
  %v5815 = vmul.f32 %v5495, %v5814
  %v5816 = vrcp.pop %v5637
  %v5817 = vmul.f32 %v5497, %v5816
  %v5818 = vrcp.pop %v5640
  %v5819 = vmul.f32 %v5499, %v5818
  %v5820 = vrcp.pop %v5643
  %v5821 = vmul.f32 %v5501, %v5820
  %v5822 = vrcp.pop %v5646
  %v5823 = vmul.f32 %v5503, %v5822
  %v5824 = vrcp.pop %v5649
  %v5825 = vmul.f32 %v5505, %v5824
  %v5826 = vrcp.pop %v5652
  %v5827 = vmul.f32 %v5507, %v5826
  %v5828 = vrcp.pop %v5655
  %v5829 = vmul.f32 %v5509, %v5828
  %v5830 = vrcp.pop %v5658
  %v5831 = vmul.f32 %v5511, %v5830
  %v5832 = vrcp.pop %v5661
  %v5833 = vmul.f32 %v5513, %v5832
  %v5834 = vrcp.pop %v5664
  %v5835 = vmul.f32 %v5515, %v5834
  %v5836 = vrcp.pop %v5667
  %v5837 = vmul.f32 %v5517, %v5836
  %v5838 = vrcp.pop %v5670
  %v5839 = vmul.f32 %v5519, %v5838
  %v5840 = vrcp.pop %v5673
  %v5841 = vmul.f32 %v5521, %v5840
  %v5842 = vrcp.pop %v5676
  %v5843 = vmul.f32 %v5523, %v5842
  %v5844 = vrcp.pop %v5679
  %v5845 = vmul.f32 %v5525, %v5844
  %v5846 = vrcp.pop %v5682
  %v5847 = vmul.f32 %v5527, %v5846
  %v5848 = vrcp.pop %v5685
  %v5849 = vmul.f32 %v5529, %v5848
  %v5850 = vrcp.pop %v5688
  %v5851 = vmul.f32 %v5531, %v5850
  %v5852 = vrcp.pop %v5691
  %v5853 = vmul.f32 %v5533, %v5852
  %v5854 = vrcp.pop %v5694
  %v5855 = vmul.f32 %v5535, %v5854
  %v5856 = vrcp.pop %v5697
  %v5857 = vmul.f32 %v5537, %v5856
  %v5858 = vrcp.pop %v5700
  %v5859 = vmul.f32 %v5539, %v5858
  %v5860 = vrcp.pop %v5703
  %v5861 = vmul.f32 %v5541, %v5860
  %v5862 = vrcp.pop %v5706
  %v5863 = vmul.f32 %v5543, %v5862
  %v5864 = vrcp.pop %v5709
  %v5865 = vmul.f32 %v5545, %v5864
  %v5866 = vrcp.pop %v5712
  %v5867 = vmul.f32 %v5547, %v5866
  %v5868 = vrcp.pop %v5715
  %v5869 = vmul.f32 %v5549, %v5868
  %v5870 = vrcp.pop %v5718
  %v5871 = vmul.f32 %v5551, %v5870
  %v5872 = vrcp.pop %v5721
  %v5873 = vmul.f32 %v5553, %v5872
  %v5874 = vrcp.pop %v5724
  %v5875 = vmul.f32 %v5555, %v5874
  %v5876 = vrcp.pop %v5727
  %v5877 = vmul.f32 %v5557, %v5876
  %v5878 = vrcp.pop %v5730
  %v5879 = vmul.f32 %v5559, %v5878
  %v5880 = vrcp.pop %v5733
  %v5881 = vmul.f32 %v5561, %v5880
  %v5882 = vrcp.pop %v5736
  %v5883 = vmul.f32 %v5563, %v5882
  %v5884 = vrcp.pop %v5739
  %v5885 = vmul.f32 %v5565, %v5884
  %v5886 = vrcp.pop %v5742
  %v5887 = vmul.f32 %v5567, %v5886
  %v5888 = vrcp.pop %v5745
  %v5889 = vmul.f32 %v5569, %v5888
  %v5890 = vrcp.pop %v5748
  %v5891 = vmul.f32 %v5571, %v5890
  %v5892 = vrcp.pop %v5751
  %v5893 = vmul.f32 %v5573, %v5892
  %v5894 = vrcp.pop %v5754
  %v5895 = vmul.f32 %v5575, %v5894
  %v5896 = vrcp.pop %v5757
  %v5897 = vmul.f32 %v5577, %v5896
  %v5898 = vrcp.pop %v5760
  %v5899 = vmul.f32 %v5579, %v5898
  %v5900 = vrcp.pop %v5763
  %v5901 = vmul.f32 %v5581, %v5900
  %v5902 = vrcp.pop %v5766
  %v5903 = vmul.f32 %v5583, %v5902
  %v5904 = vrcp.pop %v5769
  %v5905 = vmul.f32 %v5585, %v5904
  %v5906 = vrcp.pop %v5772
  %v5907 = vmul.f32 %v5587, %v5906
  %v5908 = vrcp.pop %v5775
  %v5909 = vmul.f32 %v5589, %v5908
  %v5910 = vrcp.pop %v5778
  %v5911 = vmul.f32 %v5591, %v5910
  %v5912 = vrcp.pop %v5781
  %v5913 = vmul.f32 %v5593, %v5912
  %v5914 = vrcp.pop %v5784
  %v5915 = vmul.f32 %v5595, %v5914
  %v5916 = vrcp.pop %v5787
  %v5917 = vmul.f32 %v5597, %v5916
  %v5918 = vrcp.pop %v5790
  %v5919 = vmul.f32 %v5599, %v5918
  %v5920 = vrcp.pop %v5793
  %v5921 = vmul.f32 %v5601, %v5920
  %5922 = vrot.lane.b32.xlu0 %v163, 64
  %v5923 = vpop.permute.xlu0 %5922
  %v5926 = vsel %vm355, %v5795, 0
  %5928 = vmatprep.subr.mxu0 0.0
  %5929 = vmatpush1.msra.mxu0 0.0
  %5930 = vmatprep.subr.mxu0 0.0
  %5931 = vmatpush1.msra.mxu0 0.0
  %5932 = vmatprep.subr.mxu0 0.0
  %5933 = vmatpush1.msra.mxu0 0.0
  %5934 = vmatprep.subr.mxu0 0.0
  %5935 = vmatpush1.msra.mxu0 0.0
  %5936 = vmatprep.subr.mxu0 0.0
  %5937 = vmatpush1.msra.mxu0 0.0
  %5938 = vmatprep.subr.mxu0 0.0
  %5939 = vmatpush1.msra.mxu0 0.0
  %5940 = vmatprep.subr.mxu0 0.0
  %5941 = vmatpush1.msra.mxu0 0.0
  %5942 = vmatprep.subr.mxu0 0.0
  %5943 = vmatpush1.msra.mxu0 0.0
  %5944 = vmatprep.subr.mxu0 0.0
  %5945 = vmatpush1.msra.mxu0 0.0
  %5946 = vmatprep.subr.mxu0 0.0
  %5947 = vmatpush1.msra.mxu0 0.0
  %5948 = vmatprep.subr.mxu0 0.0
  %5949 = vmatpush1.msra.mxu0 0.0
  %5950 = vmatprep.subr.mxu0 0.0
  %5951 = vmatpush1.msra.mxu0 0.0
  %5952 = vmatprep.subr.mxu0 0.0
  %5953 = vmatpush1.msra.mxu0 0.0
  %5954 = vmatprep.subr.mxu0 0.0
  %5955 = vmatpush1.msra.mxu0 0.0
  %5956 = vmatprep.subr.mxu0 0.0
  %5957 = vmatpush1.msra.mxu0 0.0
  %5958 = vmatprep.subr.mxu0 0.0
  %5959 = vmatpush1.msra.mxu0 %v5923
  %5960 = vmatprep.subr.mxu0 0.0
  %5961 = vmatpush2.msra.mxu0 0.0
  %5962 = vmatprep.subr.mxu0 0.0
  %5963 = vmatpush2.msra.mxu0 0.0
  %5964 = vmatprep.subr.mxu0 0.0
  %5965 = vmatpush2.msra.mxu0 0.0
  %5966 = vmatprep.subr.mxu0 0.0
  %5967 = vmatpush2.msra.mxu0 0.0
  %5968 = vmatprep.subr.mxu0 0.0
  %5969 = vmatpush2.msra.mxu0 0.0
  %5970 = vmatprep.subr.mxu0 0.0
  %5971 = vmatpush2.msra.mxu0 0.0
  %5972 = vmatprep.subr.mxu0 0.0
  %5973 = vmatpush2.msra.mxu0 0.0
  %5974 = vmatprep.subr.mxu0 0.0
  %5975 = vmatpush2.msra.mxu0 0.0
  %5976 = vmatprep.subr.mxu0 0.0
  %5977 = vmatpush2.msra.mxu0 0.0
  %5978 = vmatprep.subr.mxu0 0.0
  %5979 = vmatpush2.msra.mxu0 0.0
  %5980 = vmatprep.subr.mxu0 0.0
  %5981 = vmatpush2.msra.mxu0 0.0
  %5982 = vmatprep.subr.mxu0 0.0
  %5983 = vmatpush2.msra.mxu0 0.0
  %5984 = vmatprep.subr.mxu0 0.0
  %5985 = vmatpush2.msra.mxu0 0.0
  %5986 = vmatprep.subr.mxu0 0.0
  %5987 = vmatpush2.msra.mxu0 0.0
  %5988 = vmatprep.subr.mxu0 0.0
  %5989 = vmatpush2.msra.mxu0 0.0
  %5990 = vmatprep.subr.mxu0 0.0
  %5991 = vmatpush2.msra.mxu0 0.0
  %5992 = vmatprep.mubr.f32.mxu0 0.0
  %5993 = vmatmul.mubr.f32.gmra.mxu0 %v5926
  %v5994 = vpop.f32.mrf.mxu0
  %v5995 = vadd.f32 0.0, %v5994
  %v5996 = vpop.f32.mrf.mxu0
  %5997 = vdwg.mxu0
  %5998 = vrot.lane.b32.xlu0 %v168, 64
  %v5999 = vpop.permute.xlu0 %5998
  %v6002 = vsel %vm355, %v5797, 0
  %6004 = vmatprep.subr.mxu0 0.0
  %6005 = vmatpush1.msra.mxu0 0.0
  %6006 = vmatprep.subr.mxu0 0.0
  %6007 = vmatpush1.msra.mxu0 0.0
  %6008 = vmatprep.subr.mxu0 0.0
  %6009 = vmatpush1.msra.mxu0 0.0
  %6010 = vmatprep.subr.mxu0 0.0
  %6011 = vmatpush1.msra.mxu0 0.0
  %6012 = vmatprep.subr.mxu0 0.0
  %6013 = vmatpush1.msra.mxu0 0.0
  %6014 = vmatprep.subr.mxu0 0.0
  %6015 = vmatpush1.msra.mxu0 0.0
  %6016 = vmatprep.subr.mxu0 0.0
  %6017 = vmatpush1.msra.mxu0 0.0
  %6018 = vmatprep.subr.mxu0 0.0
  %6019 = vmatpush1.msra.mxu0 0.0
  %6020 = vmatprep.subr.mxu0 0.0
  %6021 = vmatpush1.msra.mxu0 0.0
  %6022 = vmatprep.subr.mxu0 0.0
  %6023 = vmatpush1.msra.mxu0 0.0
  %6024 = vmatprep.subr.mxu0 0.0
  %6025 = vmatpush1.msra.mxu0 0.0
  %6026 = vmatprep.subr.mxu0 0.0
  %6027 = vmatpush1.msra.mxu0 0.0
  %6028 = vmatprep.subr.mxu0 0.0
  %6029 = vmatpush1.msra.mxu0 0.0
  %6030 = vmatprep.subr.mxu0 0.0
  %6031 = vmatpush1.msra.mxu0 0.0
  %6032 = vmatprep.subr.mxu0 0.0
  %6033 = vmatpush1.msra.mxu0 0.0
  %6034 = vmatprep.subr.mxu0 0.0
  %6035 = vmatpush1.msra.mxu0 %v5999
  %6036 = vmatprep.subr.mxu0 0.0
  %6037 = vmatpush2.msra.mxu0 0.0
  %6038 = vmatprep.subr.mxu0 0.0
  %6039 = vmatpush2.msra.mxu0 0.0
  %6040 = vmatprep.subr.mxu0 0.0
  %6041 = vmatpush2.msra.mxu0 0.0
  %6042 = vmatprep.subr.mxu0 0.0
  %6043 = vmatpush2.msra.mxu0 0.0
  %6044 = vmatprep.subr.mxu0 0.0
  %6045 = vmatpush2.msra.mxu0 0.0
  %6046 = vmatprep.subr.mxu0 0.0
  %6047 = vmatpush2.msra.mxu0 0.0
  %6048 = vmatprep.subr.mxu0 0.0
  %6049 = vmatpush2.msra.mxu0 0.0
  %6050 = vmatprep.subr.mxu0 0.0
  %6051 = vmatpush2.msra.mxu0 0.0
  %6052 = vmatprep.subr.mxu0 0.0
  %6053 = vmatpush2.msra.mxu0 0.0
  %6054 = vmatprep.subr.mxu0 0.0
  %6055 = vmatpush2.msra.mxu0 0.0
  %6056 = vmatprep.subr.mxu0 0.0
  %6057 = vmatpush2.msra.mxu0 0.0
  %6058 = vmatprep.subr.mxu0 0.0
  %6059 = vmatpush2.msra.mxu0 0.0
  %6060 = vmatprep.subr.mxu0 0.0
  %6061 = vmatpush2.msra.mxu0 0.0
  %6062 = vmatprep.subr.mxu0 0.0
  %6063 = vmatpush2.msra.mxu0 0.0
  %6064 = vmatprep.subr.mxu0 0.0
  %6065 = vmatpush2.msra.mxu0 0.0
  %6066 = vmatprep.subr.mxu0 0.0
  %6067 = vmatpush2.msra.mxu0 0.0
  %6068 = vmatprep.mubr.f32.mxu0 0.0
  %6069 = vmatmul.mubr.f32.gmra.mxu0 %v6002
  %v6070 = vpop.f32.mrf.mxu0
  %v6071 = vadd.f32 0.0, %v6070
  %v6072 = vpop.f32.mrf.mxu0
  %6073 = vdwg.mxu0
  %6074 = vrot.lane.b32.xlu0 %v173, 64
  %v6075 = vpop.permute.xlu0 %6074
  %v6078 = vsel %vm355, %v5799, 0
  %6080 = vmatprep.subr.mxu0 0.0
  %6081 = vmatpush1.msra.mxu0 0.0
  %6082 = vmatprep.subr.mxu0 0.0
  %6083 = vmatpush1.msra.mxu0 0.0
  %6084 = vmatprep.subr.mxu0 0.0
  %6085 = vmatpush1.msra.mxu0 0.0
  %6086 = vmatprep.subr.mxu0 0.0
  %6087 = vmatpush1.msra.mxu0 0.0
  %6088 = vmatprep.subr.mxu0 0.0
  %6089 = vmatpush1.msra.mxu0 0.0
  %6090 = vmatprep.subr.mxu0 0.0
  %6091 = vmatpush1.msra.mxu0 0.0
  %6092 = vmatprep.subr.mxu0 0.0
  %6093 = vmatpush1.msra.mxu0 0.0
  %6094 = vmatprep.subr.mxu0 0.0
  %6095 = vmatpush1.msra.mxu0 0.0
  %6096 = vmatprep.subr.mxu0 0.0
  %6097 = vmatpush1.msra.mxu0 0.0
  %6098 = vmatprep.subr.mxu0 0.0
  %6099 = vmatpush1.msra.mxu0 0.0
  %6100 = vmatprep.subr.mxu0 0.0
  %6101 = vmatpush1.msra.mxu0 0.0
  %6102 = vmatprep.subr.mxu0 0.0
  %6103 = vmatpush1.msra.mxu0 0.0
  %6104 = vmatprep.subr.mxu0 0.0
  %6105 = vmatpush1.msra.mxu0 0.0
  %6106 = vmatprep.subr.mxu0 0.0
  %6107 = vmatpush1.msra.mxu0 0.0
  %6108 = vmatprep.subr.mxu0 0.0
  %6109 = vmatpush1.msra.mxu0 0.0
  %6110 = vmatprep.subr.mxu0 0.0
  %6111 = vmatpush1.msra.mxu0 %v6075
  %6112 = vmatprep.subr.mxu0 0.0
  %6113 = vmatpush2.msra.mxu0 0.0
  %6114 = vmatprep.subr.mxu0 0.0
  %6115 = vmatpush2.msra.mxu0 0.0
  %6116 = vmatprep.subr.mxu0 0.0
  %6117 = vmatpush2.msra.mxu0 0.0
  %6118 = vmatprep.subr.mxu0 0.0
  %6119 = vmatpush2.msra.mxu0 0.0
  %6120 = vmatprep.subr.mxu0 0.0
  %6121 = vmatpush2.msra.mxu0 0.0
  %6122 = vmatprep.subr.mxu0 0.0
  %6123 = vmatpush2.msra.mxu0 0.0
  %6124 = vmatprep.subr.mxu0 0.0
  %6125 = vmatpush2.msra.mxu0 0.0
  %6126 = vmatprep.subr.mxu0 0.0
  %6127 = vmatpush2.msra.mxu0 0.0
  %6128 = vmatprep.subr.mxu0 0.0
  %6129 = vmatpush2.msra.mxu0 0.0
  %6130 = vmatprep.subr.mxu0 0.0
  %6131 = vmatpush2.msra.mxu0 0.0
  %6132 = vmatprep.subr.mxu0 0.0
  %6133 = vmatpush2.msra.mxu0 0.0
  %6134 = vmatprep.subr.mxu0 0.0
  %6135 = vmatpush2.msra.mxu0 0.0
  %6136 = vmatprep.subr.mxu0 0.0
  %6137 = vmatpush2.msra.mxu0 0.0
  %6138 = vmatprep.subr.mxu0 0.0
  %6139 = vmatpush2.msra.mxu0 0.0
  %6140 = vmatprep.subr.mxu0 0.0
  %6141 = vmatpush2.msra.mxu0 0.0
  %6142 = vmatprep.subr.mxu0 0.0
  %6143 = vmatpush2.msra.mxu0 0.0
  %6144 = vmatprep.mubr.f32.mxu0 0.0
  %6145 = vmatmul.mubr.f32.gmra.mxu0 %v6078
  %v6146 = vpop.f32.mrf.mxu0
  %v6147 = vadd.f32 0.0, %v6146
  %v6148 = vpop.f32.mrf.mxu0
  %6149 = vdwg.mxu0
  %6150 = vrot.lane.b32.xlu0 %v178, 64
  %v6151 = vpop.permute.xlu0 %6150
  %v6154 = vsel %vm355, %v5801, 0
  %6156 = vmatprep.subr.mxu0 0.0
  %6157 = vmatpush1.msra.mxu0 0.0
  %6158 = vmatprep.subr.mxu0 0.0
  %6159 = vmatpush1.msra.mxu0 0.0
  %6160 = vmatprep.subr.mxu0 0.0
  %6161 = vmatpush1.msra.mxu0 0.0
  %6162 = vmatprep.subr.mxu0 0.0
  %6163 = vmatpush1.msra.mxu0 0.0
  %6164 = vmatprep.subr.mxu0 0.0
  %6165 = vmatpush1.msra.mxu0 0.0
  %6166 = vmatprep.subr.mxu0 0.0
  %6167 = vmatpush1.msra.mxu0 0.0
  %6168 = vmatprep.subr.mxu0 0.0
  %6169 = vmatpush1.msra.mxu0 0.0
  %6170 = vmatprep.subr.mxu0 0.0
  %6171 = vmatpush1.msra.mxu0 0.0
  %6172 = vmatprep.subr.mxu0 0.0
  %6173 = vmatpush1.msra.mxu0 0.0
  %6174 = vmatprep.subr.mxu0 0.0
  %6175 = vmatpush1.msra.mxu0 0.0
  %6176 = vmatprep.subr.mxu0 0.0
  %6177 = vmatpush1.msra.mxu0 0.0
  %6178 = vmatprep.subr.mxu0 0.0
  %6179 = vmatpush1.msra.mxu0 0.0
  %6180 = vmatprep.subr.mxu0 0.0
  %6181 = vmatpush1.msra.mxu0 0.0
  %6182 = vmatprep.subr.mxu0 0.0
  %6183 = vmatpush1.msra.mxu0 0.0
  %6184 = vmatprep.subr.mxu0 0.0
  %6185 = vmatpush1.msra.mxu0 0.0
  %6186 = vmatprep.subr.mxu0 0.0
  %6187 = vmatpush1.msra.mxu0 %v6151
  %6188 = vmatprep.subr.mxu0 0.0
  %6189 = vmatpush2.msra.mxu0 0.0
  %6190 = vmatprep.subr.mxu0 0.0
  %6191 = vmatpush2.msra.mxu0 0.0
  %6192 = vmatprep.subr.mxu0 0.0
  %6193 = vmatpush2.msra.mxu0 0.0
  %6194 = vmatprep.subr.mxu0 0.0
  %6195 = vmatpush2.msra.mxu0 0.0
  %6196 = vmatprep.subr.mxu0 0.0
  %6197 = vmatpush2.msra.mxu0 0.0
  %6198 = vmatprep.subr.mxu0 0.0
  %6199 = vmatpush2.msra.mxu0 0.0
  %6200 = vmatprep.subr.mxu0 0.0
  %6201 = vmatpush2.msra.mxu0 0.0
  %6202 = vmatprep.subr.mxu0 0.0
  %6203 = vmatpush2.msra.mxu0 0.0
  %6204 = vmatprep.subr.mxu0 0.0
  %6205 = vmatpush2.msra.mxu0 0.0
  %6206 = vmatprep.subr.mxu0 0.0
  %6207 = vmatpush2.msra.mxu0 0.0
  %6208 = vmatprep.subr.mxu0 0.0
  %6209 = vmatpush2.msra.mxu0 0.0
  %6210 = vmatprep.subr.mxu0 0.0
  %6211 = vmatpush2.msra.mxu0 0.0
  %6212 = vmatprep.subr.mxu0 0.0
  %6213 = vmatpush2.msra.mxu0 0.0
  %6214 = vmatprep.subr.mxu0 0.0
  %6215 = vmatpush2.msra.mxu0 0.0
  %6216 = vmatprep.subr.mxu0 0.0
  %6217 = vmatpush2.msra.mxu0 0.0
  %6218 = vmatprep.subr.mxu0 0.0
  %6219 = vmatpush2.msra.mxu0 0.0
  %6220 = vmatprep.mubr.f32.mxu0 0.0
  %6221 = vmatmul.mubr.f32.gmra.mxu0 %v6154
  %v6222 = vpop.f32.mrf.mxu0
  %v6223 = vadd.f32 0.0, %v6222
  %v6224 = vpop.f32.mrf.mxu0
  %6225 = vdwg.mxu0
  %6226 = vrot.lane.b32.xlu0 %v183, 64
  %v6227 = vpop.permute.xlu0 %6226
  %v6230 = vsel %vm355, %v5803, 0
  %6232 = vmatprep.subr.mxu0 0.0
  %6233 = vmatpush1.msra.mxu0 0.0
  %6234 = vmatprep.subr.mxu0 0.0
  %6235 = vmatpush1.msra.mxu0 0.0
  %6236 = vmatprep.subr.mxu0 0.0
  %6237 = vmatpush1.msra.mxu0 0.0
  %6238 = vmatprep.subr.mxu0 0.0
  %6239 = vmatpush1.msra.mxu0 0.0
  %6240 = vmatprep.subr.mxu0 0.0
  %6241 = vmatpush1.msra.mxu0 0.0
  %6242 = vmatprep.subr.mxu0 0.0
  %6243 = vmatpush1.msra.mxu0 0.0
  %6244 = vmatprep.subr.mxu0 0.0
  %6245 = vmatpush1.msra.mxu0 0.0
  %6246 = vmatprep.subr.mxu0 0.0
  %6247 = vmatpush1.msra.mxu0 0.0
  %6248 = vmatprep.subr.mxu0 0.0
  %6249 = vmatpush1.msra.mxu0 0.0
  %6250 = vmatprep.subr.mxu0 0.0
  %6251 = vmatpush1.msra.mxu0 0.0
  %6252 = vmatprep.subr.mxu0 0.0
  %6253 = vmatpush1.msra.mxu0 0.0
  %6254 = vmatprep.subr.mxu0 0.0
  %6255 = vmatpush1.msra.mxu0 0.0
  %6256 = vmatprep.subr.mxu0 0.0
  %6257 = vmatpush1.msra.mxu0 0.0
  %6258 = vmatprep.subr.mxu0 0.0
  %6259 = vmatpush1.msra.mxu0 0.0
  %6260 = vmatprep.subr.mxu0 0.0
  %6261 = vmatpush1.msra.mxu0 0.0
  %6262 = vmatprep.subr.mxu0 0.0
  %6263 = vmatpush1.msra.mxu0 %v6227
  %6264 = vmatprep.subr.mxu0 0.0
  %6265 = vmatpush2.msra.mxu0 0.0
  %6266 = vmatprep.subr.mxu0 0.0
  %6267 = vmatpush2.msra.mxu0 0.0
  %6268 = vmatprep.subr.mxu0 0.0
  %6269 = vmatpush2.msra.mxu0 0.0
  %6270 = vmatprep.subr.mxu0 0.0
  %6271 = vmatpush2.msra.mxu0 0.0
  %6272 = vmatprep.subr.mxu0 0.0
  %6273 = vmatpush2.msra.mxu0 0.0
  %6274 = vmatprep.subr.mxu0 0.0
  %6275 = vmatpush2.msra.mxu0 0.0
  %6276 = vmatprep.subr.mxu0 0.0
  %6277 = vmatpush2.msra.mxu0 0.0
  %6278 = vmatprep.subr.mxu0 0.0
  %6279 = vmatpush2.msra.mxu0 0.0
  %6280 = vmatprep.subr.mxu0 0.0
  %6281 = vmatpush2.msra.mxu0 0.0
  %6282 = vmatprep.subr.mxu0 0.0
  %6283 = vmatpush2.msra.mxu0 0.0
  %6284 = vmatprep.subr.mxu0 0.0
  %6285 = vmatpush2.msra.mxu0 0.0
  %6286 = vmatprep.subr.mxu0 0.0
  %6287 = vmatpush2.msra.mxu0 0.0
  %6288 = vmatprep.subr.mxu0 0.0
  %6289 = vmatpush2.msra.mxu0 0.0
  %6290 = vmatprep.subr.mxu0 0.0
  %6291 = vmatpush2.msra.mxu0 0.0
  %6292 = vmatprep.subr.mxu0 0.0
  %6293 = vmatpush2.msra.mxu0 0.0
  %6294 = vmatprep.subr.mxu0 0.0
  %6295 = vmatpush2.msra.mxu0 0.0
  %6296 = vmatprep.mubr.f32.mxu0 0.0
  %6297 = vmatmul.mubr.f32.gmra.mxu0 %v6230
  %v6298 = vpop.f32.mrf.mxu0
  %v6299 = vadd.f32 0.0, %v6298
  %v6300 = vpop.f32.mrf.mxu0
  %6301 = vdwg.mxu0
  %6302 = vrot.lane.b32.xlu0 %v188, 64
  %v6303 = vpop.permute.xlu0 %6302
  %v6306 = vsel %vm355, %v5805, 0
  %6308 = vmatprep.subr.mxu0 0.0
  %6309 = vmatpush1.msra.mxu0 0.0
  %6310 = vmatprep.subr.mxu0 0.0
  %6311 = vmatpush1.msra.mxu0 0.0
  %6312 = vmatprep.subr.mxu0 0.0
  %6313 = vmatpush1.msra.mxu0 0.0
  %6314 = vmatprep.subr.mxu0 0.0
  %6315 = vmatpush1.msra.mxu0 0.0
  %6316 = vmatprep.subr.mxu0 0.0
  %6317 = vmatpush1.msra.mxu0 0.0
  %6318 = vmatprep.subr.mxu0 0.0
  %6319 = vmatpush1.msra.mxu0 0.0
  %6320 = vmatprep.subr.mxu0 0.0
  %6321 = vmatpush1.msra.mxu0 0.0
  %6322 = vmatprep.subr.mxu0 0.0
  %6323 = vmatpush1.msra.mxu0 0.0
  %6324 = vmatprep.subr.mxu0 0.0
  %6325 = vmatpush1.msra.mxu0 0.0
  %6326 = vmatprep.subr.mxu0 0.0
  %6327 = vmatpush1.msra.mxu0 0.0
  %6328 = vmatprep.subr.mxu0 0.0
  %6329 = vmatpush1.msra.mxu0 0.0
  %6330 = vmatprep.subr.mxu0 0.0
  %6331 = vmatpush1.msra.mxu0 0.0
  %6332 = vmatprep.subr.mxu0 0.0
  %6333 = vmatpush1.msra.mxu0 0.0
  %6334 = vmatprep.subr.mxu0 0.0
  %6335 = vmatpush1.msra.mxu0 0.0
  %6336 = vmatprep.subr.mxu0 0.0
  %6337 = vmatpush1.msra.mxu0 0.0
  %6338 = vmatprep.subr.mxu0 0.0
  %6339 = vmatpush1.msra.mxu0 %v6303
  %6340 = vmatprep.subr.mxu0 0.0
  %6341 = vmatpush2.msra.mxu0 0.0
  %6342 = vmatprep.subr.mxu0 0.0
  %6343 = vmatpush2.msra.mxu0 0.0
  %6344 = vmatprep.subr.mxu0 0.0
  %6345 = vmatpush2.msra.mxu0 0.0
  %6346 = vmatprep.subr.mxu0 0.0
  %6347 = vmatpush2.msra.mxu0 0.0
  %6348 = vmatprep.subr.mxu0 0.0
  %6349 = vmatpush2.msra.mxu0 0.0
  %6350 = vmatprep.subr.mxu0 0.0
  %6351 = vmatpush2.msra.mxu0 0.0
  %6352 = vmatprep.subr.mxu0 0.0
  %6353 = vmatpush2.msra.mxu0 0.0
  %6354 = vmatprep.subr.mxu0 0.0
  %6355 = vmatpush2.msra.mxu0 0.0
  %6356 = vmatprep.subr.mxu0 0.0
  %6357 = vmatpush2.msra.mxu0 0.0
  %6358 = vmatprep.subr.mxu0 0.0
  %6359 = vmatpush2.msra.mxu0 0.0
  %6360 = vmatprep.subr.mxu0 0.0
  %6361 = vmatpush2.msra.mxu0 0.0
  %6362 = vmatprep.subr.mxu0 0.0
  %6363 = vmatpush2.msra.mxu0 0.0
  %6364 = vmatprep.subr.mxu0 0.0
  %6365 = vmatpush2.msra.mxu0 0.0
  %6366 = vmatprep.subr.mxu0 0.0
  %6367 = vmatpush2.msra.mxu0 0.0
  %6368 = vmatprep.subr.mxu0 0.0
  %6369 = vmatpush2.msra.mxu0 0.0
  %6370 = vmatprep.subr.mxu0 0.0
  %6371 = vmatpush2.msra.mxu0 0.0
  %6372 = vmatprep.mubr.f32.mxu0 0.0
  %6373 = vmatmul.mubr.f32.gmra.mxu0 %v6306
  %v6374 = vpop.f32.mrf.mxu0
  %v6375 = vadd.f32 0.0, %v6374
  %v6376 = vpop.f32.mrf.mxu0
  %6377 = vdwg.mxu0
  %6378 = vrot.lane.b32.xlu0 %v193, 64
  %v6379 = vpop.permute.xlu0 %6378
  %v6382 = vsel %vm355, %v5807, 0
  %6384 = vmatprep.subr.mxu0 0.0
  %6385 = vmatpush1.msra.mxu0 0.0
  %6386 = vmatprep.subr.mxu0 0.0
  %6387 = vmatpush1.msra.mxu0 0.0
  %6388 = vmatprep.subr.mxu0 0.0
  %6389 = vmatpush1.msra.mxu0 0.0
  %6390 = vmatprep.subr.mxu0 0.0
  %6391 = vmatpush1.msra.mxu0 0.0
  %6392 = vmatprep.subr.mxu0 0.0
  %6393 = vmatpush1.msra.mxu0 0.0
  %6394 = vmatprep.subr.mxu0 0.0
  %6395 = vmatpush1.msra.mxu0 0.0
  %6396 = vmatprep.subr.mxu0 0.0
  %6397 = vmatpush1.msra.mxu0 0.0
  %6398 = vmatprep.subr.mxu0 0.0
  %6399 = vmatpush1.msra.mxu0 0.0
  %6400 = vmatprep.subr.mxu0 0.0
  %6401 = vmatpush1.msra.mxu0 0.0
  %6402 = vmatprep.subr.mxu0 0.0
  %6403 = vmatpush1.msra.mxu0 0.0
  %6404 = vmatprep.subr.mxu0 0.0
  %6405 = vmatpush1.msra.mxu0 0.0
  %6406 = vmatprep.subr.mxu0 0.0
  %6407 = vmatpush1.msra.mxu0 0.0
  %6408 = vmatprep.subr.mxu0 0.0
  %6409 = vmatpush1.msra.mxu0 0.0
  %6410 = vmatprep.subr.mxu0 0.0
  %6411 = vmatpush1.msra.mxu0 0.0
  %6412 = vmatprep.subr.mxu0 0.0
  %6413 = vmatpush1.msra.mxu0 0.0
  %6414 = vmatprep.subr.mxu0 0.0
  %6415 = vmatpush1.msra.mxu0 %v6379
  %6416 = vmatprep.subr.mxu0 0.0
  %6417 = vmatpush2.msra.mxu0 0.0
  %6418 = vmatprep.subr.mxu0 0.0
  %6419 = vmatpush2.msra.mxu0 0.0
  %6420 = vmatprep.subr.mxu0 0.0
  %6421 = vmatpush2.msra.mxu0 0.0
  %6422 = vmatprep.subr.mxu0 0.0
  %6423 = vmatpush2.msra.mxu0 0.0
  %6424 = vmatprep.subr.mxu0 0.0
  %6425 = vmatpush2.msra.mxu0 0.0
  %6426 = vmatprep.subr.mxu0 0.0
  %6427 = vmatpush2.msra.mxu0 0.0
  %6428 = vmatprep.subr.mxu0 0.0
  %6429 = vmatpush2.msra.mxu0 0.0
  %6430 = vmatprep.subr.mxu0 0.0
  %6431 = vmatpush2.msra.mxu0 0.0
  %6432 = vmatprep.subr.mxu0 0.0
  %6433 = vmatpush2.msra.mxu0 0.0
  %6434 = vmatprep.subr.mxu0 0.0
  %6435 = vmatpush2.msra.mxu0 0.0
  %6436 = vmatprep.subr.mxu0 0.0
  %6437 = vmatpush2.msra.mxu0 0.0
  %6438 = vmatprep.subr.mxu0 0.0
  %6439 = vmatpush2.msra.mxu0 0.0
  %6440 = vmatprep.subr.mxu0 0.0
  %6441 = vmatpush2.msra.mxu0 0.0
  %6442 = vmatprep.subr.mxu0 0.0
  %6443 = vmatpush2.msra.mxu0 0.0
  %6444 = vmatprep.subr.mxu0 0.0
  %6445 = vmatpush2.msra.mxu0 0.0
  %6446 = vmatprep.subr.mxu0 0.0
  %6447 = vmatpush2.msra.mxu0 0.0
  %6448 = vmatprep.mubr.f32.mxu0 0.0
  %6449 = vmatmul.mubr.f32.gmra.mxu0 %v6382
  %v6450 = vpop.f32.mrf.mxu0
  %v6451 = vadd.f32 0.0, %v6450
  %v6452 = vpop.f32.mrf.mxu0
  %6453 = vdwg.mxu0
  %6454 = vrot.lane.b32.xlu0 %v198, 64
  %v6455 = vpop.permute.xlu0 %6454
  %v6458 = vsel %vm355, %v5809, 0
  %6460 = vmatprep.subr.mxu0 0.0
  %6461 = vmatpush1.msra.mxu0 0.0
  %6462 = vmatprep.subr.mxu0 0.0
  %6463 = vmatpush1.msra.mxu0 0.0
  %6464 = vmatprep.subr.mxu0 0.0
  %6465 = vmatpush1.msra.mxu0 0.0
  %6466 = vmatprep.subr.mxu0 0.0
  %6467 = vmatpush1.msra.mxu0 0.0
  %6468 = vmatprep.subr.mxu0 0.0
  %6469 = vmatpush1.msra.mxu0 0.0
  %6470 = vmatprep.subr.mxu0 0.0
  %6471 = vmatpush1.msra.mxu0 0.0
  %6472 = vmatprep.subr.mxu0 0.0
  %6473 = vmatpush1.msra.mxu0 0.0
  %6474 = vmatprep.subr.mxu0 0.0
  %6475 = vmatpush1.msra.mxu0 0.0
  %6476 = vmatprep.subr.mxu0 0.0
  %6477 = vmatpush1.msra.mxu0 0.0
  %6478 = vmatprep.subr.mxu0 0.0
  %6479 = vmatpush1.msra.mxu0 0.0
  %6480 = vmatprep.subr.mxu0 0.0
  %6481 = vmatpush1.msra.mxu0 0.0
  %6482 = vmatprep.subr.mxu0 0.0
  %6483 = vmatpush1.msra.mxu0 0.0
  %6484 = vmatprep.subr.mxu0 0.0
  %6485 = vmatpush1.msra.mxu0 0.0
  %6486 = vmatprep.subr.mxu0 0.0
  %6487 = vmatpush1.msra.mxu0 0.0
  %6488 = vmatprep.subr.mxu0 0.0
  %6489 = vmatpush1.msra.mxu0 0.0
  %6490 = vmatprep.subr.mxu0 0.0
  %6491 = vmatpush1.msra.mxu0 %v6455
  %6492 = vmatprep.subr.mxu0 0.0
  %6493 = vmatpush2.msra.mxu0 0.0
  %6494 = vmatprep.subr.mxu0 0.0
  %6495 = vmatpush2.msra.mxu0 0.0
  %6496 = vmatprep.subr.mxu0 0.0
  %6497 = vmatpush2.msra.mxu0 0.0
  %6498 = vmatprep.subr.mxu0 0.0
  %6499 = vmatpush2.msra.mxu0 0.0
  %6500 = vmatprep.subr.mxu0 0.0
  %6501 = vmatpush2.msra.mxu0 0.0
  %6502 = vmatprep.subr.mxu0 0.0
  %6503 = vmatpush2.msra.mxu0 0.0
  %6504 = vmatprep.subr.mxu0 0.0
  %6505 = vmatpush2.msra.mxu0 0.0
  %6506 = vmatprep.subr.mxu0 0.0
  %6507 = vmatpush2.msra.mxu0 0.0
  %6508 = vmatprep.subr.mxu0 0.0
  %6509 = vmatpush2.msra.mxu0 0.0
  %6510 = vmatprep.subr.mxu0 0.0
  %6511 = vmatpush2.msra.mxu0 0.0
  %6512 = vmatprep.subr.mxu0 0.0
  %6513 = vmatpush2.msra.mxu0 0.0
  %6514 = vmatprep.subr.mxu0 0.0
  %6515 = vmatpush2.msra.mxu0 0.0
  %6516 = vmatprep.subr.mxu0 0.0
  %6517 = vmatpush2.msra.mxu0 0.0
  %6518 = vmatprep.subr.mxu0 0.0
  %6519 = vmatpush2.msra.mxu0 0.0
  %6520 = vmatprep.subr.mxu0 0.0
  %6521 = vmatpush2.msra.mxu0 0.0
  %6522 = vmatprep.subr.mxu0 0.0
  %6523 = vmatpush2.msra.mxu0 0.0
  %6524 = vmatprep.mubr.f32.mxu0 0.0
  %6525 = vmatmul.mubr.f32.gmra.mxu0 %v6458
  %v6526 = vpop.f32.mrf.mxu0
  %v6527 = vadd.f32 0.0, %v6526
  %v6528 = vpop.f32.mrf.mxu0
  %6529 = vdwg.mxu0
  %6530 = vrot.lane.b32.xlu0 %v203, 64
  %v6531 = vpop.permute.xlu0 %6530
  %v6534 = vsel %vm355, %v5811, 0
  %6536 = vmatprep.subr.mxu0 0.0
  %6537 = vmatpush1.msra.mxu0 0.0
  %6538 = vmatprep.subr.mxu0 0.0
  %6539 = vmatpush1.msra.mxu0 0.0
  %6540 = vmatprep.subr.mxu0 0.0
  %6541 = vmatpush1.msra.mxu0 0.0
  %6542 = vmatprep.subr.mxu0 0.0
  %6543 = vmatpush1.msra.mxu0 0.0
  %6544 = vmatprep.subr.mxu0 0.0
  %6545 = vmatpush1.msra.mxu0 0.0
  %6546 = vmatprep.subr.mxu0 0.0
  %6547 = vmatpush1.msra.mxu0 0.0
  %6548 = vmatprep.subr.mxu0 0.0
  %6549 = vmatpush1.msra.mxu0 0.0
  %6550 = vmatprep.subr.mxu0 0.0
  %6551 = vmatpush1.msra.mxu0 0.0
  %6552 = vmatprep.subr.mxu0 0.0
  %6553 = vmatpush1.msra.mxu0 0.0
  %6554 = vmatprep.subr.mxu0 0.0
  %6555 = vmatpush1.msra.mxu0 0.0
  %6556 = vmatprep.subr.mxu0 0.0
  %6557 = vmatpush1.msra.mxu0 0.0
  %6558 = vmatprep.subr.mxu0 0.0
  %6559 = vmatpush1.msra.mxu0 0.0
  %6560 = vmatprep.subr.mxu0 0.0
  %6561 = vmatpush1.msra.mxu0 0.0
  %6562 = vmatprep.subr.mxu0 0.0
  %6563 = vmatpush1.msra.mxu0 0.0
  %6564 = vmatprep.subr.mxu0 0.0
  %6565 = vmatpush1.msra.mxu0 0.0
  %6566 = vmatprep.subr.mxu0 0.0
  %6567 = vmatpush1.msra.mxu0 %v6531
  %6568 = vmatprep.subr.mxu0 0.0
  %6569 = vmatpush2.msra.mxu0 0.0
  %6570 = vmatprep.subr.mxu0 0.0
  %6571 = vmatpush2.msra.mxu0 0.0
  %6572 = vmatprep.subr.mxu0 0.0
  %6573 = vmatpush2.msra.mxu0 0.0
  %6574 = vmatprep.subr.mxu0 0.0
  %6575 = vmatpush2.msra.mxu0 0.0
  %6576 = vmatprep.subr.mxu0 0.0
  %6577 = vmatpush2.msra.mxu0 0.0
  %6578 = vmatprep.subr.mxu0 0.0
  %6579 = vmatpush2.msra.mxu0 0.0
  %6580 = vmatprep.subr.mxu0 0.0
  %6581 = vmatpush2.msra.mxu0 0.0
  %6582 = vmatprep.subr.mxu0 0.0
  %6583 = vmatpush2.msra.mxu0 0.0
  %6584 = vmatprep.subr.mxu0 0.0
  %6585 = vmatpush2.msra.mxu0 0.0
  %6586 = vmatprep.subr.mxu0 0.0
  %6587 = vmatpush2.msra.mxu0 0.0
  %6588 = vmatprep.subr.mxu0 0.0
  %6589 = vmatpush2.msra.mxu0 0.0
  %6590 = vmatprep.subr.mxu0 0.0
  %6591 = vmatpush2.msra.mxu0 0.0
  %6592 = vmatprep.subr.mxu0 0.0
  %6593 = vmatpush2.msra.mxu0 0.0
  %6594 = vmatprep.subr.mxu0 0.0
  %6595 = vmatpush2.msra.mxu0 0.0
  %6596 = vmatprep.subr.mxu0 0.0
  %6597 = vmatpush2.msra.mxu0 0.0
  %6598 = vmatprep.subr.mxu0 0.0
  %6599 = vmatpush2.msra.mxu0 0.0
  %6600 = vmatprep.mubr.f32.mxu0 0.0
  %6601 = vmatmul.mubr.f32.gmra.mxu0 %v6534
  %v6602 = vpop.f32.mrf.mxu0
  %v6603 = vadd.f32 0.0, %v6602
  %v6604 = vpop.f32.mrf.mxu0
  %6605 = vdwg.mxu0
  %6606 = vrot.lane.b32.xlu0 %v208, 64
  %v6607 = vpop.permute.xlu0 %6606
  %v6610 = vsel %vm355, %v5813, 0
  %6612 = vmatprep.subr.mxu0 0.0
  %6613 = vmatpush1.msra.mxu0 0.0
  %6614 = vmatprep.subr.mxu0 0.0
  %6615 = vmatpush1.msra.mxu0 0.0
  %6616 = vmatprep.subr.mxu0 0.0
  %6617 = vmatpush1.msra.mxu0 0.0
  %6618 = vmatprep.subr.mxu0 0.0
  %6619 = vmatpush1.msra.mxu0 0.0
  %6620 = vmatprep.subr.mxu0 0.0
  %6621 = vmatpush1.msra.mxu0 0.0
  %6622 = vmatprep.subr.mxu0 0.0
  %6623 = vmatpush1.msra.mxu0 0.0
  %6624 = vmatprep.subr.mxu0 0.0
  %6625 = vmatpush1.msra.mxu0 0.0
  %6626 = vmatprep.subr.mxu0 0.0
  %6627 = vmatpush1.msra.mxu0 0.0
  %6628 = vmatprep.subr.mxu0 0.0
  %6629 = vmatpush1.msra.mxu0 0.0
  %6630 = vmatprep.subr.mxu0 0.0
  %6631 = vmatpush1.msra.mxu0 0.0
  %6632 = vmatprep.subr.mxu0 0.0
  %6633 = vmatpush1.msra.mxu0 0.0
  %6634 = vmatprep.subr.mxu0 0.0
  %6635 = vmatpush1.msra.mxu0 0.0
  %6636 = vmatprep.subr.mxu0 0.0
  %6637 = vmatpush1.msra.mxu0 0.0
  %6638 = vmatprep.subr.mxu0 0.0
  %6639 = vmatpush1.msra.mxu0 0.0
  %6640 = vmatprep.subr.mxu0 0.0
  %6641 = vmatpush1.msra.mxu0 0.0
  %6642 = vmatprep.subr.mxu0 0.0
  %6643 = vmatpush1.msra.mxu0 %v6607
  %6644 = vmatprep.subr.mxu0 0.0
  %6645 = vmatpush2.msra.mxu0 0.0
  %6646 = vmatprep.subr.mxu0 0.0
  %6647 = vmatpush2.msra.mxu0 0.0
  %6648 = vmatprep.subr.mxu0 0.0
  %6649 = vmatpush2.msra.mxu0 0.0
  %6650 = vmatprep.subr.mxu0 0.0
  %6651 = vmatpush2.msra.mxu0 0.0
  %6652 = vmatprep.subr.mxu0 0.0
  %6653 = vmatpush2.msra.mxu0 0.0
  %6654 = vmatprep.subr.mxu0 0.0
  %6655 = vmatpush2.msra.mxu0 0.0
  %6656 = vmatprep.subr.mxu0 0.0
  %6657 = vmatpush2.msra.mxu0 0.0
  %6658 = vmatprep.subr.mxu0 0.0
  %6659 = vmatpush2.msra.mxu0 0.0
  %6660 = vmatprep.subr.mxu0 0.0
  %6661 = vmatpush2.msra.mxu0 0.0
  %6662 = vmatprep.subr.mxu0 0.0
  %6663 = vmatpush2.msra.mxu0 0.0
  %6664 = vmatprep.subr.mxu0 0.0
  %6665 = vmatpush2.msra.mxu0 0.0
  %6666 = vmatprep.subr.mxu0 0.0
  %6667 = vmatpush2.msra.mxu0 0.0
  %6668 = vmatprep.subr.mxu0 0.0
  %6669 = vmatpush2.msra.mxu0 0.0
  %6670 = vmatprep.subr.mxu0 0.0
  %6671 = vmatpush2.msra.mxu0 0.0
  %6672 = vmatprep.subr.mxu0 0.0
  %6673 = vmatpush2.msra.mxu0 0.0
  %6674 = vmatprep.subr.mxu0 0.0
  %6675 = vmatpush2.msra.mxu0 0.0
  %6676 = vmatprep.mubr.f32.mxu0 0.0
  %6677 = vmatmul.mubr.f32.gmra.mxu0 %v6610
  %v6678 = vpop.f32.mrf.mxu0
  %v6679 = vadd.f32 0.0, %v6678
  %v6680 = vpop.f32.mrf.mxu0
  %6681 = vdwg.mxu0
  %6682 = vrot.lane.b32.xlu0 %v213, 64
  %v6683 = vpop.permute.xlu0 %6682
  %v6686 = vsel %vm355, %v5815, 0
  %6688 = vmatprep.subr.mxu0 0.0
  %6689 = vmatpush1.msra.mxu0 0.0
  %6690 = vmatprep.subr.mxu0 0.0
  %6691 = vmatpush1.msra.mxu0 0.0
  %6692 = vmatprep.subr.mxu0 0.0
  %6693 = vmatpush1.msra.mxu0 0.0
  %6694 = vmatprep.subr.mxu0 0.0
  %6695 = vmatpush1.msra.mxu0 0.0
  %6696 = vmatprep.subr.mxu0 0.0
  %6697 = vmatpush1.msra.mxu0 0.0
  %6698 = vmatprep.subr.mxu0 0.0
  %6699 = vmatpush1.msra.mxu0 0.0
  %6700 = vmatprep.subr.mxu0 0.0
  %6701 = vmatpush1.msra.mxu0 0.0
  %6702 = vmatprep.subr.mxu0 0.0
  %6703 = vmatpush1.msra.mxu0 0.0
  %6704 = vmatprep.subr.mxu0 0.0
  %6705 = vmatpush1.msra.mxu0 0.0
  %6706 = vmatprep.subr.mxu0 0.0
  %6707 = vmatpush1.msra.mxu0 0.0
  %6708 = vmatprep.subr.mxu0 0.0
  %6709 = vmatpush1.msra.mxu0 0.0
  %6710 = vmatprep.subr.mxu0 0.0
  %6711 = vmatpush1.msra.mxu0 0.0
  %6712 = vmatprep.subr.mxu0 0.0
  %6713 = vmatpush1.msra.mxu0 0.0
  %6714 = vmatprep.subr.mxu0 0.0
  %6715 = vmatpush1.msra.mxu0 0.0
  %6716 = vmatprep.subr.mxu0 0.0
  %6717 = vmatpush1.msra.mxu0 0.0
  %6718 = vmatprep.subr.mxu0 0.0
  %6719 = vmatpush1.msra.mxu0 %v6683
  %6720 = vmatprep.subr.mxu0 0.0
  %6721 = vmatpush2.msra.mxu0 0.0
  %6722 = vmatprep.subr.mxu0 0.0
  %6723 = vmatpush2.msra.mxu0 0.0
  %6724 = vmatprep.subr.mxu0 0.0
  %6725 = vmatpush2.msra.mxu0 0.0
  %6726 = vmatprep.subr.mxu0 0.0
  %6727 = vmatpush2.msra.mxu0 0.0
  %6728 = vmatprep.subr.mxu0 0.0
  %6729 = vmatpush2.msra.mxu0 0.0
  %6730 = vmatprep.subr.mxu0 0.0
  %6731 = vmatpush2.msra.mxu0 0.0
  %6732 = vmatprep.subr.mxu0 0.0
  %6733 = vmatpush2.msra.mxu0 0.0
  %6734 = vmatprep.subr.mxu0 0.0
  %6735 = vmatpush2.msra.mxu0 0.0
  %6736 = vmatprep.subr.mxu0 0.0
  %6737 = vmatpush2.msra.mxu0 0.0
  %6738 = vmatprep.subr.mxu0 0.0
  %6739 = vmatpush2.msra.mxu0 0.0
  %6740 = vmatprep.subr.mxu0 0.0
  %6741 = vmatpush2.msra.mxu0 0.0
  %6742 = vmatprep.subr.mxu0 0.0
  %6743 = vmatpush2.msra.mxu0 0.0
  %6744 = vmatprep.subr.mxu0 0.0
  %6745 = vmatpush2.msra.mxu0 0.0
  %6746 = vmatprep.subr.mxu0 0.0
  %6747 = vmatpush2.msra.mxu0 0.0
  %6748 = vmatprep.subr.mxu0 0.0
  %6749 = vmatpush2.msra.mxu0 0.0
  %6750 = vmatprep.subr.mxu0 0.0
  %6751 = vmatpush2.msra.mxu0 0.0
  %6752 = vmatprep.mubr.f32.mxu0 0.0
  %6753 = vmatmul.mubr.f32.gmra.mxu0 %v6686
  %v6754 = vpop.f32.mrf.mxu0
  %v6755 = vadd.f32 0.0, %v6754
  %v6756 = vpop.f32.mrf.mxu0
  %6757 = vdwg.mxu0
  %6758 = vrot.lane.b32.xlu0 %v218, 64
  %v6759 = vpop.permute.xlu0 %6758
  %v6762 = vsel %vm355, %v5817, 0
  %6764 = vmatprep.subr.mxu0 0.0
  %6765 = vmatpush1.msra.mxu0 0.0
  %6766 = vmatprep.subr.mxu0 0.0
  %6767 = vmatpush1.msra.mxu0 0.0
  %6768 = vmatprep.subr.mxu0 0.0
  %6769 = vmatpush1.msra.mxu0 0.0
  %6770 = vmatprep.subr.mxu0 0.0
  %6771 = vmatpush1.msra.mxu0 0.0
  %6772 = vmatprep.subr.mxu0 0.0
  %6773 = vmatpush1.msra.mxu0 0.0
  %6774 = vmatprep.subr.mxu0 0.0
  %6775 = vmatpush1.msra.mxu0 0.0
  %6776 = vmatprep.subr.mxu0 0.0
  %6777 = vmatpush1.msra.mxu0 0.0
  %6778 = vmatprep.subr.mxu0 0.0
  %6779 = vmatpush1.msra.mxu0 0.0
  %6780 = vmatprep.subr.mxu0 0.0
  %6781 = vmatpush1.msra.mxu0 0.0
  %6782 = vmatprep.subr.mxu0 0.0
  %6783 = vmatpush1.msra.mxu0 0.0
  %6784 = vmatprep.subr.mxu0 0.0
  %6785 = vmatpush1.msra.mxu0 0.0
  %6786 = vmatprep.subr.mxu0 0.0
  %6787 = vmatpush1.msra.mxu0 0.0
  %6788 = vmatprep.subr.mxu0 0.0
  %6789 = vmatpush1.msra.mxu0 0.0
  %6790 = vmatprep.subr.mxu0 0.0
  %6791 = vmatpush1.msra.mxu0 0.0
  %6792 = vmatprep.subr.mxu0 0.0
  %6793 = vmatpush1.msra.mxu0 0.0
  %6794 = vmatprep.subr.mxu0 0.0
  %6795 = vmatpush1.msra.mxu0 %v6759
  %6796 = vmatprep.subr.mxu0 0.0
  %6797 = vmatpush2.msra.mxu0 0.0
  %6798 = vmatprep.subr.mxu0 0.0
  %6799 = vmatpush2.msra.mxu0 0.0
  %6800 = vmatprep.subr.mxu0 0.0
  %6801 = vmatpush2.msra.mxu0 0.0
  %6802 = vmatprep.subr.mxu0 0.0
  %6803 = vmatpush2.msra.mxu0 0.0
  %6804 = vmatprep.subr.mxu0 0.0
  %6805 = vmatpush2.msra.mxu0 0.0
  %6806 = vmatprep.subr.mxu0 0.0
  %6807 = vmatpush2.msra.mxu0 0.0
  %6808 = vmatprep.subr.mxu0 0.0
  %6809 = vmatpush2.msra.mxu0 0.0
  %6810 = vmatprep.subr.mxu0 0.0
  %6811 = vmatpush2.msra.mxu0 0.0
  %6812 = vmatprep.subr.mxu0 0.0
  %6813 = vmatpush2.msra.mxu0 0.0
  %6814 = vmatprep.subr.mxu0 0.0
  %6815 = vmatpush2.msra.mxu0 0.0
  %6816 = vmatprep.subr.mxu0 0.0
  %6817 = vmatpush2.msra.mxu0 0.0
  %6818 = vmatprep.subr.mxu0 0.0
  %6819 = vmatpush2.msra.mxu0 0.0
  %6820 = vmatprep.subr.mxu0 0.0
  %6821 = vmatpush2.msra.mxu0 0.0
  %6822 = vmatprep.subr.mxu0 0.0
  %6823 = vmatpush2.msra.mxu0 0.0
  %6824 = vmatprep.subr.mxu0 0.0
  %6825 = vmatpush2.msra.mxu0 0.0
  %6826 = vmatprep.subr.mxu0 0.0
  %6827 = vmatpush2.msra.mxu0 0.0
  %6828 = vmatprep.mubr.f32.mxu0 0.0
  %6829 = vmatmul.mubr.f32.gmra.mxu0 %v6762
  %v6830 = vpop.f32.mrf.mxu0
  %v6831 = vadd.f32 0.0, %v6830
  %v6832 = vpop.f32.mrf.mxu0
  %6833 = vdwg.mxu0
  %6834 = vrot.lane.b32.xlu0 %v223, 64
  %v6835 = vpop.permute.xlu0 %6834
  %v6838 = vsel %vm355, %v5819, 0
  %6840 = vmatprep.subr.mxu0 0.0
  %6841 = vmatpush1.msra.mxu0 0.0
  %6842 = vmatprep.subr.mxu0 0.0
  %6843 = vmatpush1.msra.mxu0 0.0
  %6844 = vmatprep.subr.mxu0 0.0
  %6845 = vmatpush1.msra.mxu0 0.0
  %6846 = vmatprep.subr.mxu0 0.0
  %6847 = vmatpush1.msra.mxu0 0.0
  %6848 = vmatprep.subr.mxu0 0.0
  %6849 = vmatpush1.msra.mxu0 0.0
  %6850 = vmatprep.subr.mxu0 0.0
  %6851 = vmatpush1.msra.mxu0 0.0
  %6852 = vmatprep.subr.mxu0 0.0
  %6853 = vmatpush1.msra.mxu0 0.0
  %6854 = vmatprep.subr.mxu0 0.0
  %6855 = vmatpush1.msra.mxu0 0.0
  %6856 = vmatprep.subr.mxu0 0.0
  %6857 = vmatpush1.msra.mxu0 0.0
  %6858 = vmatprep.subr.mxu0 0.0
  %6859 = vmatpush1.msra.mxu0 0.0
  %6860 = vmatprep.subr.mxu0 0.0
  %6861 = vmatpush1.msra.mxu0 0.0
  %6862 = vmatprep.subr.mxu0 0.0
  %6863 = vmatpush1.msra.mxu0 0.0
  %6864 = vmatprep.subr.mxu0 0.0
  %6865 = vmatpush1.msra.mxu0 0.0
  %6866 = vmatprep.subr.mxu0 0.0
  %6867 = vmatpush1.msra.mxu0 0.0
  %6868 = vmatprep.subr.mxu0 0.0
  %6869 = vmatpush1.msra.mxu0 0.0
  %6870 = vmatprep.subr.mxu0 0.0
  %6871 = vmatpush1.msra.mxu0 %v6835
  %6872 = vmatprep.subr.mxu0 0.0
  %6873 = vmatpush2.msra.mxu0 0.0
  %6874 = vmatprep.subr.mxu0 0.0
  %6875 = vmatpush2.msra.mxu0 0.0
  %6876 = vmatprep.subr.mxu0 0.0
  %6877 = vmatpush2.msra.mxu0 0.0
  %6878 = vmatprep.subr.mxu0 0.0
  %6879 = vmatpush2.msra.mxu0 0.0
  %6880 = vmatprep.subr.mxu0 0.0
  %6881 = vmatpush2.msra.mxu0 0.0
  %6882 = vmatprep.subr.mxu0 0.0
  %6883 = vmatpush2.msra.mxu0 0.0
  %6884 = vmatprep.subr.mxu0 0.0
  %6885 = vmatpush2.msra.mxu0 0.0
  %6886 = vmatprep.subr.mxu0 0.0
  %6887 = vmatpush2.msra.mxu0 0.0
  %6888 = vmatprep.subr.mxu0 0.0
  %6889 = vmatpush2.msra.mxu0 0.0
  %6890 = vmatprep.subr.mxu0 0.0
  %6891 = vmatpush2.msra.mxu0 0.0
  %6892 = vmatprep.subr.mxu0 0.0
  %6893 = vmatpush2.msra.mxu0 0.0
  %6894 = vmatprep.subr.mxu0 0.0
  %6895 = vmatpush2.msra.mxu0 0.0
  %6896 = vmatprep.subr.mxu0 0.0
  %6897 = vmatpush2.msra.mxu0 0.0
  %6898 = vmatprep.subr.mxu0 0.0
  %6899 = vmatpush2.msra.mxu0 0.0
  %6900 = vmatprep.subr.mxu0 0.0
  %6901 = vmatpush2.msra.mxu0 0.0
  %6902 = vmatprep.subr.mxu0 0.0
  %6903 = vmatpush2.msra.mxu0 0.0
  %6904 = vmatprep.mubr.f32.mxu0 0.0
  %6905 = vmatmul.mubr.f32.gmra.mxu0 %v6838
  %v6906 = vpop.f32.mrf.mxu0
  %v6907 = vadd.f32 0.0, %v6906
  %v6908 = vpop.f32.mrf.mxu0
  %6909 = vdwg.mxu0
  %6910 = vrot.lane.b32.xlu0 %v228, 64
  %v6911 = vpop.permute.xlu0 %6910
  %v6914 = vsel %vm355, %v5821, 0
  %6916 = vmatprep.subr.mxu0 0.0
  %6917 = vmatpush1.msra.mxu0 0.0
  %6918 = vmatprep.subr.mxu0 0.0
  %6919 = vmatpush1.msra.mxu0 0.0
  %6920 = vmatprep.subr.mxu0 0.0
  %6921 = vmatpush1.msra.mxu0 0.0
  %6922 = vmatprep.subr.mxu0 0.0
  %6923 = vmatpush1.msra.mxu0 0.0
  %6924 = vmatprep.subr.mxu0 0.0
  %6925 = vmatpush1.msra.mxu0 0.0
  %6926 = vmatprep.subr.mxu0 0.0
  %6927 = vmatpush1.msra.mxu0 0.0
  %6928 = vmatprep.subr.mxu0 0.0
  %6929 = vmatpush1.msra.mxu0 0.0
  %6930 = vmatprep.subr.mxu0 0.0
  %6931 = vmatpush1.msra.mxu0 0.0
  %6932 = vmatprep.subr.mxu0 0.0
  %6933 = vmatpush1.msra.mxu0 0.0
  %6934 = vmatprep.subr.mxu0 0.0
  %6935 = vmatpush1.msra.mxu0 0.0
  %6936 = vmatprep.subr.mxu0 0.0
  %6937 = vmatpush1.msra.mxu0 0.0
  %6938 = vmatprep.subr.mxu0 0.0
  %6939 = vmatpush1.msra.mxu0 0.0
  %6940 = vmatprep.subr.mxu0 0.0
  %6941 = vmatpush1.msra.mxu0 0.0
  %6942 = vmatprep.subr.mxu0 0.0
  %6943 = vmatpush1.msra.mxu0 0.0
  %6944 = vmatprep.subr.mxu0 0.0
  %6945 = vmatpush1.msra.mxu0 0.0
  %6946 = vmatprep.subr.mxu0 0.0
  %6947 = vmatpush1.msra.mxu0 %v6911
  %6948 = vmatprep.subr.mxu0 0.0
  %6949 = vmatpush2.msra.mxu0 0.0
  %6950 = vmatprep.subr.mxu0 0.0
  %6951 = vmatpush2.msra.mxu0 0.0
  %6952 = vmatprep.subr.mxu0 0.0
  %6953 = vmatpush2.msra.mxu0 0.0
  %6954 = vmatprep.subr.mxu0 0.0
  %6955 = vmatpush2.msra.mxu0 0.0
  %6956 = vmatprep.subr.mxu0 0.0
  %6957 = vmatpush2.msra.mxu0 0.0
  %6958 = vmatprep.subr.mxu0 0.0
  %6959 = vmatpush2.msra.mxu0 0.0
  %6960 = vmatprep.subr.mxu0 0.0
  %6961 = vmatpush2.msra.mxu0 0.0
  %6962 = vmatprep.subr.mxu0 0.0
  %6963 = vmatpush2.msra.mxu0 0.0
  %6964 = vmatprep.subr.mxu0 0.0
  %6965 = vmatpush2.msra.mxu0 0.0
  %6966 = vmatprep.subr.mxu0 0.0
  %6967 = vmatpush2.msra.mxu0 0.0
  %6968 = vmatprep.subr.mxu0 0.0
  %6969 = vmatpush2.msra.mxu0 0.0
  %6970 = vmatprep.subr.mxu0 0.0
  %6971 = vmatpush2.msra.mxu0 0.0
  %6972 = vmatprep.subr.mxu0 0.0
  %6973 = vmatpush2.msra.mxu0 0.0
  %6974 = vmatprep.subr.mxu0 0.0
  %6975 = vmatpush2.msra.mxu0 0.0
  %6976 = vmatprep.subr.mxu0 0.0
  %6977 = vmatpush2.msra.mxu0 0.0
  %6978 = vmatprep.subr.mxu0 0.0
  %6979 = vmatpush2.msra.mxu0 0.0
  %6980 = vmatprep.mubr.f32.mxu0 0.0
  %6981 = vmatmul.mubr.f32.gmra.mxu0 %v6914
  %v6982 = vpop.f32.mrf.mxu0
  %v6983 = vadd.f32 0.0, %v6982
  %v6984 = vpop.f32.mrf.mxu0
  %6985 = vdwg.mxu0
  %6986 = vrot.lane.b32.xlu0 %v233, 64
  %v6987 = vpop.permute.xlu0 %6986
  %v6990 = vsel %vm355, %v5823, 0
  %6992 = vmatprep.subr.mxu0 0.0
  %6993 = vmatpush1.msra.mxu0 0.0
  %6994 = vmatprep.subr.mxu0 0.0
  %6995 = vmatpush1.msra.mxu0 0.0
  %6996 = vmatprep.subr.mxu0 0.0
  %6997 = vmatpush1.msra.mxu0 0.0
  %6998 = vmatprep.subr.mxu0 0.0
  %6999 = vmatpush1.msra.mxu0 0.0
  %7000 = vmatprep.subr.mxu0 0.0
  %7001 = vmatpush1.msra.mxu0 0.0
  %7002 = vmatprep.subr.mxu0 0.0
  %7003 = vmatpush1.msra.mxu0 0.0
  %7004 = vmatprep.subr.mxu0 0.0
  %7005 = vmatpush1.msra.mxu0 0.0
  %7006 = vmatprep.subr.mxu0 0.0
  %7007 = vmatpush1.msra.mxu0 0.0
  %7008 = vmatprep.subr.mxu0 0.0
  %7009 = vmatpush1.msra.mxu0 0.0
  %7010 = vmatprep.subr.mxu0 0.0
  %7011 = vmatpush1.msra.mxu0 0.0
  %7012 = vmatprep.subr.mxu0 0.0
  %7013 = vmatpush1.msra.mxu0 0.0
  %7014 = vmatprep.subr.mxu0 0.0
  %7015 = vmatpush1.msra.mxu0 0.0
  %7016 = vmatprep.subr.mxu0 0.0
  %7017 = vmatpush1.msra.mxu0 0.0
  %7018 = vmatprep.subr.mxu0 0.0
  %7019 = vmatpush1.msra.mxu0 0.0
  %7020 = vmatprep.subr.mxu0 0.0
  %7021 = vmatpush1.msra.mxu0 0.0
  %7022 = vmatprep.subr.mxu0 0.0
  %7023 = vmatpush1.msra.mxu0 %v6987
  %7024 = vmatprep.subr.mxu0 0.0
  %7025 = vmatpush2.msra.mxu0 0.0
  %7026 = vmatprep.subr.mxu0 0.0
  %7027 = vmatpush2.msra.mxu0 0.0
  %7028 = vmatprep.subr.mxu0 0.0
  %7029 = vmatpush2.msra.mxu0 0.0
  %7030 = vmatprep.subr.mxu0 0.0
  %7031 = vmatpush2.msra.mxu0 0.0
  %7032 = vmatprep.subr.mxu0 0.0
  %7033 = vmatpush2.msra.mxu0 0.0
  %7034 = vmatprep.subr.mxu0 0.0
  %7035 = vmatpush2.msra.mxu0 0.0
  %7036 = vmatprep.subr.mxu0 0.0
  %7037 = vmatpush2.msra.mxu0 0.0
  %7038 = vmatprep.subr.mxu0 0.0
  %7039 = vmatpush2.msra.mxu0 0.0
  %7040 = vmatprep.subr.mxu0 0.0
  %7041 = vmatpush2.msra.mxu0 0.0
  %7042 = vmatprep.subr.mxu0 0.0
  %7043 = vmatpush2.msra.mxu0 0.0
  %7044 = vmatprep.subr.mxu0 0.0
  %7045 = vmatpush2.msra.mxu0 0.0
  %7046 = vmatprep.subr.mxu0 0.0
  %7047 = vmatpush2.msra.mxu0 0.0
  %7048 = vmatprep.subr.mxu0 0.0
  %7049 = vmatpush2.msra.mxu0 0.0
  %7050 = vmatprep.subr.mxu0 0.0
  %7051 = vmatpush2.msra.mxu0 0.0
  %7052 = vmatprep.subr.mxu0 0.0
  %7053 = vmatpush2.msra.mxu0 0.0
  %7054 = vmatprep.subr.mxu0 0.0
  %7055 = vmatpush2.msra.mxu0 0.0
  %7056 = vmatprep.mubr.f32.mxu0 0.0
  %7057 = vmatmul.mubr.f32.gmra.mxu0 %v6990
  %v7058 = vpop.f32.mrf.mxu0
  %v7059 = vadd.f32 0.0, %v7058
  %v7060 = vpop.f32.mrf.mxu0
  %7061 = vdwg.mxu0
  %7062 = vrot.lane.b32.xlu0 %v238, 64
  %v7063 = vpop.permute.xlu0 %7062
  %v7066 = vsel %vm355, %v5825, 0
  %7068 = vmatprep.subr.mxu0 0.0
  %7069 = vmatpush1.msra.mxu0 0.0
  %7070 = vmatprep.subr.mxu0 0.0
  %7071 = vmatpush1.msra.mxu0 0.0
  %7072 = vmatprep.subr.mxu0 0.0
  %7073 = vmatpush1.msra.mxu0 0.0
  %7074 = vmatprep.subr.mxu0 0.0
  %7075 = vmatpush1.msra.mxu0 0.0
  %7076 = vmatprep.subr.mxu0 0.0
  %7077 = vmatpush1.msra.mxu0 0.0
  %7078 = vmatprep.subr.mxu0 0.0
  %7079 = vmatpush1.msra.mxu0 0.0
  %7080 = vmatprep.subr.mxu0 0.0
  %7081 = vmatpush1.msra.mxu0 0.0
  %7082 = vmatprep.subr.mxu0 0.0
  %7083 = vmatpush1.msra.mxu0 0.0
  %7084 = vmatprep.subr.mxu0 0.0
  %7085 = vmatpush1.msra.mxu0 0.0
  %7086 = vmatprep.subr.mxu0 0.0
  %7087 = vmatpush1.msra.mxu0 0.0
  %7088 = vmatprep.subr.mxu0 0.0
  %7089 = vmatpush1.msra.mxu0 0.0
  %7090 = vmatprep.subr.mxu0 0.0
  %7091 = vmatpush1.msra.mxu0 0.0
  %7092 = vmatprep.subr.mxu0 0.0
  %7093 = vmatpush1.msra.mxu0 0.0
  %7094 = vmatprep.subr.mxu0 0.0
  %7095 = vmatpush1.msra.mxu0 0.0
  %7096 = vmatprep.subr.mxu0 0.0
  %7097 = vmatpush1.msra.mxu0 0.0
  %7098 = vmatprep.subr.mxu0 0.0
  %7099 = vmatpush1.msra.mxu0 %v7063
  %7100 = vmatprep.subr.mxu0 0.0
  %7101 = vmatpush2.msra.mxu0 0.0
  %7102 = vmatprep.subr.mxu0 0.0
  %7103 = vmatpush2.msra.mxu0 0.0
  %7104 = vmatprep.subr.mxu0 0.0
  %7105 = vmatpush2.msra.mxu0 0.0
  %7106 = vmatprep.subr.mxu0 0.0
  %7107 = vmatpush2.msra.mxu0 0.0
  %7108 = vmatprep.subr.mxu0 0.0
  %7109 = vmatpush2.msra.mxu0 0.0
  %7110 = vmatprep.subr.mxu0 0.0
  %7111 = vmatpush2.msra.mxu0 0.0
  %7112 = vmatprep.subr.mxu0 0.0
  %7113 = vmatpush2.msra.mxu0 0.0
  %7114 = vmatprep.subr.mxu0 0.0
  %7115 = vmatpush2.msra.mxu0 0.0
  %7116 = vmatprep.subr.mxu0 0.0
  %7117 = vmatpush2.msra.mxu0 0.0
  %7118 = vmatprep.subr.mxu0 0.0
  %7119 = vmatpush2.msra.mxu0 0.0
  %7120 = vmatprep.subr.mxu0 0.0
  %7121 = vmatpush2.msra.mxu0 0.0
  %7122 = vmatprep.subr.mxu0 0.0
  %7123 = vmatpush2.msra.mxu0 0.0
  %7124 = vmatprep.subr.mxu0 0.0
  %7125 = vmatpush2.msra.mxu0 0.0
  %7126 = vmatprep.subr.mxu0 0.0
  %7127 = vmatpush2.msra.mxu0 0.0
  %7128 = vmatprep.subr.mxu0 0.0
  %7129 = vmatpush2.msra.mxu0 0.0
  %7130 = vmatprep.subr.mxu0 0.0
  %7131 = vmatpush2.msra.mxu0 0.0
  %7132 = vmatprep.mubr.f32.mxu0 0.0
  %7133 = vmatmul.mubr.f32.gmra.mxu0 %v7066
  %v7134 = vpop.f32.mrf.mxu0
  %v7135 = vadd.f32 0.0, %v7134
  %v7136 = vpop.f32.mrf.mxu0
  %7137 = vdwg.mxu0
  %7138 = vrot.lane.b32.xlu0 %v258, 64
  %v7139 = vpop.permute.xlu0 %7138
  %v7142 = vsel %vm355, %v5827, 0
  %7144 = vmatprep.subr.mxu0 0.0
  %7145 = vmatpush1.msra.mxu0 0.0
  %7146 = vmatprep.subr.mxu0 0.0
  %7147 = vmatpush1.msra.mxu0 0.0
  %7148 = vmatprep.subr.mxu0 0.0
  %7149 = vmatpush1.msra.mxu0 0.0
  %7150 = vmatprep.subr.mxu0 0.0
  %7151 = vmatpush1.msra.mxu0 0.0
  %7152 = vmatprep.subr.mxu0 0.0
  %7153 = vmatpush1.msra.mxu0 0.0
  %7154 = vmatprep.subr.mxu0 0.0
  %7155 = vmatpush1.msra.mxu0 0.0
  %7156 = vmatprep.subr.mxu0 0.0
  %7157 = vmatpush1.msra.mxu0 0.0
  %7158 = vmatprep.subr.mxu0 0.0
  %7159 = vmatpush1.msra.mxu0 0.0
  %7160 = vmatprep.subr.mxu0 0.0
  %7161 = vmatpush1.msra.mxu0 0.0
  %7162 = vmatprep.subr.mxu0 0.0
  %7163 = vmatpush1.msra.mxu0 0.0
  %7164 = vmatprep.subr.mxu0 0.0
  %7165 = vmatpush1.msra.mxu0 0.0
  %7166 = vmatprep.subr.mxu0 0.0
  %7167 = vmatpush1.msra.mxu0 0.0
  %7168 = vmatprep.subr.mxu0 0.0
  %7169 = vmatpush1.msra.mxu0 0.0
  %7170 = vmatprep.subr.mxu0 0.0
  %7171 = vmatpush1.msra.mxu0 0.0
  %7172 = vmatprep.subr.mxu0 0.0
  %7173 = vmatpush1.msra.mxu0 0.0
  %7174 = vmatprep.subr.mxu0 0.0
  %7175 = vmatpush1.msra.mxu0 %v7139
  %7176 = vmatprep.subr.mxu0 0.0
  %7177 = vmatpush2.msra.mxu0 0.0
  %7178 = vmatprep.subr.mxu0 0.0
  %7179 = vmatpush2.msra.mxu0 0.0
  %7180 = vmatprep.subr.mxu0 0.0
  %7181 = vmatpush2.msra.mxu0 0.0
  %7182 = vmatprep.subr.mxu0 0.0
  %7183 = vmatpush2.msra.mxu0 0.0
  %7184 = vmatprep.subr.mxu0 0.0
  %7185 = vmatpush2.msra.mxu0 0.0
  %7186 = vmatprep.subr.mxu0 0.0
  %7187 = vmatpush2.msra.mxu0 0.0
  %7188 = vmatprep.subr.mxu0 0.0
  %7189 = vmatpush2.msra.mxu0 0.0
  %7190 = vmatprep.subr.mxu0 0.0
  %7191 = vmatpush2.msra.mxu0 0.0
  %7192 = vmatprep.subr.mxu0 0.0
  %7193 = vmatpush2.msra.mxu0 0.0
  %7194 = vmatprep.subr.mxu0 0.0
  %7195 = vmatpush2.msra.mxu0 0.0
  %7196 = vmatprep.subr.mxu0 0.0
  %7197 = vmatpush2.msra.mxu0 0.0
  %7198 = vmatprep.subr.mxu0 0.0
  %7199 = vmatpush2.msra.mxu0 0.0
  %7200 = vmatprep.subr.mxu0 0.0
  %7201 = vmatpush2.msra.mxu0 0.0
  %7202 = vmatprep.subr.mxu0 0.0
  %7203 = vmatpush2.msra.mxu0 0.0
  %7204 = vmatprep.subr.mxu0 0.0
  %7205 = vmatpush2.msra.mxu0 0.0
  %7206 = vmatprep.subr.mxu0 0.0
  %7207 = vmatpush2.msra.mxu0 0.0
  %7208 = vmatprep.mubr.f32.mxu0 0.0
  %7209 = vmatmul.mubr.f32.gmra.mxu0 %v7142
  %v7210 = vpop.f32.mrf.mxu0
  %v7211 = vadd.f32 0.0, %v7210
  %v7212 = vpop.f32.mrf.mxu0
  %7213 = vdwg.mxu0
  %7214 = vrot.lane.b32.xlu0 %v260, 64
  %v7215 = vpop.permute.xlu0 %7214
  %v7218 = vsel %vm355, %v5829, 0
  %7220 = vmatprep.subr.mxu0 0.0
  %7221 = vmatpush1.msra.mxu0 0.0
  %7222 = vmatprep.subr.mxu0 0.0
  %7223 = vmatpush1.msra.mxu0 0.0
  %7224 = vmatprep.subr.mxu0 0.0
  %7225 = vmatpush1.msra.mxu0 0.0
  %7226 = vmatprep.subr.mxu0 0.0
  %7227 = vmatpush1.msra.mxu0 0.0
  %7228 = vmatprep.subr.mxu0 0.0
  %7229 = vmatpush1.msra.mxu0 0.0
  %7230 = vmatprep.subr.mxu0 0.0
  %7231 = vmatpush1.msra.mxu0 0.0
  %7232 = vmatprep.subr.mxu0 0.0
  %7233 = vmatpush1.msra.mxu0 0.0
  %7234 = vmatprep.subr.mxu0 0.0
  %7235 = vmatpush1.msra.mxu0 0.0
  %7236 = vmatprep.subr.mxu0 0.0
  %7237 = vmatpush1.msra.mxu0 0.0
  %7238 = vmatprep.subr.mxu0 0.0
  %7239 = vmatpush1.msra.mxu0 0.0
  %7240 = vmatprep.subr.mxu0 0.0
  %7241 = vmatpush1.msra.mxu0 0.0
  %7242 = vmatprep.subr.mxu0 0.0
  %7243 = vmatpush1.msra.mxu0 0.0
  %7244 = vmatprep.subr.mxu0 0.0
  %7245 = vmatpush1.msra.mxu0 0.0
  %7246 = vmatprep.subr.mxu0 0.0
  %7247 = vmatpush1.msra.mxu0 0.0
  %7248 = vmatprep.subr.mxu0 0.0
  %7249 = vmatpush1.msra.mxu0 0.0
  %7250 = vmatprep.subr.mxu0 0.0
  %7251 = vmatpush1.msra.mxu0 %v7215
  %7252 = vmatprep.subr.mxu0 0.0
  %7253 = vmatpush2.msra.mxu0 0.0
  %7254 = vmatprep.subr.mxu0 0.0
  %7255 = vmatpush2.msra.mxu0 0.0
  %7256 = vmatprep.subr.mxu0 0.0
  %7257 = vmatpush2.msra.mxu0 0.0
  %7258 = vmatprep.subr.mxu0 0.0
  %7259 = vmatpush2.msra.mxu0 0.0
  %7260 = vmatprep.subr.mxu0 0.0
  %7261 = vmatpush2.msra.mxu0 0.0
  %7262 = vmatprep.subr.mxu0 0.0
  %7263 = vmatpush2.msra.mxu0 0.0
  %7264 = vmatprep.subr.mxu0 0.0
  %7265 = vmatpush2.msra.mxu0 0.0
  %7266 = vmatprep.subr.mxu0 0.0
  %7267 = vmatpush2.msra.mxu0 0.0
  %7268 = vmatprep.subr.mxu0 0.0
  %7269 = vmatpush2.msra.mxu0 0.0
  %7270 = vmatprep.subr.mxu0 0.0
  %7271 = vmatpush2.msra.mxu0 0.0
  %7272 = vmatprep.subr.mxu0 0.0
  %7273 = vmatpush2.msra.mxu0 0.0
  %7274 = vmatprep.subr.mxu0 0.0
  %7275 = vmatpush2.msra.mxu0 0.0
  %7276 = vmatprep.subr.mxu0 0.0
  %7277 = vmatpush2.msra.mxu0 0.0
  %7278 = vmatprep.subr.mxu0 0.0
  %7279 = vmatpush2.msra.mxu0 0.0
  %7280 = vmatprep.subr.mxu0 0.0
  %7281 = vmatpush2.msra.mxu0 0.0
  %7282 = vmatprep.subr.mxu0 0.0
  %7283 = vmatpush2.msra.mxu0 0.0
  %7284 = vmatprep.mubr.f32.mxu0 0.0
  %7285 = vmatmul.mubr.f32.gmra.mxu0 %v7218
  %v7286 = vpop.f32.mrf.mxu0
  %v7287 = vadd.f32 0.0, %v7286
  %v7288 = vpop.f32.mrf.mxu0
  %7289 = vdwg.mxu0
  %7290 = vrot.lane.b32.xlu0 %v262, 64
  %v7291 = vpop.permute.xlu0 %7290
  %v7294 = vsel %vm355, %v5831, 0
  %7296 = vmatprep.subr.mxu0 0.0
  %7297 = vmatpush1.msra.mxu0 0.0
  %7298 = vmatprep.subr.mxu0 0.0
  %7299 = vmatpush1.msra.mxu0 0.0
  %7300 = vmatprep.subr.mxu0 0.0
  %7301 = vmatpush1.msra.mxu0 0.0
  %7302 = vmatprep.subr.mxu0 0.0
  %7303 = vmatpush1.msra.mxu0 0.0
  %7304 = vmatprep.subr.mxu0 0.0
  %7305 = vmatpush1.msra.mxu0 0.0
  %7306 = vmatprep.subr.mxu0 0.0
  %7307 = vmatpush1.msra.mxu0 0.0
  %7308 = vmatprep.subr.mxu0 0.0
  %7309 = vmatpush1.msra.mxu0 0.0
  %7310 = vmatprep.subr.mxu0 0.0
  %7311 = vmatpush1.msra.mxu0 0.0
  %7312 = vmatprep.subr.mxu0 0.0
  %7313 = vmatpush1.msra.mxu0 0.0
  %7314 = vmatprep.subr.mxu0 0.0
  %7315 = vmatpush1.msra.mxu0 0.0
  %7316 = vmatprep.subr.mxu0 0.0
  %7317 = vmatpush1.msra.mxu0 0.0
  %7318 = vmatprep.subr.mxu0 0.0
  %7319 = vmatpush1.msra.mxu0 0.0
  %7320 = vmatprep.subr.mxu0 0.0
  %7321 = vmatpush1.msra.mxu0 0.0
  %7322 = vmatprep.subr.mxu0 0.0
  %7323 = vmatpush1.msra.mxu0 0.0
  %7324 = vmatprep.subr.mxu0 0.0
  %7325 = vmatpush1.msra.mxu0 0.0
  %7326 = vmatprep.subr.mxu0 0.0
  %7327 = vmatpush1.msra.mxu0 %v7291
  %7328 = vmatprep.subr.mxu0 0.0
  %7329 = vmatpush2.msra.mxu0 0.0
  %7330 = vmatprep.subr.mxu0 0.0
  %7331 = vmatpush2.msra.mxu0 0.0
  %7332 = vmatprep.subr.mxu0 0.0
  %7333 = vmatpush2.msra.mxu0 0.0
  %7334 = vmatprep.subr.mxu0 0.0
  %7335 = vmatpush2.msra.mxu0 0.0
  %7336 = vmatprep.subr.mxu0 0.0
  %7337 = vmatpush2.msra.mxu0 0.0
  %7338 = vmatprep.subr.mxu0 0.0
  %7339 = vmatpush2.msra.mxu0 0.0
  %7340 = vmatprep.subr.mxu0 0.0
  %7341 = vmatpush2.msra.mxu0 0.0
  %7342 = vmatprep.subr.mxu0 0.0
  %7343 = vmatpush2.msra.mxu0 0.0
  %7344 = vmatprep.subr.mxu0 0.0
  %7345 = vmatpush2.msra.mxu0 0.0
  %7346 = vmatprep.subr.mxu0 0.0
  %7347 = vmatpush2.msra.mxu0 0.0
  %7348 = vmatprep.subr.mxu0 0.0
  %7349 = vmatpush2.msra.mxu0 0.0
  %7350 = vmatprep.subr.mxu0 0.0
  %7351 = vmatpush2.msra.mxu0 0.0
  %7352 = vmatprep.subr.mxu0 0.0
  %7353 = vmatpush2.msra.mxu0 0.0
  %7354 = vmatprep.subr.mxu0 0.0
  %7355 = vmatpush2.msra.mxu0 0.0
  %7356 = vmatprep.subr.mxu0 0.0
  %7357 = vmatpush2.msra.mxu0 0.0
  %7358 = vmatprep.subr.mxu0 0.0
  %7359 = vmatpush2.msra.mxu0 0.0
  %7360 = vmatprep.mubr.f32.mxu0 0.0
  %7361 = vmatmul.mubr.f32.gmra.mxu0 %v7294
  %v7362 = vpop.f32.mrf.mxu0
  %v7363 = vadd.f32 0.0, %v7362
  %v7364 = vpop.f32.mrf.mxu0
  %7365 = vdwg.mxu0
  %7366 = vrot.lane.b32.xlu0 %v264, 64
  %v7367 = vpop.permute.xlu0 %7366
  %v7370 = vsel %vm355, %v5833, 0
  %7372 = vmatprep.subr.mxu0 0.0
  %7373 = vmatpush1.msra.mxu0 0.0
  %7374 = vmatprep.subr.mxu0 0.0
  %7375 = vmatpush1.msra.mxu0 0.0
  %7376 = vmatprep.subr.mxu0 0.0
  %7377 = vmatpush1.msra.mxu0 0.0
  %7378 = vmatprep.subr.mxu0 0.0
  %7379 = vmatpush1.msra.mxu0 0.0
  %7380 = vmatprep.subr.mxu0 0.0
  %7381 = vmatpush1.msra.mxu0 0.0
  %7382 = vmatprep.subr.mxu0 0.0
  %7383 = vmatpush1.msra.mxu0 0.0
  %7384 = vmatprep.subr.mxu0 0.0
  %7385 = vmatpush1.msra.mxu0 0.0
  %7386 = vmatprep.subr.mxu0 0.0
  %7387 = vmatpush1.msra.mxu0 0.0
  %7388 = vmatprep.subr.mxu0 0.0
  %7389 = vmatpush1.msra.mxu0 0.0
  %7390 = vmatprep.subr.mxu0 0.0
  %7391 = vmatpush1.msra.mxu0 0.0
  %7392 = vmatprep.subr.mxu0 0.0
  %7393 = vmatpush1.msra.mxu0 0.0
  %7394 = vmatprep.subr.mxu0 0.0
  %7395 = vmatpush1.msra.mxu0 0.0
  %7396 = vmatprep.subr.mxu0 0.0
  %7397 = vmatpush1.msra.mxu0 0.0
  %7398 = vmatprep.subr.mxu0 0.0
  %7399 = vmatpush1.msra.mxu0 0.0
  %7400 = vmatprep.subr.mxu0 0.0
  %7401 = vmatpush1.msra.mxu0 0.0
  %7402 = vmatprep.subr.mxu0 0.0
  %7403 = vmatpush1.msra.mxu0 %v7367
  %7404 = vmatprep.subr.mxu0 0.0
  %7405 = vmatpush2.msra.mxu0 0.0
  %7406 = vmatprep.subr.mxu0 0.0
  %7407 = vmatpush2.msra.mxu0 0.0
  %7408 = vmatprep.subr.mxu0 0.0
  %7409 = vmatpush2.msra.mxu0 0.0
  %7410 = vmatprep.subr.mxu0 0.0
  %7411 = vmatpush2.msra.mxu0 0.0
  %7412 = vmatprep.subr.mxu0 0.0
  %7413 = vmatpush2.msra.mxu0 0.0
  %7414 = vmatprep.subr.mxu0 0.0
  %7415 = vmatpush2.msra.mxu0 0.0
  %7416 = vmatprep.subr.mxu0 0.0
  %7417 = vmatpush2.msra.mxu0 0.0
  %7418 = vmatprep.subr.mxu0 0.0
  %7419 = vmatpush2.msra.mxu0 0.0
  %7420 = vmatprep.subr.mxu0 0.0
  %7421 = vmatpush2.msra.mxu0 0.0
  %7422 = vmatprep.subr.mxu0 0.0
  %7423 = vmatpush2.msra.mxu0 0.0
  %7424 = vmatprep.subr.mxu0 0.0
  %7425 = vmatpush2.msra.mxu0 0.0
  %7426 = vmatprep.subr.mxu0 0.0
  %7427 = vmatpush2.msra.mxu0 0.0
  %7428 = vmatprep.subr.mxu0 0.0
  %7429 = vmatpush2.msra.mxu0 0.0
  %7430 = vmatprep.subr.mxu0 0.0
  %7431 = vmatpush2.msra.mxu0 0.0
  %7432 = vmatprep.subr.mxu0 0.0
  %7433 = vmatpush2.msra.mxu0 0.0
  %7434 = vmatprep.subr.mxu0 0.0
  %7435 = vmatpush2.msra.mxu0 0.0
  %7436 = vmatprep.mubr.f32.mxu0 0.0
  %7437 = vmatmul.mubr.f32.gmra.mxu0 %v7370
  %v7438 = vpop.f32.mrf.mxu0
  %v7439 = vadd.f32 0.0, %v7438
  %v7440 = vpop.f32.mrf.mxu0
  %7441 = vdwg.mxu0
  %7442 = vrot.lane.b32.xlu0 %v266, 64
  %v7443 = vpop.permute.xlu0 %7442
  %v7446 = vsel %vm355, %v5835, 0
  %7448 = vmatprep.subr.mxu0 0.0
  %7449 = vmatpush1.msra.mxu0 0.0
  %7450 = vmatprep.subr.mxu0 0.0
  %7451 = vmatpush1.msra.mxu0 0.0
  %7452 = vmatprep.subr.mxu0 0.0
  %7453 = vmatpush1.msra.mxu0 0.0
  %7454 = vmatprep.subr.mxu0 0.0
  %7455 = vmatpush1.msra.mxu0 0.0
  %7456 = vmatprep.subr.mxu0 0.0
  %7457 = vmatpush1.msra.mxu0 0.0
  %7458 = vmatprep.subr.mxu0 0.0
  %7459 = vmatpush1.msra.mxu0 0.0
  %7460 = vmatprep.subr.mxu0 0.0
  %7461 = vmatpush1.msra.mxu0 0.0
  %7462 = vmatprep.subr.mxu0 0.0
  %7463 = vmatpush1.msra.mxu0 0.0
  %7464 = vmatprep.subr.mxu0 0.0
  %7465 = vmatpush1.msra.mxu0 0.0
  %7466 = vmatprep.subr.mxu0 0.0
  %7467 = vmatpush1.msra.mxu0 0.0
  %7468 = vmatprep.subr.mxu0 0.0
  %7469 = vmatpush1.msra.mxu0 0.0
  %7470 = vmatprep.subr.mxu0 0.0
  %7471 = vmatpush1.msra.mxu0 0.0
  %7472 = vmatprep.subr.mxu0 0.0
  %7473 = vmatpush1.msra.mxu0 0.0
  %7474 = vmatprep.subr.mxu0 0.0
  %7475 = vmatpush1.msra.mxu0 0.0
  %7476 = vmatprep.subr.mxu0 0.0
  %7477 = vmatpush1.msra.mxu0 0.0
  %7478 = vmatprep.subr.mxu0 0.0
  %7479 = vmatpush1.msra.mxu0 %v7443
  %7480 = vmatprep.subr.mxu0 0.0
  %7481 = vmatpush2.msra.mxu0 0.0
  %7482 = vmatprep.subr.mxu0 0.0
  %7483 = vmatpush2.msra.mxu0 0.0
  %7484 = vmatprep.subr.mxu0 0.0
  %7485 = vmatpush2.msra.mxu0 0.0
  %7486 = vmatprep.subr.mxu0 0.0
  %7487 = vmatpush2.msra.mxu0 0.0
  %7488 = vmatprep.subr.mxu0 0.0
  %7489 = vmatpush2.msra.mxu0 0.0
  %7490 = vmatprep.subr.mxu0 0.0
  %7491 = vmatpush2.msra.mxu0 0.0
  %7492 = vmatprep.subr.mxu0 0.0
  %7493 = vmatpush2.msra.mxu0 0.0
  %7494 = vmatprep.subr.mxu0 0.0
  %7495 = vmatpush2.msra.mxu0 0.0
  %7496 = vmatprep.subr.mxu0 0.0
  %7497 = vmatpush2.msra.mxu0 0.0
  %7498 = vmatprep.subr.mxu0 0.0
  %7499 = vmatpush2.msra.mxu0 0.0
  %7500 = vmatprep.subr.mxu0 0.0
  %7501 = vmatpush2.msra.mxu0 0.0
  %7502 = vmatprep.subr.mxu0 0.0
  %7503 = vmatpush2.msra.mxu0 0.0
  %7504 = vmatprep.subr.mxu0 0.0
  %7505 = vmatpush2.msra.mxu0 0.0
  %7506 = vmatprep.subr.mxu0 0.0
  %7507 = vmatpush2.msra.mxu0 0.0
  %7508 = vmatprep.subr.mxu0 0.0
  %7509 = vmatpush2.msra.mxu0 0.0
  %7510 = vmatprep.subr.mxu0 0.0
  %7511 = vmatpush2.msra.mxu0 0.0
  %7512 = vmatprep.mubr.f32.mxu0 0.0
  %7513 = vmatmul.mubr.f32.gmra.mxu0 %v7446
  %v7514 = vpop.f32.mrf.mxu0
  %v7515 = vadd.f32 0.0, %v7514
  %v7516 = vpop.f32.mrf.mxu0
  %7517 = vdwg.mxu0
  %7518 = vrot.lane.b32.xlu0 %v268, 64
  %v7519 = vpop.permute.xlu0 %7518
  %v7522 = vsel %vm355, %v5837, 0
  %7524 = vmatprep.subr.mxu0 0.0
  %7525 = vmatpush1.msra.mxu0 0.0
  %7526 = vmatprep.subr.mxu0 0.0
  %7527 = vmatpush1.msra.mxu0 0.0
  %7528 = vmatprep.subr.mxu0 0.0
  %7529 = vmatpush1.msra.mxu0 0.0
  %7530 = vmatprep.subr.mxu0 0.0
  %7531 = vmatpush1.msra.mxu0 0.0
  %7532 = vmatprep.subr.mxu0 0.0
  %7533 = vmatpush1.msra.mxu0 0.0
  %7534 = vmatprep.subr.mxu0 0.0
  %7535 = vmatpush1.msra.mxu0 0.0
  %7536 = vmatprep.subr.mxu0 0.0
  %7537 = vmatpush1.msra.mxu0 0.0
  %7538 = vmatprep.subr.mxu0 0.0
  %7539 = vmatpush1.msra.mxu0 0.0
  %7540 = vmatprep.subr.mxu0 0.0
  %7541 = vmatpush1.msra.mxu0 0.0
  %7542 = vmatprep.subr.mxu0 0.0
  %7543 = vmatpush1.msra.mxu0 0.0
  %7544 = vmatprep.subr.mxu0 0.0
  %7545 = vmatpush1.msra.mxu0 0.0
  %7546 = vmatprep.subr.mxu0 0.0
  %7547 = vmatpush1.msra.mxu0 0.0
  %7548 = vmatprep.subr.mxu0 0.0
  %7549 = vmatpush1.msra.mxu0 0.0
  %7550 = vmatprep.subr.mxu0 0.0
  %7551 = vmatpush1.msra.mxu0 0.0
  %7552 = vmatprep.subr.mxu0 0.0
  %7553 = vmatpush1.msra.mxu0 0.0
  %7554 = vmatprep.subr.mxu0 0.0
  %7555 = vmatpush1.msra.mxu0 %v7519
  %7556 = vmatprep.subr.mxu0 0.0
  %7557 = vmatpush2.msra.mxu0 0.0
  %7558 = vmatprep.subr.mxu0 0.0
  %7559 = vmatpush2.msra.mxu0 0.0
  %7560 = vmatprep.subr.mxu0 0.0
  %7561 = vmatpush2.msra.mxu0 0.0
  %7562 = vmatprep.subr.mxu0 0.0
  %7563 = vmatpush2.msra.mxu0 0.0
  %7564 = vmatprep.subr.mxu0 0.0
  %7565 = vmatpush2.msra.mxu0 0.0
  %7566 = vmatprep.subr.mxu0 0.0
  %7567 = vmatpush2.msra.mxu0 0.0
  %7568 = vmatprep.subr.mxu0 0.0
  %7569 = vmatpush2.msra.mxu0 0.0
  %7570 = vmatprep.subr.mxu0 0.0
  %7571 = vmatpush2.msra.mxu0 0.0
  %7572 = vmatprep.subr.mxu0 0.0
  %7573 = vmatpush2.msra.mxu0 0.0
  %7574 = vmatprep.subr.mxu0 0.0
  %7575 = vmatpush2.msra.mxu0 0.0
  %7576 = vmatprep.subr.mxu0 0.0
  %7577 = vmatpush2.msra.mxu0 0.0
  %7578 = vmatprep.subr.mxu0 0.0
  %7579 = vmatpush2.msra.mxu0 0.0
  %7580 = vmatprep.subr.mxu0 0.0
  %7581 = vmatpush2.msra.mxu0 0.0
  %7582 = vmatprep.subr.mxu0 0.0
  %7583 = vmatpush2.msra.mxu0 0.0
  %7584 = vmatprep.subr.mxu0 0.0
  %7585 = vmatpush2.msra.mxu0 0.0
  %7586 = vmatprep.subr.mxu0 0.0
  %7587 = vmatpush2.msra.mxu0 0.0
  %7588 = vmatprep.mubr.f32.mxu0 0.0
  %7589 = vmatmul.mubr.f32.gmra.mxu0 %v7522
  %v7590 = vpop.f32.mrf.mxu0
  %v7591 = vadd.f32 0.0, %v7590
  %v7592 = vpop.f32.mrf.mxu0
  %7593 = vdwg.mxu0
  %7594 = vrot.lane.b32.xlu0 %v270, 64
  %v7595 = vpop.permute.xlu0 %7594
  %v7598 = vsel %vm355, %v5839, 0
  %7600 = vmatprep.subr.mxu0 0.0
  %7601 = vmatpush1.msra.mxu0 0.0
  %7602 = vmatprep.subr.mxu0 0.0
  %7603 = vmatpush1.msra.mxu0 0.0
  %7604 = vmatprep.subr.mxu0 0.0
  %7605 = vmatpush1.msra.mxu0 0.0
  %7606 = vmatprep.subr.mxu0 0.0
  %7607 = vmatpush1.msra.mxu0 0.0
  %7608 = vmatprep.subr.mxu0 0.0
  %7609 = vmatpush1.msra.mxu0 0.0
  %7610 = vmatprep.subr.mxu0 0.0
  %7611 = vmatpush1.msra.mxu0 0.0
  %7612 = vmatprep.subr.mxu0 0.0
  %7613 = vmatpush1.msra.mxu0 0.0
  %7614 = vmatprep.subr.mxu0 0.0
  %7615 = vmatpush1.msra.mxu0 0.0
  %7616 = vmatprep.subr.mxu0 0.0
  %7617 = vmatpush1.msra.mxu0 0.0
  %7618 = vmatprep.subr.mxu0 0.0
  %7619 = vmatpush1.msra.mxu0 0.0
  %7620 = vmatprep.subr.mxu0 0.0
  %7621 = vmatpush1.msra.mxu0 0.0
  %7622 = vmatprep.subr.mxu0 0.0
  %7623 = vmatpush1.msra.mxu0 0.0
  %7624 = vmatprep.subr.mxu0 0.0
  %7625 = vmatpush1.msra.mxu0 0.0
  %7626 = vmatprep.subr.mxu0 0.0
  %7627 = vmatpush1.msra.mxu0 0.0
  %7628 = vmatprep.subr.mxu0 0.0
  %7629 = vmatpush1.msra.mxu0 0.0
  %7630 = vmatprep.subr.mxu0 0.0
  %7631 = vmatpush1.msra.mxu0 %v7595
  %7632 = vmatprep.subr.mxu0 0.0
  %7633 = vmatpush2.msra.mxu0 0.0
  %7634 = vmatprep.subr.mxu0 0.0
  %7635 = vmatpush2.msra.mxu0 0.0
  %7636 = vmatprep.subr.mxu0 0.0
  %7637 = vmatpush2.msra.mxu0 0.0
  %7638 = vmatprep.subr.mxu0 0.0
  %7639 = vmatpush2.msra.mxu0 0.0
  %7640 = vmatprep.subr.mxu0 0.0
  %7641 = vmatpush2.msra.mxu0 0.0
  %7642 = vmatprep.subr.mxu0 0.0
  %7643 = vmatpush2.msra.mxu0 0.0
  %7644 = vmatprep.subr.mxu0 0.0
  %7645 = vmatpush2.msra.mxu0 0.0
  %7646 = vmatprep.subr.mxu0 0.0
  %7647 = vmatpush2.msra.mxu0 0.0
  %7648 = vmatprep.subr.mxu0 0.0
  %7649 = vmatpush2.msra.mxu0 0.0
  %7650 = vmatprep.subr.mxu0 0.0
  %7651 = vmatpush2.msra.mxu0 0.0
  %7652 = vmatprep.subr.mxu0 0.0
  %7653 = vmatpush2.msra.mxu0 0.0
  %7654 = vmatprep.subr.mxu0 0.0
  %7655 = vmatpush2.msra.mxu0 0.0
  %7656 = vmatprep.subr.mxu0 0.0
  %7657 = vmatpush2.msra.mxu0 0.0
  %7658 = vmatprep.subr.mxu0 0.0
  %7659 = vmatpush2.msra.mxu0 0.0
  %7660 = vmatprep.subr.mxu0 0.0
  %7661 = vmatpush2.msra.mxu0 0.0
  %7662 = vmatprep.subr.mxu0 0.0
  %7663 = vmatpush2.msra.mxu0 0.0
  %7664 = vmatprep.mubr.f32.mxu0 0.0
  %7665 = vmatmul.mubr.f32.gmra.mxu0 %v7598
  %v7666 = vpop.f32.mrf.mxu0
  %v7667 = vadd.f32 0.0, %v7666
  %v7668 = vpop.f32.mrf.mxu0
  %7669 = vdwg.mxu0
  %7670 = vrot.lane.b32.xlu0 %v272, 64
  %v7671 = vpop.permute.xlu0 %7670
  %v7674 = vsel %vm355, %v5841, 0
  %7676 = vmatprep.subr.mxu0 0.0
  %7677 = vmatpush1.msra.mxu0 0.0
  %7678 = vmatprep.subr.mxu0 0.0
  %7679 = vmatpush1.msra.mxu0 0.0
  %7680 = vmatprep.subr.mxu0 0.0
  %7681 = vmatpush1.msra.mxu0 0.0
  %7682 = vmatprep.subr.mxu0 0.0
  %7683 = vmatpush1.msra.mxu0 0.0
  %7684 = vmatprep.subr.mxu0 0.0
  %7685 = vmatpush1.msra.mxu0 0.0
  %7686 = vmatprep.subr.mxu0 0.0
  %7687 = vmatpush1.msra.mxu0 0.0
  %7688 = vmatprep.subr.mxu0 0.0
  %7689 = vmatpush1.msra.mxu0 0.0
  %7690 = vmatprep.subr.mxu0 0.0
  %7691 = vmatpush1.msra.mxu0 0.0
  %7692 = vmatprep.subr.mxu0 0.0
  %7693 = vmatpush1.msra.mxu0 0.0
  %7694 = vmatprep.subr.mxu0 0.0
  %7695 = vmatpush1.msra.mxu0 0.0
  %7696 = vmatprep.subr.mxu0 0.0
  %7697 = vmatpush1.msra.mxu0 0.0
  %7698 = vmatprep.subr.mxu0 0.0
  %7699 = vmatpush1.msra.mxu0 0.0
  %7700 = vmatprep.subr.mxu0 0.0
  %7701 = vmatpush1.msra.mxu0 0.0
  %7702 = vmatprep.subr.mxu0 0.0
  %7703 = vmatpush1.msra.mxu0 0.0
  %7704 = vmatprep.subr.mxu0 0.0
  %7705 = vmatpush1.msra.mxu0 0.0
  %7706 = vmatprep.subr.mxu0 0.0
  %7707 = vmatpush1.msra.mxu0 %v7671
  %7708 = vmatprep.subr.mxu0 0.0
  %7709 = vmatpush2.msra.mxu0 0.0
  %7710 = vmatprep.subr.mxu0 0.0
  %7711 = vmatpush2.msra.mxu0 0.0
  %7712 = vmatprep.subr.mxu0 0.0
  %7713 = vmatpush2.msra.mxu0 0.0
  %7714 = vmatprep.subr.mxu0 0.0
  %7715 = vmatpush2.msra.mxu0 0.0
  %7716 = vmatprep.subr.mxu0 0.0
  %7717 = vmatpush2.msra.mxu0 0.0
  %7718 = vmatprep.subr.mxu0 0.0
  %7719 = vmatpush2.msra.mxu0 0.0
  %7720 = vmatprep.subr.mxu0 0.0
  %7721 = vmatpush2.msra.mxu0 0.0
  %7722 = vmatprep.subr.mxu0 0.0
  %7723 = vmatpush2.msra.mxu0 0.0
  %7724 = vmatprep.subr.mxu0 0.0
  %7725 = vmatpush2.msra.mxu0 0.0
  %7726 = vmatprep.subr.mxu0 0.0
  %7727 = vmatpush2.msra.mxu0 0.0
  %7728 = vmatprep.subr.mxu0 0.0
  %7729 = vmatpush2.msra.mxu0 0.0
  %7730 = vmatprep.subr.mxu0 0.0
  %7731 = vmatpush2.msra.mxu0 0.0
  %7732 = vmatprep.subr.mxu0 0.0
  %7733 = vmatpush2.msra.mxu0 0.0
  %7734 = vmatprep.subr.mxu0 0.0
  %7735 = vmatpush2.msra.mxu0 0.0
  %7736 = vmatprep.subr.mxu0 0.0
  %7737 = vmatpush2.msra.mxu0 0.0
  %7738 = vmatprep.subr.mxu0 0.0
  %7739 = vmatpush2.msra.mxu0 0.0
  %7740 = vmatprep.mubr.f32.mxu0 0.0
  %7741 = vmatmul.mubr.f32.gmra.mxu0 %v7674
  %v7742 = vpop.f32.mrf.mxu0
  %v7743 = vadd.f32 0.0, %v7742
  %v7744 = vpop.f32.mrf.mxu0
  %7745 = vdwg.mxu0
  %7746 = vrot.lane.b32.xlu0 %v274, 64
  %v7747 = vpop.permute.xlu0 %7746
  %v7750 = vsel %vm355, %v5843, 0
  %7752 = vmatprep.subr.mxu0 0.0
  %7753 = vmatpush1.msra.mxu0 0.0
  %7754 = vmatprep.subr.mxu0 0.0
  %7755 = vmatpush1.msra.mxu0 0.0
  %7756 = vmatprep.subr.mxu0 0.0
  %7757 = vmatpush1.msra.mxu0 0.0
  %7758 = vmatprep.subr.mxu0 0.0
  %7759 = vmatpush1.msra.mxu0 0.0
  %7760 = vmatprep.subr.mxu0 0.0
  %7761 = vmatpush1.msra.mxu0 0.0
  %7762 = vmatprep.subr.mxu0 0.0
  %7763 = vmatpush1.msra.mxu0 0.0
  %7764 = vmatprep.subr.mxu0 0.0
  %7765 = vmatpush1.msra.mxu0 0.0
  %7766 = vmatprep.subr.mxu0 0.0
  %7767 = vmatpush1.msra.mxu0 0.0
  %7768 = vmatprep.subr.mxu0 0.0
  %7769 = vmatpush1.msra.mxu0 0.0
  %7770 = vmatprep.subr.mxu0 0.0
  %7771 = vmatpush1.msra.mxu0 0.0
  %7772 = vmatprep.subr.mxu0 0.0
  %7773 = vmatpush1.msra.mxu0 0.0
  %7774 = vmatprep.subr.mxu0 0.0
  %7775 = vmatpush1.msra.mxu0 0.0
  %7776 = vmatprep.subr.mxu0 0.0
  %7777 = vmatpush1.msra.mxu0 0.0
  %7778 = vmatprep.subr.mxu0 0.0
  %7779 = vmatpush1.msra.mxu0 0.0
  %7780 = vmatprep.subr.mxu0 0.0
  %7781 = vmatpush1.msra.mxu0 0.0
  %7782 = vmatprep.subr.mxu0 0.0
  %7783 = vmatpush1.msra.mxu0 %v7747
  %7784 = vmatprep.subr.mxu0 0.0
  %7785 = vmatpush2.msra.mxu0 0.0
  %7786 = vmatprep.subr.mxu0 0.0
  %7787 = vmatpush2.msra.mxu0 0.0
  %7788 = vmatprep.subr.mxu0 0.0
  %7789 = vmatpush2.msra.mxu0 0.0
  %7790 = vmatprep.subr.mxu0 0.0
  %7791 = vmatpush2.msra.mxu0 0.0
  %7792 = vmatprep.subr.mxu0 0.0
  %7793 = vmatpush2.msra.mxu0 0.0
  %7794 = vmatprep.subr.mxu0 0.0
  %7795 = vmatpush2.msra.mxu0 0.0
  %7796 = vmatprep.subr.mxu0 0.0
  %7797 = vmatpush2.msra.mxu0 0.0
  %7798 = vmatprep.subr.mxu0 0.0
  %7799 = vmatpush2.msra.mxu0 0.0
  %7800 = vmatprep.subr.mxu0 0.0
  %7801 = vmatpush2.msra.mxu0 0.0
  %7802 = vmatprep.subr.mxu0 0.0
  %7803 = vmatpush2.msra.mxu0 0.0
  %7804 = vmatprep.subr.mxu0 0.0
  %7805 = vmatpush2.msra.mxu0 0.0
  %7806 = vmatprep.subr.mxu0 0.0
  %7807 = vmatpush2.msra.mxu0 0.0
  %7808 = vmatprep.subr.mxu0 0.0
  %7809 = vmatpush2.msra.mxu0 0.0
  %7810 = vmatprep.subr.mxu0 0.0
  %7811 = vmatpush2.msra.mxu0 0.0
  %7812 = vmatprep.subr.mxu0 0.0
  %7813 = vmatpush2.msra.mxu0 0.0
  %7814 = vmatprep.subr.mxu0 0.0
  %7815 = vmatpush2.msra.mxu0 0.0
  %7816 = vmatprep.mubr.f32.mxu0 0.0
  %7817 = vmatmul.mubr.f32.gmra.mxu0 %v7750
  %v7818 = vpop.f32.mrf.mxu0
  %v7819 = vadd.f32 0.0, %v7818
  %v7820 = vpop.f32.mrf.mxu0
  %7821 = vdwg.mxu0
  %7822 = vrot.lane.b32.xlu0 %v276, 64
  %v7823 = vpop.permute.xlu0 %7822
  %v7826 = vsel %vm355, %v5845, 0
  %7828 = vmatprep.subr.mxu0 0.0
  %7829 = vmatpush1.msra.mxu0 0.0
  %7830 = vmatprep.subr.mxu0 0.0
  %7831 = vmatpush1.msra.mxu0 0.0
  %7832 = vmatprep.subr.mxu0 0.0
  %7833 = vmatpush1.msra.mxu0 0.0
  %7834 = vmatprep.subr.mxu0 0.0
  %7835 = vmatpush1.msra.mxu0 0.0
  %7836 = vmatprep.subr.mxu0 0.0
  %7837 = vmatpush1.msra.mxu0 0.0
  %7838 = vmatprep.subr.mxu0 0.0
  %7839 = vmatpush1.msra.mxu0 0.0
  %7840 = vmatprep.subr.mxu0 0.0
  %7841 = vmatpush1.msra.mxu0 0.0
  %7842 = vmatprep.subr.mxu0 0.0
  %7843 = vmatpush1.msra.mxu0 0.0
  %7844 = vmatprep.subr.mxu0 0.0
  %7845 = vmatpush1.msra.mxu0 0.0
  %7846 = vmatprep.subr.mxu0 0.0
  %7847 = vmatpush1.msra.mxu0 0.0
  %7848 = vmatprep.subr.mxu0 0.0
  %7849 = vmatpush1.msra.mxu0 0.0
  %7850 = vmatprep.subr.mxu0 0.0
  %7851 = vmatpush1.msra.mxu0 0.0
  %7852 = vmatprep.subr.mxu0 0.0
  %7853 = vmatpush1.msra.mxu0 0.0
  %7854 = vmatprep.subr.mxu0 0.0
  %7855 = vmatpush1.msra.mxu0 0.0
  %7856 = vmatprep.subr.mxu0 0.0
  %7857 = vmatpush1.msra.mxu0 0.0
  %7858 = vmatprep.subr.mxu0 0.0
  %7859 = vmatpush1.msra.mxu0 %v7823
  %7860 = vmatprep.subr.mxu0 0.0
  %7861 = vmatpush2.msra.mxu0 0.0
  %7862 = vmatprep.subr.mxu0 0.0
  %7863 = vmatpush2.msra.mxu0 0.0
  %7864 = vmatprep.subr.mxu0 0.0
  %7865 = vmatpush2.msra.mxu0 0.0
  %7866 = vmatprep.subr.mxu0 0.0
  %7867 = vmatpush2.msra.mxu0 0.0
  %7868 = vmatprep.subr.mxu0 0.0
  %7869 = vmatpush2.msra.mxu0 0.0
  %7870 = vmatprep.subr.mxu0 0.0
  %7871 = vmatpush2.msra.mxu0 0.0
  %7872 = vmatprep.subr.mxu0 0.0
  %7873 = vmatpush2.msra.mxu0 0.0
  %7874 = vmatprep.subr.mxu0 0.0
  %7875 = vmatpush2.msra.mxu0 0.0
  %7876 = vmatprep.subr.mxu0 0.0
  %7877 = vmatpush2.msra.mxu0 0.0
  %7878 = vmatprep.subr.mxu0 0.0
  %7879 = vmatpush2.msra.mxu0 0.0
  %7880 = vmatprep.subr.mxu0 0.0
  %7881 = vmatpush2.msra.mxu0 0.0
  %7882 = vmatprep.subr.mxu0 0.0
  %7883 = vmatpush2.msra.mxu0 0.0
  %7884 = vmatprep.subr.mxu0 0.0
  %7885 = vmatpush2.msra.mxu0 0.0
  %7886 = vmatprep.subr.mxu0 0.0
  %7887 = vmatpush2.msra.mxu0 0.0
  %7888 = vmatprep.subr.mxu0 0.0
  %7889 = vmatpush2.msra.mxu0 0.0
  %7890 = vmatprep.subr.mxu0 0.0
  %7891 = vmatpush2.msra.mxu0 0.0
  %7892 = vmatprep.mubr.f32.mxu0 0.0
  %7893 = vmatmul.mubr.f32.gmra.mxu0 %v7826
  %v7894 = vpop.f32.mrf.mxu0
  %v7895 = vadd.f32 0.0, %v7894
  %v7896 = vpop.f32.mrf.mxu0
  %7897 = vdwg.mxu0
  %7898 = vrot.lane.b32.xlu0 %v278, 64
  %v7899 = vpop.permute.xlu0 %7898
  %v7902 = vsel %vm355, %v5847, 0
  %7904 = vmatprep.subr.mxu0 0.0
  %7905 = vmatpush1.msra.mxu0 0.0
  %7906 = vmatprep.subr.mxu0 0.0
  %7907 = vmatpush1.msra.mxu0 0.0
  %7908 = vmatprep.subr.mxu0 0.0
  %7909 = vmatpush1.msra.mxu0 0.0
  %7910 = vmatprep.subr.mxu0 0.0
  %7911 = vmatpush1.msra.mxu0 0.0
  %7912 = vmatprep.subr.mxu0 0.0
  %7913 = vmatpush1.msra.mxu0 0.0
  %7914 = vmatprep.subr.mxu0 0.0
  %7915 = vmatpush1.msra.mxu0 0.0
  %7916 = vmatprep.subr.mxu0 0.0
  %7917 = vmatpush1.msra.mxu0 0.0
  %7918 = vmatprep.subr.mxu0 0.0
  %7919 = vmatpush1.msra.mxu0 0.0
  %7920 = vmatprep.subr.mxu0 0.0
  %7921 = vmatpush1.msra.mxu0 0.0
  %7922 = vmatprep.subr.mxu0 0.0
  %7923 = vmatpush1.msra.mxu0 0.0
  %7924 = vmatprep.subr.mxu0 0.0
  %7925 = vmatpush1.msra.mxu0 0.0
  %7926 = vmatprep.subr.mxu0 0.0
  %7927 = vmatpush1.msra.mxu0 0.0
  %7928 = vmatprep.subr.mxu0 0.0
  %7929 = vmatpush1.msra.mxu0 0.0
  %7930 = vmatprep.subr.mxu0 0.0
  %7931 = vmatpush1.msra.mxu0 0.0
  %7932 = vmatprep.subr.mxu0 0.0
  %7933 = vmatpush1.msra.mxu0 0.0
  %7934 = vmatprep.subr.mxu0 0.0
  %7935 = vmatpush1.msra.mxu0 %v7899
  %7936 = vmatprep.subr.mxu0 0.0
  %7937 = vmatpush2.msra.mxu0 0.0
  %7938 = vmatprep.subr.mxu0 0.0
  %7939 = vmatpush2.msra.mxu0 0.0
  %7940 = vmatprep.subr.mxu0 0.0
  %7941 = vmatpush2.msra.mxu0 0.0
  %7942 = vmatprep.subr.mxu0 0.0
  %7943 = vmatpush2.msra.mxu0 0.0
  %7944 = vmatprep.subr.mxu0 0.0
  %7945 = vmatpush2.msra.mxu0 0.0
  %7946 = vmatprep.subr.mxu0 0.0
  %7947 = vmatpush2.msra.mxu0 0.0
  %7948 = vmatprep.subr.mxu0 0.0
  %7949 = vmatpush2.msra.mxu0 0.0
  %7950 = vmatprep.subr.mxu0 0.0
  %7951 = vmatpush2.msra.mxu0 0.0
  %7952 = vmatprep.subr.mxu0 0.0
  %7953 = vmatpush2.msra.mxu0 0.0
  %7954 = vmatprep.subr.mxu0 0.0
  %7955 = vmatpush2.msra.mxu0 0.0
  %7956 = vmatprep.subr.mxu0 0.0
  %7957 = vmatpush2.msra.mxu0 0.0
  %7958 = vmatprep.subr.mxu0 0.0
  %7959 = vmatpush2.msra.mxu0 0.0
  %7960 = vmatprep.subr.mxu0 0.0
  %7961 = vmatpush2.msra.mxu0 0.0
  %7962 = vmatprep.subr.mxu0 0.0
  %7963 = vmatpush2.msra.mxu0 0.0
  %7964 = vmatprep.subr.mxu0 0.0
  %7965 = vmatpush2.msra.mxu0 0.0
  %7966 = vmatprep.subr.mxu0 0.0
  %7967 = vmatpush2.msra.mxu0 0.0
  %7968 = vmatprep.mubr.f32.mxu0 0.0
  %7969 = vmatmul.mubr.f32.gmra.mxu0 %v7902
  %v7970 = vpop.f32.mrf.mxu0
  %v7971 = vadd.f32 0.0, %v7970
  %v7972 = vpop.f32.mrf.mxu0
  %7973 = vdwg.mxu0
  %7974 = vrot.lane.b32.xlu0 %v280, 64
  %v7975 = vpop.permute.xlu0 %7974
  %v7978 = vsel %vm355, %v5849, 0
  %7980 = vmatprep.subr.mxu0 0.0
  %7981 = vmatpush1.msra.mxu0 0.0
  %7982 = vmatprep.subr.mxu0 0.0
  %7983 = vmatpush1.msra.mxu0 0.0
  %7984 = vmatprep.subr.mxu0 0.0
  %7985 = vmatpush1.msra.mxu0 0.0
  %7986 = vmatprep.subr.mxu0 0.0
  %7987 = vmatpush1.msra.mxu0 0.0
  %7988 = vmatprep.subr.mxu0 0.0
  %7989 = vmatpush1.msra.mxu0 0.0
  %7990 = vmatprep.subr.mxu0 0.0
  %7991 = vmatpush1.msra.mxu0 0.0
  %7992 = vmatprep.subr.mxu0 0.0
  %7993 = vmatpush1.msra.mxu0 0.0
  %7994 = vmatprep.subr.mxu0 0.0
  %7995 = vmatpush1.msra.mxu0 0.0
  %7996 = vmatprep.subr.mxu0 0.0
  %7997 = vmatpush1.msra.mxu0 0.0
  %7998 = vmatprep.subr.mxu0 0.0
  %7999 = vmatpush1.msra.mxu0 0.0
  %8000 = vmatprep.subr.mxu0 0.0
  %8001 = vmatpush1.msra.mxu0 0.0
  %8002 = vmatprep.subr.mxu0 0.0
  %8003 = vmatpush1.msra.mxu0 0.0
  %8004 = vmatprep.subr.mxu0 0.0
  %8005 = vmatpush1.msra.mxu0 0.0
  %8006 = vmatprep.subr.mxu0 0.0
  %8007 = vmatpush1.msra.mxu0 0.0
  %8008 = vmatprep.subr.mxu0 0.0
  %8009 = vmatpush1.msra.mxu0 0.0
  %8010 = vmatprep.subr.mxu0 0.0
  %8011 = vmatpush1.msra.mxu0 %v7975
  %8012 = vmatprep.subr.mxu0 0.0
  %8013 = vmatpush2.msra.mxu0 0.0
  %8014 = vmatprep.subr.mxu0 0.0
  %8015 = vmatpush2.msra.mxu0 0.0
  %8016 = vmatprep.subr.mxu0 0.0
  %8017 = vmatpush2.msra.mxu0 0.0
  %8018 = vmatprep.subr.mxu0 0.0
  %8019 = vmatpush2.msra.mxu0 0.0
  %8020 = vmatprep.subr.mxu0 0.0
  %8021 = vmatpush2.msra.mxu0 0.0
  %8022 = vmatprep.subr.mxu0 0.0
  %8023 = vmatpush2.msra.mxu0 0.0
  %8024 = vmatprep.subr.mxu0 0.0
  %8025 = vmatpush2.msra.mxu0 0.0
  %8026 = vmatprep.subr.mxu0 0.0
  %8027 = vmatpush2.msra.mxu0 0.0
  %8028 = vmatprep.subr.mxu0 0.0
  %8029 = vmatpush2.msra.mxu0 0.0
  %8030 = vmatprep.subr.mxu0 0.0
  %8031 = vmatpush2.msra.mxu0 0.0
  %8032 = vmatprep.subr.mxu0 0.0
  %8033 = vmatpush2.msra.mxu0 0.0
  %8034 = vmatprep.subr.mxu0 0.0
  %8035 = vmatpush2.msra.mxu0 0.0
  %8036 = vmatprep.subr.mxu0 0.0
  %8037 = vmatpush2.msra.mxu0 0.0
  %8038 = vmatprep.subr.mxu0 0.0
  %8039 = vmatpush2.msra.mxu0 0.0
  %8040 = vmatprep.subr.mxu0 0.0
  %8041 = vmatpush2.msra.mxu0 0.0
  %8042 = vmatprep.subr.mxu0 0.0
  %8043 = vmatpush2.msra.mxu0 0.0
  %8044 = vmatprep.mubr.f32.mxu0 0.0
  %8045 = vmatmul.mubr.f32.gmra.mxu0 %v7978
  %v8046 = vpop.f32.mrf.mxu0
  %v8047 = vadd.f32 0.0, %v8046
  %v8048 = vpop.f32.mrf.mxu0
  %8049 = vdwg.mxu0
  %8050 = vrot.lane.b32.xlu0 %v282, 64
  %v8051 = vpop.permute.xlu0 %8050
  %v8054 = vsel %vm355, %v5851, 0
  %8056 = vmatprep.subr.mxu0 0.0
  %8057 = vmatpush1.msra.mxu0 0.0
  %8058 = vmatprep.subr.mxu0 0.0
  %8059 = vmatpush1.msra.mxu0 0.0
  %8060 = vmatprep.subr.mxu0 0.0
  %8061 = vmatpush1.msra.mxu0 0.0
  %8062 = vmatprep.subr.mxu0 0.0
  %8063 = vmatpush1.msra.mxu0 0.0
  %8064 = vmatprep.subr.mxu0 0.0
  %8065 = vmatpush1.msra.mxu0 0.0
  %8066 = vmatprep.subr.mxu0 0.0
  %8067 = vmatpush1.msra.mxu0 0.0
  %8068 = vmatprep.subr.mxu0 0.0
  %8069 = vmatpush1.msra.mxu0 0.0
  %8070 = vmatprep.subr.mxu0 0.0
  %8071 = vmatpush1.msra.mxu0 0.0
  %8072 = vmatprep.subr.mxu0 0.0
  %8073 = vmatpush1.msra.mxu0 0.0
  %8074 = vmatprep.subr.mxu0 0.0
  %8075 = vmatpush1.msra.mxu0 0.0
  %8076 = vmatprep.subr.mxu0 0.0
  %8077 = vmatpush1.msra.mxu0 0.0
  %8078 = vmatprep.subr.mxu0 0.0
  %8079 = vmatpush1.msra.mxu0 0.0
  %8080 = vmatprep.subr.mxu0 0.0
  %8081 = vmatpush1.msra.mxu0 0.0
  %8082 = vmatprep.subr.mxu0 0.0
  %8083 = vmatpush1.msra.mxu0 0.0
  %8084 = vmatprep.subr.mxu0 0.0
  %8085 = vmatpush1.msra.mxu0 0.0
  %8086 = vmatprep.subr.mxu0 0.0
  %8087 = vmatpush1.msra.mxu0 %v8051
  %8088 = vmatprep.subr.mxu0 0.0
  %8089 = vmatpush2.msra.mxu0 0.0
  %8090 = vmatprep.subr.mxu0 0.0
  %8091 = vmatpush2.msra.mxu0 0.0
  %8092 = vmatprep.subr.mxu0 0.0
  %8093 = vmatpush2.msra.mxu0 0.0
  %8094 = vmatprep.subr.mxu0 0.0
  %8095 = vmatpush2.msra.mxu0 0.0
  %8096 = vmatprep.subr.mxu0 0.0
  %8097 = vmatpush2.msra.mxu0 0.0
  %8098 = vmatprep.subr.mxu0 0.0
  %8099 = vmatpush2.msra.mxu0 0.0
  %8100 = vmatprep.subr.mxu0 0.0
  %8101 = vmatpush2.msra.mxu0 0.0
  %8102 = vmatprep.subr.mxu0 0.0
  %8103 = vmatpush2.msra.mxu0 0.0
  %8104 = vmatprep.subr.mxu0 0.0
  %8105 = vmatpush2.msra.mxu0 0.0
  %8106 = vmatprep.subr.mxu0 0.0
  %8107 = vmatpush2.msra.mxu0 0.0
  %8108 = vmatprep.subr.mxu0 0.0
  %8109 = vmatpush2.msra.mxu0 0.0
  %8110 = vmatprep.subr.mxu0 0.0
  %8111 = vmatpush2.msra.mxu0 0.0
  %8112 = vmatprep.subr.mxu0 0.0
  %8113 = vmatpush2.msra.mxu0 0.0
  %8114 = vmatprep.subr.mxu0 0.0
  %8115 = vmatpush2.msra.mxu0 0.0
  %8116 = vmatprep.subr.mxu0 0.0
  %8117 = vmatpush2.msra.mxu0 0.0
  %8118 = vmatprep.subr.mxu0 0.0
  %8119 = vmatpush2.msra.mxu0 0.0
  %8120 = vmatprep.mubr.f32.mxu0 0.0
  %8121 = vmatmul.mubr.f32.gmra.mxu0 %v8054
  %v8122 = vpop.f32.mrf.mxu0
  %v8123 = vadd.f32 0.0, %v8122
  %v8124 = vpop.f32.mrf.mxu0
  %8125 = vdwg.mxu0
  %8126 = vrot.lane.b32.xlu0 %v284, 64
  %v8127 = vpop.permute.xlu0 %8126
  %v8130 = vsel %vm355, %v5853, 0
  %8132 = vmatprep.subr.mxu0 0.0
  %8133 = vmatpush1.msra.mxu0 0.0
  %8134 = vmatprep.subr.mxu0 0.0
  %8135 = vmatpush1.msra.mxu0 0.0
  %8136 = vmatprep.subr.mxu0 0.0
  %8137 = vmatpush1.msra.mxu0 0.0
  %8138 = vmatprep.subr.mxu0 0.0
  %8139 = vmatpush1.msra.mxu0 0.0
  %8140 = vmatprep.subr.mxu0 0.0
  %8141 = vmatpush1.msra.mxu0 0.0
  %8142 = vmatprep.subr.mxu0 0.0
  %8143 = vmatpush1.msra.mxu0 0.0
  %8144 = vmatprep.subr.mxu0 0.0
  %8145 = vmatpush1.msra.mxu0 0.0
  %8146 = vmatprep.subr.mxu0 0.0
  %8147 = vmatpush1.msra.mxu0 0.0
  %8148 = vmatprep.subr.mxu0 0.0
  %8149 = vmatpush1.msra.mxu0 0.0
  %8150 = vmatprep.subr.mxu0 0.0
  %8151 = vmatpush1.msra.mxu0 0.0
  %8152 = vmatprep.subr.mxu0 0.0
  %8153 = vmatpush1.msra.mxu0 0.0
  %8154 = vmatprep.subr.mxu0 0.0
  %8155 = vmatpush1.msra.mxu0 0.0
  %8156 = vmatprep.subr.mxu0 0.0
  %8157 = vmatpush1.msra.mxu0 0.0
  %8158 = vmatprep.subr.mxu0 0.0
  %8159 = vmatpush1.msra.mxu0 0.0
  %8160 = vmatprep.subr.mxu0 0.0
  %8161 = vmatpush1.msra.mxu0 0.0
  %8162 = vmatprep.subr.mxu0 0.0
  %8163 = vmatpush1.msra.mxu0 %v8127
  %8164 = vmatprep.subr.mxu0 0.0
  %8165 = vmatpush2.msra.mxu0 0.0
  %8166 = vmatprep.subr.mxu0 0.0
  %8167 = vmatpush2.msra.mxu0 0.0
  %8168 = vmatprep.subr.mxu0 0.0
  %8169 = vmatpush2.msra.mxu0 0.0
  %8170 = vmatprep.subr.mxu0 0.0
  %8171 = vmatpush2.msra.mxu0 0.0
  %8172 = vmatprep.subr.mxu0 0.0
  %8173 = vmatpush2.msra.mxu0 0.0
  %8174 = vmatprep.subr.mxu0 0.0
  %8175 = vmatpush2.msra.mxu0 0.0
  %8176 = vmatprep.subr.mxu0 0.0
  %8177 = vmatpush2.msra.mxu0 0.0
  %8178 = vmatprep.subr.mxu0 0.0
  %8179 = vmatpush2.msra.mxu0 0.0
  %8180 = vmatprep.subr.mxu0 0.0
  %8181 = vmatpush2.msra.mxu0 0.0
  %8182 = vmatprep.subr.mxu0 0.0
  %8183 = vmatpush2.msra.mxu0 0.0
  %8184 = vmatprep.subr.mxu0 0.0
  %8185 = vmatpush2.msra.mxu0 0.0
  %8186 = vmatprep.subr.mxu0 0.0
  %8187 = vmatpush2.msra.mxu0 0.0
  %8188 = vmatprep.subr.mxu0 0.0
  %8189 = vmatpush2.msra.mxu0 0.0
  %8190 = vmatprep.subr.mxu0 0.0
  %8191 = vmatpush2.msra.mxu0 0.0
  %8192 = vmatprep.subr.mxu0 0.0
  %8193 = vmatpush2.msra.mxu0 0.0
  %8194 = vmatprep.subr.mxu0 0.0
  %8195 = vmatpush2.msra.mxu0 0.0
  %8196 = vmatprep.mubr.f32.mxu0 0.0
  %8197 = vmatmul.mubr.f32.gmra.mxu0 %v8130
  %v8198 = vpop.f32.mrf.mxu0
  %v8199 = vadd.f32 0.0, %v8198
  %v8200 = vpop.f32.mrf.mxu0
  %8201 = vdwg.mxu0
  %8202 = vrot.lane.b32.xlu0 %v286, 64
  %v8203 = vpop.permute.xlu0 %8202
  %v8206 = vsel %vm355, %v5855, 0
  %8208 = vmatprep.subr.mxu0 0.0
  %8209 = vmatpush1.msra.mxu0 0.0
  %8210 = vmatprep.subr.mxu0 0.0
  %8211 = vmatpush1.msra.mxu0 0.0
  %8212 = vmatprep.subr.mxu0 0.0
  %8213 = vmatpush1.msra.mxu0 0.0
  %8214 = vmatprep.subr.mxu0 0.0
  %8215 = vmatpush1.msra.mxu0 0.0
  %8216 = vmatprep.subr.mxu0 0.0
  %8217 = vmatpush1.msra.mxu0 0.0
  %8218 = vmatprep.subr.mxu0 0.0
  %8219 = vmatpush1.msra.mxu0 0.0
  %8220 = vmatprep.subr.mxu0 0.0
  %8221 = vmatpush1.msra.mxu0 0.0
  %8222 = vmatprep.subr.mxu0 0.0
  %8223 = vmatpush1.msra.mxu0 0.0
  %8224 = vmatprep.subr.mxu0 0.0
  %8225 = vmatpush1.msra.mxu0 0.0
  %8226 = vmatprep.subr.mxu0 0.0
  %8227 = vmatpush1.msra.mxu0 0.0
  %8228 = vmatprep.subr.mxu0 0.0
  %8229 = vmatpush1.msra.mxu0 0.0
  %8230 = vmatprep.subr.mxu0 0.0
  %8231 = vmatpush1.msra.mxu0 0.0
  %8232 = vmatprep.subr.mxu0 0.0
  %8233 = vmatpush1.msra.mxu0 0.0
  %8234 = vmatprep.subr.mxu0 0.0
  %8235 = vmatpush1.msra.mxu0 0.0
  %8236 = vmatprep.subr.mxu0 0.0
  %8237 = vmatpush1.msra.mxu0 0.0
  %8238 = vmatprep.subr.mxu0 0.0
  %8239 = vmatpush1.msra.mxu0 %v8203
  %8240 = vmatprep.subr.mxu0 0.0
  %8241 = vmatpush2.msra.mxu0 0.0
  %8242 = vmatprep.subr.mxu0 0.0
  %8243 = vmatpush2.msra.mxu0 0.0
  %8244 = vmatprep.subr.mxu0 0.0
  %8245 = vmatpush2.msra.mxu0 0.0
  %8246 = vmatprep.subr.mxu0 0.0
  %8247 = vmatpush2.msra.mxu0 0.0
  %8248 = vmatprep.subr.mxu0 0.0
  %8249 = vmatpush2.msra.mxu0 0.0
  %8250 = vmatprep.subr.mxu0 0.0
  %8251 = vmatpush2.msra.mxu0 0.0
  %8252 = vmatprep.subr.mxu0 0.0
  %8253 = vmatpush2.msra.mxu0 0.0
  %8254 = vmatprep.subr.mxu0 0.0
  %8255 = vmatpush2.msra.mxu0 0.0
  %8256 = vmatprep.subr.mxu0 0.0
  %8257 = vmatpush2.msra.mxu0 0.0
  %8258 = vmatprep.subr.mxu0 0.0
  %8259 = vmatpush2.msra.mxu0 0.0
  %8260 = vmatprep.subr.mxu0 0.0
  %8261 = vmatpush2.msra.mxu0 0.0
  %8262 = vmatprep.subr.mxu0 0.0
  %8263 = vmatpush2.msra.mxu0 0.0
  %8264 = vmatprep.subr.mxu0 0.0
  %8265 = vmatpush2.msra.mxu0 0.0
  %8266 = vmatprep.subr.mxu0 0.0
  %8267 = vmatpush2.msra.mxu0 0.0
  %8268 = vmatprep.subr.mxu0 0.0
  %8269 = vmatpush2.msra.mxu0 0.0
  %8270 = vmatprep.subr.mxu0 0.0
  %8271 = vmatpush2.msra.mxu0 0.0
  %8272 = vmatprep.mubr.f32.mxu0 0.0
  %8273 = vmatmul.mubr.f32.gmra.mxu0 %v8206
  %v8274 = vpop.f32.mrf.mxu0
  %v8275 = vadd.f32 0.0, %v8274
  %v8276 = vpop.f32.mrf.mxu0
  %8277 = vdwg.mxu0
  %8278 = vrot.lane.b32.xlu0 %v288, 64
  %v8279 = vpop.permute.xlu0 %8278
  %v8282 = vsel %vm355, %v5857, 0
  %8284 = vmatprep.subr.mxu0 0.0
  %8285 = vmatpush1.msra.mxu0 0.0
  %8286 = vmatprep.subr.mxu0 0.0
  %8287 = vmatpush1.msra.mxu0 0.0
  %8288 = vmatprep.subr.mxu0 0.0
  %8289 = vmatpush1.msra.mxu0 0.0
  %8290 = vmatprep.subr.mxu0 0.0
  %8291 = vmatpush1.msra.mxu0 0.0
  %8292 = vmatprep.subr.mxu0 0.0
  %8293 = vmatpush1.msra.mxu0 0.0
  %8294 = vmatprep.subr.mxu0 0.0
  %8295 = vmatpush1.msra.mxu0 0.0
  %8296 = vmatprep.subr.mxu0 0.0
  %8297 = vmatpush1.msra.mxu0 0.0
  %8298 = vmatprep.subr.mxu0 0.0
  %8299 = vmatpush1.msra.mxu0 0.0
  %8300 = vmatprep.subr.mxu0 0.0
  %8301 = vmatpush1.msra.mxu0 0.0
  %8302 = vmatprep.subr.mxu0 0.0
  %8303 = vmatpush1.msra.mxu0 0.0
  %8304 = vmatprep.subr.mxu0 0.0
  %8305 = vmatpush1.msra.mxu0 0.0
  %8306 = vmatprep.subr.mxu0 0.0
  %8307 = vmatpush1.msra.mxu0 0.0
  %8308 = vmatprep.subr.mxu0 0.0
  %8309 = vmatpush1.msra.mxu0 0.0
  %8310 = vmatprep.subr.mxu0 0.0
  %8311 = vmatpush1.msra.mxu0 0.0
  %8312 = vmatprep.subr.mxu0 0.0
  %8313 = vmatpush1.msra.mxu0 0.0
  %8314 = vmatprep.subr.mxu0 0.0
  %8315 = vmatpush1.msra.mxu0 %v8279
  %8316 = vmatprep.subr.mxu0 0.0
  %8317 = vmatpush2.msra.mxu0 0.0
  %8318 = vmatprep.subr.mxu0 0.0
  %8319 = vmatpush2.msra.mxu0 0.0
  %8320 = vmatprep.subr.mxu0 0.0
  %8321 = vmatpush2.msra.mxu0 0.0
  %8322 = vmatprep.subr.mxu0 0.0
  %8323 = vmatpush2.msra.mxu0 0.0
  %8324 = vmatprep.subr.mxu0 0.0
  %8325 = vmatpush2.msra.mxu0 0.0
  %8326 = vmatprep.subr.mxu0 0.0
  %8327 = vmatpush2.msra.mxu0 0.0
  %8328 = vmatprep.subr.mxu0 0.0
  %8329 = vmatpush2.msra.mxu0 0.0
  %8330 = vmatprep.subr.mxu0 0.0
  %8331 = vmatpush2.msra.mxu0 0.0
  %8332 = vmatprep.subr.mxu0 0.0
  %8333 = vmatpush2.msra.mxu0 0.0
  %8334 = vmatprep.subr.mxu0 0.0
  %8335 = vmatpush2.msra.mxu0 0.0
  %8336 = vmatprep.subr.mxu0 0.0
  %8337 = vmatpush2.msra.mxu0 0.0
  %8338 = vmatprep.subr.mxu0 0.0
  %8339 = vmatpush2.msra.mxu0 0.0
  %8340 = vmatprep.subr.mxu0 0.0
  %8341 = vmatpush2.msra.mxu0 0.0
  %8342 = vmatprep.subr.mxu0 0.0
  %8343 = vmatpush2.msra.mxu0 0.0
  %8344 = vmatprep.subr.mxu0 0.0
  %8345 = vmatpush2.msra.mxu0 0.0
  %8346 = vmatprep.subr.mxu0 0.0
  %8347 = vmatpush2.msra.mxu0 0.0
  %8348 = vmatprep.mubr.f32.mxu0 0.0
  %8349 = vmatmul.mubr.f32.gmra.mxu0 %v8282
  %v8350 = vpop.f32.mrf.mxu0
  %v8351 = vadd.f32 0.0, %v8350
  %v8352 = vpop.f32.mrf.mxu0
  %8353 = vdwg.mxu0
  %8354 = vrot.lane.b32.xlu0 %v290, 64
  %v8355 = vpop.permute.xlu0 %8354
  %v8358 = vsel %vm355, %v5859, 0
  %8360 = vmatprep.subr.mxu0 0.0
  %8361 = vmatpush1.msra.mxu0 0.0
  %8362 = vmatprep.subr.mxu0 0.0
  %8363 = vmatpush1.msra.mxu0 0.0
  %8364 = vmatprep.subr.mxu0 0.0
  %8365 = vmatpush1.msra.mxu0 0.0
  %8366 = vmatprep.subr.mxu0 0.0
  %8367 = vmatpush1.msra.mxu0 0.0
  %8368 = vmatprep.subr.mxu0 0.0
  %8369 = vmatpush1.msra.mxu0 0.0
  %8370 = vmatprep.subr.mxu0 0.0
  %8371 = vmatpush1.msra.mxu0 0.0
  %8372 = vmatprep.subr.mxu0 0.0
  %8373 = vmatpush1.msra.mxu0 0.0
  %8374 = vmatprep.subr.mxu0 0.0
  %8375 = vmatpush1.msra.mxu0 0.0
  %8376 = vmatprep.subr.mxu0 0.0
  %8377 = vmatpush1.msra.mxu0 0.0
  %8378 = vmatprep.subr.mxu0 0.0
  %8379 = vmatpush1.msra.mxu0 0.0
  %8380 = vmatprep.subr.mxu0 0.0
  %8381 = vmatpush1.msra.mxu0 0.0
  %8382 = vmatprep.subr.mxu0 0.0
  %8383 = vmatpush1.msra.mxu0 0.0
  %8384 = vmatprep.subr.mxu0 0.0
  %8385 = vmatpush1.msra.mxu0 0.0
  %8386 = vmatprep.subr.mxu0 0.0
  %8387 = vmatpush1.msra.mxu0 0.0
  %8388 = vmatprep.subr.mxu0 0.0
  %8389 = vmatpush1.msra.mxu0 0.0
  %8390 = vmatprep.subr.mxu0 0.0
  %8391 = vmatpush1.msra.mxu0 %v8355
  %8392 = vmatprep.subr.mxu0 0.0
  %8393 = vmatpush2.msra.mxu0 0.0
  %8394 = vmatprep.subr.mxu0 0.0
  %8395 = vmatpush2.msra.mxu0 0.0
  %8396 = vmatprep.subr.mxu0 0.0
  %8397 = vmatpush2.msra.mxu0 0.0
  %8398 = vmatprep.subr.mxu0 0.0
  %8399 = vmatpush2.msra.mxu0 0.0
  %8400 = vmatprep.subr.mxu0 0.0
  %8401 = vmatpush2.msra.mxu0 0.0
  %8402 = vmatprep.subr.mxu0 0.0
  %8403 = vmatpush2.msra.mxu0 0.0
  %8404 = vmatprep.subr.mxu0 0.0
  %8405 = vmatpush2.msra.mxu0 0.0
  %8406 = vmatprep.subr.mxu0 0.0
  %8407 = vmatpush2.msra.mxu0 0.0
  %8408 = vmatprep.subr.mxu0 0.0
  %8409 = vmatpush2.msra.mxu0 0.0
  %8410 = vmatprep.subr.mxu0 0.0
  %8411 = vmatpush2.msra.mxu0 0.0
  %8412 = vmatprep.subr.mxu0 0.0
  %8413 = vmatpush2.msra.mxu0 0.0
  %8414 = vmatprep.subr.mxu0 0.0
  %8415 = vmatpush2.msra.mxu0 0.0
  %8416 = vmatprep.subr.mxu0 0.0
  %8417 = vmatpush2.msra.mxu0 0.0
  %8418 = vmatprep.subr.mxu0 0.0
  %8419 = vmatpush2.msra.mxu0 0.0
  %8420 = vmatprep.subr.mxu0 0.0
  %8421 = vmatpush2.msra.mxu0 0.0
  %8422 = vmatprep.subr.mxu0 0.0
  %8423 = vmatpush2.msra.mxu0 0.0
  %8424 = vmatprep.mubr.f32.mxu0 0.0
  %8425 = vmatmul.mubr.f32.gmra.mxu0 %v8358
  %v8426 = vpop.f32.mrf.mxu0
  %v8427 = vadd.f32 0.0, %v8426
  %v8428 = vpop.f32.mrf.mxu0
  %8429 = vdwg.mxu0
  %8430 = vrot.lane.b32.xlu0 %v292, 64
  %v8431 = vpop.permute.xlu0 %8430
  %v8434 = vsel %vm355, %v5861, 0
  %8436 = vmatprep.subr.mxu0 0.0
  %8437 = vmatpush1.msra.mxu0 0.0
  %8438 = vmatprep.subr.mxu0 0.0
  %8439 = vmatpush1.msra.mxu0 0.0
  %8440 = vmatprep.subr.mxu0 0.0
  %8441 = vmatpush1.msra.mxu0 0.0
  %8442 = vmatprep.subr.mxu0 0.0
  %8443 = vmatpush1.msra.mxu0 0.0
  %8444 = vmatprep.subr.mxu0 0.0
  %8445 = vmatpush1.msra.mxu0 0.0
  %8446 = vmatprep.subr.mxu0 0.0
  %8447 = vmatpush1.msra.mxu0 0.0
  %8448 = vmatprep.subr.mxu0 0.0
  %8449 = vmatpush1.msra.mxu0 0.0
  %8450 = vmatprep.subr.mxu0 0.0
  %8451 = vmatpush1.msra.mxu0 0.0
  %8452 = vmatprep.subr.mxu0 0.0
  %8453 = vmatpush1.msra.mxu0 0.0
  %8454 = vmatprep.subr.mxu0 0.0
  %8455 = vmatpush1.msra.mxu0 0.0
  %8456 = vmatprep.subr.mxu0 0.0
  %8457 = vmatpush1.msra.mxu0 0.0
  %8458 = vmatprep.subr.mxu0 0.0
  %8459 = vmatpush1.msra.mxu0 0.0
  %8460 = vmatprep.subr.mxu0 0.0
  %8461 = vmatpush1.msra.mxu0 0.0
  %8462 = vmatprep.subr.mxu0 0.0
  %8463 = vmatpush1.msra.mxu0 0.0
  %8464 = vmatprep.subr.mxu0 0.0
  %8465 = vmatpush1.msra.mxu0 0.0
  %8466 = vmatprep.subr.mxu0 0.0
  %8467 = vmatpush1.msra.mxu0 %v8431
  %8468 = vmatprep.subr.mxu0 0.0
  %8469 = vmatpush2.msra.mxu0 0.0
  %8470 = vmatprep.subr.mxu0 0.0
  %8471 = vmatpush2.msra.mxu0 0.0
  %8472 = vmatprep.subr.mxu0 0.0
  %8473 = vmatpush2.msra.mxu0 0.0
  %8474 = vmatprep.subr.mxu0 0.0
  %8475 = vmatpush2.msra.mxu0 0.0
  %8476 = vmatprep.subr.mxu0 0.0
  %8477 = vmatpush2.msra.mxu0 0.0
  %8478 = vmatprep.subr.mxu0 0.0
  %8479 = vmatpush2.msra.mxu0 0.0
  %8480 = vmatprep.subr.mxu0 0.0
  %8481 = vmatpush2.msra.mxu0 0.0
  %8482 = vmatprep.subr.mxu0 0.0
  %8483 = vmatpush2.msra.mxu0 0.0
  %8484 = vmatprep.subr.mxu0 0.0
  %8485 = vmatpush2.msra.mxu0 0.0
  %8486 = vmatprep.subr.mxu0 0.0
  %8487 = vmatpush2.msra.mxu0 0.0
  %8488 = vmatprep.subr.mxu0 0.0
  %8489 = vmatpush2.msra.mxu0 0.0
  %8490 = vmatprep.subr.mxu0 0.0
  %8491 = vmatpush2.msra.mxu0 0.0
  %8492 = vmatprep.subr.mxu0 0.0
  %8493 = vmatpush2.msra.mxu0 0.0
  %8494 = vmatprep.subr.mxu0 0.0
  %8495 = vmatpush2.msra.mxu0 0.0
  %8496 = vmatprep.subr.mxu0 0.0
  %8497 = vmatpush2.msra.mxu0 0.0
  %8498 = vmatprep.subr.mxu0 0.0
  %8499 = vmatpush2.msra.mxu0 0.0
  %8500 = vmatprep.mubr.f32.mxu0 0.0
  %8501 = vmatmul.mubr.f32.gmra.mxu0 %v8434
  %v8502 = vpop.f32.mrf.mxu0
  %v8503 = vadd.f32 0.0, %v8502
  %v8504 = vpop.f32.mrf.mxu0
  %8505 = vdwg.mxu0
  %8506 = vrot.lane.b32.xlu0 %v294, 64
  %v8507 = vpop.permute.xlu0 %8506
  %v8510 = vsel %vm355, %v5863, 0
  %8512 = vmatprep.subr.mxu0 0.0
  %8513 = vmatpush1.msra.mxu0 0.0
  %8514 = vmatprep.subr.mxu0 0.0
  %8515 = vmatpush1.msra.mxu0 0.0
  %8516 = vmatprep.subr.mxu0 0.0
  %8517 = vmatpush1.msra.mxu0 0.0
  %8518 = vmatprep.subr.mxu0 0.0
  %8519 = vmatpush1.msra.mxu0 0.0
  %8520 = vmatprep.subr.mxu0 0.0
  %8521 = vmatpush1.msra.mxu0 0.0
  %8522 = vmatprep.subr.mxu0 0.0
  %8523 = vmatpush1.msra.mxu0 0.0
  %8524 = vmatprep.subr.mxu0 0.0
  %8525 = vmatpush1.msra.mxu0 0.0
  %8526 = vmatprep.subr.mxu0 0.0
  %8527 = vmatpush1.msra.mxu0 0.0
  %8528 = vmatprep.subr.mxu0 0.0
  %8529 = vmatpush1.msra.mxu0 0.0
  %8530 = vmatprep.subr.mxu0 0.0
  %8531 = vmatpush1.msra.mxu0 0.0
  %8532 = vmatprep.subr.mxu0 0.0
  %8533 = vmatpush1.msra.mxu0 0.0
  %8534 = vmatprep.subr.mxu0 0.0
  %8535 = vmatpush1.msra.mxu0 0.0
  %8536 = vmatprep.subr.mxu0 0.0
  %8537 = vmatpush1.msra.mxu0 0.0
  %8538 = vmatprep.subr.mxu0 0.0
  %8539 = vmatpush1.msra.mxu0 0.0
  %8540 = vmatprep.subr.mxu0 0.0
  %8541 = vmatpush1.msra.mxu0 0.0
  %8542 = vmatprep.subr.mxu0 0.0
  %8543 = vmatpush1.msra.mxu0 %v8507
  %8544 = vmatprep.subr.mxu0 0.0
  %8545 = vmatpush2.msra.mxu0 0.0
  %8546 = vmatprep.subr.mxu0 0.0
  %8547 = vmatpush2.msra.mxu0 0.0
  %8548 = vmatprep.subr.mxu0 0.0
  %8549 = vmatpush2.msra.mxu0 0.0
  %8550 = vmatprep.subr.mxu0 0.0
  %8551 = vmatpush2.msra.mxu0 0.0
  %8552 = vmatprep.subr.mxu0 0.0
  %8553 = vmatpush2.msra.mxu0 0.0
  %8554 = vmatprep.subr.mxu0 0.0
  %8555 = vmatpush2.msra.mxu0 0.0
  %8556 = vmatprep.subr.mxu0 0.0
  %8557 = vmatpush2.msra.mxu0 0.0
  %8558 = vmatprep.subr.mxu0 0.0
  %8559 = vmatpush2.msra.mxu0 0.0
  %8560 = vmatprep.subr.mxu0 0.0
  %8561 = vmatpush2.msra.mxu0 0.0
  %8562 = vmatprep.subr.mxu0 0.0
  %8563 = vmatpush2.msra.mxu0 0.0
  %8564 = vmatprep.subr.mxu0 0.0
  %8565 = vmatpush2.msra.mxu0 0.0
  %8566 = vmatprep.subr.mxu0 0.0
  %8567 = vmatpush2.msra.mxu0 0.0
  %8568 = vmatprep.subr.mxu0 0.0
  %8569 = vmatpush2.msra.mxu0 0.0
  %8570 = vmatprep.subr.mxu0 0.0
  %8571 = vmatpush2.msra.mxu0 0.0
  %8572 = vmatprep.subr.mxu0 0.0
  %8573 = vmatpush2.msra.mxu0 0.0
  %8574 = vmatprep.subr.mxu0 0.0
  %8575 = vmatpush2.msra.mxu0 0.0
  %8576 = vmatprep.mubr.f32.mxu0 0.0
  %8577 = vmatmul.mubr.f32.gmra.mxu0 %v8510
  %v8578 = vpop.f32.mrf.mxu0
  %v8579 = vadd.f32 0.0, %v8578
  %v8580 = vpop.f32.mrf.mxu0
  %8581 = vdwg.mxu0
  %8582 = vrot.lane.b32.xlu0 %v296, 64
  %v8583 = vpop.permute.xlu0 %8582
  %v8586 = vsel %vm355, %v5865, 0
  %8588 = vmatprep.subr.mxu0 0.0
  %8589 = vmatpush1.msra.mxu0 0.0
  %8590 = vmatprep.subr.mxu0 0.0
  %8591 = vmatpush1.msra.mxu0 0.0
  %8592 = vmatprep.subr.mxu0 0.0
  %8593 = vmatpush1.msra.mxu0 0.0
  %8594 = vmatprep.subr.mxu0 0.0
  %8595 = vmatpush1.msra.mxu0 0.0
  %8596 = vmatprep.subr.mxu0 0.0
  %8597 = vmatpush1.msra.mxu0 0.0
  %8598 = vmatprep.subr.mxu0 0.0
  %8599 = vmatpush1.msra.mxu0 0.0
  %8600 = vmatprep.subr.mxu0 0.0
  %8601 = vmatpush1.msra.mxu0 0.0
  %8602 = vmatprep.subr.mxu0 0.0
  %8603 = vmatpush1.msra.mxu0 0.0
  %8604 = vmatprep.subr.mxu0 0.0
  %8605 = vmatpush1.msra.mxu0 0.0
  %8606 = vmatprep.subr.mxu0 0.0
  %8607 = vmatpush1.msra.mxu0 0.0
  %8608 = vmatprep.subr.mxu0 0.0
  %8609 = vmatpush1.msra.mxu0 0.0
  %8610 = vmatprep.subr.mxu0 0.0
  %8611 = vmatpush1.msra.mxu0 0.0
  %8612 = vmatprep.subr.mxu0 0.0
  %8613 = vmatpush1.msra.mxu0 0.0
  %8614 = vmatprep.subr.mxu0 0.0
  %8615 = vmatpush1.msra.mxu0 0.0
  %8616 = vmatprep.subr.mxu0 0.0
  %8617 = vmatpush1.msra.mxu0 0.0
  %8618 = vmatprep.subr.mxu0 0.0
  %8619 = vmatpush1.msra.mxu0 %v8583
  %8620 = vmatprep.subr.mxu0 0.0
  %8621 = vmatpush2.msra.mxu0 0.0
  %8622 = vmatprep.subr.mxu0 0.0
  %8623 = vmatpush2.msra.mxu0 0.0
  %8624 = vmatprep.subr.mxu0 0.0
  %8625 = vmatpush2.msra.mxu0 0.0
  %8626 = vmatprep.subr.mxu0 0.0
  %8627 = vmatpush2.msra.mxu0 0.0
  %8628 = vmatprep.subr.mxu0 0.0
  %8629 = vmatpush2.msra.mxu0 0.0
  %8630 = vmatprep.subr.mxu0 0.0
  %8631 = vmatpush2.msra.mxu0 0.0
  %8632 = vmatprep.subr.mxu0 0.0
  %8633 = vmatpush2.msra.mxu0 0.0
  %8634 = vmatprep.subr.mxu0 0.0
  %8635 = vmatpush2.msra.mxu0 0.0
  %8636 = vmatprep.subr.mxu0 0.0
  %8637 = vmatpush2.msra.mxu0 0.0
  %8638 = vmatprep.subr.mxu0 0.0
  %8639 = vmatpush2.msra.mxu0 0.0
  %8640 = vmatprep.subr.mxu0 0.0
  %8641 = vmatpush2.msra.mxu0 0.0
  %8642 = vmatprep.subr.mxu0 0.0
  %8643 = vmatpush2.msra.mxu0 0.0
  %8644 = vmatprep.subr.mxu0 0.0
  %8645 = vmatpush2.msra.mxu0 0.0
  %8646 = vmatprep.subr.mxu0 0.0
  %8647 = vmatpush2.msra.mxu0 0.0
  %8648 = vmatprep.subr.mxu0 0.0
  %8649 = vmatpush2.msra.mxu0 0.0
  %8650 = vmatprep.subr.mxu0 0.0
  %8651 = vmatpush2.msra.mxu0 0.0
  %8652 = vmatprep.mubr.f32.mxu0 0.0
  %8653 = vmatmul.mubr.f32.gmra.mxu0 %v8586
  %v8654 = vpop.f32.mrf.mxu0
  %v8655 = vadd.f32 0.0, %v8654
  %v8656 = vpop.f32.mrf.mxu0
  %8657 = vdwg.mxu0
  %8658 = vrot.lane.b32.xlu0 %v298, 64
  %v8659 = vpop.permute.xlu0 %8658
  %v8662 = vsel %vm355, %v5867, 0
  %8664 = vmatprep.subr.mxu0 0.0
  %8665 = vmatpush1.msra.mxu0 0.0
  %8666 = vmatprep.subr.mxu0 0.0
  %8667 = vmatpush1.msra.mxu0 0.0
  %8668 = vmatprep.subr.mxu0 0.0
  %8669 = vmatpush1.msra.mxu0 0.0
  %8670 = vmatprep.subr.mxu0 0.0
  %8671 = vmatpush1.msra.mxu0 0.0
  %8672 = vmatprep.subr.mxu0 0.0
  %8673 = vmatpush1.msra.mxu0 0.0
  %8674 = vmatprep.subr.mxu0 0.0
  %8675 = vmatpush1.msra.mxu0 0.0
  %8676 = vmatprep.subr.mxu0 0.0
  %8677 = vmatpush1.msra.mxu0 0.0
  %8678 = vmatprep.subr.mxu0 0.0
  %8679 = vmatpush1.msra.mxu0 0.0
  %8680 = vmatprep.subr.mxu0 0.0
  %8681 = vmatpush1.msra.mxu0 0.0
  %8682 = vmatprep.subr.mxu0 0.0
  %8683 = vmatpush1.msra.mxu0 0.0
  %8684 = vmatprep.subr.mxu0 0.0
  %8685 = vmatpush1.msra.mxu0 0.0
  %8686 = vmatprep.subr.mxu0 0.0
  %8687 = vmatpush1.msra.mxu0 0.0
  %8688 = vmatprep.subr.mxu0 0.0
  %8689 = vmatpush1.msra.mxu0 0.0
  %8690 = vmatprep.subr.mxu0 0.0
  %8691 = vmatpush1.msra.mxu0 0.0
  %8692 = vmatprep.subr.mxu0 0.0
  %8693 = vmatpush1.msra.mxu0 0.0
  %8694 = vmatprep.subr.mxu0 0.0
  %8695 = vmatpush1.msra.mxu0 %v8659
  %8696 = vmatprep.subr.mxu0 0.0
  %8697 = vmatpush2.msra.mxu0 0.0
  %8698 = vmatprep.subr.mxu0 0.0
  %8699 = vmatpush2.msra.mxu0 0.0
  %8700 = vmatprep.subr.mxu0 0.0
  %8701 = vmatpush2.msra.mxu0 0.0
  %8702 = vmatprep.subr.mxu0 0.0
  %8703 = vmatpush2.msra.mxu0 0.0
  %8704 = vmatprep.subr.mxu0 0.0
  %8705 = vmatpush2.msra.mxu0 0.0
  %8706 = vmatprep.subr.mxu0 0.0
  %8707 = vmatpush2.msra.mxu0 0.0
  %8708 = vmatprep.subr.mxu0 0.0
  %8709 = vmatpush2.msra.mxu0 0.0
  %8710 = vmatprep.subr.mxu0 0.0
  %8711 = vmatpush2.msra.mxu0 0.0
  %8712 = vmatprep.subr.mxu0 0.0
  %8713 = vmatpush2.msra.mxu0 0.0
  %8714 = vmatprep.subr.mxu0 0.0
  %8715 = vmatpush2.msra.mxu0 0.0
  %8716 = vmatprep.subr.mxu0 0.0
  %8717 = vmatpush2.msra.mxu0 0.0
  %8718 = vmatprep.subr.mxu0 0.0
  %8719 = vmatpush2.msra.mxu0 0.0
  %8720 = vmatprep.subr.mxu0 0.0
  %8721 = vmatpush2.msra.mxu0 0.0
  %8722 = vmatprep.subr.mxu0 0.0
  %8723 = vmatpush2.msra.mxu0 0.0
  %8724 = vmatprep.subr.mxu0 0.0
  %8725 = vmatpush2.msra.mxu0 0.0
  %8726 = vmatprep.subr.mxu0 0.0
  %8727 = vmatpush2.msra.mxu0 0.0
  %8728 = vmatprep.mubr.f32.mxu0 0.0
  %8729 = vmatmul.mubr.f32.gmra.mxu0 %v8662
  %v8730 = vpop.f32.mrf.mxu0
  %v8731 = vadd.f32 0.0, %v8730
  %v8732 = vpop.f32.mrf.mxu0
  %8733 = vdwg.mxu0
  %8734 = vrot.lane.b32.xlu0 %v300, 64
  %v8735 = vpop.permute.xlu0 %8734
  %v8738 = vsel %vm355, %v5869, 0
  %8740 = vmatprep.subr.mxu0 0.0
  %8741 = vmatpush1.msra.mxu0 0.0
  %8742 = vmatprep.subr.mxu0 0.0
  %8743 = vmatpush1.msra.mxu0 0.0
  %8744 = vmatprep.subr.mxu0 0.0
  %8745 = vmatpush1.msra.mxu0 0.0
  %8746 = vmatprep.subr.mxu0 0.0
  %8747 = vmatpush1.msra.mxu0 0.0
  %8748 = vmatprep.subr.mxu0 0.0
  %8749 = vmatpush1.msra.mxu0 0.0
  %8750 = vmatprep.subr.mxu0 0.0
  %8751 = vmatpush1.msra.mxu0 0.0
  %8752 = vmatprep.subr.mxu0 0.0
  %8753 = vmatpush1.msra.mxu0 0.0
  %8754 = vmatprep.subr.mxu0 0.0
  %8755 = vmatpush1.msra.mxu0 0.0
  %8756 = vmatprep.subr.mxu0 0.0
  %8757 = vmatpush1.msra.mxu0 0.0
  %8758 = vmatprep.subr.mxu0 0.0
  %8759 = vmatpush1.msra.mxu0 0.0
  %8760 = vmatprep.subr.mxu0 0.0
  %8761 = vmatpush1.msra.mxu0 0.0
  %8762 = vmatprep.subr.mxu0 0.0
  %8763 = vmatpush1.msra.mxu0 0.0
  %8764 = vmatprep.subr.mxu0 0.0
  %8765 = vmatpush1.msra.mxu0 0.0
  %8766 = vmatprep.subr.mxu0 0.0
  %8767 = vmatpush1.msra.mxu0 0.0
  %8768 = vmatprep.subr.mxu0 0.0
  %8769 = vmatpush1.msra.mxu0 0.0
  %8770 = vmatprep.subr.mxu0 0.0
  %8771 = vmatpush1.msra.mxu0 %v8735
  %8772 = vmatprep.subr.mxu0 0.0
  %8773 = vmatpush2.msra.mxu0 0.0
  %8774 = vmatprep.subr.mxu0 0.0
  %8775 = vmatpush2.msra.mxu0 0.0
  %8776 = vmatprep.subr.mxu0 0.0
  %8777 = vmatpush2.msra.mxu0 0.0
  %8778 = vmatprep.subr.mxu0 0.0
  %8779 = vmatpush2.msra.mxu0 0.0
  %8780 = vmatprep.subr.mxu0 0.0
  %8781 = vmatpush2.msra.mxu0 0.0
  %8782 = vmatprep.subr.mxu0 0.0
  %8783 = vmatpush2.msra.mxu0 0.0
  %8784 = vmatprep.subr.mxu0 0.0
  %8785 = vmatpush2.msra.mxu0 0.0
  %8786 = vmatprep.subr.mxu0 0.0
  %8787 = vmatpush2.msra.mxu0 0.0
  %8788 = vmatprep.subr.mxu0 0.0
  %8789 = vmatpush2.msra.mxu0 0.0
  %8790 = vmatprep.subr.mxu0 0.0
  %8791 = vmatpush2.msra.mxu0 0.0
  %8792 = vmatprep.subr.mxu0 0.0
  %8793 = vmatpush2.msra.mxu0 0.0
  %8794 = vmatprep.subr.mxu0 0.0
  %8795 = vmatpush2.msra.mxu0 0.0
  %8796 = vmatprep.subr.mxu0 0.0
  %8797 = vmatpush2.msra.mxu0 0.0
  %8798 = vmatprep.subr.mxu0 0.0
  %8799 = vmatpush2.msra.mxu0 0.0
  %8800 = vmatprep.subr.mxu0 0.0
  %8801 = vmatpush2.msra.mxu0 0.0
  %8802 = vmatprep.subr.mxu0 0.0
  %8803 = vmatpush2.msra.mxu0 0.0
  %8804 = vmatprep.mubr.f32.mxu0 0.0
  %8805 = vmatmul.mubr.f32.gmra.mxu0 %v8738
  %v8806 = vpop.f32.mrf.mxu0
  %v8807 = vadd.f32 0.0, %v8806
  %v8808 = vpop.f32.mrf.mxu0
  %8809 = vdwg.mxu0
  %8810 = vrot.lane.b32.xlu0 %v302, 64
  %v8811 = vpop.permute.xlu0 %8810
  %v8814 = vsel %vm355, %v5871, 0
  %8816 = vmatprep.subr.mxu0 0.0
  %8817 = vmatpush1.msra.mxu0 0.0
  %8818 = vmatprep.subr.mxu0 0.0
  %8819 = vmatpush1.msra.mxu0 0.0
  %8820 = vmatprep.subr.mxu0 0.0
  %8821 = vmatpush1.msra.mxu0 0.0
  %8822 = vmatprep.subr.mxu0 0.0
  %8823 = vmatpush1.msra.mxu0 0.0
  %8824 = vmatprep.subr.mxu0 0.0
  %8825 = vmatpush1.msra.mxu0 0.0
  %8826 = vmatprep.subr.mxu0 0.0
  %8827 = vmatpush1.msra.mxu0 0.0
  %8828 = vmatprep.subr.mxu0 0.0
  %8829 = vmatpush1.msra.mxu0 0.0
  %8830 = vmatprep.subr.mxu0 0.0
  %8831 = vmatpush1.msra.mxu0 0.0
  %8832 = vmatprep.subr.mxu0 0.0
  %8833 = vmatpush1.msra.mxu0 0.0
  %8834 = vmatprep.subr.mxu0 0.0
  %8835 = vmatpush1.msra.mxu0 0.0
  %8836 = vmatprep.subr.mxu0 0.0
  %8837 = vmatpush1.msra.mxu0 0.0
  %8838 = vmatprep.subr.mxu0 0.0
  %8839 = vmatpush1.msra.mxu0 0.0
  %8840 = vmatprep.subr.mxu0 0.0
  %8841 = vmatpush1.msra.mxu0 0.0
  %8842 = vmatprep.subr.mxu0 0.0
  %8843 = vmatpush1.msra.mxu0 0.0
  %8844 = vmatprep.subr.mxu0 0.0
  %8845 = vmatpush1.msra.mxu0 0.0
  %8846 = vmatprep.subr.mxu0 0.0
  %8847 = vmatpush1.msra.mxu0 %v8811
  %8848 = vmatprep.subr.mxu0 0.0
  %8849 = vmatpush2.msra.mxu0 0.0
  %8850 = vmatprep.subr.mxu0 0.0
  %8851 = vmatpush2.msra.mxu0 0.0
  %8852 = vmatprep.subr.mxu0 0.0
  %8853 = vmatpush2.msra.mxu0 0.0
  %8854 = vmatprep.subr.mxu0 0.0
  %8855 = vmatpush2.msra.mxu0 0.0
  %8856 = vmatprep.subr.mxu0 0.0
  %8857 = vmatpush2.msra.mxu0 0.0
  %8858 = vmatprep.subr.mxu0 0.0
  %8859 = vmatpush2.msra.mxu0 0.0
  %8860 = vmatprep.subr.mxu0 0.0
  %8861 = vmatpush2.msra.mxu0 0.0
  %8862 = vmatprep.subr.mxu0 0.0
  %8863 = vmatpush2.msra.mxu0 0.0
  %8864 = vmatprep.subr.mxu0 0.0
  %8865 = vmatpush2.msra.mxu0 0.0
  %8866 = vmatprep.subr.mxu0 0.0
  %8867 = vmatpush2.msra.mxu0 0.0
  %8868 = vmatprep.subr.mxu0 0.0
  %8869 = vmatpush2.msra.mxu0 0.0
  %8870 = vmatprep.subr.mxu0 0.0
  %8871 = vmatpush2.msra.mxu0 0.0
  %8872 = vmatprep.subr.mxu0 0.0
  %8873 = vmatpush2.msra.mxu0 0.0
  %8874 = vmatprep.subr.mxu0 0.0
  %8875 = vmatpush2.msra.mxu0 0.0
  %8876 = vmatprep.subr.mxu0 0.0
  %8877 = vmatpush2.msra.mxu0 0.0
  %8878 = vmatprep.subr.mxu0 0.0
  %8879 = vmatpush2.msra.mxu0 0.0
  %8880 = vmatprep.mubr.f32.mxu0 0.0
  %8881 = vmatmul.mubr.f32.gmra.mxu0 %v8814
  %v8882 = vpop.f32.mrf.mxu0
  %v8883 = vadd.f32 0.0, %v8882
  %v8884 = vpop.f32.mrf.mxu0
  %8885 = vdwg.mxu0
  %8886 = vrot.lane.b32.xlu0 %v304, 64
  %v8887 = vpop.permute.xlu0 %8886
  %v8890 = vsel %vm355, %v5873, 0
  %8892 = vmatprep.subr.mxu0 0.0
  %8893 = vmatpush1.msra.mxu0 0.0
  %8894 = vmatprep.subr.mxu0 0.0
  %8895 = vmatpush1.msra.mxu0 0.0
  %8896 = vmatprep.subr.mxu0 0.0
  %8897 = vmatpush1.msra.mxu0 0.0
  %8898 = vmatprep.subr.mxu0 0.0
  %8899 = vmatpush1.msra.mxu0 0.0
  %8900 = vmatprep.subr.mxu0 0.0
  %8901 = vmatpush1.msra.mxu0 0.0
  %8902 = vmatprep.subr.mxu0 0.0
  %8903 = vmatpush1.msra.mxu0 0.0
  %8904 = vmatprep.subr.mxu0 0.0
  %8905 = vmatpush1.msra.mxu0 0.0
  %8906 = vmatprep.subr.mxu0 0.0
  %8907 = vmatpush1.msra.mxu0 0.0
  %8908 = vmatprep.subr.mxu0 0.0
  %8909 = vmatpush1.msra.mxu0 0.0
  %8910 = vmatprep.subr.mxu0 0.0
  %8911 = vmatpush1.msra.mxu0 0.0
  %8912 = vmatprep.subr.mxu0 0.0
  %8913 = vmatpush1.msra.mxu0 0.0
  %8914 = vmatprep.subr.mxu0 0.0
  %8915 = vmatpush1.msra.mxu0 0.0
  %8916 = vmatprep.subr.mxu0 0.0
  %8917 = vmatpush1.msra.mxu0 0.0
  %8918 = vmatprep.subr.mxu0 0.0
  %8919 = vmatpush1.msra.mxu0 0.0
  %8920 = vmatprep.subr.mxu0 0.0
  %8921 = vmatpush1.msra.mxu0 0.0
  %8922 = vmatprep.subr.mxu0 0.0
  %8923 = vmatpush1.msra.mxu0 %v8887
  %8924 = vmatprep.subr.mxu0 0.0
  %8925 = vmatpush2.msra.mxu0 0.0
  %8926 = vmatprep.subr.mxu0 0.0
  %8927 = vmatpush2.msra.mxu0 0.0
  %8928 = vmatprep.subr.mxu0 0.0
  %8929 = vmatpush2.msra.mxu0 0.0
  %8930 = vmatprep.subr.mxu0 0.0
  %8931 = vmatpush2.msra.mxu0 0.0
  %8932 = vmatprep.subr.mxu0 0.0
  %8933 = vmatpush2.msra.mxu0 0.0
  %8934 = vmatprep.subr.mxu0 0.0
  %8935 = vmatpush2.msra.mxu0 0.0
  %8936 = vmatprep.subr.mxu0 0.0
  %8937 = vmatpush2.msra.mxu0 0.0
  %8938 = vmatprep.subr.mxu0 0.0
  %8939 = vmatpush2.msra.mxu0 0.0
  %8940 = vmatprep.subr.mxu0 0.0
  %8941 = vmatpush2.msra.mxu0 0.0
  %8942 = vmatprep.subr.mxu0 0.0
  %8943 = vmatpush2.msra.mxu0 0.0
  %8944 = vmatprep.subr.mxu0 0.0
  %8945 = vmatpush2.msra.mxu0 0.0
  %8946 = vmatprep.subr.mxu0 0.0
  %8947 = vmatpush2.msra.mxu0 0.0
  %8948 = vmatprep.subr.mxu0 0.0
  %8949 = vmatpush2.msra.mxu0 0.0
  %8950 = vmatprep.subr.mxu0 0.0
  %8951 = vmatpush2.msra.mxu0 0.0
  %8952 = vmatprep.subr.mxu0 0.0
  %8953 = vmatpush2.msra.mxu0 0.0
  %8954 = vmatprep.subr.mxu0 0.0
  %8955 = vmatpush2.msra.mxu0 0.0
  %8956 = vmatprep.mubr.f32.mxu0 0.0
  %8957 = vmatmul.mubr.f32.gmra.mxu0 %v8890
  %v8958 = vpop.f32.mrf.mxu0
  %v8959 = vadd.f32 0.0, %v8958
  %v8960 = vpop.f32.mrf.mxu0
  %8961 = vdwg.mxu0
  %8962 = vrot.lane.b32.xlu0 %v306, 64
  %v8963 = vpop.permute.xlu0 %8962
  %v8966 = vsel %vm355, %v5875, 0
  %8968 = vmatprep.subr.mxu0 0.0
  %8969 = vmatpush1.msra.mxu0 0.0
  %8970 = vmatprep.subr.mxu0 0.0
  %8971 = vmatpush1.msra.mxu0 0.0
  %8972 = vmatprep.subr.mxu0 0.0
  %8973 = vmatpush1.msra.mxu0 0.0
  %8974 = vmatprep.subr.mxu0 0.0
  %8975 = vmatpush1.msra.mxu0 0.0
  %8976 = vmatprep.subr.mxu0 0.0
  %8977 = vmatpush1.msra.mxu0 0.0
  %8978 = vmatprep.subr.mxu0 0.0
  %8979 = vmatpush1.msra.mxu0 0.0
  %8980 = vmatprep.subr.mxu0 0.0
  %8981 = vmatpush1.msra.mxu0 0.0
  %8982 = vmatprep.subr.mxu0 0.0
  %8983 = vmatpush1.msra.mxu0 0.0
  %8984 = vmatprep.subr.mxu0 0.0
  %8985 = vmatpush1.msra.mxu0 0.0
  %8986 = vmatprep.subr.mxu0 0.0
  %8987 = vmatpush1.msra.mxu0 0.0
  %8988 = vmatprep.subr.mxu0 0.0
  %8989 = vmatpush1.msra.mxu0 0.0
  %8990 = vmatprep.subr.mxu0 0.0
  %8991 = vmatpush1.msra.mxu0 0.0
  %8992 = vmatprep.subr.mxu0 0.0
  %8993 = vmatpush1.msra.mxu0 0.0
  %8994 = vmatprep.subr.mxu0 0.0
  %8995 = vmatpush1.msra.mxu0 0.0
  %8996 = vmatprep.subr.mxu0 0.0
  %8997 = vmatpush1.msra.mxu0 0.0
  %8998 = vmatprep.subr.mxu0 0.0
  %8999 = vmatpush1.msra.mxu0 %v8963
  %9000 = vmatprep.subr.mxu0 0.0
  %9001 = vmatpush2.msra.mxu0 0.0
  %9002 = vmatprep.subr.mxu0 0.0
  %9003 = vmatpush2.msra.mxu0 0.0
  %9004 = vmatprep.subr.mxu0 0.0
  %9005 = vmatpush2.msra.mxu0 0.0
  %9006 = vmatprep.subr.mxu0 0.0
  %9007 = vmatpush2.msra.mxu0 0.0
  %9008 = vmatprep.subr.mxu0 0.0
  %9009 = vmatpush2.msra.mxu0 0.0
  %9010 = vmatprep.subr.mxu0 0.0
  %9011 = vmatpush2.msra.mxu0 0.0
  %9012 = vmatprep.subr.mxu0 0.0
  %9013 = vmatpush2.msra.mxu0 0.0
  %9014 = vmatprep.subr.mxu0 0.0
  %9015 = vmatpush2.msra.mxu0 0.0
  %9016 = vmatprep.subr.mxu0 0.0
  %9017 = vmatpush2.msra.mxu0 0.0
  %9018 = vmatprep.subr.mxu0 0.0
  %9019 = vmatpush2.msra.mxu0 0.0
  %9020 = vmatprep.subr.mxu0 0.0
  %9021 = vmatpush2.msra.mxu0 0.0
  %9022 = vmatprep.subr.mxu0 0.0
  %9023 = vmatpush2.msra.mxu0 0.0
  %9024 = vmatprep.subr.mxu0 0.0
  %9025 = vmatpush2.msra.mxu0 0.0
  %9026 = vmatprep.subr.mxu0 0.0
  %9027 = vmatpush2.msra.mxu0 0.0
  %9028 = vmatprep.subr.mxu0 0.0
  %9029 = vmatpush2.msra.mxu0 0.0
  %9030 = vmatprep.subr.mxu0 0.0
  %9031 = vmatpush2.msra.mxu0 0.0
  %9032 = vmatprep.mubr.f32.mxu0 0.0
  %9033 = vmatmul.mubr.f32.gmra.mxu0 %v8966
  %v9034 = vpop.f32.mrf.mxu0
  %v9035 = vadd.f32 0.0, %v9034
  %v9036 = vpop.f32.mrf.mxu0
  %9037 = vdwg.mxu0
  %9038 = vrot.lane.b32.xlu0 %v308, 64
  %v9039 = vpop.permute.xlu0 %9038
  %v9042 = vsel %vm355, %v5877, 0
  %9044 = vmatprep.subr.mxu0 0.0
  %9045 = vmatpush1.msra.mxu0 0.0
  %9046 = vmatprep.subr.mxu0 0.0
  %9047 = vmatpush1.msra.mxu0 0.0
  %9048 = vmatprep.subr.mxu0 0.0
  %9049 = vmatpush1.msra.mxu0 0.0
  %9050 = vmatprep.subr.mxu0 0.0
  %9051 = vmatpush1.msra.mxu0 0.0
  %9052 = vmatprep.subr.mxu0 0.0
  %9053 = vmatpush1.msra.mxu0 0.0
  %9054 = vmatprep.subr.mxu0 0.0
  %9055 = vmatpush1.msra.mxu0 0.0
  %9056 = vmatprep.subr.mxu0 0.0
  %9057 = vmatpush1.msra.mxu0 0.0
  %9058 = vmatprep.subr.mxu0 0.0
  %9059 = vmatpush1.msra.mxu0 0.0
  %9060 = vmatprep.subr.mxu0 0.0
  %9061 = vmatpush1.msra.mxu0 0.0
  %9062 = vmatprep.subr.mxu0 0.0
  %9063 = vmatpush1.msra.mxu0 0.0
  %9064 = vmatprep.subr.mxu0 0.0
  %9065 = vmatpush1.msra.mxu0 0.0
  %9066 = vmatprep.subr.mxu0 0.0
  %9067 = vmatpush1.msra.mxu0 0.0
  %9068 = vmatprep.subr.mxu0 0.0
  %9069 = vmatpush1.msra.mxu0 0.0
  %9070 = vmatprep.subr.mxu0 0.0
  %9071 = vmatpush1.msra.mxu0 0.0
  %9072 = vmatprep.subr.mxu0 0.0
  %9073 = vmatpush1.msra.mxu0 0.0
  %9074 = vmatprep.subr.mxu0 0.0
  %9075 = vmatpush1.msra.mxu0 %v9039
  %9076 = vmatprep.subr.mxu0 0.0
  %9077 = vmatpush2.msra.mxu0 0.0
  %9078 = vmatprep.subr.mxu0 0.0
  %9079 = vmatpush2.msra.mxu0 0.0
  %9080 = vmatprep.subr.mxu0 0.0
  %9081 = vmatpush2.msra.mxu0 0.0
  %9082 = vmatprep.subr.mxu0 0.0
  %9083 = vmatpush2.msra.mxu0 0.0
  %9084 = vmatprep.subr.mxu0 0.0
  %9085 = vmatpush2.msra.mxu0 0.0
  %9086 = vmatprep.subr.mxu0 0.0
  %9087 = vmatpush2.msra.mxu0 0.0
  %9088 = vmatprep.subr.mxu0 0.0
  %9089 = vmatpush2.msra.mxu0 0.0
  %9090 = vmatprep.subr.mxu0 0.0
  %9091 = vmatpush2.msra.mxu0 0.0
  %9092 = vmatprep.subr.mxu0 0.0
  %9093 = vmatpush2.msra.mxu0 0.0
  %9094 = vmatprep.subr.mxu0 0.0
  %9095 = vmatpush2.msra.mxu0 0.0
  %9096 = vmatprep.subr.mxu0 0.0
  %9097 = vmatpush2.msra.mxu0 0.0
  %9098 = vmatprep.subr.mxu0 0.0
  %9099 = vmatpush2.msra.mxu0 0.0
  %9100 = vmatprep.subr.mxu0 0.0
  %9101 = vmatpush2.msra.mxu0 0.0
  %9102 = vmatprep.subr.mxu0 0.0
  %9103 = vmatpush2.msra.mxu0 0.0
  %9104 = vmatprep.subr.mxu0 0.0
  %9105 = vmatpush2.msra.mxu0 0.0
  %9106 = vmatprep.subr.mxu0 0.0
  %9107 = vmatpush2.msra.mxu0 0.0
  %9108 = vmatprep.mubr.f32.mxu0 0.0
  %9109 = vmatmul.mubr.f32.gmra.mxu0 %v9042
  %v9110 = vpop.f32.mrf.mxu0
  %v9111 = vadd.f32 0.0, %v9110
  %v9112 = vpop.f32.mrf.mxu0
  %9113 = vdwg.mxu0
  %9114 = vrot.lane.b32.xlu0 %v310, 64
  %v9115 = vpop.permute.xlu0 %9114
  %v9118 = vsel %vm355, %v5879, 0
  %9120 = vmatprep.subr.mxu0 0.0
  %9121 = vmatpush1.msra.mxu0 0.0
  %9122 = vmatprep.subr.mxu0 0.0
  %9123 = vmatpush1.msra.mxu0 0.0
  %9124 = vmatprep.subr.mxu0 0.0
  %9125 = vmatpush1.msra.mxu0 0.0
  %9126 = vmatprep.subr.mxu0 0.0
  %9127 = vmatpush1.msra.mxu0 0.0
  %9128 = vmatprep.subr.mxu0 0.0
  %9129 = vmatpush1.msra.mxu0 0.0
  %9130 = vmatprep.subr.mxu0 0.0
  %9131 = vmatpush1.msra.mxu0 0.0
  %9132 = vmatprep.subr.mxu0 0.0
  %9133 = vmatpush1.msra.mxu0 0.0
  %9134 = vmatprep.subr.mxu0 0.0
  %9135 = vmatpush1.msra.mxu0 0.0
  %9136 = vmatprep.subr.mxu0 0.0
  %9137 = vmatpush1.msra.mxu0 0.0
  %9138 = vmatprep.subr.mxu0 0.0
  %9139 = vmatpush1.msra.mxu0 0.0
  %9140 = vmatprep.subr.mxu0 0.0
  %9141 = vmatpush1.msra.mxu0 0.0
  %9142 = vmatprep.subr.mxu0 0.0
  %9143 = vmatpush1.msra.mxu0 0.0
  %9144 = vmatprep.subr.mxu0 0.0
  %9145 = vmatpush1.msra.mxu0 0.0
  %9146 = vmatprep.subr.mxu0 0.0
  %9147 = vmatpush1.msra.mxu0 0.0
  %9148 = vmatprep.subr.mxu0 0.0
  %9149 = vmatpush1.msra.mxu0 0.0
  %9150 = vmatprep.subr.mxu0 0.0
  %9151 = vmatpush1.msra.mxu0 %v9115
  %9152 = vmatprep.subr.mxu0 0.0
  %9153 = vmatpush2.msra.mxu0 0.0
  %9154 = vmatprep.subr.mxu0 0.0
  %9155 = vmatpush2.msra.mxu0 0.0
  %9156 = vmatprep.subr.mxu0 0.0
  %9157 = vmatpush2.msra.mxu0 0.0
  %9158 = vmatprep.subr.mxu0 0.0
  %9159 = vmatpush2.msra.mxu0 0.0
  %9160 = vmatprep.subr.mxu0 0.0
  %9161 = vmatpush2.msra.mxu0 0.0
  %9162 = vmatprep.subr.mxu0 0.0
  %9163 = vmatpush2.msra.mxu0 0.0
  %9164 = vmatprep.subr.mxu0 0.0
  %9165 = vmatpush2.msra.mxu0 0.0
  %9166 = vmatprep.subr.mxu0 0.0
  %9167 = vmatpush2.msra.mxu0 0.0
  %9168 = vmatprep.subr.mxu0 0.0
  %9169 = vmatpush2.msra.mxu0 0.0
  %9170 = vmatprep.subr.mxu0 0.0
  %9171 = vmatpush2.msra.mxu0 0.0
  %9172 = vmatprep.subr.mxu0 0.0
  %9173 = vmatpush2.msra.mxu0 0.0
  %9174 = vmatprep.subr.mxu0 0.0
  %9175 = vmatpush2.msra.mxu0 0.0
  %9176 = vmatprep.subr.mxu0 0.0
  %9177 = vmatpush2.msra.mxu0 0.0
  %9178 = vmatprep.subr.mxu0 0.0
  %9179 = vmatpush2.msra.mxu0 0.0
  %9180 = vmatprep.subr.mxu0 0.0
  %9181 = vmatpush2.msra.mxu0 0.0
  %9182 = vmatprep.subr.mxu0 0.0
  %9183 = vmatpush2.msra.mxu0 0.0
  %9184 = vmatprep.mubr.f32.mxu0 0.0
  %9185 = vmatmul.mubr.f32.gmra.mxu0 %v9118
  %v9186 = vpop.f32.mrf.mxu0
  %v9187 = vadd.f32 0.0, %v9186
  %v9188 = vpop.f32.mrf.mxu0
  %9189 = vdwg.mxu0
  %9190 = vrot.lane.b32.xlu0 %v312, 64
  %v9191 = vpop.permute.xlu0 %9190
  %v9194 = vsel %vm355, %v5881, 0
  %9196 = vmatprep.subr.mxu0 0.0
  %9197 = vmatpush1.msra.mxu0 0.0
  %9198 = vmatprep.subr.mxu0 0.0
  %9199 = vmatpush1.msra.mxu0 0.0
  %9200 = vmatprep.subr.mxu0 0.0
  %9201 = vmatpush1.msra.mxu0 0.0
  %9202 = vmatprep.subr.mxu0 0.0
  %9203 = vmatpush1.msra.mxu0 0.0
  %9204 = vmatprep.subr.mxu0 0.0
  %9205 = vmatpush1.msra.mxu0 0.0
  %9206 = vmatprep.subr.mxu0 0.0
  %9207 = vmatpush1.msra.mxu0 0.0
  %9208 = vmatprep.subr.mxu0 0.0
  %9209 = vmatpush1.msra.mxu0 0.0
  %9210 = vmatprep.subr.mxu0 0.0
  %9211 = vmatpush1.msra.mxu0 0.0
  %9212 = vmatprep.subr.mxu0 0.0
  %9213 = vmatpush1.msra.mxu0 0.0
  %9214 = vmatprep.subr.mxu0 0.0
  %9215 = vmatpush1.msra.mxu0 0.0
  %9216 = vmatprep.subr.mxu0 0.0
  %9217 = vmatpush1.msra.mxu0 0.0
  %9218 = vmatprep.subr.mxu0 0.0
  %9219 = vmatpush1.msra.mxu0 0.0
  %9220 = vmatprep.subr.mxu0 0.0
  %9221 = vmatpush1.msra.mxu0 0.0
  %9222 = vmatprep.subr.mxu0 0.0
  %9223 = vmatpush1.msra.mxu0 0.0
  %9224 = vmatprep.subr.mxu0 0.0
  %9225 = vmatpush1.msra.mxu0 0.0
  %9226 = vmatprep.subr.mxu0 0.0
  %9227 = vmatpush1.msra.mxu0 %v9191
  %9228 = vmatprep.subr.mxu0 0.0
  %9229 = vmatpush2.msra.mxu0 0.0
  %9230 = vmatprep.subr.mxu0 0.0
  %9231 = vmatpush2.msra.mxu0 0.0
  %9232 = vmatprep.subr.mxu0 0.0
  %9233 = vmatpush2.msra.mxu0 0.0
  %9234 = vmatprep.subr.mxu0 0.0
  %9235 = vmatpush2.msra.mxu0 0.0
  %9236 = vmatprep.subr.mxu0 0.0
  %9237 = vmatpush2.msra.mxu0 0.0
  %9238 = vmatprep.subr.mxu0 0.0
  %9239 = vmatpush2.msra.mxu0 0.0
  %9240 = vmatprep.subr.mxu0 0.0
  %9241 = vmatpush2.msra.mxu0 0.0
  %9242 = vmatprep.subr.mxu0 0.0
  %9243 = vmatpush2.msra.mxu0 0.0
  %9244 = vmatprep.subr.mxu0 0.0
  %9245 = vmatpush2.msra.mxu0 0.0
  %9246 = vmatprep.subr.mxu0 0.0
  %9247 = vmatpush2.msra.mxu0 0.0
  %9248 = vmatprep.subr.mxu0 0.0
  %9249 = vmatpush2.msra.mxu0 0.0
  %9250 = vmatprep.subr.mxu0 0.0
  %9251 = vmatpush2.msra.mxu0 0.0
  %9252 = vmatprep.subr.mxu0 0.0
  %9253 = vmatpush2.msra.mxu0 0.0
  %9254 = vmatprep.subr.mxu0 0.0
  %9255 = vmatpush2.msra.mxu0 0.0
  %9256 = vmatprep.subr.mxu0 0.0
  %9257 = vmatpush2.msra.mxu0 0.0
  %9258 = vmatprep.subr.mxu0 0.0
  %9259 = vmatpush2.msra.mxu0 0.0
  %9260 = vmatprep.mubr.f32.mxu0 0.0
  %9261 = vmatmul.mubr.f32.gmra.mxu0 %v9194
  %v9262 = vpop.f32.mrf.mxu0
  %v9263 = vadd.f32 0.0, %v9262
  %v9264 = vpop.f32.mrf.mxu0
  %9265 = vdwg.mxu0
  %9266 = vrot.lane.b32.xlu0 %v314, 64
  %v9267 = vpop.permute.xlu0 %9266
  %v9270 = vsel %vm355, %v5883, 0
  %9272 = vmatprep.subr.mxu0 0.0
  %9273 = vmatpush1.msra.mxu0 0.0
  %9274 = vmatprep.subr.mxu0 0.0
  %9275 = vmatpush1.msra.mxu0 0.0
  %9276 = vmatprep.subr.mxu0 0.0
  %9277 = vmatpush1.msra.mxu0 0.0
  %9278 = vmatprep.subr.mxu0 0.0
  %9279 = vmatpush1.msra.mxu0 0.0
  %9280 = vmatprep.subr.mxu0 0.0
  %9281 = vmatpush1.msra.mxu0 0.0
  %9282 = vmatprep.subr.mxu0 0.0
  %9283 = vmatpush1.msra.mxu0 0.0
  %9284 = vmatprep.subr.mxu0 0.0
  %9285 = vmatpush1.msra.mxu0 0.0
  %9286 = vmatprep.subr.mxu0 0.0
  %9287 = vmatpush1.msra.mxu0 0.0
  %9288 = vmatprep.subr.mxu0 0.0
  %9289 = vmatpush1.msra.mxu0 0.0
  %9290 = vmatprep.subr.mxu0 0.0
  %9291 = vmatpush1.msra.mxu0 0.0
  %9292 = vmatprep.subr.mxu0 0.0
  %9293 = vmatpush1.msra.mxu0 0.0
  %9294 = vmatprep.subr.mxu0 0.0
  %9295 = vmatpush1.msra.mxu0 0.0
  %9296 = vmatprep.subr.mxu0 0.0
  %9297 = vmatpush1.msra.mxu0 0.0
  %9298 = vmatprep.subr.mxu0 0.0
  %9299 = vmatpush1.msra.mxu0 0.0
  %9300 = vmatprep.subr.mxu0 0.0
  %9301 = vmatpush1.msra.mxu0 0.0
  %9302 = vmatprep.subr.mxu0 0.0
  %9303 = vmatpush1.msra.mxu0 %v9267
  %9304 = vmatprep.subr.mxu0 0.0
  %9305 = vmatpush2.msra.mxu0 0.0
  %9306 = vmatprep.subr.mxu0 0.0
  %9307 = vmatpush2.msra.mxu0 0.0
  %9308 = vmatprep.subr.mxu0 0.0
  %9309 = vmatpush2.msra.mxu0 0.0
  %9310 = vmatprep.subr.mxu0 0.0
  %9311 = vmatpush2.msra.mxu0 0.0
  %9312 = vmatprep.subr.mxu0 0.0
  %9313 = vmatpush2.msra.mxu0 0.0
  %9314 = vmatprep.subr.mxu0 0.0
  %9315 = vmatpush2.msra.mxu0 0.0
  %9316 = vmatprep.subr.mxu0 0.0
  %9317 = vmatpush2.msra.mxu0 0.0
  %9318 = vmatprep.subr.mxu0 0.0
  %9319 = vmatpush2.msra.mxu0 0.0
  %9320 = vmatprep.subr.mxu0 0.0
  %9321 = vmatpush2.msra.mxu0 0.0
  %9322 = vmatprep.subr.mxu0 0.0
  %9323 = vmatpush2.msra.mxu0 0.0
  %9324 = vmatprep.subr.mxu0 0.0
  %9325 = vmatpush2.msra.mxu0 0.0
  %9326 = vmatprep.subr.mxu0 0.0
  %9327 = vmatpush2.msra.mxu0 0.0
  %9328 = vmatprep.subr.mxu0 0.0
  %9329 = vmatpush2.msra.mxu0 0.0
  %9330 = vmatprep.subr.mxu0 0.0
  %9331 = vmatpush2.msra.mxu0 0.0
  %9332 = vmatprep.subr.mxu0 0.0
  %9333 = vmatpush2.msra.mxu0 0.0
  %9334 = vmatprep.subr.mxu0 0.0
  %9335 = vmatpush2.msra.mxu0 0.0
  %9336 = vmatprep.mubr.f32.mxu0 0.0
  %9337 = vmatmul.mubr.f32.gmra.mxu0 %v9270
  %v9338 = vpop.f32.mrf.mxu0
  %v9339 = vadd.f32 0.0, %v9338
  %v9340 = vpop.f32.mrf.mxu0
  %9341 = vdwg.mxu0
  %9342 = vrot.lane.b32.xlu0 %v316, 64
  %v9343 = vpop.permute.xlu0 %9342
  %v9346 = vsel %vm355, %v5885, 0
  %9348 = vmatprep.subr.mxu0 0.0
  %9349 = vmatpush1.msra.mxu0 0.0
  %9350 = vmatprep.subr.mxu0 0.0
  %9351 = vmatpush1.msra.mxu0 0.0
  %9352 = vmatprep.subr.mxu0 0.0
  %9353 = vmatpush1.msra.mxu0 0.0
  %9354 = vmatprep.subr.mxu0 0.0
  %9355 = vmatpush1.msra.mxu0 0.0
  %9356 = vmatprep.subr.mxu0 0.0
  %9357 = vmatpush1.msra.mxu0 0.0
  %9358 = vmatprep.subr.mxu0 0.0
  %9359 = vmatpush1.msra.mxu0 0.0
  %9360 = vmatprep.subr.mxu0 0.0
  %9361 = vmatpush1.msra.mxu0 0.0
  %9362 = vmatprep.subr.mxu0 0.0
  %9363 = vmatpush1.msra.mxu0 0.0
  %9364 = vmatprep.subr.mxu0 0.0
  %9365 = vmatpush1.msra.mxu0 0.0
  %9366 = vmatprep.subr.mxu0 0.0
  %9367 = vmatpush1.msra.mxu0 0.0
  %9368 = vmatprep.subr.mxu0 0.0
  %9369 = vmatpush1.msra.mxu0 0.0
  %9370 = vmatprep.subr.mxu0 0.0
  %9371 = vmatpush1.msra.mxu0 0.0
  %9372 = vmatprep.subr.mxu0 0.0
  %9373 = vmatpush1.msra.mxu0 0.0
  %9374 = vmatprep.subr.mxu0 0.0
  %9375 = vmatpush1.msra.mxu0 0.0
  %9376 = vmatprep.subr.mxu0 0.0
  %9377 = vmatpush1.msra.mxu0 0.0
  %9378 = vmatprep.subr.mxu0 0.0
  %9379 = vmatpush1.msra.mxu0 %v9343
  %9380 = vmatprep.subr.mxu0 0.0
  %9381 = vmatpush2.msra.mxu0 0.0
  %9382 = vmatprep.subr.mxu0 0.0
  %9383 = vmatpush2.msra.mxu0 0.0
  %9384 = vmatprep.subr.mxu0 0.0
  %9385 = vmatpush2.msra.mxu0 0.0
  %9386 = vmatprep.subr.mxu0 0.0
  %9387 = vmatpush2.msra.mxu0 0.0
  %9388 = vmatprep.subr.mxu0 0.0
  %9389 = vmatpush2.msra.mxu0 0.0
  %9390 = vmatprep.subr.mxu0 0.0
  %9391 = vmatpush2.msra.mxu0 0.0
  %9392 = vmatprep.subr.mxu0 0.0
  %9393 = vmatpush2.msra.mxu0 0.0
  %9394 = vmatprep.subr.mxu0 0.0
  %9395 = vmatpush2.msra.mxu0 0.0
  %9396 = vmatprep.subr.mxu0 0.0
  %9397 = vmatpush2.msra.mxu0 0.0
  %9398 = vmatprep.subr.mxu0 0.0
  %9399 = vmatpush2.msra.mxu0 0.0
  %9400 = vmatprep.subr.mxu0 0.0
  %9401 = vmatpush2.msra.mxu0 0.0
  %9402 = vmatprep.subr.mxu0 0.0
  %9403 = vmatpush2.msra.mxu0 0.0
  %9404 = vmatprep.subr.mxu0 0.0
  %9405 = vmatpush2.msra.mxu0 0.0
  %9406 = vmatprep.subr.mxu0 0.0
  %9407 = vmatpush2.msra.mxu0 0.0
  %9408 = vmatprep.subr.mxu0 0.0
  %9409 = vmatpush2.msra.mxu0 0.0
  %9410 = vmatprep.subr.mxu0 0.0
  %9411 = vmatpush2.msra.mxu0 0.0
  %9412 = vmatprep.mubr.f32.mxu0 0.0
  %9413 = vmatmul.mubr.f32.gmra.mxu0 %v9346
  %v9414 = vpop.f32.mrf.mxu0
  %v9415 = vadd.f32 0.0, %v9414
  %v9416 = vpop.f32.mrf.mxu0
  %9417 = vdwg.mxu0
  %9418 = vrot.lane.b32.xlu0 %v318, 64
  %v9419 = vpop.permute.xlu0 %9418
  %v9422 = vsel %vm355, %v5887, 0
  %9424 = vmatprep.subr.mxu0 0.0
  %9425 = vmatpush1.msra.mxu0 0.0
  %9426 = vmatprep.subr.mxu0 0.0
  %9427 = vmatpush1.msra.mxu0 0.0
  %9428 = vmatprep.subr.mxu0 0.0
  %9429 = vmatpush1.msra.mxu0 0.0
  %9430 = vmatprep.subr.mxu0 0.0
  %9431 = vmatpush1.msra.mxu0 0.0
  %9432 = vmatprep.subr.mxu0 0.0
  %9433 = vmatpush1.msra.mxu0 0.0
  %9434 = vmatprep.subr.mxu0 0.0
  %9435 = vmatpush1.msra.mxu0 0.0
  %9436 = vmatprep.subr.mxu0 0.0
  %9437 = vmatpush1.msra.mxu0 0.0
  %9438 = vmatprep.subr.mxu0 0.0
  %9439 = vmatpush1.msra.mxu0 0.0
  %9440 = vmatprep.subr.mxu0 0.0
  %9441 = vmatpush1.msra.mxu0 0.0
  %9442 = vmatprep.subr.mxu0 0.0
  %9443 = vmatpush1.msra.mxu0 0.0
  %9444 = vmatprep.subr.mxu0 0.0
  %9445 = vmatpush1.msra.mxu0 0.0
  %9446 = vmatprep.subr.mxu0 0.0
  %9447 = vmatpush1.msra.mxu0 0.0
  %9448 = vmatprep.subr.mxu0 0.0
  %9449 = vmatpush1.msra.mxu0 0.0
  %9450 = vmatprep.subr.mxu0 0.0
  %9451 = vmatpush1.msra.mxu0 0.0
  %9452 = vmatprep.subr.mxu0 0.0
  %9453 = vmatpush1.msra.mxu0 0.0
  %9454 = vmatprep.subr.mxu0 0.0
  %9455 = vmatpush1.msra.mxu0 %v9419
  %9456 = vmatprep.subr.mxu0 0.0
  %9457 = vmatpush2.msra.mxu0 0.0
  %9458 = vmatprep.subr.mxu0 0.0
  %9459 = vmatpush2.msra.mxu0 0.0
  %9460 = vmatprep.subr.mxu0 0.0
  %9461 = vmatpush2.msra.mxu0 0.0
  %9462 = vmatprep.subr.mxu0 0.0
  %9463 = vmatpush2.msra.mxu0 0.0
  %9464 = vmatprep.subr.mxu0 0.0
  %9465 = vmatpush2.msra.mxu0 0.0
  %9466 = vmatprep.subr.mxu0 0.0
  %9467 = vmatpush2.msra.mxu0 0.0
  %9468 = vmatprep.subr.mxu0 0.0
  %9469 = vmatpush2.msra.mxu0 0.0
  %9470 = vmatprep.subr.mxu0 0.0
  %9471 = vmatpush2.msra.mxu0 0.0
  %9472 = vmatprep.subr.mxu0 0.0
  %9473 = vmatpush2.msra.mxu0 0.0
  %9474 = vmatprep.subr.mxu0 0.0
  %9475 = vmatpush2.msra.mxu0 0.0
  %9476 = vmatprep.subr.mxu0 0.0
  %9477 = vmatpush2.msra.mxu0 0.0
  %9478 = vmatprep.subr.mxu0 0.0
  %9479 = vmatpush2.msra.mxu0 0.0
  %9480 = vmatprep.subr.mxu0 0.0
  %9481 = vmatpush2.msra.mxu0 0.0
  %9482 = vmatprep.subr.mxu0 0.0
  %9483 = vmatpush2.msra.mxu0 0.0
  %9484 = vmatprep.subr.mxu0 0.0
  %9485 = vmatpush2.msra.mxu0 0.0
  %9486 = vmatprep.subr.mxu0 0.0
  %9487 = vmatpush2.msra.mxu0 0.0
  %9488 = vmatprep.mubr.f32.mxu0 0.0
  %9489 = vmatmul.mubr.f32.gmra.mxu0 %v9422
  %v9490 = vpop.f32.mrf.mxu0
  %v9491 = vadd.f32 0.0, %v9490
  %v9492 = vpop.f32.mrf.mxu0
  %9493 = vdwg.mxu0
  %9494 = vrot.lane.b32.xlu0 %v320, 64
  %v9495 = vpop.permute.xlu0 %9494
  %v9498 = vsel %vm355, %v5889, 0
  %9500 = vmatprep.subr.mxu0 0.0
  %9501 = vmatpush1.msra.mxu0 0.0
  %9502 = vmatprep.subr.mxu0 0.0
  %9503 = vmatpush1.msra.mxu0 0.0
  %9504 = vmatprep.subr.mxu0 0.0
  %9505 = vmatpush1.msra.mxu0 0.0
  %9506 = vmatprep.subr.mxu0 0.0
  %9507 = vmatpush1.msra.mxu0 0.0
  %9508 = vmatprep.subr.mxu0 0.0
  %9509 = vmatpush1.msra.mxu0 0.0
  %9510 = vmatprep.subr.mxu0 0.0
  %9511 = vmatpush1.msra.mxu0 0.0
  %9512 = vmatprep.subr.mxu0 0.0
  %9513 = vmatpush1.msra.mxu0 0.0
  %9514 = vmatprep.subr.mxu0 0.0
  %9515 = vmatpush1.msra.mxu0 0.0
  %9516 = vmatprep.subr.mxu0 0.0
  %9517 = vmatpush1.msra.mxu0 0.0
  %9518 = vmatprep.subr.mxu0 0.0
  %9519 = vmatpush1.msra.mxu0 0.0
  %9520 = vmatprep.subr.mxu0 0.0
  %9521 = vmatpush1.msra.mxu0 0.0
  %9522 = vmatprep.subr.mxu0 0.0
  %9523 = vmatpush1.msra.mxu0 0.0
  %9524 = vmatprep.subr.mxu0 0.0
  %9525 = vmatpush1.msra.mxu0 0.0
  %9526 = vmatprep.subr.mxu0 0.0
  %9527 = vmatpush1.msra.mxu0 0.0
  %9528 = vmatprep.subr.mxu0 0.0
  %9529 = vmatpush1.msra.mxu0 0.0
  %9530 = vmatprep.subr.mxu0 0.0
  %9531 = vmatpush1.msra.mxu0 %v9495
  %9532 = vmatprep.subr.mxu0 0.0
  %9533 = vmatpush2.msra.mxu0 0.0
  %9534 = vmatprep.subr.mxu0 0.0
  %9535 = vmatpush2.msra.mxu0 0.0
  %9536 = vmatprep.subr.mxu0 0.0
  %9537 = vmatpush2.msra.mxu0 0.0
  %9538 = vmatprep.subr.mxu0 0.0
  %9539 = vmatpush2.msra.mxu0 0.0
  %9540 = vmatprep.subr.mxu0 0.0
  %9541 = vmatpush2.msra.mxu0 0.0
  %9542 = vmatprep.subr.mxu0 0.0
  %9543 = vmatpush2.msra.mxu0 0.0
  %9544 = vmatprep.subr.mxu0 0.0
  %9545 = vmatpush2.msra.mxu0 0.0
  %9546 = vmatprep.subr.mxu0 0.0
  %9547 = vmatpush2.msra.mxu0 0.0
  %9548 = vmatprep.subr.mxu0 0.0
  %9549 = vmatpush2.msra.mxu0 0.0
  %9550 = vmatprep.subr.mxu0 0.0
  %9551 = vmatpush2.msra.mxu0 0.0
  %9552 = vmatprep.subr.mxu0 0.0
  %9553 = vmatpush2.msra.mxu0 0.0
  %9554 = vmatprep.subr.mxu0 0.0
  %9555 = vmatpush2.msra.mxu0 0.0
  %9556 = vmatprep.subr.mxu0 0.0
  %9557 = vmatpush2.msra.mxu0 0.0
  %9558 = vmatprep.subr.mxu0 0.0
  %9559 = vmatpush2.msra.mxu0 0.0
  %9560 = vmatprep.subr.mxu0 0.0
  %9561 = vmatpush2.msra.mxu0 0.0
  %9562 = vmatprep.subr.mxu0 0.0
  %9563 = vmatpush2.msra.mxu0 0.0
  %9564 = vmatprep.mubr.f32.mxu0 0.0
  %9565 = vmatmul.mubr.f32.gmra.mxu0 %v9498
  %v9566 = vpop.f32.mrf.mxu0
  %v9567 = vadd.f32 0.0, %v9566
  %v9568 = vpop.f32.mrf.mxu0
  %9569 = vdwg.mxu0
  %9570 = vrot.lane.b32.xlu0 %v322, 64
  %v9571 = vpop.permute.xlu0 %9570
  %v9574 = vsel %vm355, %v5891, 0
  %9576 = vmatprep.subr.mxu0 0.0
  %9577 = vmatpush1.msra.mxu0 0.0
  %9578 = vmatprep.subr.mxu0 0.0
  %9579 = vmatpush1.msra.mxu0 0.0
  %9580 = vmatprep.subr.mxu0 0.0
  %9581 = vmatpush1.msra.mxu0 0.0
  %9582 = vmatprep.subr.mxu0 0.0
  %9583 = vmatpush1.msra.mxu0 0.0
  %9584 = vmatprep.subr.mxu0 0.0
  %9585 = vmatpush1.msra.mxu0 0.0
  %9586 = vmatprep.subr.mxu0 0.0
  %9587 = vmatpush1.msra.mxu0 0.0
  %9588 = vmatprep.subr.mxu0 0.0
  %9589 = vmatpush1.msra.mxu0 0.0
  %9590 = vmatprep.subr.mxu0 0.0
  %9591 = vmatpush1.msra.mxu0 0.0
  %9592 = vmatprep.subr.mxu0 0.0
  %9593 = vmatpush1.msra.mxu0 0.0
  %9594 = vmatprep.subr.mxu0 0.0
  %9595 = vmatpush1.msra.mxu0 0.0
  %9596 = vmatprep.subr.mxu0 0.0
  %9597 = vmatpush1.msra.mxu0 0.0
  %9598 = vmatprep.subr.mxu0 0.0
  %9599 = vmatpush1.msra.mxu0 0.0
  %9600 = vmatprep.subr.mxu0 0.0
  %9601 = vmatpush1.msra.mxu0 0.0
  %9602 = vmatprep.subr.mxu0 0.0
  %9603 = vmatpush1.msra.mxu0 0.0
  %9604 = vmatprep.subr.mxu0 0.0
  %9605 = vmatpush1.msra.mxu0 0.0
  %9606 = vmatprep.subr.mxu0 0.0
  %9607 = vmatpush1.msra.mxu0 %v9571
  %9608 = vmatprep.subr.mxu0 0.0
  %9609 = vmatpush2.msra.mxu0 0.0
  %9610 = vmatprep.subr.mxu0 0.0
  %9611 = vmatpush2.msra.mxu0 0.0
  %9612 = vmatprep.subr.mxu0 0.0
  %9613 = vmatpush2.msra.mxu0 0.0
  %9614 = vmatprep.subr.mxu0 0.0
  %9615 = vmatpush2.msra.mxu0 0.0
  %9616 = vmatprep.subr.mxu0 0.0
  %9617 = vmatpush2.msra.mxu0 0.0
  %9618 = vmatprep.subr.mxu0 0.0
  %9619 = vmatpush2.msra.mxu0 0.0
  %9620 = vmatprep.subr.mxu0 0.0
  %9621 = vmatpush2.msra.mxu0 0.0
  %9622 = vmatprep.subr.mxu0 0.0
  %9623 = vmatpush2.msra.mxu0 0.0
  %9624 = vmatprep.subr.mxu0 0.0
  %9625 = vmatpush2.msra.mxu0 0.0
  %9626 = vmatprep.subr.mxu0 0.0
  %9627 = vmatpush2.msra.mxu0 0.0
  %9628 = vmatprep.subr.mxu0 0.0
  %9629 = vmatpush2.msra.mxu0 0.0
  %9630 = vmatprep.subr.mxu0 0.0
  %9631 = vmatpush2.msra.mxu0 0.0
  %9632 = vmatprep.subr.mxu0 0.0
  %9633 = vmatpush2.msra.mxu0 0.0
  %9634 = vmatprep.subr.mxu0 0.0
  %9635 = vmatpush2.msra.mxu0 0.0
  %9636 = vmatprep.subr.mxu0 0.0
  %9637 = vmatpush2.msra.mxu0 0.0
  %9638 = vmatprep.subr.mxu0 0.0
  %9639 = vmatpush2.msra.mxu0 0.0
  %9640 = vmatprep.mubr.f32.mxu0 0.0
  %9641 = vmatmul.mubr.f32.gmra.mxu0 %v9574
  %v9642 = vpop.f32.mrf.mxu0
  %v9643 = vadd.f32 0.0, %v9642
  %v9644 = vpop.f32.mrf.mxu0
  %9645 = vdwg.mxu0
  %9646 = vrot.lane.b32.xlu0 %v324, 64
  %v9647 = vpop.permute.xlu0 %9646
  %v9650 = vsel %vm355, %v5893, 0
  %9652 = vmatprep.subr.mxu0 0.0
  %9653 = vmatpush1.msra.mxu0 0.0
  %9654 = vmatprep.subr.mxu0 0.0
  %9655 = vmatpush1.msra.mxu0 0.0
  %9656 = vmatprep.subr.mxu0 0.0
  %9657 = vmatpush1.msra.mxu0 0.0
  %9658 = vmatprep.subr.mxu0 0.0
  %9659 = vmatpush1.msra.mxu0 0.0
  %9660 = vmatprep.subr.mxu0 0.0
  %9661 = vmatpush1.msra.mxu0 0.0
  %9662 = vmatprep.subr.mxu0 0.0
  %9663 = vmatpush1.msra.mxu0 0.0
  %9664 = vmatprep.subr.mxu0 0.0
  %9665 = vmatpush1.msra.mxu0 0.0
  %9666 = vmatprep.subr.mxu0 0.0
  %9667 = vmatpush1.msra.mxu0 0.0
  %9668 = vmatprep.subr.mxu0 0.0
  %9669 = vmatpush1.msra.mxu0 0.0
  %9670 = vmatprep.subr.mxu0 0.0
  %9671 = vmatpush1.msra.mxu0 0.0
  %9672 = vmatprep.subr.mxu0 0.0
  %9673 = vmatpush1.msra.mxu0 0.0
  %9674 = vmatprep.subr.mxu0 0.0
  %9675 = vmatpush1.msra.mxu0 0.0
  %9676 = vmatprep.subr.mxu0 0.0
  %9677 = vmatpush1.msra.mxu0 0.0
  %9678 = vmatprep.subr.mxu0 0.0
  %9679 = vmatpush1.msra.mxu0 0.0
  %9680 = vmatprep.subr.mxu0 0.0
  %9681 = vmatpush1.msra.mxu0 0.0
  %9682 = vmatprep.subr.mxu0 0.0
  %9683 = vmatpush1.msra.mxu0 %v9647
  %9684 = vmatprep.subr.mxu0 0.0
  %9685 = vmatpush2.msra.mxu0 0.0
  %9686 = vmatprep.subr.mxu0 0.0
  %9687 = vmatpush2.msra.mxu0 0.0
  %9688 = vmatprep.subr.mxu0 0.0
  %9689 = vmatpush2.msra.mxu0 0.0
  %9690 = vmatprep.subr.mxu0 0.0
  %9691 = vmatpush2.msra.mxu0 0.0
  %9692 = vmatprep.subr.mxu0 0.0
  %9693 = vmatpush2.msra.mxu0 0.0
  %9694 = vmatprep.subr.mxu0 0.0
  %9695 = vmatpush2.msra.mxu0 0.0
  %9696 = vmatprep.subr.mxu0 0.0
  %9697 = vmatpush2.msra.mxu0 0.0
  %9698 = vmatprep.subr.mxu0 0.0
  %9699 = vmatpush2.msra.mxu0 0.0
  %9700 = vmatprep.subr.mxu0 0.0
  %9701 = vmatpush2.msra.mxu0 0.0
  %9702 = vmatprep.subr.mxu0 0.0
  %9703 = vmatpush2.msra.mxu0 0.0
  %9704 = vmatprep.subr.mxu0 0.0
  %9705 = vmatpush2.msra.mxu0 0.0
  %9706 = vmatprep.subr.mxu0 0.0
  %9707 = vmatpush2.msra.mxu0 0.0
  %9708 = vmatprep.subr.mxu0 0.0
  %9709 = vmatpush2.msra.mxu0 0.0
  %9710 = vmatprep.subr.mxu0 0.0
  %9711 = vmatpush2.msra.mxu0 0.0
  %9712 = vmatprep.subr.mxu0 0.0
  %9713 = vmatpush2.msra.mxu0 0.0
  %9714 = vmatprep.subr.mxu0 0.0
  %9715 = vmatpush2.msra.mxu0 0.0
  %9716 = vmatprep.mubr.f32.mxu0 0.0
  %9717 = vmatmul.mubr.f32.gmra.mxu0 %v9650
  %v9718 = vpop.f32.mrf.mxu0
  %v9719 = vadd.f32 0.0, %v9718
  %v9720 = vpop.f32.mrf.mxu0
  %9721 = vdwg.mxu0
  %9722 = vrot.lane.b32.xlu0 %v326, 64
  %v9723 = vpop.permute.xlu0 %9722
  %v9726 = vsel %vm355, %v5895, 0
  %9728 = vmatprep.subr.mxu0 0.0
  %9729 = vmatpush1.msra.mxu0 0.0
  %9730 = vmatprep.subr.mxu0 0.0
  %9731 = vmatpush1.msra.mxu0 0.0
  %9732 = vmatprep.subr.mxu0 0.0
  %9733 = vmatpush1.msra.mxu0 0.0
  %9734 = vmatprep.subr.mxu0 0.0
  %9735 = vmatpush1.msra.mxu0 0.0
  %9736 = vmatprep.subr.mxu0 0.0
  %9737 = vmatpush1.msra.mxu0 0.0
  %9738 = vmatprep.subr.mxu0 0.0
  %9739 = vmatpush1.msra.mxu0 0.0
  %9740 = vmatprep.subr.mxu0 0.0
  %9741 = vmatpush1.msra.mxu0 0.0
  %9742 = vmatprep.subr.mxu0 0.0
  %9743 = vmatpush1.msra.mxu0 0.0
  %9744 = vmatprep.subr.mxu0 0.0
  %9745 = vmatpush1.msra.mxu0 0.0
  %9746 = vmatprep.subr.mxu0 0.0
  %9747 = vmatpush1.msra.mxu0 0.0
  %9748 = vmatprep.subr.mxu0 0.0
  %9749 = vmatpush1.msra.mxu0 0.0
  %9750 = vmatprep.subr.mxu0 0.0
  %9751 = vmatpush1.msra.mxu0 0.0
  %9752 = vmatprep.subr.mxu0 0.0
  %9753 = vmatpush1.msra.mxu0 0.0
  %9754 = vmatprep.subr.mxu0 0.0
  %9755 = vmatpush1.msra.mxu0 0.0
  %9756 = vmatprep.subr.mxu0 0.0
  %9757 = vmatpush1.msra.mxu0 0.0
  %9758 = vmatprep.subr.mxu0 0.0
  %9759 = vmatpush1.msra.mxu0 %v9723
  %9760 = vmatprep.subr.mxu0 0.0
  %9761 = vmatpush2.msra.mxu0 0.0
  %9762 = vmatprep.subr.mxu0 0.0
  %9763 = vmatpush2.msra.mxu0 0.0
  %9764 = vmatprep.subr.mxu0 0.0
  %9765 = vmatpush2.msra.mxu0 0.0
  %9766 = vmatprep.subr.mxu0 0.0
  %9767 = vmatpush2.msra.mxu0 0.0
  %9768 = vmatprep.subr.mxu0 0.0
  %9769 = vmatpush2.msra.mxu0 0.0
  %9770 = vmatprep.subr.mxu0 0.0
  %9771 = vmatpush2.msra.mxu0 0.0
  %9772 = vmatprep.subr.mxu0 0.0
  %9773 = vmatpush2.msra.mxu0 0.0
  %9774 = vmatprep.subr.mxu0 0.0
  %9775 = vmatpush2.msra.mxu0 0.0
  %9776 = vmatprep.subr.mxu0 0.0
  %9777 = vmatpush2.msra.mxu0 0.0
  %9778 = vmatprep.subr.mxu0 0.0
  %9779 = vmatpush2.msra.mxu0 0.0
  %9780 = vmatprep.subr.mxu0 0.0
  %9781 = vmatpush2.msra.mxu0 0.0
  %9782 = vmatprep.subr.mxu0 0.0
  %9783 = vmatpush2.msra.mxu0 0.0
  %9784 = vmatprep.subr.mxu0 0.0
  %9785 = vmatpush2.msra.mxu0 0.0
  %9786 = vmatprep.subr.mxu0 0.0
  %9787 = vmatpush2.msra.mxu0 0.0
  %9788 = vmatprep.subr.mxu0 0.0
  %9789 = vmatpush2.msra.mxu0 0.0
  %9790 = vmatprep.subr.mxu0 0.0
  %9791 = vmatpush2.msra.mxu0 0.0
  %9792 = vmatprep.mubr.f32.mxu0 0.0
  %9793 = vmatmul.mubr.f32.gmra.mxu0 %v9726
  %v9794 = vpop.f32.mrf.mxu0
  %v9795 = vadd.f32 0.0, %v9794
  %v9796 = vpop.f32.mrf.mxu0
  %9797 = vdwg.mxu0
  %9798 = vrot.lane.b32.xlu0 %v328, 64
  %v9799 = vpop.permute.xlu0 %9798
  %v9802 = vsel %vm355, %v5897, 0
  %9804 = vmatprep.subr.mxu0 0.0
  %9805 = vmatpush1.msra.mxu0 0.0
  %9806 = vmatprep.subr.mxu0 0.0
  %9807 = vmatpush1.msra.mxu0 0.0
  %9808 = vmatprep.subr.mxu0 0.0
  %9809 = vmatpush1.msra.mxu0 0.0
  %9810 = vmatprep.subr.mxu0 0.0
  %9811 = vmatpush1.msra.mxu0 0.0
  %9812 = vmatprep.subr.mxu0 0.0
  %9813 = vmatpush1.msra.mxu0 0.0
  %9814 = vmatprep.subr.mxu0 0.0
  %9815 = vmatpush1.msra.mxu0 0.0
  %9816 = vmatprep.subr.mxu0 0.0
  %9817 = vmatpush1.msra.mxu0 0.0
  %9818 = vmatprep.subr.mxu0 0.0
  %9819 = vmatpush1.msra.mxu0 0.0
  %9820 = vmatprep.subr.mxu0 0.0
  %9821 = vmatpush1.msra.mxu0 0.0
  %9822 = vmatprep.subr.mxu0 0.0
  %9823 = vmatpush1.msra.mxu0 0.0
  %9824 = vmatprep.subr.mxu0 0.0
  %9825 = vmatpush1.msra.mxu0 0.0
  %9826 = vmatprep.subr.mxu0 0.0
  %9827 = vmatpush1.msra.mxu0 0.0
  %9828 = vmatprep.subr.mxu0 0.0
  %9829 = vmatpush1.msra.mxu0 0.0
  %9830 = vmatprep.subr.mxu0 0.0
  %9831 = vmatpush1.msra.mxu0 0.0
  %9832 = vmatprep.subr.mxu0 0.0
  %9833 = vmatpush1.msra.mxu0 0.0
  %9834 = vmatprep.subr.mxu0 0.0
  %9835 = vmatpush1.msra.mxu0 %v9799
  %9836 = vmatprep.subr.mxu0 0.0
  %9837 = vmatpush2.msra.mxu0 0.0
  %9838 = vmatprep.subr.mxu0 0.0
  %9839 = vmatpush2.msra.mxu0 0.0
  %9840 = vmatprep.subr.mxu0 0.0
  %9841 = vmatpush2.msra.mxu0 0.0
  %9842 = vmatprep.subr.mxu0 0.0
  %9843 = vmatpush2.msra.mxu0 0.0
  %9844 = vmatprep.subr.mxu0 0.0
  %9845 = vmatpush2.msra.mxu0 0.0
  %9846 = vmatprep.subr.mxu0 0.0
  %9847 = vmatpush2.msra.mxu0 0.0
  %9848 = vmatprep.subr.mxu0 0.0
  %9849 = vmatpush2.msra.mxu0 0.0
  %9850 = vmatprep.subr.mxu0 0.0
  %9851 = vmatpush2.msra.mxu0 0.0
  %9852 = vmatprep.subr.mxu0 0.0
  %9853 = vmatpush2.msra.mxu0 0.0
  %9854 = vmatprep.subr.mxu0 0.0
  %9855 = vmatpush2.msra.mxu0 0.0
  %9856 = vmatprep.subr.mxu0 0.0
  %9857 = vmatpush2.msra.mxu0 0.0
  %9858 = vmatprep.subr.mxu0 0.0
  %9859 = vmatpush2.msra.mxu0 0.0
  %9860 = vmatprep.subr.mxu0 0.0
  %9861 = vmatpush2.msra.mxu0 0.0
  %9862 = vmatprep.subr.mxu0 0.0
  %9863 = vmatpush2.msra.mxu0 0.0
  %9864 = vmatprep.subr.mxu0 0.0
  %9865 = vmatpush2.msra.mxu0 0.0
  %9866 = vmatprep.subr.mxu0 0.0
  %9867 = vmatpush2.msra.mxu0 0.0
  %9868 = vmatprep.mubr.f32.mxu0 0.0
  %9869 = vmatmul.mubr.f32.gmra.mxu0 %v9802
  %v9870 = vpop.f32.mrf.mxu0
  %v9871 = vadd.f32 0.0, %v9870
  %v9872 = vpop.f32.mrf.mxu0
  %9873 = vdwg.mxu0
  %9874 = vrot.lane.b32.xlu0 %v330, 64
  %v9875 = vpop.permute.xlu0 %9874
  %v9878 = vsel %vm355, %v5899, 0
  %9880 = vmatprep.subr.mxu0 0.0
  %9881 = vmatpush1.msra.mxu0 0.0
  %9882 = vmatprep.subr.mxu0 0.0
  %9883 = vmatpush1.msra.mxu0 0.0
  %9884 = vmatprep.subr.mxu0 0.0
  %9885 = vmatpush1.msra.mxu0 0.0
  %9886 = vmatprep.subr.mxu0 0.0
  %9887 = vmatpush1.msra.mxu0 0.0
  %9888 = vmatprep.subr.mxu0 0.0
  %9889 = vmatpush1.msra.mxu0 0.0
  %9890 = vmatprep.subr.mxu0 0.0
  %9891 = vmatpush1.msra.mxu0 0.0
  %9892 = vmatprep.subr.mxu0 0.0
  %9893 = vmatpush1.msra.mxu0 0.0
  %9894 = vmatprep.subr.mxu0 0.0
  %9895 = vmatpush1.msra.mxu0 0.0
  %9896 = vmatprep.subr.mxu0 0.0
  %9897 = vmatpush1.msra.mxu0 0.0
  %9898 = vmatprep.subr.mxu0 0.0
  %9899 = vmatpush1.msra.mxu0 0.0
  %9900 = vmatprep.subr.mxu0 0.0
  %9901 = vmatpush1.msra.mxu0 0.0
  %9902 = vmatprep.subr.mxu0 0.0
  %9903 = vmatpush1.msra.mxu0 0.0
  %9904 = vmatprep.subr.mxu0 0.0
  %9905 = vmatpush1.msra.mxu0 0.0
  %9906 = vmatprep.subr.mxu0 0.0
  %9907 = vmatpush1.msra.mxu0 0.0
  %9908 = vmatprep.subr.mxu0 0.0
  %9909 = vmatpush1.msra.mxu0 0.0
  %9910 = vmatprep.subr.mxu0 0.0
  %9911 = vmatpush1.msra.mxu0 %v9875
  %9912 = vmatprep.subr.mxu0 0.0
  %9913 = vmatpush2.msra.mxu0 0.0
  %9914 = vmatprep.subr.mxu0 0.0
  %9915 = vmatpush2.msra.mxu0 0.0
  %9916 = vmatprep.subr.mxu0 0.0
  %9917 = vmatpush2.msra.mxu0 0.0
  %9918 = vmatprep.subr.mxu0 0.0
  %9919 = vmatpush2.msra.mxu0 0.0
  %9920 = vmatprep.subr.mxu0 0.0
  %9921 = vmatpush2.msra.mxu0 0.0
  %9922 = vmatprep.subr.mxu0 0.0
  %9923 = vmatpush2.msra.mxu0 0.0
  %9924 = vmatprep.subr.mxu0 0.0
  %9925 = vmatpush2.msra.mxu0 0.0
  %9926 = vmatprep.subr.mxu0 0.0
  %9927 = vmatpush2.msra.mxu0 0.0
  %9928 = vmatprep.subr.mxu0 0.0
  %9929 = vmatpush2.msra.mxu0 0.0
  %9930 = vmatprep.subr.mxu0 0.0
  %9931 = vmatpush2.msra.mxu0 0.0
  %9932 = vmatprep.subr.mxu0 0.0
  %9933 = vmatpush2.msra.mxu0 0.0
  %9934 = vmatprep.subr.mxu0 0.0
  %9935 = vmatpush2.msra.mxu0 0.0
  %9936 = vmatprep.subr.mxu0 0.0
  %9937 = vmatpush2.msra.mxu0 0.0
  %9938 = vmatprep.subr.mxu0 0.0
  %9939 = vmatpush2.msra.mxu0 0.0
  %9940 = vmatprep.subr.mxu0 0.0
  %9941 = vmatpush2.msra.mxu0 0.0
  %9942 = vmatprep.subr.mxu0 0.0
  %9943 = vmatpush2.msra.mxu0 0.0
  %9944 = vmatprep.mubr.f32.mxu0 0.0
  %9945 = vmatmul.mubr.f32.gmra.mxu0 %v9878
  %v9946 = vpop.f32.mrf.mxu0
  %v9947 = vadd.f32 0.0, %v9946
  %v9948 = vpop.f32.mrf.mxu0
  %9949 = vdwg.mxu0
  %9950 = vrot.lane.b32.xlu0 %v332, 64
  %v9951 = vpop.permute.xlu0 %9950
  %v9954 = vsel %vm355, %v5901, 0
  %9956 = vmatprep.subr.mxu0 0.0
  %9957 = vmatpush1.msra.mxu0 0.0
  %9958 = vmatprep.subr.mxu0 0.0
  %9959 = vmatpush1.msra.mxu0 0.0
  %9960 = vmatprep.subr.mxu0 0.0
  %9961 = vmatpush1.msra.mxu0 0.0
  %9962 = vmatprep.subr.mxu0 0.0
  %9963 = vmatpush1.msra.mxu0 0.0
  %9964 = vmatprep.subr.mxu0 0.0
  %9965 = vmatpush1.msra.mxu0 0.0
  %9966 = vmatprep.subr.mxu0 0.0
  %9967 = vmatpush1.msra.mxu0 0.0
  %9968 = vmatprep.subr.mxu0 0.0
  %9969 = vmatpush1.msra.mxu0 0.0
  %9970 = vmatprep.subr.mxu0 0.0
  %9971 = vmatpush1.msra.mxu0 0.0
  %9972 = vmatprep.subr.mxu0 0.0
  %9973 = vmatpush1.msra.mxu0 0.0
  %9974 = vmatprep.subr.mxu0 0.0
  %9975 = vmatpush1.msra.mxu0 0.0
  %9976 = vmatprep.subr.mxu0 0.0
  %9977 = vmatpush1.msra.mxu0 0.0
  %9978 = vmatprep.subr.mxu0 0.0
  %9979 = vmatpush1.msra.mxu0 0.0
  %9980 = vmatprep.subr.mxu0 0.0
  %9981 = vmatpush1.msra.mxu0 0.0
  %9982 = vmatprep.subr.mxu0 0.0
  %9983 = vmatpush1.msra.mxu0 0.0
  %9984 = vmatprep.subr.mxu0 0.0
  %9985 = vmatpush1.msra.mxu0 0.0
  %9986 = vmatprep.subr.mxu0 0.0
  %9987 = vmatpush1.msra.mxu0 %v9951
  %9988 = vmatprep.subr.mxu0 0.0
  %9989 = vmatpush2.msra.mxu0 0.0
  %9990 = vmatprep.subr.mxu0 0.0
  %9991 = vmatpush2.msra.mxu0 0.0
  %9992 = vmatprep.subr.mxu0 0.0
  %9993 = vmatpush2.msra.mxu0 0.0
  %9994 = vmatprep.subr.mxu0 0.0
  %9995 = vmatpush2.msra.mxu0 0.0
  %9996 = vmatprep.subr.mxu0 0.0
  %9997 = vmatpush2.msra.mxu0 0.0
  %9998 = vmatprep.subr.mxu0 0.0
  %9999 = vmatpush2.msra.mxu0 0.0
  %10000 = vmatprep.subr.mxu0 0.0
  %10001 = vmatpush2.msra.mxu0 0.0
  %10002 = vmatprep.subr.mxu0 0.0
  %10003 = vmatpush2.msra.mxu0 0.0
  %10004 = vmatprep.subr.mxu0 0.0
  %10005 = vmatpush2.msra.mxu0 0.0
  %10006 = vmatprep.subr.mxu0 0.0
  %10007 = vmatpush2.msra.mxu0 0.0
  %10008 = vmatprep.subr.mxu0 0.0
  %10009 = vmatpush2.msra.mxu0 0.0
  %10010 = vmatprep.subr.mxu0 0.0
  %10011 = vmatpush2.msra.mxu0 0.0
  %10012 = vmatprep.subr.mxu0 0.0
  %10013 = vmatpush2.msra.mxu0 0.0
  %10014 = vmatprep.subr.mxu0 0.0
  %10015 = vmatpush2.msra.mxu0 0.0
  %10016 = vmatprep.subr.mxu0 0.0
  %10017 = vmatpush2.msra.mxu0 0.0
  %10018 = vmatprep.subr.mxu0 0.0
  %10019 = vmatpush2.msra.mxu0 0.0
  %10020 = vmatprep.mubr.f32.mxu0 0.0
  %10021 = vmatmul.mubr.f32.gmra.mxu0 %v9954
  %v10022 = vpop.f32.mrf.mxu0
  %v10023 = vadd.f32 0.0, %v10022
  %v10024 = vpop.f32.mrf.mxu0
  %10025 = vdwg.mxu0
  %10026 = vrot.lane.b32.xlu0 %v334, 64
  %v10027 = vpop.permute.xlu0 %10026
  %v10030 = vsel %vm355, %v5903, 0
  %10032 = vmatprep.subr.mxu0 0.0
  %10033 = vmatpush1.msra.mxu0 0.0
  %10034 = vmatprep.subr.mxu0 0.0
  %10035 = vmatpush1.msra.mxu0 0.0
  %10036 = vmatprep.subr.mxu0 0.0
  %10037 = vmatpush1.msra.mxu0 0.0
  %10038 = vmatprep.subr.mxu0 0.0
  %10039 = vmatpush1.msra.mxu0 0.0
  %10040 = vmatprep.subr.mxu0 0.0
  %10041 = vmatpush1.msra.mxu0 0.0
  %10042 = vmatprep.subr.mxu0 0.0
  %10043 = vmatpush1.msra.mxu0 0.0
  %10044 = vmatprep.subr.mxu0 0.0
  %10045 = vmatpush1.msra.mxu0 0.0
  %10046 = vmatprep.subr.mxu0 0.0
  %10047 = vmatpush1.msra.mxu0 0.0
  %10048 = vmatprep.subr.mxu0 0.0
  %10049 = vmatpush1.msra.mxu0 0.0
  %10050 = vmatprep.subr.mxu0 0.0
  %10051 = vmatpush1.msra.mxu0 0.0
  %10052 = vmatprep.subr.mxu0 0.0
  %10053 = vmatpush1.msra.mxu0 0.0
  %10054 = vmatprep.subr.mxu0 0.0
  %10055 = vmatpush1.msra.mxu0 0.0
  %10056 = vmatprep.subr.mxu0 0.0
  %10057 = vmatpush1.msra.mxu0 0.0
  %10058 = vmatprep.subr.mxu0 0.0
  %10059 = vmatpush1.msra.mxu0 0.0
  %10060 = vmatprep.subr.mxu0 0.0
  %10061 = vmatpush1.msra.mxu0 0.0
  %10062 = vmatprep.subr.mxu0 0.0
  %10063 = vmatpush1.msra.mxu0 %v10027
  %10064 = vmatprep.subr.mxu0 0.0
  %10065 = vmatpush2.msra.mxu0 0.0
  %10066 = vmatprep.subr.mxu0 0.0
  %10067 = vmatpush2.msra.mxu0 0.0
  %10068 = vmatprep.subr.mxu0 0.0
  %10069 = vmatpush2.msra.mxu0 0.0
  %10070 = vmatprep.subr.mxu0 0.0
  %10071 = vmatpush2.msra.mxu0 0.0
  %10072 = vmatprep.subr.mxu0 0.0
  %10073 = vmatpush2.msra.mxu0 0.0
  %10074 = vmatprep.subr.mxu0 0.0
  %10075 = vmatpush2.msra.mxu0 0.0
  %10076 = vmatprep.subr.mxu0 0.0
  %10077 = vmatpush2.msra.mxu0 0.0
  %10078 = vmatprep.subr.mxu0 0.0
  %10079 = vmatpush2.msra.mxu0 0.0
  %10080 = vmatprep.subr.mxu0 0.0
  %10081 = vmatpush2.msra.mxu0 0.0
  %10082 = vmatprep.subr.mxu0 0.0
  %10083 = vmatpush2.msra.mxu0 0.0
  %10084 = vmatprep.subr.mxu0 0.0
  %10085 = vmatpush2.msra.mxu0 0.0
  %10086 = vmatprep.subr.mxu0 0.0
  %10087 = vmatpush2.msra.mxu0 0.0
  %10088 = vmatprep.subr.mxu0 0.0
  %10089 = vmatpush2.msra.mxu0 0.0
  %10090 = vmatprep.subr.mxu0 0.0
  %10091 = vmatpush2.msra.mxu0 0.0
  %10092 = vmatprep.subr.mxu0 0.0
  %10093 = vmatpush2.msra.mxu0 0.0
  %10094 = vmatprep.subr.mxu0 0.0
  %10095 = vmatpush2.msra.mxu0 0.0
  %10096 = vmatprep.mubr.f32.mxu0 0.0
  %10097 = vmatmul.mubr.f32.gmra.mxu0 %v10030
  %v10098 = vpop.f32.mrf.mxu0
  %v10099 = vadd.f32 0.0, %v10098
  %v10100 = vpop.f32.mrf.mxu0
  %10101 = vdwg.mxu0
  %10102 = vrot.lane.b32.xlu0 %v336, 64
  %v10103 = vpop.permute.xlu0 %10102
  %v10106 = vsel %vm355, %v5905, 0
  %10108 = vmatprep.subr.mxu0 0.0
  %10109 = vmatpush1.msra.mxu0 0.0
  %10110 = vmatprep.subr.mxu0 0.0
  %10111 = vmatpush1.msra.mxu0 0.0
  %10112 = vmatprep.subr.mxu0 0.0
  %10113 = vmatpush1.msra.mxu0 0.0
  %10114 = vmatprep.subr.mxu0 0.0
  %10115 = vmatpush1.msra.mxu0 0.0
  %10116 = vmatprep.subr.mxu0 0.0
  %10117 = vmatpush1.msra.mxu0 0.0
  %10118 = vmatprep.subr.mxu0 0.0
  %10119 = vmatpush1.msra.mxu0 0.0
  %10120 = vmatprep.subr.mxu0 0.0
  %10121 = vmatpush1.msra.mxu0 0.0
  %10122 = vmatprep.subr.mxu0 0.0
  %10123 = vmatpush1.msra.mxu0 0.0
  %10124 = vmatprep.subr.mxu0 0.0
  %10125 = vmatpush1.msra.mxu0 0.0
  %10126 = vmatprep.subr.mxu0 0.0
  %10127 = vmatpush1.msra.mxu0 0.0
  %10128 = vmatprep.subr.mxu0 0.0
  %10129 = vmatpush1.msra.mxu0 0.0
  %10130 = vmatprep.subr.mxu0 0.0
  %10131 = vmatpush1.msra.mxu0 0.0
  %10132 = vmatprep.subr.mxu0 0.0
  %10133 = vmatpush1.msra.mxu0 0.0
  %10134 = vmatprep.subr.mxu0 0.0
  %10135 = vmatpush1.msra.mxu0 0.0
  %10136 = vmatprep.subr.mxu0 0.0
  %10137 = vmatpush1.msra.mxu0 0.0
  %10138 = vmatprep.subr.mxu0 0.0
  %10139 = vmatpush1.msra.mxu0 %v10103
  %10140 = vmatprep.subr.mxu0 0.0
  %10141 = vmatpush2.msra.mxu0 0.0
  %10142 = vmatprep.subr.mxu0 0.0
  %10143 = vmatpush2.msra.mxu0 0.0
  %10144 = vmatprep.subr.mxu0 0.0
  %10145 = vmatpush2.msra.mxu0 0.0
  %10146 = vmatprep.subr.mxu0 0.0
  %10147 = vmatpush2.msra.mxu0 0.0
  %10148 = vmatprep.subr.mxu0 0.0
  %10149 = vmatpush2.msra.mxu0 0.0
  %10150 = vmatprep.subr.mxu0 0.0
  %10151 = vmatpush2.msra.mxu0 0.0
  %10152 = vmatprep.subr.mxu0 0.0
  %10153 = vmatpush2.msra.mxu0 0.0
  %10154 = vmatprep.subr.mxu0 0.0
  %10155 = vmatpush2.msra.mxu0 0.0
  %10156 = vmatprep.subr.mxu0 0.0
  %10157 = vmatpush2.msra.mxu0 0.0
  %10158 = vmatprep.subr.mxu0 0.0
  %10159 = vmatpush2.msra.mxu0 0.0
  %10160 = vmatprep.subr.mxu0 0.0
  %10161 = vmatpush2.msra.mxu0 0.0
  %10162 = vmatprep.subr.mxu0 0.0
  %10163 = vmatpush2.msra.mxu0 0.0
  %10164 = vmatprep.subr.mxu0 0.0
  %10165 = vmatpush2.msra.mxu0 0.0
  %10166 = vmatprep.subr.mxu0 0.0
  %10167 = vmatpush2.msra.mxu0 0.0
  %10168 = vmatprep.subr.mxu0 0.0
  %10169 = vmatpush2.msra.mxu0 0.0
  %10170 = vmatprep.subr.mxu0 0.0
  %10171 = vmatpush2.msra.mxu0 0.0
  %10172 = vmatprep.mubr.f32.mxu0 0.0
  %10173 = vmatmul.mubr.f32.gmra.mxu0 %v10106
  %v10174 = vpop.f32.mrf.mxu0
  %v10175 = vadd.f32 0.0, %v10174
  %v10176 = vpop.f32.mrf.mxu0
  %10177 = vdwg.mxu0
  %10178 = vrot.lane.b32.xlu0 %v338, 64
  %v10179 = vpop.permute.xlu0 %10178
  %v10182 = vsel %vm355, %v5907, 0
  %10184 = vmatprep.subr.mxu0 0.0
  %10185 = vmatpush1.msra.mxu0 0.0
  %10186 = vmatprep.subr.mxu0 0.0
  %10187 = vmatpush1.msra.mxu0 0.0
  %10188 = vmatprep.subr.mxu0 0.0
  %10189 = vmatpush1.msra.mxu0 0.0
  %10190 = vmatprep.subr.mxu0 0.0
  %10191 = vmatpush1.msra.mxu0 0.0
  %10192 = vmatprep.subr.mxu0 0.0
  %10193 = vmatpush1.msra.mxu0 0.0
  %10194 = vmatprep.subr.mxu0 0.0
  %10195 = vmatpush1.msra.mxu0 0.0
  %10196 = vmatprep.subr.mxu0 0.0
  %10197 = vmatpush1.msra.mxu0 0.0
  %10198 = vmatprep.subr.mxu0 0.0
  %10199 = vmatpush1.msra.mxu0 0.0
  %10200 = vmatprep.subr.mxu0 0.0
  %10201 = vmatpush1.msra.mxu0 0.0
  %10202 = vmatprep.subr.mxu0 0.0
  %10203 = vmatpush1.msra.mxu0 0.0
  %10204 = vmatprep.subr.mxu0 0.0
  %10205 = vmatpush1.msra.mxu0 0.0
  %10206 = vmatprep.subr.mxu0 0.0
  %10207 = vmatpush1.msra.mxu0 0.0
  %10208 = vmatprep.subr.mxu0 0.0
  %10209 = vmatpush1.msra.mxu0 0.0
  %10210 = vmatprep.subr.mxu0 0.0
  %10211 = vmatpush1.msra.mxu0 0.0
  %10212 = vmatprep.subr.mxu0 0.0
  %10213 = vmatpush1.msra.mxu0 0.0
  %10214 = vmatprep.subr.mxu0 0.0
  %10215 = vmatpush1.msra.mxu0 %v10179
  %10216 = vmatprep.subr.mxu0 0.0
  %10217 = vmatpush2.msra.mxu0 0.0
  %10218 = vmatprep.subr.mxu0 0.0
  %10219 = vmatpush2.msra.mxu0 0.0
  %10220 = vmatprep.subr.mxu0 0.0
  %10221 = vmatpush2.msra.mxu0 0.0
  %10222 = vmatprep.subr.mxu0 0.0
  %10223 = vmatpush2.msra.mxu0 0.0
  %10224 = vmatprep.subr.mxu0 0.0
  %10225 = vmatpush2.msra.mxu0 0.0
  %10226 = vmatprep.subr.mxu0 0.0
  %10227 = vmatpush2.msra.mxu0 0.0
  %10228 = vmatprep.subr.mxu0 0.0
  %10229 = vmatpush2.msra.mxu0 0.0
  %10230 = vmatprep.subr.mxu0 0.0
  %10231 = vmatpush2.msra.mxu0 0.0
  %10232 = vmatprep.subr.mxu0 0.0
  %10233 = vmatpush2.msra.mxu0 0.0
  %10234 = vmatprep.subr.mxu0 0.0
  %10235 = vmatpush2.msra.mxu0 0.0
  %10236 = vmatprep.subr.mxu0 0.0
  %10237 = vmatpush2.msra.mxu0 0.0
  %10238 = vmatprep.subr.mxu0 0.0
  %10239 = vmatpush2.msra.mxu0 0.0
  %10240 = vmatprep.subr.mxu0 0.0
  %10241 = vmatpush2.msra.mxu0 0.0
  %10242 = vmatprep.subr.mxu0 0.0
  %10243 = vmatpush2.msra.mxu0 0.0
  %10244 = vmatprep.subr.mxu0 0.0
  %10245 = vmatpush2.msra.mxu0 0.0
  %10246 = vmatprep.subr.mxu0 0.0
  %10247 = vmatpush2.msra.mxu0 0.0
  %10248 = vmatprep.mubr.f32.mxu0 0.0
  %10249 = vmatmul.mubr.f32.gmra.mxu0 %v10182
  %v10250 = vpop.f32.mrf.mxu0
  %v10251 = vadd.f32 0.0, %v10250
  %v10252 = vpop.f32.mrf.mxu0
  %10253 = vdwg.mxu0
  %10254 = vrot.lane.b32.xlu0 %v340, 64
  %v10255 = vpop.permute.xlu0 %10254
  %v10258 = vsel %vm355, %v5909, 0
  %10260 = vmatprep.subr.mxu0 0.0
  %10261 = vmatpush1.msra.mxu0 0.0
  %10262 = vmatprep.subr.mxu0 0.0
  %10263 = vmatpush1.msra.mxu0 0.0
  %10264 = vmatprep.subr.mxu0 0.0
  %10265 = vmatpush1.msra.mxu0 0.0
  %10266 = vmatprep.subr.mxu0 0.0
  %10267 = vmatpush1.msra.mxu0 0.0
  %10268 = vmatprep.subr.mxu0 0.0
  %10269 = vmatpush1.msra.mxu0 0.0
  %10270 = vmatprep.subr.mxu0 0.0
  %10271 = vmatpush1.msra.mxu0 0.0
  %10272 = vmatprep.subr.mxu0 0.0
  %10273 = vmatpush1.msra.mxu0 0.0
  %10274 = vmatprep.subr.mxu0 0.0
  %10275 = vmatpush1.msra.mxu0 0.0
  %10276 = vmatprep.subr.mxu0 0.0
  %10277 = vmatpush1.msra.mxu0 0.0
  %10278 = vmatprep.subr.mxu0 0.0
  %10279 = vmatpush1.msra.mxu0 0.0
  %10280 = vmatprep.subr.mxu0 0.0
  %10281 = vmatpush1.msra.mxu0 0.0
  %10282 = vmatprep.subr.mxu0 0.0
  %10283 = vmatpush1.msra.mxu0 0.0
  %10284 = vmatprep.subr.mxu0 0.0
  %10285 = vmatpush1.msra.mxu0 0.0
  %10286 = vmatprep.subr.mxu0 0.0
  %10287 = vmatpush1.msra.mxu0 0.0
  %10288 = vmatprep.subr.mxu0 0.0
  %10289 = vmatpush1.msra.mxu0 0.0
  %10290 = vmatprep.subr.mxu0 0.0
  %10291 = vmatpush1.msra.mxu0 %v10255
  %10292 = vmatprep.subr.mxu0 0.0
  %10293 = vmatpush2.msra.mxu0 0.0
  %10294 = vmatprep.subr.mxu0 0.0
  %10295 = vmatpush2.msra.mxu0 0.0
  %10296 = vmatprep.subr.mxu0 0.0
  %10297 = vmatpush2.msra.mxu0 0.0
  %10298 = vmatprep.subr.mxu0 0.0
  %10299 = vmatpush2.msra.mxu0 0.0
  %10300 = vmatprep.subr.mxu0 0.0
  %10301 = vmatpush2.msra.mxu0 0.0
  %10302 = vmatprep.subr.mxu0 0.0
  %10303 = vmatpush2.msra.mxu0 0.0
  %10304 = vmatprep.subr.mxu0 0.0
  %10305 = vmatpush2.msra.mxu0 0.0
  %10306 = vmatprep.subr.mxu0 0.0
  %10307 = vmatpush2.msra.mxu0 0.0
  %10308 = vmatprep.subr.mxu0 0.0
  %10309 = vmatpush2.msra.mxu0 0.0
  %10310 = vmatprep.subr.mxu0 0.0
  %10311 = vmatpush2.msra.mxu0 0.0
  %10312 = vmatprep.subr.mxu0 0.0
  %10313 = vmatpush2.msra.mxu0 0.0
  %10314 = vmatprep.subr.mxu0 0.0
  %10315 = vmatpush2.msra.mxu0 0.0
  %10316 = vmatprep.subr.mxu0 0.0
  %10317 = vmatpush2.msra.mxu0 0.0
  %10318 = vmatprep.subr.mxu0 0.0
  %10319 = vmatpush2.msra.mxu0 0.0
  %10320 = vmatprep.subr.mxu0 0.0
  %10321 = vmatpush2.msra.mxu0 0.0
  %10322 = vmatprep.subr.mxu0 0.0
  %10323 = vmatpush2.msra.mxu0 0.0
  %10324 = vmatprep.mubr.f32.mxu0 0.0
  %10325 = vmatmul.mubr.f32.gmra.mxu0 %v10258
  %v10326 = vpop.f32.mrf.mxu0
  %v10327 = vadd.f32 0.0, %v10326
  %v10328 = vpop.f32.mrf.mxu0
  %10329 = vdwg.mxu0
  %10330 = vrot.lane.b32.xlu0 %v342, 64
  %v10331 = vpop.permute.xlu0 %10330
  %v10334 = vsel %vm355, %v5911, 0
  %10336 = vmatprep.subr.mxu0 0.0
  %10337 = vmatpush1.msra.mxu0 0.0
  %10338 = vmatprep.subr.mxu0 0.0
  %10339 = vmatpush1.msra.mxu0 0.0
  %10340 = vmatprep.subr.mxu0 0.0
  %10341 = vmatpush1.msra.mxu0 0.0
  %10342 = vmatprep.subr.mxu0 0.0
  %10343 = vmatpush1.msra.mxu0 0.0
  %10344 = vmatprep.subr.mxu0 0.0
  %10345 = vmatpush1.msra.mxu0 0.0
  %10346 = vmatprep.subr.mxu0 0.0
  %10347 = vmatpush1.msra.mxu0 0.0
  %10348 = vmatprep.subr.mxu0 0.0
  %10349 = vmatpush1.msra.mxu0 0.0
  %10350 = vmatprep.subr.mxu0 0.0
  %10351 = vmatpush1.msra.mxu0 0.0
  %10352 = vmatprep.subr.mxu0 0.0
  %10353 = vmatpush1.msra.mxu0 0.0
  %10354 = vmatprep.subr.mxu0 0.0
  %10355 = vmatpush1.msra.mxu0 0.0
  %10356 = vmatprep.subr.mxu0 0.0
  %10357 = vmatpush1.msra.mxu0 0.0
  %10358 = vmatprep.subr.mxu0 0.0
  %10359 = vmatpush1.msra.mxu0 0.0
  %10360 = vmatprep.subr.mxu0 0.0
  %10361 = vmatpush1.msra.mxu0 0.0
  %10362 = vmatprep.subr.mxu0 0.0
  %10363 = vmatpush1.msra.mxu0 0.0
  %10364 = vmatprep.subr.mxu0 0.0
  %10365 = vmatpush1.msra.mxu0 0.0
  %10366 = vmatprep.subr.mxu0 0.0
  %10367 = vmatpush1.msra.mxu0 %v10331
  %10368 = vmatprep.subr.mxu0 0.0
  %10369 = vmatpush2.msra.mxu0 0.0
  %10370 = vmatprep.subr.mxu0 0.0
  %10371 = vmatpush2.msra.mxu0 0.0
  %10372 = vmatprep.subr.mxu0 0.0
  %10373 = vmatpush2.msra.mxu0 0.0
  %10374 = vmatprep.subr.mxu0 0.0
  %10375 = vmatpush2.msra.mxu0 0.0
  %10376 = vmatprep.subr.mxu0 0.0
  %10377 = vmatpush2.msra.mxu0 0.0
  %10378 = vmatprep.subr.mxu0 0.0
  %10379 = vmatpush2.msra.mxu0 0.0
  %10380 = vmatprep.subr.mxu0 0.0
  %10381 = vmatpush2.msra.mxu0 0.0
  %10382 = vmatprep.subr.mxu0 0.0
  %10383 = vmatpush2.msra.mxu0 0.0
  %10384 = vmatprep.subr.mxu0 0.0
  %10385 = vmatpush2.msra.mxu0 0.0
  %10386 = vmatprep.subr.mxu0 0.0
  %10387 = vmatpush2.msra.mxu0 0.0
  %10388 = vmatprep.subr.mxu0 0.0
  %10389 = vmatpush2.msra.mxu0 0.0
  %10390 = vmatprep.subr.mxu0 0.0
  %10391 = vmatpush2.msra.mxu0 0.0
  %10392 = vmatprep.subr.mxu0 0.0
  %10393 = vmatpush2.msra.mxu0 0.0
  %10394 = vmatprep.subr.mxu0 0.0
  %10395 = vmatpush2.msra.mxu0 0.0
  %10396 = vmatprep.subr.mxu0 0.0
  %10397 = vmatpush2.msra.mxu0 0.0
  %10398 = vmatprep.subr.mxu0 0.0
  %10399 = vmatpush2.msra.mxu0 0.0
  %10400 = vmatprep.mubr.f32.mxu0 0.0
  %10401 = vmatmul.mubr.f32.gmra.mxu0 %v10334
  %v10402 = vpop.f32.mrf.mxu0
  %v10403 = vadd.f32 0.0, %v10402
  %v10404 = vpop.f32.mrf.mxu0
  %10405 = vdwg.mxu0
  %10406 = vrot.lane.b32.xlu0 %v344, 64
  %v10407 = vpop.permute.xlu0 %10406
  %v10410 = vsel %vm355, %v5913, 0
  %10412 = vmatprep.subr.mxu0 0.0
  %10413 = vmatpush1.msra.mxu0 0.0
  %10414 = vmatprep.subr.mxu0 0.0
  %10415 = vmatpush1.msra.mxu0 0.0
  %10416 = vmatprep.subr.mxu0 0.0
  %10417 = vmatpush1.msra.mxu0 0.0
  %10418 = vmatprep.subr.mxu0 0.0
  %10419 = vmatpush1.msra.mxu0 0.0
  %10420 = vmatprep.subr.mxu0 0.0
  %10421 = vmatpush1.msra.mxu0 0.0
  %10422 = vmatprep.subr.mxu0 0.0
  %10423 = vmatpush1.msra.mxu0 0.0
  %10424 = vmatprep.subr.mxu0 0.0
  %10425 = vmatpush1.msra.mxu0 0.0
  %10426 = vmatprep.subr.mxu0 0.0
  %10427 = vmatpush1.msra.mxu0 0.0
  %10428 = vmatprep.subr.mxu0 0.0
  %10429 = vmatpush1.msra.mxu0 0.0
  %10430 = vmatprep.subr.mxu0 0.0
  %10431 = vmatpush1.msra.mxu0 0.0
  %10432 = vmatprep.subr.mxu0 0.0
  %10433 = vmatpush1.msra.mxu0 0.0
  %10434 = vmatprep.subr.mxu0 0.0
  %10435 = vmatpush1.msra.mxu0 0.0
  %10436 = vmatprep.subr.mxu0 0.0
  %10437 = vmatpush1.msra.mxu0 0.0
  %10438 = vmatprep.subr.mxu0 0.0
  %10439 = vmatpush1.msra.mxu0 0.0
  %10440 = vmatprep.subr.mxu0 0.0
  %10441 = vmatpush1.msra.mxu0 0.0
  %10442 = vmatprep.subr.mxu0 0.0
  %10443 = vmatpush1.msra.mxu0 %v10407
  %10444 = vmatprep.subr.mxu0 0.0
  %10445 = vmatpush2.msra.mxu0 0.0
  %10446 = vmatprep.subr.mxu0 0.0
  %10447 = vmatpush2.msra.mxu0 0.0
  %10448 = vmatprep.subr.mxu0 0.0
  %10449 = vmatpush2.msra.mxu0 0.0
  %10450 = vmatprep.subr.mxu0 0.0
  %10451 = vmatpush2.msra.mxu0 0.0
  %10452 = vmatprep.subr.mxu0 0.0
  %10453 = vmatpush2.msra.mxu0 0.0
  %10454 = vmatprep.subr.mxu0 0.0
  %10455 = vmatpush2.msra.mxu0 0.0
  %10456 = vmatprep.subr.mxu0 0.0
  %10457 = vmatpush2.msra.mxu0 0.0
  %10458 = vmatprep.subr.mxu0 0.0
  %10459 = vmatpush2.msra.mxu0 0.0
  %10460 = vmatprep.subr.mxu0 0.0
  %10461 = vmatpush2.msra.mxu0 0.0
  %10462 = vmatprep.subr.mxu0 0.0
  %10463 = vmatpush2.msra.mxu0 0.0
  %10464 = vmatprep.subr.mxu0 0.0
  %10465 = vmatpush2.msra.mxu0 0.0
  %10466 = vmatprep.subr.mxu0 0.0
  %10467 = vmatpush2.msra.mxu0 0.0
  %10468 = vmatprep.subr.mxu0 0.0
  %10469 = vmatpush2.msra.mxu0 0.0
  %10470 = vmatprep.subr.mxu0 0.0
  %10471 = vmatpush2.msra.mxu0 0.0
  %10472 = vmatprep.subr.mxu0 0.0
  %10473 = vmatpush2.msra.mxu0 0.0
  %10474 = vmatprep.subr.mxu0 0.0
  %10475 = vmatpush2.msra.mxu0 0.0
  %10476 = vmatprep.mubr.f32.mxu0 0.0
  %10477 = vmatmul.mubr.f32.gmra.mxu0 %v10410
  %v10478 = vpop.f32.mrf.mxu0
  %v10479 = vadd.f32 0.0, %v10478
  %v10480 = vpop.f32.mrf.mxu0
  %10481 = vdwg.mxu0
  %10482 = vrot.lane.b32.xlu0 %v346, 64
  %v10483 = vpop.permute.xlu0 %10482
  %v10486 = vsel %vm355, %v5915, 0
  %10488 = vmatprep.subr.mxu0 0.0
  %10489 = vmatpush1.msra.mxu0 0.0
  %10490 = vmatprep.subr.mxu0 0.0
  %10491 = vmatpush1.msra.mxu0 0.0
  %10492 = vmatprep.subr.mxu0 0.0
  %10493 = vmatpush1.msra.mxu0 0.0
  %10494 = vmatprep.subr.mxu0 0.0
  %10495 = vmatpush1.msra.mxu0 0.0
  %10496 = vmatprep.subr.mxu0 0.0
  %10497 = vmatpush1.msra.mxu0 0.0
  %10498 = vmatprep.subr.mxu0 0.0
  %10499 = vmatpush1.msra.mxu0 0.0
  %10500 = vmatprep.subr.mxu0 0.0
  %10501 = vmatpush1.msra.mxu0 0.0
  %10502 = vmatprep.subr.mxu0 0.0
  %10503 = vmatpush1.msra.mxu0 0.0
  %10504 = vmatprep.subr.mxu0 0.0
  %10505 = vmatpush1.msra.mxu0 0.0
  %10506 = vmatprep.subr.mxu0 0.0
  %10507 = vmatpush1.msra.mxu0 0.0
  %10508 = vmatprep.subr.mxu0 0.0
  %10509 = vmatpush1.msra.mxu0 0.0
  %10510 = vmatprep.subr.mxu0 0.0
  %10511 = vmatpush1.msra.mxu0 0.0
  %10512 = vmatprep.subr.mxu0 0.0
  %10513 = vmatpush1.msra.mxu0 0.0
  %10514 = vmatprep.subr.mxu0 0.0
  %10515 = vmatpush1.msra.mxu0 0.0
  %10516 = vmatprep.subr.mxu0 0.0
  %10517 = vmatpush1.msra.mxu0 0.0
  %10518 = vmatprep.subr.mxu0 0.0
  %10519 = vmatpush1.msra.mxu0 %v10483
  %10520 = vmatprep.subr.mxu0 0.0
  %10521 = vmatpush2.msra.mxu0 0.0
  %10522 = vmatprep.subr.mxu0 0.0
  %10523 = vmatpush2.msra.mxu0 0.0
  %10524 = vmatprep.subr.mxu0 0.0
  %10525 = vmatpush2.msra.mxu0 0.0
  %10526 = vmatprep.subr.mxu0 0.0
  %10527 = vmatpush2.msra.mxu0 0.0
  %10528 = vmatprep.subr.mxu0 0.0
  %10529 = vmatpush2.msra.mxu0 0.0
  %10530 = vmatprep.subr.mxu0 0.0
  %10531 = vmatpush2.msra.mxu0 0.0
  %10532 = vmatprep.subr.mxu0 0.0
  %10533 = vmatpush2.msra.mxu0 0.0
  %10534 = vmatprep.subr.mxu0 0.0
  %10535 = vmatpush2.msra.mxu0 0.0
  %10536 = vmatprep.subr.mxu0 0.0
  %10537 = vmatpush2.msra.mxu0 0.0
  %10538 = vmatprep.subr.mxu0 0.0
  %10539 = vmatpush2.msra.mxu0 0.0
  %10540 = vmatprep.subr.mxu0 0.0
  %10541 = vmatpush2.msra.mxu0 0.0
  %10542 = vmatprep.subr.mxu0 0.0
  %10543 = vmatpush2.msra.mxu0 0.0
  %10544 = vmatprep.subr.mxu0 0.0
  %10545 = vmatpush2.msra.mxu0 0.0
  %10546 = vmatprep.subr.mxu0 0.0
  %10547 = vmatpush2.msra.mxu0 0.0
  %10548 = vmatprep.subr.mxu0 0.0
  %10549 = vmatpush2.msra.mxu0 0.0
  %10550 = vmatprep.subr.mxu0 0.0
  %10551 = vmatpush2.msra.mxu0 0.0
  %10552 = vmatprep.mubr.f32.mxu0 0.0
  %10553 = vmatmul.mubr.f32.gmra.mxu0 %v10486
  %v10554 = vpop.f32.mrf.mxu0
  %v10555 = vadd.f32 0.0, %v10554
  %v10556 = vpop.f32.mrf.mxu0
  %10557 = vdwg.mxu0
  %10558 = vrot.lane.b32.xlu0 %v348, 64
  %v10559 = vpop.permute.xlu0 %10558
  %v10562 = vsel %vm355, %v5917, 0
  %10564 = vmatprep.subr.mxu0 0.0
  %10565 = vmatpush1.msra.mxu0 0.0
  %10566 = vmatprep.subr.mxu0 0.0
  %10567 = vmatpush1.msra.mxu0 0.0
  %10568 = vmatprep.subr.mxu0 0.0
  %10569 = vmatpush1.msra.mxu0 0.0
  %10570 = vmatprep.subr.mxu0 0.0
  %10571 = vmatpush1.msra.mxu0 0.0
  %10572 = vmatprep.subr.mxu0 0.0
  %10573 = vmatpush1.msra.mxu0 0.0
  %10574 = vmatprep.subr.mxu0 0.0
  %10575 = vmatpush1.msra.mxu0 0.0
  %10576 = vmatprep.subr.mxu0 0.0
  %10577 = vmatpush1.msra.mxu0 0.0
  %10578 = vmatprep.subr.mxu0 0.0
  %10579 = vmatpush1.msra.mxu0 0.0
  %10580 = vmatprep.subr.mxu0 0.0
  %10581 = vmatpush1.msra.mxu0 0.0
  %10582 = vmatprep.subr.mxu0 0.0
  %10583 = vmatpush1.msra.mxu0 0.0
  %10584 = vmatprep.subr.mxu0 0.0
  %10585 = vmatpush1.msra.mxu0 0.0
  %10586 = vmatprep.subr.mxu0 0.0
  %10587 = vmatpush1.msra.mxu0 0.0
  %10588 = vmatprep.subr.mxu0 0.0
  %10589 = vmatpush1.msra.mxu0 0.0
  %10590 = vmatprep.subr.mxu0 0.0
  %10591 = vmatpush1.msra.mxu0 0.0
  %10592 = vmatprep.subr.mxu0 0.0
  %10593 = vmatpush1.msra.mxu0 0.0
  %10594 = vmatprep.subr.mxu0 0.0
  %10595 = vmatpush1.msra.mxu0 %v10559
  %10596 = vmatprep.subr.mxu0 0.0
  %10597 = vmatpush2.msra.mxu0 0.0
  %10598 = vmatprep.subr.mxu0 0.0
  %10599 = vmatpush2.msra.mxu0 0.0
  %10600 = vmatprep.subr.mxu0 0.0
  %10601 = vmatpush2.msra.mxu0 0.0
  %10602 = vmatprep.subr.mxu0 0.0
  %10603 = vmatpush2.msra.mxu0 0.0
  %10604 = vmatprep.subr.mxu0 0.0
  %10605 = vmatpush2.msra.mxu0 0.0
  %10606 = vmatprep.subr.mxu0 0.0
  %10607 = vmatpush2.msra.mxu0 0.0
  %10608 = vmatprep.subr.mxu0 0.0
  %10609 = vmatpush2.msra.mxu0 0.0
  %10610 = vmatprep.subr.mxu0 0.0
  %10611 = vmatpush2.msra.mxu0 0.0
  %10612 = vmatprep.subr.mxu0 0.0
  %10613 = vmatpush2.msra.mxu0 0.0
  %10614 = vmatprep.subr.mxu0 0.0
  %10615 = vmatpush2.msra.mxu0 0.0
  %10616 = vmatprep.subr.mxu0 0.0
  %10617 = vmatpush2.msra.mxu0 0.0
  %10618 = vmatprep.subr.mxu0 0.0
  %10619 = vmatpush2.msra.mxu0 0.0
  %10620 = vmatprep.subr.mxu0 0.0
  %10621 = vmatpush2.msra.mxu0 0.0
  %10622 = vmatprep.subr.mxu0 0.0
  %10623 = vmatpush2.msra.mxu0 0.0
  %10624 = vmatprep.subr.mxu0 0.0
  %10625 = vmatpush2.msra.mxu0 0.0
  %10626 = vmatprep.subr.mxu0 0.0
  %10627 = vmatpush2.msra.mxu0 0.0
  %10628 = vmatprep.mubr.f32.mxu0 0.0
  %10629 = vmatmul.mubr.f32.gmra.mxu0 %v10562
  %v10630 = vpop.f32.mrf.mxu0
  %v10631 = vadd.f32 0.0, %v10630
  %v10632 = vpop.f32.mrf.mxu0
  %10633 = vdwg.mxu0
  %10634 = vrot.lane.b32.xlu0 %v350, 64
  %v10635 = vpop.permute.xlu0 %10634
  %v10638 = vsel %vm355, %v5919, 0
  %10640 = vmatprep.subr.mxu0 0.0
  %10641 = vmatpush1.msra.mxu0 0.0
  %10642 = vmatprep.subr.mxu0 0.0
  %10643 = vmatpush1.msra.mxu0 0.0
  %10644 = vmatprep.subr.mxu0 0.0
  %10645 = vmatpush1.msra.mxu0 0.0
  %10646 = vmatprep.subr.mxu0 0.0
  %10647 = vmatpush1.msra.mxu0 0.0
  %10648 = vmatprep.subr.mxu0 0.0
  %10649 = vmatpush1.msra.mxu0 0.0
  %10650 = vmatprep.subr.mxu0 0.0
  %10651 = vmatpush1.msra.mxu0 0.0
  %10652 = vmatprep.subr.mxu0 0.0
  %10653 = vmatpush1.msra.mxu0 0.0
  %10654 = vmatprep.subr.mxu0 0.0
  %10655 = vmatpush1.msra.mxu0 0.0
  %10656 = vmatprep.subr.mxu0 0.0
  %10657 = vmatpush1.msra.mxu0 0.0
  %10658 = vmatprep.subr.mxu0 0.0
  %10659 = vmatpush1.msra.mxu0 0.0
  %10660 = vmatprep.subr.mxu0 0.0
  %10661 = vmatpush1.msra.mxu0 0.0
  %10662 = vmatprep.subr.mxu0 0.0
  %10663 = vmatpush1.msra.mxu0 0.0
  %10664 = vmatprep.subr.mxu0 0.0
  %10665 = vmatpush1.msra.mxu0 0.0
  %10666 = vmatprep.subr.mxu0 0.0
  %10667 = vmatpush1.msra.mxu0 0.0
  %10668 = vmatprep.subr.mxu0 0.0
  %10669 = vmatpush1.msra.mxu0 0.0
  %10670 = vmatprep.subr.mxu0 0.0
  %10671 = vmatpush1.msra.mxu0 %v10635
  %10672 = vmatprep.subr.mxu0 0.0
  %10673 = vmatpush2.msra.mxu0 0.0
  %10674 = vmatprep.subr.mxu0 0.0
  %10675 = vmatpush2.msra.mxu0 0.0
  %10676 = vmatprep.subr.mxu0 0.0
  %10677 = vmatpush2.msra.mxu0 0.0
  %10678 = vmatprep.subr.mxu0 0.0
  %10679 = vmatpush2.msra.mxu0 0.0
  %10680 = vmatprep.subr.mxu0 0.0
  %10681 = vmatpush2.msra.mxu0 0.0
  %10682 = vmatprep.subr.mxu0 0.0
  %10683 = vmatpush2.msra.mxu0 0.0
  %10684 = vmatprep.subr.mxu0 0.0
  %10685 = vmatpush2.msra.mxu0 0.0
  %10686 = vmatprep.subr.mxu0 0.0
  %10687 = vmatpush2.msra.mxu0 0.0
  %10688 = vmatprep.subr.mxu0 0.0
  %10689 = vmatpush2.msra.mxu0 0.0
  %10690 = vmatprep.subr.mxu0 0.0
  %10691 = vmatpush2.msra.mxu0 0.0
  %10692 = vmatprep.subr.mxu0 0.0
  %10693 = vmatpush2.msra.mxu0 0.0
  %10694 = vmatprep.subr.mxu0 0.0
  %10695 = vmatpush2.msra.mxu0 0.0
  %10696 = vmatprep.subr.mxu0 0.0
  %10697 = vmatpush2.msra.mxu0 0.0
  %10698 = vmatprep.subr.mxu0 0.0
  %10699 = vmatpush2.msra.mxu0 0.0
  %10700 = vmatprep.subr.mxu0 0.0
  %10701 = vmatpush2.msra.mxu0 0.0
  %10702 = vmatprep.subr.mxu0 0.0
  %10703 = vmatpush2.msra.mxu0 0.0
  %10704 = vmatprep.mubr.f32.mxu0 0.0
  %10705 = vmatmul.mubr.f32.gmra.mxu0 %v10638
  %v10706 = vpop.f32.mrf.mxu0
  %v10707 = vadd.f32 0.0, %v10706
  %v10708 = vpop.f32.mrf.mxu0
  %10709 = vdwg.mxu0
  %10710 = vrot.lane.b32.xlu0 %v352, 64
  %v10711 = vpop.permute.xlu0 %10710
  %v10714 = vsel %vm355, %v5921, 0
  %10716 = vmatprep.subr.mxu0 0.0
  %10717 = vmatpush1.msra.mxu0 0.0
  %10718 = vmatprep.subr.mxu0 0.0
  %10719 = vmatpush1.msra.mxu0 0.0
  %10720 = vmatprep.subr.mxu0 0.0
  %10721 = vmatpush1.msra.mxu0 0.0
  %10722 = vmatprep.subr.mxu0 0.0
  %10723 = vmatpush1.msra.mxu0 0.0
  %10724 = vmatprep.subr.mxu0 0.0
  %10725 = vmatpush1.msra.mxu0 0.0
  %10726 = vmatprep.subr.mxu0 0.0
  %10727 = vmatpush1.msra.mxu0 0.0
  %10728 = vmatprep.subr.mxu0 0.0
  %10729 = vmatpush1.msra.mxu0 0.0
  %10730 = vmatprep.subr.mxu0 0.0
  %10731 = vmatpush1.msra.mxu0 0.0
  %10732 = vmatprep.subr.mxu0 0.0
  %10733 = vmatpush1.msra.mxu0 0.0
  %10734 = vmatprep.subr.mxu0 0.0
  %10735 = vmatpush1.msra.mxu0 0.0
  %10736 = vmatprep.subr.mxu0 0.0
  %10737 = vmatpush1.msra.mxu0 0.0
  %10738 = vmatprep.subr.mxu0 0.0
  %10739 = vmatpush1.msra.mxu0 0.0
  %10740 = vmatprep.subr.mxu0 0.0
  %10741 = vmatpush1.msra.mxu0 0.0
  %10742 = vmatprep.subr.mxu0 0.0
  %10743 = vmatpush1.msra.mxu0 0.0
  %10744 = vmatprep.subr.mxu0 0.0
  %10745 = vmatpush1.msra.mxu0 0.0
  %10746 = vmatprep.subr.mxu0 0.0
  %10747 = vmatpush1.msra.mxu0 %v10711
  %10748 = vmatprep.subr.mxu0 0.0
  %10749 = vmatpush2.msra.mxu0 0.0
  %10750 = vmatprep.subr.mxu0 0.0
  %10751 = vmatpush2.msra.mxu0 0.0
  %10752 = vmatprep.subr.mxu0 0.0
  %10753 = vmatpush2.msra.mxu0 0.0
  %10754 = vmatprep.subr.mxu0 0.0
  %10755 = vmatpush2.msra.mxu0 0.0
  %10756 = vmatprep.subr.mxu0 0.0
  %10757 = vmatpush2.msra.mxu0 0.0
  %10758 = vmatprep.subr.mxu0 0.0
  %10759 = vmatpush2.msra.mxu0 0.0
  %10760 = vmatprep.subr.mxu0 0.0
  %10761 = vmatpush2.msra.mxu0 0.0
  %10762 = vmatprep.subr.mxu0 0.0
  %10763 = vmatpush2.msra.mxu0 0.0
  %10764 = vmatprep.subr.mxu0 0.0
  %10765 = vmatpush2.msra.mxu0 0.0
  %10766 = vmatprep.subr.mxu0 0.0
  %10767 = vmatpush2.msra.mxu0 0.0
  %10768 = vmatprep.subr.mxu0 0.0
  %10769 = vmatpush2.msra.mxu0 0.0
  %10770 = vmatprep.subr.mxu0 0.0
  %10771 = vmatpush2.msra.mxu0 0.0
  %10772 = vmatprep.subr.mxu0 0.0
  %10773 = vmatpush2.msra.mxu0 0.0
  %10774 = vmatprep.subr.mxu0 0.0
  %10775 = vmatpush2.msra.mxu0 0.0
  %10776 = vmatprep.subr.mxu0 0.0
  %10777 = vmatpush2.msra.mxu0 0.0
  %10778 = vmatprep.subr.mxu0 0.0
  %10779 = vmatpush2.msra.mxu0 0.0
  %10780 = vmatprep.mubr.f32.mxu0 0.0
  %10781 = vmatmul.mubr.f32.gmra.mxu0 %v10714
  %v10782 = vpop.f32.mrf.mxu0
  %v10783 = vadd.f32 0.0, %v10782
  %v10784 = vpop.f32.mrf.mxu0
  %10785 = vdwg.mxu0
  %10802 = vrot.lane.b32.xlu0 %v7211, 8
  %v10803 = vpop.permute.xlu0 %10802
  %10804 = vrot.lane.b32.xlu0 %v7287, 8
  %v10805 = vpop.permute.xlu0 %10804
  %10806 = vrot.lane.b32.xlu0 %v7363, 8
  %v10807 = vpop.permute.xlu0 %10806
  %10808 = vrot.lane.b32.xlu0 %v7439, 8
  %v10809 = vpop.permute.xlu0 %10808
  %10810 = vrot.lane.b32.xlu0 %v7515, 8
  %v10811 = vpop.permute.xlu0 %10810
  %10812 = vrot.lane.b32.xlu0 %v7591, 8
  %v10813 = vpop.permute.xlu0 %10812
  %10814 = vrot.lane.b32.xlu0 %v7667, 8
  %v10815 = vpop.permute.xlu0 %10814
  %10816 = vrot.lane.b32.xlu0 %v7743, 8
  %v10817 = vpop.permute.xlu0 %10816
  %10818 = vrot.lane.b32.xlu0 %v7819, 8
  %v10819 = vpop.permute.xlu0 %10818
  %10820 = vrot.lane.b32.xlu0 %v7895, 8
  %v10821 = vpop.permute.xlu0 %10820
  %10822 = vrot.lane.b32.xlu0 %v7971, 8
  %v10823 = vpop.permute.xlu0 %10822
  %10824 = vrot.lane.b32.xlu0 %v8047, 8
  %v10825 = vpop.permute.xlu0 %10824
  %10826 = vrot.lane.b32.xlu0 %v8123, 8
  %v10827 = vpop.permute.xlu0 %10826
  %10828 = vrot.lane.b32.xlu0 %v8199, 8
  %v10829 = vpop.permute.xlu0 %10828
  %10830 = vrot.lane.b32.xlu0 %v8275, 8
  %v10831 = vpop.permute.xlu0 %10830
  %10832 = vrot.lane.b32.xlu0 %v8351, 8
  %v10833 = vpop.permute.xlu0 %10832
  %10866 = vrot.lane.b32.xlu0 %v8427, 16
  %v10867 = vpop.permute.xlu0 %10866
  %10868 = vrot.lane.b32.xlu0 %v8503, 16
  %v10869 = vpop.permute.xlu0 %10868
  %10870 = vrot.lane.b32.xlu0 %v8579, 16
  %v10871 = vpop.permute.xlu0 %10870
  %10872 = vrot.lane.b32.xlu0 %v8655, 16
  %v10873 = vpop.permute.xlu0 %10872
  %10874 = vrot.lane.b32.xlu0 %v8731, 16
  %v10875 = vpop.permute.xlu0 %10874
  %10876 = vrot.lane.b32.xlu0 %v8807, 16
  %v10877 = vpop.permute.xlu0 %10876
  %10878 = vrot.lane.b32.xlu0 %v8883, 16
  %v10879 = vpop.permute.xlu0 %10878
  %10880 = vrot.lane.b32.xlu0 %v8959, 16
  %v10881 = vpop.permute.xlu0 %10880
  %10882 = vrot.lane.b32.xlu0 %v9035, 16
  %v10883 = vpop.permute.xlu0 %10882
  %10884 = vrot.lane.b32.xlu0 %v9111, 16
  %v10885 = vpop.permute.xlu0 %10884
  %10886 = vrot.lane.b32.xlu0 %v9187, 16
  %v10887 = vpop.permute.xlu0 %10886
  %10888 = vrot.lane.b32.xlu0 %v9263, 16
  %v10889 = vpop.permute.xlu0 %10888
  %10890 = vrot.lane.b32.xlu0 %v9339, 16
  %v10891 = vpop.permute.xlu0 %10890
  %10892 = vrot.lane.b32.xlu0 %v9415, 16
  %v10893 = vpop.permute.xlu0 %10892
  %10894 = vrot.lane.b32.xlu0 %v9491, 16
  %v10895 = vpop.permute.xlu0 %10894
  %10896 = vrot.lane.b32.xlu0 %v9567, 16
  %v10897 = vpop.permute.xlu0 %10896
  %10930 = vrot.lane.b32.xlu0 %v9643, 24
  %v10931 = vpop.permute.xlu0 %10930
  %10932 = vrot.lane.b32.xlu0 %v9719, 24
  %v10933 = vpop.permute.xlu0 %10932
  %10934 = vrot.lane.b32.xlu0 %v9795, 24
  %v10935 = vpop.permute.xlu0 %10934
  %10936 = vrot.lane.b32.xlu0 %v9871, 24
  %v10937 = vpop.permute.xlu0 %10936
  %10938 = vrot.lane.b32.xlu0 %v9947, 24
  %v10939 = vpop.permute.xlu0 %10938
  %10940 = vrot.lane.b32.xlu0 %v10023, 24
  %v10941 = vpop.permute.xlu0 %10940
  %10942 = vrot.lane.b32.xlu0 %v10099, 24
  %v10943 = vpop.permute.xlu0 %10942
  %10944 = vrot.lane.b32.xlu0 %v10175, 24
  %v10945 = vpop.permute.xlu0 %10944
  %10946 = vrot.lane.b32.xlu0 %v10251, 24
  %v10947 = vpop.permute.xlu0 %10946
  %10948 = vrot.lane.b32.xlu0 %v10327, 24
  %v10949 = vpop.permute.xlu0 %10948
  %10950 = vrot.lane.b32.xlu0 %v10403, 24
  %v10951 = vpop.permute.xlu0 %10950
  %10952 = vrot.lane.b32.xlu0 %v10479, 24
  %v10953 = vpop.permute.xlu0 %10952
  %10954 = vrot.lane.b32.xlu0 %v10555, 24
  %v10955 = vpop.permute.xlu0 %10954
  %10956 = vrot.lane.b32.xlu0 %v10631, 24
  %v10957 = vpop.permute.xlu0 %10956
  %10958 = vrot.lane.b32.xlu0 %v10707, 24
  %v10959 = vpop.permute.xlu0 %10958
  %10960 = vrot.lane.b32.xlu0 %v10783, 24
  %v10961 = vpop.permute.xlu0 %10960
  %v10978 = vsel %vm355, %v5995, %v10803
  %v10979 = vsel %vm355, %v6071, %v10805
  %v10980 = vsel %vm355, %v6147, %v10807
  %v10981 = vsel %vm355, %v6223, %v10809
  %v10982 = vsel %vm355, %v6299, %v10811
  %v10983 = vsel %vm355, %v6375, %v10813
  %v10984 = vsel %vm355, %v6451, %v10815
  %v10985 = vsel %vm355, %v6527, %v10817
  %v10986 = vsel %vm355, %v6603, %v10819
  %v10987 = vsel %vm355, %v6679, %v10821
  %v10988 = vsel %vm355, %v6755, %v10823
  %v10989 = vsel %vm355, %v6831, %v10825
  %v10990 = vsel %vm355, %v6907, %v10827
  %v10991 = vsel %vm355, %v6983, %v10829
  %v10992 = vsel %vm355, %v7059, %v10831
  %v10993 = vsel %vm355, %v7135, %v10833
  %vm10994 = vcmask 130048
  %v10995 = vsel %vm10994, %v10978, %v10867
  %v10996 = vsel %vm10994, %v10979, %v10869
  %v10997 = vsel %vm10994, %v10980, %v10871
  %v10998 = vsel %vm10994, %v10981, %v10873
  %v10999 = vsel %vm10994, %v10982, %v10875
  %v11000 = vsel %vm10994, %v10983, %v10877
  %v11001 = vsel %vm10994, %v10984, %v10879
  %v11002 = vsel %vm10994, %v10985, %v10881
  %v11003 = vsel %vm10994, %v10986, %v10883
  %v11004 = vsel %vm10994, %v10987, %v10885
  %v11005 = vsel %vm10994, %v10988, %v10887
  %v11006 = vsel %vm10994, %v10989, %v10889
  %v11007 = vsel %vm10994, %v10990, %v10891
  %v11008 = vsel %vm10994, %v10991, %v10893
  %v11009 = vsel %vm10994, %v10992, %v10895
  %v11010 = vsel %vm10994, %v10993, %v10897
  %vm11011 = vcmask 195584
  %v11012 = vsel %vm11011, %v10995, %v10931
  %v11013 = vsel %vm11011, %v10996, %v10933
  %v11014 = vsel %vm11011, %v10997, %v10935
  %v11015 = vsel %vm11011, %v10998, %v10937
  %v11016 = vsel %vm11011, %v10999, %v10939
  %v11017 = vsel %vm11011, %v11000, %v10941
  %v11018 = vsel %vm11011, %v11001, %v10943
  %v11019 = vsel %vm11011, %v11002, %v10945
  %v11020 = vsel %vm11011, %v11003, %v10947
  %v11021 = vsel %vm11011, %v11004, %v10949
  %v11022 = vsel %vm11011, %v11005, %v10951
  %v11023 = vsel %vm11011, %v11006, %v10953
  %v11024 = vsel %vm11011, %v11007, %v10955
  %v11025 = vsel %vm11011, %v11008, %v10957
  %v11026 = vsel %vm11011, %v11009, %v10959
  %v11027 = vsel %vm11011, %v11010, %v10961
  %v11028 = vld [vmem:[%s3] sm:$0xff]
  %v11029 = vld [vmem:[%s3 + $0x8] sm:$0xff]
  %v11030 = vld [vmem:[%s3 + $0x10] sm:$0xff]
  %v11031 = vld [vmem:[%s3 + $0x18] sm:$0xff]
  %v11032 = vld [vmem:[%s4] sm:$0x1]
  %v11034 = vlaneseq
  %v11035 = vshrl.u32 %v11034, 7
  %v11036 = vsub.s32 0, %v11035
  %v11037 = vrot.slane %v11032, %v11036
  %v11040 = vsel %vm47, %v11012, 0
  %v11043 = vsel %vm47, %v11013, 0
  %v11046 = vsel %vm47, %v11014, 0
  %v11049 = vsel %vm47, %v11015, 0
  %v11052 = vsel %vm47, %v11016, 0
  %v11055 = vsel %vm47, %v11017, 0
  %v11058 = vsel %vm47, %v11018, 0
  %v11061 = vsel %vm47, %v11019, 0
  %v11064 = vsel %vm47, %v11020, 0
  %v11067 = vsel %vm47, %v11021, 0
  %v11070 = vsel %vm47, %v11022, 0
  %v11073 = vsel %vm47, %v11023, 0
  %v11076 = vsel %vm47, %v11024, 0
  %v11079 = vsel %vm47, %v11025, 0
  %v11082 = vsel %vm47, %v11026, 0
  %v11085 = vsel %vm47, %v11027, 0
  %11087 = vmatprep.subr.mxu0 0.0
  %11088 = vmatpush1.msra.mxu0 0.0
  %11089 = vmatprep.subr.mxu0 0.0
  %11090 = vmatpush1.msra.mxu0 0.0
  %11091 = vmatprep.subr.mxu0 0.0
  %11092 = vmatpush1.msra.mxu0 0.0
  %11093 = vmatprep.subr.mxu0 0.0
  %11094 = vmatpush1.msra.mxu0 0.0
  %11095 = vmatprep.subr.mxu0 0.0
  %11096 = vmatpush1.msra.mxu0 0.0
  %11097 = vmatprep.subr.mxu0 0.0
  %11098 = vmatpush1.msra.mxu0 0.0
  %11099 = vmatprep.subr.mxu0 0.0
  %11100 = vmatpush1.msra.mxu0 0.0
  %11101 = vmatprep.subr.mxu0 0.0
  %11102 = vmatpush1.msra.mxu0 0.0
  %11103 = vmatprep.subr.mxu0 0.0
  %11104 = vmatpush1.msra.mxu0 0.0
  %11105 = vmatprep.subr.mxu0 0.0
  %11106 = vmatpush1.msra.mxu0 0.0
  %11107 = vmatprep.subr.mxu0 0.0
  %11108 = vmatpush1.msra.mxu0 0.0
  %11109 = vmatprep.subr.mxu0 0.0
  %11110 = vmatpush1.msra.mxu0 0.0
  %11111 = vmatprep.subr.mxu0 0.0
  %11112 = vmatpush1.msra.mxu0 %v11031
  %11113 = vmatprep.subr.mxu0 0.0
  %11114 = vmatpush1.msra.mxu0 %v11030
  %11115 = vmatprep.subr.mxu0 0.0
  %11116 = vmatpush1.msra.mxu0 %v11029
  %11117 = vmatprep.subr.mxu0 0.0
  %11118 = vmatpush1.msra.mxu0 %v11028
  %11119 = vmatprep.subr.mxu0 0.0
  %11120 = vmatpush2.msra.mxu0 0.0
  %11121 = vmatprep.subr.mxu0 0.0
  %11122 = vmatpush2.msra.mxu0 0.0
  %11123 = vmatprep.subr.mxu0 0.0
  %11124 = vmatpush2.msra.mxu0 0.0
  %11125 = vmatprep.subr.mxu0 0.0
  %11126 = vmatpush2.msra.mxu0 0.0
  %11127 = vmatprep.subr.mxu0 0.0
  %11128 = vmatpush2.msra.mxu0 0.0
  %11129 = vmatprep.subr.mxu0 0.0
  %11130 = vmatpush2.msra.mxu0 0.0
  %11131 = vmatprep.subr.mxu0 0.0
  %11132 = vmatpush2.msra.mxu0 0.0
  %11133 = vmatprep.subr.mxu0 0.0
  %11134 = vmatpush2.msra.mxu0 0.0
  %11135 = vmatprep.subr.mxu0 0.0
  %11136 = vmatpush2.msra.mxu0 0.0
  %11137 = vmatprep.subr.mxu0 0.0
  %11138 = vmatpush2.msra.mxu0 0.0
  %11139 = vmatprep.subr.mxu0 0.0
  %11140 = vmatpush2.msra.mxu0 0.0
  %11141 = vmatprep.subr.mxu0 0.0
  %11142 = vmatpush2.msra.mxu0 0.0
  %11143 = vmatprep.subr.mxu0 0.0
  %11144 = vmatpush2.msra.mxu0 0.0
  %11145 = vmatprep.subr.mxu0 0.0
  %11146 = vmatpush2.msra.mxu0 0.0
  %11147 = vmatprep.subr.mxu0 0.0
  %11148 = vmatpush2.msra.mxu0 0.0
  %11149 = vmatprep.subr.mxu0 0.0
  %11150 = vmatpush2.msra.mxu0 0.0
  %11151 = vmatprep.mubr.f32.mxu0 0.0
  %11152 = vmatmul.mubr.f32.gmra.mxu0 %v11040
  %v11153 = vpop.f32.mrf.mxu0
  %v11154 = vadd.f32 %v11037, %v11153
  %v11155 = vpop.f32.mrf.mxu0
  %11156 = vmatprep.mubr.f32.mxu0 0.0
  %11157 = vmatmul.mubr.f32.gmra.mxu0 %v11043
  %v11158 = vpop.f32.mrf.mxu0
  %v11159 = vadd.f32 %v11037, %v11158
  %v11160 = vpop.f32.mrf.mxu0
  %11161 = vmatprep.mubr.f32.mxu0 0.0
  %11162 = vmatmul.mubr.f32.gmra.mxu0 %v11046
  %v11163 = vpop.f32.mrf.mxu0
  %v11164 = vadd.f32 %v11037, %v11163
  %v11165 = vpop.f32.mrf.mxu0
  %11166 = vmatprep.mubr.f32.mxu0 0.0
  %11167 = vmatmul.mubr.f32.gmra.mxu0 %v11049
  %v11168 = vpop.f32.mrf.mxu0
  %v11169 = vadd.f32 %v11037, %v11168
  %v11170 = vpop.f32.mrf.mxu0
  %11171 = vmatprep.mubr.f32.mxu0 0.0
  %11172 = vmatmul.mubr.f32.gmra.mxu0 %v11052
  %v11173 = vpop.f32.mrf.mxu0
  %v11174 = vadd.f32 %v11037, %v11173
  %v11175 = vpop.f32.mrf.mxu0
  %11176 = vmatprep.mubr.f32.mxu0 0.0
  %11177 = vmatmul.mubr.f32.gmra.mxu0 %v11055
  %v11178 = vpop.f32.mrf.mxu0
  %v11179 = vadd.f32 %v11037, %v11178
  %v11180 = vpop.f32.mrf.mxu0
  %11181 = vmatprep.mubr.f32.mxu0 0.0
  %11182 = vmatmul.mubr.f32.gmra.mxu0 %v11058
  %v11183 = vpop.f32.mrf.mxu0
  %v11184 = vadd.f32 %v11037, %v11183
  %v11185 = vpop.f32.mrf.mxu0
  %11186 = vmatprep.mubr.f32.mxu0 0.0
  %11187 = vmatmul.mubr.f32.gmra.mxu0 %v11061
  %v11188 = vpop.f32.mrf.mxu0
  %v11189 = vadd.f32 %v11037, %v11188
  %v11190 = vpop.f32.mrf.mxu0
  %11191 = vmatprep.mubr.f32.mxu0 0.0
  %11192 = vmatmul.mubr.f32.gmra.mxu0 %v11064
  %v11193 = vpop.f32.mrf.mxu0
  %v11194 = vadd.f32 %v11037, %v11193
  %v11195 = vpop.f32.mrf.mxu0
  %11196 = vmatprep.mubr.f32.mxu0 0.0
  %11197 = vmatmul.mubr.f32.gmra.mxu0 %v11067
  %v11198 = vpop.f32.mrf.mxu0
  %v11199 = vadd.f32 %v11037, %v11198
  %v11200 = vpop.f32.mrf.mxu0
  %11201 = vmatprep.mubr.f32.mxu0 0.0
  %11202 = vmatmul.mubr.f32.gmra.mxu0 %v11070
  %v11203 = vpop.f32.mrf.mxu0
  %v11204 = vadd.f32 %v11037, %v11203
  %v11205 = vpop.f32.mrf.mxu0
  %11206 = vmatprep.mubr.f32.mxu0 0.0
  %11207 = vmatmul.mubr.f32.gmra.mxu0 %v11073
  %v11208 = vpop.f32.mrf.mxu0
  %v11209 = vadd.f32 %v11037, %v11208
  %v11210 = vpop.f32.mrf.mxu0
  %11211 = vmatprep.mubr.f32.mxu0 0.0
  %11212 = vmatmul.mubr.f32.gmra.mxu0 %v11076
  %v11213 = vpop.f32.mrf.mxu0
  %v11214 = vadd.f32 %v11037, %v11213
  %v11215 = vpop.f32.mrf.mxu0
  %11216 = vmatprep.mubr.f32.mxu0 0.0
  %11217 = vmatmul.mubr.f32.gmra.mxu0 %v11079
  %v11218 = vpop.f32.mrf.mxu0
  %v11219 = vadd.f32 %v11037, %v11218
  %v11220 = vpop.f32.mrf.mxu0
  %11221 = vmatprep.mubr.f32.mxu0 0.0
  %11222 = vmatmul.mubr.f32.gmra.mxu0 %v11082
  %v11223 = vpop.f32.mrf.mxu0
  %v11224 = vadd.f32 %v11037, %v11223
  %v11225 = vpop.f32.mrf.mxu0
  %11226 = vmatprep.mubr.f32.mxu0 0.0
  %11227 = vmatmul.mubr.f32.gmra.mxu0 %v11085
  %v11228 = vpop.f32.mrf.mxu0
  %v11229 = vadd.f32 %v11037, %v11228
  %v11230 = vpop.f32.mrf.mxu0
  %11231 = vdwg.mxu0
  %11232 = vst.msk [vmem:[%s5] sm:$0xff] %vm47, %v11154
  %11233 = vst.msk [vmem:[%s5 + $0x8] sm:$0xff] %vm47, %v11159
  %11234 = vst.msk [vmem:[%s5 + $0x10] sm:$0xff] %vm47, %v11164
  %11235 = vst.msk [vmem:[%s5 + $0x18] sm:$0xff] %vm47, %v11169
  %11236 = vst.msk [vmem:[%s5 + $0x20] sm:$0xff] %vm47, %v11174
  %11237 = vst.msk [vmem:[%s5 + $0x28] sm:$0xff] %vm47, %v11179
  %11238 = vst.msk [vmem:[%s5 + $0x30] sm:$0xff] %vm47, %v11184
  %11239 = vst.msk [vmem:[%s5 + $0x38] sm:$0xff] %vm47, %v11189
  %11240 = vst.msk [vmem:[%s5 + $0x40] sm:$0xff] %vm47, %v11194
  %11241 = vst.msk [vmem:[%s5 + $0x48] sm:$0xff] %vm47, %v11199
  %11242 = vst.msk [vmem:[%s5 + $0x50] sm:$0xff] %vm47, %v11204
  %11243 = vst.msk [vmem:[%s5 + $0x58] sm:$0xff] %vm47, %v11209
  %11244 = vst.msk [vmem:[%s5 + $0x60] sm:$0xff] %vm47, %v11214
  %11245 = vst.msk [vmem:[%s5 + $0x68] sm:$0xff] %vm47, %v11219
  %11246 = vst.msk [vmem:[%s5 + $0x70] sm:$0xff] %vm47, %v11224
  %11247 = vst.msk [vmem:[%s5 + $0x78] sm:$0xff] %vm47, %v11229
  // Predicated region
  $region22: #{tpu_custom_call.1} parent=0 // pred_check
    _
  $region23: #{tpu_custom_call.1} parent=0 // pred_check_branch
    %11249 = sbr.rel (0) target = $region25
  $region24: #{tpu_custom_call.1} parent=0 // pred_region
    _
  $region25: #{tpu_custom_call.1} parent=0 // pred_fallthru
    _
  // Predicated region
  $region26: #{tpu_custom_call.1} parent=0 // pred_check
    _
  $region27: #{tpu_custom_call.1} parent=0 // pred_check_branch
    %11251 = sbr.rel (0) target = $region29
  $region28: #{tpu_custom_call.1} parent=0 // pred_region
    _
  $region29: #{tpu_custom_call.1} parent=0 // pred_fallthru
    _

</llo_original>
